<compile_context>
chip_gen: v7x
topology: tpu7x:2x2x1
jax: 0.10.0
libtpu: 0.0.40
codegen_flags: <defaults>
</compile_context>

<pallas_src>
import functools

import numpy as np

import jax
import jax.numpy as jnp
from jax import lax
from jax.experimental import pallas as pl
from jax.experimental.pallas import tpu as pltpu

EPS = 1e-5


# ---------------------------------------------------------------------------
# Fused conv stage kernel:  conv3x3(pad=1) + bias + ReLU + maxpool2x2 + BN
#   x_ref:  [B*H + 2, W*Cin]   f32, rows 0 and B*H+1 are zero padding (H dir)
#   w_ref:  [3, W*Cin, W*Cout] bf16 banded conv weights (one band per ky)
#   brow:   [1, W*Cout]        f32, bias tiled over w
#   gamma/beta: [1, Cout]      f32
#   o_ref:  [B*Ho(+2), Wo*Cout] f32 (padded rows written here for next stage)
# ---------------------------------------------------------------------------
def _conv_stage_kernel(x_ref, w_ref, brow_ref, gamma_ref, beta_ref, o_ref, *,
                       B, H, W, Cout, pad_out):
    f32 = jnp.float32
    BH = B * H
    Ho, Wo = H // 2, W // 2
    BHo = B * Ho
    WC = W * Cout
    WoC = Wo * Cout

    # ---- conv 3x3 as 3 banded matmuls over row-shifted views of the input ----
    y = lax.broadcasted_iota(jnp.int32, (BH, 1), 0) & (H - 1)  # y = row % H
    acc = jnp.zeros((BH, WC), f32)
    for dy in range(3):
        s = x_ref[dy:dy + BH, :].astype(jnp.bfloat16)          # row-shifted slab
        t = jnp.dot(s, w_ref[dy], preferred_element_type=f32)  # [BH, W*Cout]
        # mask rows that would read across an image boundary (per-image H pad)
        if dy == 0:
            t = t * jnp.where(y != 0, 1.0, 0.0)
        elif dy == 2:
            t = t * jnp.where(y != H - 1, 1.0, 0.0)
        acc = acc + t
    acc = jnp.maximum(acc + brow_ref[...], 0.0)                # bias + ReLU

    # ---- 2x2 max pool via 0/1 selection matmuls (MXU does the gather) --------
    rj = lax.broadcasted_iota(jnp.int32, (BHo, BH), 0)
    ri = lax.broadcasted_iota(jnp.int32, (BHo, BH), 1)
    row_even = jnp.where(ri == 2 * rj, 1.0, 0.0)
    row_odd = jnp.where(ri == 2 * rj + 1, 1.0, 0.0)
    vmax = jnp.maximum(jnp.dot(row_even, acc, preferred_element_type=f32),
                       jnp.dot(row_odd, acc, preferred_element_type=f32))

    ci = lax.broadcasted_iota(jnp.int32, (WC, WoC), 0)
    cj = lax.broadcasted_iota(jnp.int32, (WC, WoC), 1)
    base = 2 * cj - (cj & (Cout - 1))           # lane of (2*w', c) for col j'
    col_even = jnp.where(ci == base, 1.0, 0.0)
    col_odd = jnp.where(ci == base + Cout, 1.0, 0.0)
    pool = jnp.maximum(jnp.dot(vmax, col_even, preferred_element_type=f32),
                       jnp.dot(vmax, col_odd, preferred_element_type=f32))
    # pool: [B*Ho, Wo*Cout]

    # ---- BatchNorm (training mode, biased batch stats, one pass) -------------
    gi = lax.broadcasted_iota(jnp.int32, (WoC, Cout), 0) & (Cout - 1)
    go = lax.broadcasted_iota(jnp.int32, (WoC, Cout), 1)
    gather_c = jnp.where(gi == go, 1.0, 0.0)    # [Wo*Cout, Cout] channel group sum
    count = float(BHo * Wo)                     # = B*Ho*Wo elements per channel
    sum_c = jnp.dot(jnp.sum(pool, axis=0, keepdims=True), gather_c,
                    preferred_element_type=f32)
    sumsq_c = jnp.dot(jnp.sum(pool * pool, axis=0, keepdims=True), gather_c,
                      preferred_element_type=f32)
    mean_c = sum_c / count
    var_c = sumsq_c / count - mean_c * mean_c
    inv_c = lax.rsqrt(var_c + EPS)
    scale_c = gamma_ref[...] * inv_c
    shift_c = beta_ref[...] - mean_c * scale_c

    bi = lax.broadcasted_iota(jnp.int32, (Cout, WoC), 0)
    bj = lax.broadcasted_iota(jnp.int32, (Cout, WoC), 1) & (Cout - 1)
    scatter_c = jnp.where(bi == bj, 1.0, 0.0)   # [Cout, Wo*Cout] broadcast back
    scale_l = jnp.dot(scale_c, scatter_c, preferred_element_type=f32)
    shift_l = jnp.dot(shift_c, scatter_c, preferred_element_type=f32)
    out = pool * scale_l + shift_l              # [B*Ho, Wo*Cout]

    if pad_out:
        # Write the next conv's zero-padded input directly (no glue between stages).
        o_ref[0:1, :] = jnp.zeros((1, WoC), f32)
        o_ref[1:BHo + 1, :] = out
        o_ref[BHo + 1:BHo + 2, :] = jnp.zeros((1, WoC), f32)
    else:
        o_ref[...] = out


def conv_stage(x, stage_params, *, B, H, W, Cin, Cout, pad_out):
    # NOTE: single grid step (whole batch resident) because BN needs global batch
    # stats.  For large batches, add an M-axis grid with cross-tile BN accumulators.
    wb, brow, gamma, beta = stage_params
    BH, Ho, Wo = B * H, H // 2, W // 2
    BHo = B * Ho
    out_rows = BHo + 2 if pad_out else BHo
    out_cols = Wo * Cout
    kernel = functools.partial(_conv_stage_kernel, B=B, H=H, W=W, Cout=Cout,
                               pad_out=pad_out)
    return pl.pallas_call(
        kernel,
        out_shape=jax.ShapeDtypeStruct((out_rows, out_cols), jnp.float32),
        grid=(1,),
        in_specs=[
            pl.BlockSpec((BH + 2, W * Cin), lambda i: (0, 0)),
            pl.BlockSpec((3, W * Cin, W * Cout), lambda i: (0, 0, 0)),
            pl.BlockSpec((1, W * Cout), lambda i: (0, 0)),
            pl.BlockSpec((1, Cout), lambda i: (0, 0)),
            pl.BlockSpec((1, Cout), lambda i: (0, 0)),
        ],
        out_specs=pl.BlockSpec((out_rows, out_cols), lambda i: (0, 0)),
        compiler_params=pltpu.CompilerParams(
            dimension_semantics=("arbitrary",),
            vmem_limit_bytes=32 * 1024 * 1024),
    )(x, wb, brow, gamma, beta)


# ---------------------------------------------------------------------------
# Fused FC head kernel:  fc1+ReLU + fc2+ReLU + fc3 + log_softmax
# All N dims zero-padded to 128 lanes; padded logit lanes masked out of softmax.
# ---------------------------------------------------------------------------
def _fc_head_kernel(x_ref, w1_ref, b1_ref, w2_ref, b2_ref, w3_ref, b3_ref,
                    o_ref, *, n_classes):
    f32 = jnp.float32
    h = jnp.dot(x_ref[...].astype(jnp.bfloat16), w1_ref[...],
                preferred_element_type=f32)
    h = jnp.maximum(h + b1_ref[...], 0.0)
    h = jnp.dot(h.astype(jnp.bfloat16), w2_ref[...], preferred_element_type=f32)
    h = jnp.maximum(h + b2_ref[...], 0.0)
    logits = jnp.dot(h.astype(jnp.bfloat16), w3_ref[...],
                     preferred_element_type=f32) + b3_ref[...]
    lane = lax.broadcasted_iota(jnp.int32, logits.shape, 1)
    logits = jnp.where(lane < n_classes, logits, -1e30)   # mask padded classes
    m = jnp.max(logits, axis=1, keepdims=True)
    s = logits - m
    lse = jnp.log(jnp.sum(jnp.exp(s), axis=1, keepdims=True))
    o_ref[...] = s - lse


def fc_head(x, fc_params):
    B = x.shape[0]
    kernel = functools.partial(_fc_head_kernel, n_classes=10)
    return pl.pallas_call(
        kernel,
        out_shape=jax.ShapeDtypeStruct((B, 128), jnp.float32),
        grid=(1,),
        in_specs=[
            pl.BlockSpec((B, 512), lambda i: (0, 0)),
            pl.BlockSpec((512, 128), lambda i: (0, 0)),
            pl.BlockSpec((1, 128), lambda i: (0, 0)),
            pl.BlockSpec((128, 128), lambda i: (0, 0)),
            pl.BlockSpec((1, 128), lambda i: (0, 0)),
            pl.BlockSpec((128, 128), lambda i: (0, 0)),
            pl.BlockSpec((1, 128), lambda i: (0, 0)),
        ],
        out_specs=pl.BlockSpec((B, 128), lambda i: (0, 0)),
        compiler_params=pltpu.CompilerParams(
            dimension_semantics=("arbitrary",),
            vmem_limit_bytes=32 * 1024 * 1024),
    )(x, *fc_params)


# ---------------------------------------------------------------------------
# Parameters (PyTorch-style fan-in uniform init, PyTorch-native layouts)
# ---------------------------------------------------------------------------
def init_params(key):
    ks = jax.random.split(key, 6)

    def conv_p(k, cout, cin):
        bound = 1.0 / jnp.sqrt(cin * 9.0)
        kw, kb = jax.random.split(k)
        return (jax.random.uniform(kw, (cout, cin, 3, 3), jnp.float32, -bound, bound),
                jax.random.uniform(kb, (cout,), jnp.float32, -bound, bound))

    def lin_p(k, din, dout):
        bound = 1.0 / jnp.sqrt(float(din))
        kw, kb = jax.random.split(k)
        return (jax.random.uniform(kw, (din, dout), jnp.float32, -bound, bound),
                jax.random.uniform(kb, (dout,), jnp.float32, -bound, bound))

    return {
        "conv1": conv_p(ks[0], 16, 3),
        "conv2": conv_p(ks[1], 32, 16),
        "conv3": conv_p(ks[2], 32, 32),
        "bn1": (jnp.ones((16,), jnp.float32), jnp.zeros((16,), jnp.float32)),
        "bn2": (jnp.ones((32,), jnp.float32), jnp.zeros((32,), jnp.float32)),
        "bn3": (jnp.ones((32,), jnp.float32), jnp.zeros((32,), jnp.float32)),
        "fc1": lin_p(ks[3], 32 * 4 * 4, 120),
        "fc2": lin_p(ks[4], 120, 84),
        "fc3": lin_p(ks[5], 84, 10),
    }


# ---------------------------------------------------------------------------
# One-time (outside jit) conversion of PyTorch-layout params to kernel layouts
# ---------------------------------------------------------------------------
def _banded_conv_weight(w_oihw, W):
    """[Cout,Cin,3,3] -> [3, W*Cin, W*Cout] banded matrices; entry
    [dy, x'*Cin+c, x*Cout+o] = w[o,c,dy,x'-x+1] (W-direction zero pad built in)."""
    w = np.asarray(w_oihw, dtype=np.float32)
    cout, cin, _, _ = w.shape
    out = np.zeros((3, W * cin, W * cout), np.float32)
    for dy in range(3):
        for dx in range(3):
            blk = w[:, :, dy, dx].T                      # [Cin, Cout]
            for xo in range(W):
                xi = xo + dx - 1
                if 0 <= xi < W:
                    out[dy, xi * cin:(xi + 1) * cin, xo * cout:(xo + 1) * cout] = blk
    return jnp.asarray(out, dtype=jnp.bfloat16)


def prepare_params(params):
    def stage_prep(conv, bn, W):
        w, b = conv
        gamma, beta = bn
        cout = w.shape[0]
        wb = _banded_conv_weight(w, W)
        brow = jnp.asarray(np.tile(np.asarray(b, np.float32), W).reshape(1, W * cout))
        return (wb, brow,
                gamma.reshape(1, cout).astype(jnp.float32),
                beta.reshape(1, cout).astype(jnp.float32))

    # fc1 rows: permute from torch (c,h,w) flatten order to kernel (h,w,c) order;
    # pad all fc output dims to 128 lanes (zeros -> padded units stay inert).
    w1, b1 = params["fc1"]; w2, b2 = params["fc2"]; w3, b3 = params["fc3"]
    j = np.arange(512)
    hp, wp, o = j // 128, (j // 32) % 4, j % 32
    perm = o * 16 + hp * 4 + wp
    w1p = np.zeros((512, 128), np.float32); w1p[:, :120] = np.asarray(w1)[perm, :]
    b1p = np.zeros((1, 128), np.float32);   b1p[0, :120] = np.asarray(b1)
    w2p = np.zeros((128, 128), np.float32); w2p[:120, :84] = np.asarray(w2)
    b2p = np.zeros((1, 128), np.float32);   b2p[0, :84] = np.asarray(b2)
    w3p = np.zeros((128, 128), np.float32); w3p[:84, :10] = np.asarray(w3)
    b3p = np.zeros((1, 128), np.float32);   b3p[0, :10] = np.asarray(b3)

    return {
        "s1": stage_prep(params["conv1"], params["bn1"], 32),
        "s2": stage_prep(params["conv2"], params["bn2"], 16),
        "s3": stage_prep(params["conv3"], params["bn3"], 8),
        "fc": (jnp.asarray(w1p, jnp.bfloat16), jnp.asarray(b1p),
               jnp.asarray(w2p, jnp.bfloat16), jnp.asarray(b2p),
               jnp.asarray(w3p, jnp.bfloat16), jnp.asarray(b3p)),
    }


# ---------------------------------------------------------------------------
# Forward pass (4 pallas_calls; only trivial layout glue in between)
# ---------------------------------------------------------------------------
def lenet_forward(prep, x_nchw):
    B = x_nchw.shape[0]
    # NCHW -> rows=(b,h), lanes=(w,c); add the two global H-padding rows once.
    x = jnp.transpose(x_nchw.astype(jnp.float32), (0, 2, 3, 1)).reshape(B * 32, 32 * 3)
    x = jnp.pad(x, ((1, 1), (0, 0)))

    x = conv_stage(x, prep["s1"], B=B, H=32, W=32, Cin=3, Cout=16, pad_out=True)
    x = conv_stage(x, prep["s2"], B=B, H=16, W=16, Cin=16, Cout=32, pad_out=True)
    x = conv_stage(x, prep["s3"], B=B, H=8, W=8, Cin=32, Cout=32, pad_out=False)

    x = x.reshape(B, 32 * 4 * 4)          # (h,w,c) order; fc1 rows pre-permuted
    logits = fc_head(x, prep["fc"])       # [B, 128]; lanes >= 10 are padding
    return logits[:, :10]


# ---------------------------------------------------------------------------
# Pure-JAX reference (mirrors PyTorch semantics; mimics the bf16 MXU feeds)
# ---------------------------------------------------------------------------
def lenet_reference(params, x_nchw):
    bf16, f32 = jnp.bfloat16, jnp.float32

    def conv(x, w, b):
        y = lax.conv_general_dilated(
            x.astype(bf16), w.astype(bf16), window_strides=(1, 1),
            padding=((1, 1), (1, 1)),
            dimension_numbers=("NCHW", "OIHW", "NCHW"),
            preferred_element_type=f32)
        return y + b.reshape(1, -1, 1, 1)

    def pool(x):
        B, C, H, W = x.shape
        return jnp.max(x.reshape(B, C, H // 2, 2, W // 2, 2), axis=(3, 5))

    def bn(x, g, be):
        mean = jnp.mean(x, axis=(0, 2, 3), keepdims=True)
        var = jnp.mean((x - mean) ** 2, axis=(0, 2, 3), keepdims=True)
        return (x - mean) * lax.rsqrt(var + EPS) * g.reshape(1, -1, 1, 1) \
            + be.reshape(1, -1, 1, 1)

    def lin(x, w, b):
        return jnp.dot(x.astype(bf16), w.astype(bf16),
                       preferred_element_type=f32) + b

    x = x_nchw.astype(f32)
    w, b = params["conv1"]; x = bn(pool(jax.nn.relu(conv(x, w, b))), *params["bn1"])
    w, b = params["conv2"]; x = bn(pool(jax.nn.relu(conv(x, w, b))), *params["bn2"])
    w, b = params["conv3"]; x = bn(pool(jax.nn.relu(conv(x, w, b))), *params["bn3"])
    x = x.reshape(x.shape[0], -1)
    w, b = params["fc1"]; x = jax.nn.relu(lin(x, w, b))
    w, b = params["fc2"]; x = jax.nn.relu(lin(x, w, b))
    w, b = params["fc3"]; x = lin(x, w, b)
    return jax.nn.log_softmax(x, axis=1)


if __name__ == "__main__":
    key = jax.random.PRNGKey(0)
    kx, kp = jax.random.split(key)
    # Spatial size must be 32x32x3 so that three 2x2 pools give 4x4x32 = 512 features.
    x = jax.random.normal(kx, (2, 3, 32, 32), dtype=jnp.float32)
    params = init_params(kp)
    prep = prepare_params(params)

    out = jax.block_until_ready(jax.jit(lenet_forward)(prep, x))

    assert out.shape == (2, 10)
    assert bool(jnp.all(jnp.isfinite(out)))
    assert bool(jnp.allclose(jnp.sum(jnp.exp(out), axis=1), 1.0, atol=1e-4))

    # Cross-check against a pure-JAX reference of the same forward pass.
    ref = jax.block_until_ready(jax.jit(lenet_reference)(params, x))
    max_err = float(jnp.max(jnp.abs(out - ref)))
    assert max_err < 2e-2, f"mismatch vs reference: {max_err}"

    print("KERNEL_OK")
</pallas_src>

<mosaic_0001>
module attributes {stable_mosaic.version = 11 : i64} {
  func.func @_conv_stage_kernel(%arg0: i32, %arg1: memref<34x256xf32, #tpu.memory_space<vmem>>, %arg2: memref<3x256x512xbf16, #tpu.memory_space<vmem>>, %arg3: memref<1x512xf32, #tpu.memory_space<vmem>>, %arg4: memref<1x32xf32, #tpu.memory_space<vmem>>, %arg5: memref<1x32xf32, #tpu.memory_space<vmem>>, %arg6: memref<18x256xf32, #tpu.memory_space<vmem>>) attributes {dimension_semantics = [#tpu.dimension_semantics<arbitrary>], iteration_bounds = array<i64: 1>, scalar_prefetch = 0 : i64, scratch_operands = 0 : i64, tpu.core_type = #tpu.core_type<tc>, window_params = [{pipeline_mode = #tpu.pipeline_mode<synchronous>, transform_indices = @transform_0, window_bounds = array<i64: 34, 256>}, {pipeline_mode = #tpu.pipeline_mode<synchronous>, transform_indices = @transform_1, window_bounds = array<i64: 3, 256, 512>}, {pipeline_mode = #tpu.pipeline_mode<synchronous>, transform_indices = @transform_2, window_bounds = array<i64: 1, 512>}, {pipeline_mode = #tpu.pipeline_mode<synchronous>, transform_indices = @transform_3, window_bounds = array<i64: 1, 32>}, {pipeline_mode = #tpu.pipeline_mode<synchronous>, transform_indices = @transform_4, window_bounds = array<i64: 1, 32>}, {pipeline_mode = #tpu.pipeline_mode<synchronous>, transform_indices = @transform_5, window_bounds = array<i64: 18, 256>}]} {
    %0 = tpu.iota {dimensions = array<i32: 0>} : vector<32x1xi32>
    %c15_i32 = arith.constant 15 : i32
    %1 = vector.broadcast %c15_i32 : i32 to vector<32x1xi32>
    %2 = arith.andi %0, %1 : vector<32x1xi32>
    %cst = arith.constant 0.000000e+00 : f32
    %3 = vector.broadcast %cst : f32 to vector<32x512xf32>
    %c0 = arith.constant 0 : index
    %c0_0 = arith.constant 0 : index
    %4 = vector.load %arg1[%c0, %c0_0] : memref<34x256xf32, #tpu.memory_space<vmem>>, vector<32x256xf32>
    %5 = arith.truncf %4 : vector<32x256xf32> to vector<32x256xbf16>
    %c0_1 = arith.constant 0 : index
    %c0_2 = arith.constant 0 : index
    %c0_3 = arith.constant 0 : index
    %6 = vector.load %arg2[%c0_1, %c0_2, %c0_3] : memref<3x256x512xbf16, #tpu.memory_space<vmem>>, vector<1x256x512xbf16>
    %7 = vector.shape_cast %6 : vector<1x256x512xbf16> to vector<256x512xbf16>
    %cst_4 = arith.constant dense<0.000000e+00> : vector<32x512xf32>
    %8 = tpu.matmul %5, %7, %cst_4 {dimension_numbers = #tpu.dot_dimension_numbers<[1], [0], [0], [1], [0, 0, 1, 1], [], []>} : vector<32x256xbf16>, vector<256x512xbf16>, vector<32x512xf32> -> vector<32x512xf32>
    %c0_i32 = arith.constant 0 : i32
    %9 = vector.broadcast %c0_i32 : i32 to vector<32x1xi32>
    %10 = arith.cmpi ne, %2, %9 : vector<32x1xi32>
    %cst_5 = arith.constant 1.000000e+00 : f32
    %cst_6 = arith.constant 0.000000e+00 : f32
    %11 = vector.broadcast %cst_5 : f32 to vector<32x1xf32>
    %12 = vector.broadcast %cst_6 : f32 to vector<32x1xf32>
    %13 = arith.select %10, %11, %12 : vector<32x1xi1>, vector<32x1xf32>
    %14 = vector.broadcast %13 : vector<32x1xf32> to vector<32x512xf32>
    %15 = arith.mulf %8, %14 : vector<32x512xf32>
    %16 = arith.addf %3, %15 : vector<32x512xf32>
    %c1 = arith.constant 1 : index
    %c0_7 = arith.constant 0 : index
    %17 = vector.load %arg1[%c1, %c0_7] : memref<34x256xf32, #tpu.memory_space<vmem>>, vector<32x256xf32>
    %18 = arith.truncf %17 : vector<32x256xf32> to vector<32x256xbf16>
    %c1_8 = arith.constant 1 : index
    %c0_9 = arith.constant 0 : index
    %c0_10 = arith.constant 0 : index
    %19 = vector.load %arg2[%c1_8, %c0_9, %c0_10] : memref<3x256x512xbf16, #tpu.memory_space<vmem>>, vector<1x256x512xbf16>
    %20 = vector.shape_cast %19 : vector<1x256x512xbf16> to vector<256x512xbf16>
    %cst_11 = arith.constant dense<0.000000e+00> : vector<32x512xf32>
    %21 = tpu.matmul %18, %20, %cst_11 {dimension_numbers = #tpu.dot_dimension_numbers<[1], [0], [0], [1], [0, 0, 1, 1], [], []>} : vector<32x256xbf16>, vector<256x512xbf16>, vector<32x512xf32> -> vector<32x512xf32>
    %22 = arith.addf %16, %21 : vector<32x512xf32>
    %c2 = arith.constant 2 : index
    %c0_12 = arith.constant 0 : index
    %23 = vector.load %arg1[%c2, %c0_12] : memref<34x256xf32, #tpu.memory_space<vmem>>, vector<32x256xf32>
    %24 = arith.truncf %23 : vector<32x256xf32> to vector<32x256xbf16>
    %c2_13 = arith.constant 2 : index
    %c0_14 = arith.constant 0 : index
    %c0_15 = arith.constant 0 : index
    %25 = vector.load %arg2[%c2_13, %c0_14, %c0_15] : memref<3x256x512xbf16, #tpu.memory_space<vmem>>, vector<1x256x512xbf16>
    %26 = vector.shape_cast %25 : vector<1x256x512xbf16> to vector<256x512xbf16>
    %cst_16 = arith.constant dense<0.000000e+00> : vector<32x512xf32>
    %27 = tpu.matmul %24, %26, %cst_16 {dimension_numbers = #tpu.dot_dimension_numbers<[1], [0], [0], [1], [0, 0, 1, 1], [], []>} : vector<32x256xbf16>, vector<256x512xbf16>, vector<32x512xf32> -> vector<32x512xf32>
    %c15_i32_17 = arith.constant 15 : i32
    %28 = vector.broadcast %c15_i32_17 : i32 to vector<32x1xi32>
    %29 = arith.cmpi ne, %2, %28 : vector<32x1xi32>
    %cst_18 = arith.constant 1.000000e+00 : f32
    %cst_19 = arith.constant 0.000000e+00 : f32
    %30 = vector.broadcast %cst_18 : f32 to vector<32x1xf32>
    %31 = vector.broadcast %cst_19 : f32 to vector<32x1xf32>
    %32 = arith.select %29, %30, %31 : vector<32x1xi1>, vector<32x1xf32>
    %33 = vector.broadcast %32 : vector<32x1xf32> to vector<32x512xf32>
    %34 = arith.mulf %27, %33 : vector<32x512xf32>
    %35 = arith.addf %22, %34 : vector<32x512xf32>
    %c0_20 = arith.constant 0 : index
    %c0_21 = arith.constant 0 : index
    %36 = vector.load %arg3[%c0_20, %c0_21] : memref<1x512xf32, #tpu.memory_space<vmem>>, vector<1x512xf32>
    %37 = vector.broadcast %36 : vector<1x512xf32> to vector<32x512xf32>
    %38 = arith.addf %35, %37 : vector<32x512xf32>
    %cst_22 = arith.constant 0.000000e+00 : f32
    %39 = vector.broadcast %cst_22 : f32 to vector<32x512xf32>
    %40 = arith.maximumf %38, %39 : vector<32x512xf32>
    %41 = tpu.iota {dimensions = array<i32: 0>} : vector<16x32xi32>
    %42 = tpu.iota {dimensions = array<i32: 1>} : vector<16x32xi32>
    %c2_i32 = arith.constant 2 : i32
    %43 = vector.broadcast %c2_i32 : i32 to vector<16x32xi32>
    %44 = arith.muli %43, %41 : vector<16x32xi32>
    %45 = arith.cmpi eq, %42, %44 : vector<16x32xi32>
    %cst_23 = arith.constant 1.000000e+00 : f32
    %cst_24 = arith.constant 0.000000e+00 : f32
    %46 = vector.broadcast %cst_23 : f32 to vector<16x32xf32>
    %47 = vector.broadcast %cst_24 : f32 to vector<16x32xf32>
    %48 = arith.select %45, %46, %47 : vector<16x32xi1>, vector<16x32xf32>
    %c2_i32_25 = arith.constant 2 : i32
    %49 = vector.broadcast %c2_i32_25 : i32 to vector<16x32xi32>
    %50 = arith.muli %49, %41 : vector<16x32xi32>
    %c1_i32 = arith.constant 1 : i32
    %51 = vector.broadcast %c1_i32 : i32 to vector<16x32xi32>
    %52 = arith.addi %50, %51 : vector<16x32xi32>
    %53 = arith.cmpi eq, %42, %52 : vector<16x32xi32>
    %cst_26 = arith.constant 1.000000e+00 : f32
    %cst_27 = arith.constant 0.000000e+00 : f32
    %54 = vector.broadcast %cst_26 : f32 to vector<16x32xf32>
    %55 = vector.broadcast %cst_27 : f32 to vector<16x32xf32>
    %56 = arith.select %53, %54, %55 : vector<16x32xi1>, vector<16x32xf32>
    %cst_28 = arith.constant dense<0.000000e+00> : vector<16x512xf32>
    %57 = tpu.matmul %48, %40, %cst_28 {dimension_numbers = #tpu.dot_dimension_numbers<[1], [0], [0], [1], [0, 0, 1, 1], [], []>} : vector<16x32xf32>, vector<32x512xf32>, vector<16x512xf32> -> vector<16x512xf32>
    %cst_29 = arith.constant dense<0.000000e+00> : vector<16x512xf32>
    %58 = tpu.matmul %56, %40, %cst_29 {dimension_numbers = #tpu.dot_dimension_numbers<[1], [0], [0], [1], [0, 0, 1, 1], [], []>} : vector<16x32xf32>, vector<32x512xf32>, vector<16x512xf32> -> vector<16x512xf32>
    %59 = arith.maximumf %57, %58 : vector<16x512xf32>
    %60 = tpu.iota {dimensions = array<i32: 0>} : vector<512x256xi32>
    %61 = tpu.iota {dimensions = array<i32: 1>} : vector<512x256xi32>
    %c2_i32_30 = arith.constant 2 : i32
    %62 = vector.broadcast %c2_i32_30 : i32 to vector<512x256xi32>
    %63 = arith.muli %62, %61 : vector<512x256xi32>
    %c31_i32 = arith.constant 31 : i32
    %64 = vector.broadcast %c31_i32 : i32 to vector<512x256xi32>
    %65 = arith.andi %61, %64 : vector<512x256xi32>
    %66 = arith.subi %63, %65 : vector<512x256xi32>
    %67 = arith.cmpi eq, %60, %66 : vector<512x256xi32>
    %cst_31 = arith.constant 1.000000e+00 : f32
    %cst_32 = arith.constant 0.000000e+00 : f32
    %68 = vector.broadcast %cst_31 : f32 to vector<512x256xf32>
    %69 = vector.broadcast %cst_32 : f32 to vector<512x256xf32>
    %70 = arith.select %67, %68, %69 : vector<512x256xi1>, vector<512x256xf32>
    %c32_i32 = arith.constant 32 : i32
    %71 = vector.broadcast %c32_i32 : i32 to vector<512x256xi32>
    %72 = arith.addi %66, %71 : vector<512x256xi32>
    %73 = arith.cmpi eq, %60, %72 : vector<512x256xi32>
    %cst_33 = arith.constant 1.000000e+00 : f32
    %cst_34 = arith.constant 0.000000e+00 : f32
    %74 = vector.broadcast %cst_33 : f32 to vector<512x256xf32>
    %75 = vector.broadcast %cst_34 : f32 to vector<512x256xf32>
    %76 = arith.select %73, %74, %75 : vector<512x256xi1>, vector<512x256xf32>
    %cst_35 = arith.constant dense<0.000000e+00> : vector<16x256xf32>
    %77 = tpu.matmul %59, %70, %cst_35 {dimension_numbers = #tpu.dot_dimension_numbers<[1], [0], [0], [1], [0, 0, 1, 1], [], []>} : vector<16x512xf32>, vector<512x256xf32>, vector<16x256xf32> -> vector<16x256xf32>
    %cst_36 = arith.constant dense<0.000000e+00> : vector<16x256xf32>
    %78 = tpu.matmul %59, %76, %cst_36 {dimension_numbers = #tpu.dot_dimension_numbers<[1], [0], [0], [1], [0, 0, 1, 1], [], []>} : vector<16x512xf32>, vector<512x256xf32>, vector<16x256xf32> -> vector<16x256xf32>
    %79 = arith.maximumf %77, %78 : vector<16x256xf32>
    %80 = tpu.iota {dimensions = array<i32: 0>} : vector<256x32xi32>
    %c31_i32_37 = arith.constant 31 : i32
    %81 = vector.broadcast %c31_i32_37 : i32 to vector<256x32xi32>
    %82 = arith.andi %80, %81 : vector<256x32xi32>
    %83 = tpu.iota {dimensions = array<i32: 1>} : vector<256x32xi32>
    %84 = arith.cmpi eq, %82, %83 : vector<256x32xi32>
    %cst_38 = arith.constant 1.000000e+00 : f32
    %cst_39 = arith.constant 0.000000e+00 : f32
    %85 = vector.broadcast %cst_38 : f32 to vector<256x32xf32>
    %86 = vector.broadcast %cst_39 : f32 to vector<256x32xf32>
    %87 = arith.select %84, %85, %86 : vector<256x32xi1>, vector<256x32xf32>
    %cst_40 = arith.constant dense<0.000000e+00> : vector<256xf32>
    %88 = vector.multi_reduction <add>, %79, %cst_40 [0] : vector<16x256xf32> to vector<256xf32>
    %89 = vector.shape_cast %88 : vector<256xf32> to vector<1x256xf32>
    %cst_41 = arith.constant dense<0.000000e+00> : vector<1x32xf32>
    %90 = tpu.matmul %89, %87, %cst_41 {dimension_numbers = #tpu.dot_dimension_numbers<[1], [0], [0], [1], [0, 0, 1, 1], [], []>} : vector<1x256xf32>, vector<256x32xf32>, vector<1x32xf32> -> vector<1x32xf32>
    %91 = arith.mulf %79, %79 : vector<16x256xf32>
    %cst_42 = arith.constant dense<0.000000e+00> : vector<256xf32>
    %92 = vector.multi_reduction <add>, %91, %cst_42 [0] : vector<16x256xf32> to vector<256xf32>
    %93 = vector.shape_cast %92 : vector<256xf32> to vector<1x256xf32>
    %cst_43 = arith.constant dense<0.000000e+00> : vector<1x32xf32>
    %94 = tpu.matmul %93, %87, %cst_43 {dimension_numbers = #tpu.dot_dimension_numbers<[1], [0], [0], [1], [0, 0, 1, 1], [], []>} : vector<1x256xf32>, vector<256x32xf32>, vector<1x32xf32> -> vector<1x32xf32>
    %cst_44 = arith.constant 1.280000e+02 : f32
    %95 = vector.broadcast %cst_44 : f32 to vector<1x32xf32>
    %96 = arith.divf %90, %95 : vector<1x32xf32>
    %cst_45 = arith.constant 1.280000e+02 : f32
    %97 = vector.broadcast %cst_45 : f32 to vector<1x32xf32>
    %98 = arith.divf %94, %97 : vector<1x32xf32>
    %99 = arith.mulf %96, %96 : vector<1x32xf32>
    %100 = arith.subf %98, %99 : vector<1x32xf32>
    %cst_46 = arith.constant 9.99999974E-6 : f32
    %101 = vector.broadcast %cst_46 : f32 to vector<1x32xf32>
    %102 = arith.addf %100, %101 : vector<1x32xf32>
    %103 = math.rsqrt %102 : vector<1x32xf32>
    %c0_47 = arith.constant 0 : index
    %c0_48 = arith.constant 0 : index
    %104 = vector.load %arg4[%c0_47, %c0_48] : memref<1x32xf32, #tpu.memory_space<vmem>>, vector<1x32xf32>
    %105 = arith.mulf %104, %103 : vector<1x32xf32>
    %c0_49 = arith.constant 0 : index
    %c0_50 = arith.constant 0 : index
    %106 = vector.load %arg5[%c0_49, %c0_50] : memref<1x32xf32, #tpu.memory_space<vmem>>, vector<1x32xf32>
    %107 = arith.mulf %96, %105 : vector<1x32xf32>
    %108 = arith.subf %106, %107 : vector<1x32xf32>
    %109 = tpu.iota {dimensions = array<i32: 0>} : vector<32x256xi32>
    %110 = tpu.iota {dimensions = array<i32: 1>} : vector<32x256xi32>
    %c31_i32_51 = arith.constant 31 : i32
    %111 = vector.broadcast %c31_i32_51 : i32 to vector<32x256xi32>
    %112 = arith.andi %110, %111 : vector<32x256xi32>
    %113 = arith.cmpi eq, %109, %112 : vector<32x256xi32>
    %cst_52 = arith.constant 1.000000e+00 : f32
    %cst_53 = arith.constant 0.000000e+00 : f32
    %114 = vector.broadcast %cst_52 : f32 to vector<32x256xf32>
    %115 = vector.broadcast %cst_53 : f32 to vector<32x256xf32>
    %116 = arith.select %113, %114, %115 : vector<32x256xi1>, vector<32x256xf32>
    %cst_54 = arith.constant dense<0.000000e+00> : vector<1x256xf32>
    %117 = tpu.matmul %105, %116, %cst_54 {dimension_numbers = #tpu.dot_dimension_numbers<[1], [0], [0], [1], [0, 0, 1, 1], [], []>} : vector<1x32xf32>, vector<32x256xf32>, vector<1x256xf32> -> vector<1x256xf32>
    %cst_55 = arith.constant dense<0.000000e+00> : vector<1x256xf32>
    %118 = tpu.matmul %108, %116, %cst_55 {dimension_numbers = #tpu.dot_dimension_numbers<[1], [0], [0], [1], [0, 0, 1, 1], [], []>} : vector<1x32xf32>, vector<32x256xf32>, vector<1x256xf32> -> vector<1x256xf32>
    %119 = vector.broadcast %117 : vector<1x256xf32> to vector<16x256xf32>
    %120 = arith.mulf %79, %119 : vector<16x256xf32>
    %121 = vector.broadcast %118 : vector<1x256xf32> to vector<16x256xf32>
    %122 = arith.addf %120, %121 : vector<16x256xf32>
    %cst_56 = arith.constant 0.000000e+00 : f32
    %123 = vector.broadcast %cst_56 : f32 to vector<1x256xf32>
    %c0_57 = arith.constant 0 : index
    %c0_58 = arith.constant 0 : index
    %124 = vector.load %arg6[%c0_57, %c0_58] : memref<18x256xf32, #tpu.memory_space<vmem>>, vector<1x256xf32>
    tpu.vector_store %arg6[%c0_57, %c0_58], %123 {strides = array<i32>} : memref<18x256xf32, #tpu.memory_space<vmem>>, vector<1x256xf32>,
    %c1_59 = arith.constant 1 : index
    %c0_60 = arith.constant 0 : index
    %125 = vector.load %arg6[%c1_59, %c0_60] : memref<18x256xf32, #tpu.memory_space<vmem>>, vector<16x256xf32>
    tpu.vector_store %arg6[%c1_59, %c0_60], %122 {strides = array<i32>} : memref<18x256xf32, #tpu.memory_space<vmem>>, vector<16x256xf32>,
    %cst_61 = arith.constant 0.000000e+00 : f32
    %126 = vector.broadcast %cst_61 : f32 to vector<1x256xf32>
    %c17 = arith.constant 17 : index
    %c0_62 = arith.constant 0 : index
    %127 = vector.load %arg6[%c17, %c0_62] : memref<18x256xf32, #tpu.memory_space<vmem>>, vector<1x256xf32>
    tpu.vector_store %arg6[%c17, %c0_62], %126 {strides = array<i32>} : memref<18x256xf32, #tpu.memory_space<vmem>>, vector<1x256xf32>,
    return
  }
  func.func @transform_0(%arg0: i32) -> (i32, i32) {
    %c0_i32 = arith.constant 0 : i32
    %c0_i32_0 = arith.constant 0 : i32
    %c0_i32_1 = arith.constant 0 : i32
    return %c0_i32, %c0_i32_0 : i32, i32
  }
  func.func @transform_1(%arg0: i32) -> (i32, i32, i32) {
    %c0_i32 = arith.constant 0 : i32
    %c0_i32_0 = arith.constant 0 : i32
    %c0_i32_1 = arith.constant 0 : i32
    %c0_i32_2 = arith.constant 0 : i32
    return %c0_i32, %c0_i32_0, %c0_i32_1 : i32, i32, i32
  }
  func.func @transform_2(%arg0: i32) -> (i32, i32) {
    %c0_i32 = arith.constant 0 : i32
    %c0_i32_0 = arith.constant 0 : i32
    %c0_i32_1 = arith.constant 0 : i32
    return %c0_i32, %c0_i32_0 : i32, i32
  }
  func.func @transform_3(%arg0: i32) -> (i32, i32) {
    %c0_i32 = arith.constant 0 : i32
    %c0_i32_0 = arith.constant 0 : i32
    %c0_i32_1 = arith.constant 0 : i32
    return %c0_i32, %c0_i32_0 : i32, i32
  }
  func.func @transform_4(%arg0: i32) -> (i32, i32) {
    %c0_i32 = arith.constant 0 : i32
    %c0_i32_0 = arith.constant 0 : i32
    %c0_i32_1 = arith.constant 0 : i32
    return %c0_i32, %c0_i32_0 : i32, i32
  }
  func.func @transform_5(%arg0: i32) -> (i32, i32) {
    %c0_i32 = arith.constant 0 : i32
    %c0_i32_0 = arith.constant 0 : i32
    %c0_i32_1 = arith.constant 0 : i32
    return %c0_i32, %c0_i32_0 : i32, i32
  }
}

module attributes {stable_mosaic.version = 11 : i64} {
  func.func @_conv_stage_kernel(%arg0: i32, %arg1: memref<66x96xf32, #tpu.memory_space<vmem>>, %arg2: memref<3x96x512xbf16, #tpu.memory_space<vmem>>, %arg3: memref<1x512xf32, #tpu.memory_space<vmem>>, %arg4: memref<1x16xf32, #tpu.memory_space<vmem>>, %arg5: memref<1x16xf32, #tpu.memory_space<vmem>>, %arg6: memref<34x256xf32, #tpu.memory_space<vmem>>) attributes {dimension_semantics = [#tpu.dimension_semantics<arbitrary>], iteration_bounds = array<i64: 1>, scalar_prefetch = 0 : i64, scratch_operands = 0 : i64, tpu.core_type = #tpu.core_type<tc>, window_params = [{pipeline_mode = #tpu.pipeline_mode<synchronous>, transform_indices = @transform_0, window_bounds = array<i64: 66, 96>}, {pipeline_mode = #tpu.pipeline_mode<synchronous>, transform_indices = @transform_1, window_bounds = array<i64: 3, 96, 512>}, {pipeline_mode = #tpu.pipeline_mode<synchronous>, transform_indices = @transform_2, window_bounds = array<i64: 1, 512>}, {pipeline_mode = #tpu.pipeline_mode<synchronous>, transform_indices = @transform_3, window_bounds = array<i64: 1, 16>}, {pipeline_mode = #tpu.pipeline_mode<synchronous>, transform_indices = @transform_4, window_bounds = array<i64: 1, 16>}, {pipeline_mode = #tpu.pipeline_mode<synchronous>, transform_indices = @transform_5, window_bounds = array<i64: 34, 256>}]} {
    %0 = tpu.iota {dimensions = array<i32: 0>} : vector<64x1xi32>
    %c31_i32 = arith.constant 31 : i32
    %1 = vector.broadcast %c31_i32 : i32 to vector<64x1xi32>
    %2 = arith.andi %0, %1 : vector<64x1xi32>
    %cst = arith.constant 0.000000e+00 : f32
    %3 = vector.broadcast %cst : f32 to vector<64x512xf32>
    %c0 = arith.constant 0 : index
    %c0_0 = arith.constant 0 : index
    %4 = vector.load %arg1[%c0, %c0_0] : memref<66x96xf32, #tpu.memory_space<vmem>>, vector<64x96xf32>
    %5 = arith.truncf %4 : vector<64x96xf32> to vector<64x96xbf16>
    %c0_1 = arith.constant 0 : index
    %c0_2 = arith.constant 0 : index
    %c0_3 = arith.constant 0 : index
    %6 = vector.load %arg2[%c0_1, %c0_2, %c0_3] : memref<3x96x512xbf16, #tpu.memory_space<vmem>>, vector<1x96x512xbf16>
    %7 = vector.shape_cast %6 : vector<1x96x512xbf16> to vector<96x512xbf16>
    %cst_4 = arith.constant dense<0.000000e+00> : vector<64x512xf32>
    %8 = tpu.matmul %5, %7, %cst_4 {dimension_numbers = #tpu.dot_dimension_numbers<[1], [0], [0], [1], [0, 0, 1, 1], [], []>} : vector<64x96xbf16>, vector<96x512xbf16>, vector<64x512xf32> -> vector<64x512xf32>
    %c0_i32 = arith.constant 0 : i32
    %9 = vector.broadcast %c0_i32 : i32 to vector<64x1xi32>
    %10 = arith.cmpi ne, %2, %9 : vector<64x1xi32>
    %cst_5 = arith.constant 1.000000e+00 : f32
    %cst_6 = arith.constant 0.000000e+00 : f32
    %11 = vector.broadcast %cst_5 : f32 to vector<64x1xf32>
    %12 = vector.broadcast %cst_6 : f32 to vector<64x1xf32>
    %13 = arith.select %10, %11, %12 : vector<64x1xi1>, vector<64x1xf32>
    %14 = vector.broadcast %13 : vector<64x1xf32> to vector<64x512xf32>
    %15 = arith.mulf %8, %14 : vector<64x512xf32>
    %16 = arith.addf %3, %15 : vector<64x512xf32>
    %c1 = arith.constant 1 : index
    %c0_7 = arith.constant 0 : index
    %17 = vector.load %arg1[%c1, %c0_7] : memref<66x96xf32, #tpu.memory_space<vmem>>, vector<64x96xf32>
    %18 = arith.truncf %17 : vector<64x96xf32> to vector<64x96xbf16>
    %c1_8 = arith.constant 1 : index
    %c0_9 = arith.constant 0 : index
    %c0_10 = arith.constant 0 : index
    %19 = vector.load %arg2[%c1_8, %c0_9, %c0_10] : memref<3x96x512xbf16, #tpu.memory_space<vmem>>, vector<1x96x512xbf16>
    %20 = vector.shape_cast %19 : vector<1x96x512xbf16> to vector<96x512xbf16>
    %cst_11 = arith.constant dense<0.000000e+00> : vector<64x512xf32>
    %21 = tpu.matmul %18, %20, %cst_11 {dimension_numbers = #tpu.dot_dimension_numbers<[1], [0], [0], [1], [0, 0, 1, 1], [], []>} : vector<64x96xbf16>, vector<96x512xbf16>, vector<64x512xf32> -> vector<64x512xf32>
    %22 = arith.addf %16, %21 : vector<64x512xf32>
    %c2 = arith.constant 2 : index
    %c0_12 = arith.constant 0 : index
    %23 = vector.load %arg1[%c2, %c0_12] : memref<66x96xf32, #tpu.memory_space<vmem>>, vector<64x96xf32>
    %24 = arith.truncf %23 : vector<64x96xf32> to vector<64x96xbf16>
    %c2_13 = arith.constant 2 : index
    %c0_14 = arith.constant 0 : index
    %c0_15 = arith.constant 0 : index
    %25 = vector.load %arg2[%c2_13, %c0_14, %c0_15] : memref<3x96x512xbf16, #tpu.memory_space<vmem>>, vector<1x96x512xbf16>
    %26 = vector.shape_cast %25 : vector<1x96x512xbf16> to vector<96x512xbf16>
    %cst_16 = arith.constant dense<0.000000e+00> : vector<64x512xf32>
    %27 = tpu.matmul %24, %26, %cst_16 {dimension_numbers = #tpu.dot_dimension_numbers<[1], [0], [0], [1], [0, 0, 1, 1], [], []>} : vector<64x96xbf16>, vector<96x512xbf16>, vector<64x512xf32> -> vector<64x512xf32>
    %c31_i32_17 = arith.constant 31 : i32
    %28 = vector.broadcast %c31_i32_17 : i32 to vector<64x1xi32>
    %29 = arith.cmpi ne, %2, %28 : vector<64x1xi32>
    %cst_18 = arith.constant 1.000000e+00 : f32
    %cst_19 = arith.constant 0.000000e+00 : f32
    %30 = vector.broadcast %cst_18 : f32 to vector<64x1xf32>
    %31 = vector.broadcast %cst_19 : f32 to vector<64x1xf32>
    %32 = arith.select %29, %30, %31 : vector<64x1xi1>, vector<64x1xf32>
    %33 = vector.broadcast %32 : vector<64x1xf32> to vector<64x512xf32>
    %34 = arith.mulf %27, %33 : vector<64x512xf32>
    %35 = arith.addf %22, %34 : vector<64x512xf32>
    %c0_20 = arith.constant 0 : index
    %c0_21 = arith.constant 0 : index
    %36 = vector.load %arg3[%c0_20, %c0_21] : memref<1x512xf32, #tpu.memory_space<vmem>>, vector<1x512xf32>
    %37 = vector.broadcast %36 : vector<1x512xf32> to vector<64x512xf32>
    %38 = arith.addf %35, %37 : vector<64x512xf32>
    %cst_22 = arith.constant 0.000000e+00 : f32
    %39 = vector.broadcast %cst_22 : f32 to vector<64x512xf32>
    %40 = arith.maximumf %38, %39 : vector<64x512xf32>
    %41 = tpu.iota {dimensions = array<i32: 0>} : vector<32x64xi32>
    %42 = tpu.iota {dimensions = array<i32: 1>} : vector<32x64xi32>
    %c2_i32 = arith.constant 2 : i32
    %43 = vector.broadcast %c2_i32 : i32 to vector<32x64xi32>
    %44 = arith.muli %43, %41 : vector<32x64xi32>
    %45 = arith.cmpi eq, %42, %44 : vector<32x64xi32>
    %cst_23 = arith.constant 1.000000e+00 : f32
    %cst_24 = arith.constant 0.000000e+00 : f32
    %46 = vector.broadcast %cst_23 : f32 to vector<32x64xf32>
    %47 = vector.broadcast %cst_24 : f32 to vector<32x64xf32>
    %48 = arith.select %45, %46, %47 : vector<32x64xi1>, vector<32x64xf32>
    %c2_i32_25 = arith.constant 2 : i32
    %49 = vector.broadcast %c2_i32_25 : i32 to vector<32x64xi32>
    %50 = arith.muli %49, %41 : vector<32x64xi32>
    %c1_i32 = arith.constant 1 : i32
    %51 = vector.broadcast %c1_i32 : i32 to vector<32x64xi32>
    %52 = arith.addi %50, %51 : vector<32x64xi32>
    %53 = arith.cmpi eq, %42, %52 : vector<32x64xi32>
    %cst_26 = arith.constant 1.000000e+00 : f32
    %cst_27 = arith.constant 0.000000e+00 : f32
    %54 = vector.broadcast %cst_26 : f32 to vector<32x64xf32>
    %55 = vector.broadcast %cst_27 : f32 to vector<32x64xf32>
    %56 = arith.select %53, %54, %55 : vector<32x64xi1>, vector<32x64xf32>
    %cst_28 = arith.constant dense<0.000000e+00> : vector<32x512xf32>
    %57 = tpu.matmul %48, %40, %cst_28 {dimension_numbers = #tpu.dot_dimension_numbers<[1], [0], [0], [1], [0, 0, 1, 1], [], []>} : vector<32x64xf32>, vector<64x512xf32>, vector<32x512xf32> -> vector<32x512xf32>
    %cst_29 = arith.constant dense<0.000000e+00> : vector<32x512xf32>
    %58 = tpu.matmul %56, %40, %cst_29 {dimension_numbers = #tpu.dot_dimension_numbers<[1], [0], [0], [1], [0, 0, 1, 1], [], []>} : vector<32x64xf32>, vector<64x512xf32>, vector<32x512xf32> -> vector<32x512xf32>
    %59 = arith.maximumf %57, %58 : vector<32x512xf32>
    %60 = tpu.iota {dimensions = array<i32: 0>} : vector<512x256xi32>
    %61 = tpu.iota {dimensions = array<i32: 1>} : vector<512x256xi32>
    %c2_i32_30 = arith.constant 2 : i32
    %62 = vector.broadcast %c2_i32_30 : i32 to vector<512x256xi32>
    %63 = arith.muli %62, %61 : vector<512x256xi32>
    %c15_i32 = arith.constant 15 : i32
    %64 = vector.broadcast %c15_i32 : i32 to vector<512x256xi32>
    %65 = arith.andi %61, %64 : vector<512x256xi32>
    %66 = arith.subi %63, %65 : vector<512x256xi32>
    %67 = arith.cmpi eq, %60, %66 : vector<512x256xi32>
    %cst_31 = arith.constant 1.000000e+00 : f32
    %cst_32 = arith.constant 0.000000e+00 : f32
    %68 = vector.broadcast %cst_31 : f32 to vector<512x256xf32>
    %69 = vector.broadcast %cst_32 : f32 to vector<512x256xf32>
    %70 = arith.select %67, %68, %69 : vector<512x256xi1>, vector<512x256xf32>
    %c16_i32 = arith.constant 16 : i32
    %71 = vector.broadcast %c16_i32 : i32 to vector<512x256xi32>
    %72 = arith.addi %66, %71 : vector<512x256xi32>
    %73 = arith.cmpi eq, %60, %72 : vector<512x256xi32>
    %cst_33 = arith.constant 1.000000e+00 : f32
    %cst_34 = arith.constant 0.000000e+00 : f32
    %74 = vector.broadcast %cst_33 : f32 to vector<512x256xf32>
    %75 = vector.broadcast %cst_34 : f32 to vector<512x256xf32>
    %76 = arith.select %73, %74, %75 : vector<512x256xi1>, vector<512x256xf32>
    %cst_35 = arith.constant dense<0.000000e+00> : vector<32x256xf32>
    %77 = tpu.matmul %59, %70, %cst_35 {dimension_numbers = #tpu.dot_dimension_numbers<[1], [0], [0], [1], [0, 0, 1, 1], [], []>} : vector<32x512xf32>, vector<512x256xf32>, vector<32x256xf32> -> vector<32x256xf32>
    %cst_36 = arith.constant dense<0.000000e+00> : vector<32x256xf32>
    %78 = tpu.matmul %59, %76, %cst_36 {dimension_numbers = #tpu.dot_dimension_numbers<[1], [0], [0], [1], [0, 0, 1, 1], [], []>} : vector<32x512xf32>, vector<512x256xf32>, vector<32x256xf32> -> vector<32x256xf32>
    %79 = arith.maximumf %77, %78 : vector<32x256xf32>
    %80 = tpu.iota {dimensions = array<i32: 0>} : vector<256x16xi32>
    %c15_i32_37 = arith.constant 15 : i32
    %81 = vector.broadcast %c15_i32_37 : i32 to vector<256x16xi32>
    %82 = arith.andi %80, %81 : vector<256x16xi32>
    %83 = tpu.iota {dimensions = array<i32: 1>} : vector<256x16xi32>
    %84 = arith.cmpi eq, %82, %83 : vector<256x16xi32>
    %cst_38 = arith.constant 1.000000e+00 : f32
    %cst_39 = arith.constant 0.000000e+00 : f32
    %85 = vector.broadcast %cst_38 : f32 to vector<256x16xf32>
    %86 = vector.broadcast %cst_39 : f32 to vector<256x16xf32>
    %87 = arith.select %84, %85, %86 : vector<256x16xi1>, vector<256x16xf32>
    %cst_40 = arith.constant dense<0.000000e+00> : vector<256xf32>
    %88 = vector.multi_reduction <add>, %79, %cst_40 [0] : vector<32x256xf32> to vector<256xf32>
    %89 = vector.shape_cast %88 : vector<256xf32> to vector<1x256xf32>
    %cst_41 = arith.constant dense<0.000000e+00> : vector<1x16xf32>
    %90 = tpu.matmul %89, %87, %cst_41 {dimension_numbers = #tpu.dot_dimension_numbers<[1], [0], [0], [1], [0, 0, 1, 1], [], []>} : vector<1x256xf32>, vector<256x16xf32>, vector<1x16xf32> -> vector<1x16xf32>
    %91 = arith.mulf %79, %79 : vector<32x256xf32>
    %cst_42 = arith.constant dense<0.000000e+00> : vector<256xf32>
    %92 = vector.multi_reduction <add>, %91, %cst_42 [0] : vector<32x256xf32> to vector<256xf32>
    %93 = vector.shape_cast %92 : vector<256xf32> to vector<1x256xf32>
    %cst_43 = arith.constant dense<0.000000e+00> : vector<1x16xf32>
    %94 = tpu.matmul %93, %87, %cst_43 {dimension_numbers = #tpu.dot_dimension_numbers<[1], [0], [0], [1], [0, 0, 1, 1], [], []>} : vector<1x256xf32>, vector<256x16xf32>, vector<1x16xf32> -> vector<1x16xf32>
    %cst_44 = arith.constant 5.120000e+02 : f32
    %95 = vector.broadcast %cst_44 : f32 to vector<1x16xf32>
    %96 = arith.divf %90, %95 : vector<1x16xf32>
    %cst_45 = arith.constant 5.120000e+02 : f32
    %97 = vector.broadcast %cst_45 : f32 to vector<1x16xf32>
    %98 = arith.divf %94, %97 : vector<1x16xf32>
    %99 = arith.mulf %96, %96 : vector<1x16xf32>
    %100 = arith.subf %98, %99 : vector<1x16xf32>
    %cst_46 = arith.constant 9.99999974E-6 : f32
    %101 = vector.broadcast %cst_46 : f32 to vector<1x16xf32>
    %102 = arith.addf %100, %101 : vector<1x16xf32>
    %103 = math.rsqrt %102 : vector<1x16xf32>
    %c0_47 = arith.constant 0 : index
    %c0_48 = arith.constant 0 : index
    %104 = vector.load %arg4[%c0_47, %c0_48] : memref<1x16xf32, #tpu.memory_space<vmem>>, vector<1x16xf32>
    %105 = arith.mulf %104, %103 : vector<1x16xf32>
    %c0_49 = arith.constant 0 : index
    %c0_50 = arith.constant 0 : index
    %106 = vector.load %arg5[%c0_49, %c0_50] : memref<1x16xf32, #tpu.memory_space<vmem>>, vector<1x16xf32>
    %107 = arith.mulf %96, %105 : vector<1x16xf32>
    %108 = arith.subf %106, %107 : vector<1x16xf32>
    %109 = tpu.iota {dimensions = array<i32: 0>} : vector<16x256xi32>
    %110 = tpu.iota {dimensions = array<i32: 1>} : vector<16x256xi32>
    %c15_i32_51 = arith.constant 15 : i32
    %111 = vector.broadcast %c15_i32_51 : i32 to vector<16x256xi32>
    %112 = arith.andi %110, %111 : vector<16x256xi32>
    %113 = arith.cmpi eq, %109, %112 : vector<16x256xi32>
    %cst_52 = arith.constant 1.000000e+00 : f32
    %cst_53 = arith.constant 0.000000e+00 : f32
    %114 = vector.broadcast %cst_52 : f32 to vector<16x256xf32>
    %115 = vector.broadcast %cst_53 : f32 to vector<16x256xf32>
    %116 = arith.select %113, %114, %115 : vector<16x256xi1>, vector<16x256xf32>
    %cst_54 = arith.constant dense<0.000000e+00> : vector<1x256xf32>
    %117 = tpu.matmul %105, %116, %cst_54 {dimension_numbers = #tpu.dot_dimension_numbers<[1], [0], [0], [1], [0, 0, 1, 1], [], []>} : vector<1x16xf32>, vector<16x256xf32>, vector<1x256xf32> -> vector<1x256xf32>
    %cst_55 = arith.constant dense<0.000000e+00> : vector<1x256xf32>
    %118 = tpu.matmul %108, %116, %cst_55 {dimension_numbers = #tpu.dot_dimension_numbers<[1], [0], [0], [1], [0, 0, 1, 1], [], []>} : vector<1x16xf32>, vector<16x256xf32>, vector<1x256xf32> -> vector<1x256xf32>
    %119 = vector.broadcast %117 : vector<1x256xf32> to vector<32x256xf32>
    %120 = arith.mulf %79, %119 : vector<32x256xf32>
    %121 = vector.broadcast %118 : vector<1x256xf32> to vector<32x256xf32>
    %122 = arith.addf %120, %121 : vector<32x256xf32>
    %cst_56 = arith.constant 0.000000e+00 : f32
    %123 = vector.broadcast %cst_56 : f32 to vector<1x256xf32>
    %c0_57 = arith.constant 0 : index
    %c0_58 = arith.constant 0 : index
    %124 = vector.load %arg6[%c0_57, %c0_58] : memref<34x256xf32, #tpu.memory_space<vmem>>, vector<1x256xf32>
    tpu.vector_store %arg6[%c0_57, %c0_58], %123 {strides = array<i32>} : memref<34x256xf32, #tpu.memory_space<vmem>>, vector<1x256xf32>,
    %c1_59 = arith.constant 1 : index
    %c0_60 = arith.constant 0 : index
    %125 = vector.load %arg6[%c1_59, %c0_60] : memref<34x256xf32, #tpu.memory_space<vmem>>, vector<32x256xf32>
    tpu.vector_store %arg6[%c1_59, %c0_60], %122 {strides = array<i32>} : memref<34x256xf32, #tpu.memory_space<vmem>>, vector<32x256xf32>,
    %cst_61 = arith.constant 0.000000e+00 : f32
    %126 = vector.broadcast %cst_61 : f32 to vector<1x256xf32>
    %c33 = arith.constant 33 : index
    %c0_62 = arith.constant 0 : index
    %127 = vector.load %arg6[%c33, %c0_62] : memref<34x256xf32, #tpu.memory_space<vmem>>, vector<1x256xf32>
    tpu.vector_store %arg6[%c33, %c0_62], %126 {strides = array<i32>} : memref<34x256xf32, #tpu.memory_space<vmem>>, vector<1x256xf32>,
    return
  }
  func.func @transform_0(%arg0: i32) -> (i32, i32) {
    %c0_i32 = arith.constant 0 : i32
    %c0_i32_0 = arith.constant 0 : i32
    %c0_i32_1 = arith.constant 0 : i32
    return %c0_i32, %c0_i32_0 : i32, i32
  }
  func.func @transform_1(%arg0: i32) -> (i32, i32, i32) {
    %c0_i32 = arith.constant 0 : i32
    %c0_i32_0 = arith.constant 0 : i32
    %c0_i32_1 = arith.constant 0 : i32
    %c0_i32_2 = arith.constant 0 : i32
    return %c0_i32, %c0_i32_0, %c0_i32_1 : i32, i32, i32
  }
  func.func @transform_2(%arg0: i32) -> (i32, i32) {
    %c0_i32 = arith.constant 0 : i32
    %c0_i32_0 = arith.constant 0 : i32
    %c0_i32_1 = arith.constant 0 : i32
    return %c0_i32, %c0_i32_0 : i32, i32
  }
  func.func @transform_3(%arg0: i32) -> (i32, i32) {
    %c0_i32 = arith.constant 0 : i32
    %c0_i32_0 = arith.constant 0 : i32
    %c0_i32_1 = arith.constant 0 : i32
    return %c0_i32, %c0_i32_0 : i32, i32
  }
  func.func @transform_4(%arg0: i32) -> (i32, i32) {
    %c0_i32 = arith.constant 0 : i32
    %c0_i32_0 = arith.constant 0 : i32
    %c0_i32_1 = arith.constant 0 : i32
    return %c0_i32, %c0_i32_0 : i32, i32
  }
  func.func @transform_5(%arg0: i32) -> (i32, i32) {
    %c0_i32 = arith.constant 0 : i32
    %c0_i32_0 = arith.constant 0 : i32
    %c0_i32_1 = arith.constant 0 : i32
    return %c0_i32, %c0_i32_0 : i32, i32
  }
}

module attributes {stable_mosaic.version = 11 : i64} {
  func.func @_conv_stage_kernel(%arg0: i32, %arg1: memref<18x256xf32, #tpu.memory_space<vmem>>, %arg2: memref<3x256x256xbf16, #tpu.memory_space<vmem>>, %arg3: memref<1x256xf32, #tpu.memory_space<vmem>>, %arg4: memref<1x32xf32, #tpu.memory_space<vmem>>, %arg5: memref<1x32xf32, #tpu.memory_space<vmem>>, %arg6: memref<8x128xf32, #tpu.memory_space<vmem>>) attributes {dimension_semantics = [#tpu.dimension_semantics<arbitrary>], iteration_bounds = array<i64: 1>, scalar_prefetch = 0 : i64, scratch_operands = 0 : i64, tpu.core_type = #tpu.core_type<tc>, window_params = [{pipeline_mode = #tpu.pipeline_mode<synchronous>, transform_indices = @transform_0, window_bounds = array<i64: 18, 256>}, {pipeline_mode = #tpu.pipeline_mode<synchronous>, transform_indices = @transform_1, window_bounds = array<i64: 3, 256, 256>}, {pipeline_mode = #tpu.pipeline_mode<synchronous>, transform_indices = @transform_2, window_bounds = array<i64: 1, 256>}, {pipeline_mode = #tpu.pipeline_mode<synchronous>, transform_indices = @transform_3, window_bounds = array<i64: 1, 32>}, {pipeline_mode = #tpu.pipeline_mode<synchronous>, transform_indices = @transform_4, window_bounds = array<i64: 1, 32>}, {pipeline_mode = #tpu.pipeline_mode<synchronous>, transform_indices = @transform_5, window_bounds = array<i64: 8, 128>}]} {
    %0 = tpu.iota {dimensions = array<i32: 0>} : vector<16x1xi32>
    %c7_i32 = arith.constant 7 : i32
    %1 = vector.broadcast %c7_i32 : i32 to vector<16x1xi32>
    %2 = arith.andi %0, %1 : vector<16x1xi32>
    %cst = arith.constant 0.000000e+00 : f32
    %3 = vector.broadcast %cst : f32 to vector<16x256xf32>
    %c0 = arith.constant 0 : index
    %c0_0 = arith.constant 0 : index
    %4 = vector.load %arg1[%c0, %c0_0] : memref<18x256xf32, #tpu.memory_space<vmem>>, vector<16x256xf32>
    %5 = arith.truncf %4 : vector<16x256xf32> to vector<16x256xbf16>
    %c0_1 = arith.constant 0 : index
    %c0_2 = arith.constant 0 : index
    %c0_3 = arith.constant 0 : index
    %6 = vector.load %arg2[%c0_1, %c0_2, %c0_3] : memref<3x256x256xbf16, #tpu.memory_space<vmem>>, vector<1x256x256xbf16>
    %7 = vector.shape_cast %6 : vector<1x256x256xbf16> to vector<256x256xbf16>
    %cst_4 = arith.constant dense<0.000000e+00> : vector<16x256xf32>
    %8 = tpu.matmul %5, %7, %cst_4 {dimension_numbers = #tpu.dot_dimension_numbers<[1], [0], [0], [1], [0, 0, 1, 1], [], []>} : vector<16x256xbf16>, vector<256x256xbf16>, vector<16x256xf32> -> vector<16x256xf32>
    %c0_i32 = arith.constant 0 : i32
    %9 = vector.broadcast %c0_i32 : i32 to vector<16x1xi32>
    %10 = arith.cmpi ne, %2, %9 : vector<16x1xi32>
    %cst_5 = arith.constant 1.000000e+00 : f32
    %cst_6 = arith.constant 0.000000e+00 : f32
    %11 = vector.broadcast %cst_5 : f32 to vector<16x1xf32>
    %12 = vector.broadcast %cst_6 : f32 to vector<16x1xf32>
    %13 = arith.select %10, %11, %12 : vector<16x1xi1>, vector<16x1xf32>
    %14 = vector.broadcast %13 : vector<16x1xf32> to vector<16x256xf32>
    %15 = arith.mulf %8, %14 : vector<16x256xf32>
    %16 = arith.addf %3, %15 : vector<16x256xf32>
    %c1 = arith.constant 1 : index
    %c0_7 = arith.constant 0 : index
    %17 = vector.load %arg1[%c1, %c0_7] : memref<18x256xf32, #tpu.memory_space<vmem>>, vector<16x256xf32>
    %18 = arith.truncf %17 : vector<16x256xf32> to vector<16x256xbf16>
    %c1_8 = arith.constant 1 : index
    %c0_9 = arith.constant 0 : index
    %c0_10 = arith.constant 0 : index
    %19 = vector.load %arg2[%c1_8, %c0_9, %c0_10] : memref<3x256x256xbf16, #tpu.memory_space<vmem>>, vector<1x256x256xbf16>
    %20 = vector.shape_cast %19 : vector<1x256x256xbf16> to vector<256x256xbf16>
    %cst_11 = arith.constant dense<0.000000e+00> : vector<16x256xf32>
    %21 = tpu.matmul %18, %20, %cst_11 {dimension_numbers = #tpu.dot_dimension_numbers<[1], [0], [0], [1], [0, 0, 1, 1], [], []>} : vector<16x256xbf16>, vector<256x256xbf16>, vector<16x256xf32> -> vector<16x256xf32>
    %22 = arith.addf %16, %21 : vector<16x256xf32>
    %c2 = arith.constant 2 : index
    %c0_12 = arith.constant 0 : index
    %23 = vector.load %arg1[%c2, %c0_12] : memref<18x256xf32, #tpu.memory_space<vmem>>, vector<16x256xf32>
    %24 = arith.truncf %23 : vector<16x256xf32> to vector<16x256xbf16>
    %c2_13 = arith.constant 2 : index
    %c0_14 = arith.constant 0 : index
    %c0_15 = arith.constant 0 : index
    %25 = vector.load %arg2[%c2_13, %c0_14, %c0_15] : memref<3x256x256xbf16, #tpu.memory_space<vmem>>, vector<1x256x256xbf16>
    %26 = vector.shape_cast %25 : vector<1x256x256xbf16> to vector<256x256xbf16>
    %cst_16 = arith.constant dense<0.000000e+00> : vector<16x256xf32>
    %27 = tpu.matmul %24, %26, %cst_16 {dimension_numbers = #tpu.dot_dimension_numbers<[1], [0], [0], [1], [0, 0, 1, 1], [], []>} : vector<16x256xbf16>, vector<256x256xbf16>, vector<16x256xf32> -> vector<16x256xf32>
    %c7_i32_17 = arith.constant 7 : i32
    %28 = vector.broadcast %c7_i32_17 : i32 to vector<16x1xi32>
    %29 = arith.cmpi ne, %2, %28 : vector<16x1xi32>
    %cst_18 = arith.constant 1.000000e+00 : f32
    %cst_19 = arith.constant 0.000000e+00 : f32
    %30 = vector.broadcast %cst_18 : f32 to vector<16x1xf32>
    %31 = vector.broadcast %cst_19 : f32 to vector<16x1xf32>
    %32 = arith.select %29, %30, %31 : vector<16x1xi1>, vector<16x1xf32>
    %33 = vector.broadcast %32 : vector<16x1xf32> to vector<16x256xf32>
    %34 = arith.mulf %27, %33 : vector<16x256xf32>
    %35 = arith.addf %22, %34 : vector<16x256xf32>
    %c0_20 = arith.constant 0 : index
    %c0_21 = arith.constant 0 : index
    %36 = vector.load %arg3[%c0_20, %c0_21] : memref<1x256xf32, #tpu.memory_space<vmem>>, vector<1x256xf32>
    %37 = vector.broadcast %36 : vector<1x256xf32> to vector<16x256xf32>
    %38 = arith.addf %35, %37 : vector<16x256xf32>
    %cst_22 = arith.constant 0.000000e+00 : f32
    %39 = vector.broadcast %cst_22 : f32 to vector<16x256xf32>
    %40 = arith.maximumf %38, %39 : vector<16x256xf32>
    %41 = tpu.iota {dimensions = array<i32: 0>} : vector<8x16xi32>
    %42 = tpu.iota {dimensions = array<i32: 1>} : vector<8x16xi32>
    %c2_i32 = arith.constant 2 : i32
    %43 = vector.broadcast %c2_i32 : i32 to vector<8x16xi32>
    %44 = arith.muli %43, %41 : vector<8x16xi32>
    %45 = arith.cmpi eq, %42, %44 : vector<8x16xi32>
    %cst_23 = arith.constant 1.000000e+00 : f32
    %cst_24 = arith.constant 0.000000e+00 : f32
    %46 = vector.broadcast %cst_23 : f32 to vector<8x16xf32>
    %47 = vector.broadcast %cst_24 : f32 to vector<8x16xf32>
    %48 = arith.select %45, %46, %47 : vector<8x16xi1>, vector<8x16xf32>
    %c2_i32_25 = arith.constant 2 : i32
    %49 = vector.broadcast %c2_i32_25 : i32 to vector<8x16xi32>
    %50 = arith.muli %49, %41 : vector<8x16xi32>
    %c1_i32 = arith.constant 1 : i32
    %51 = vector.broadcast %c1_i32 : i32 to vector<8x16xi32>
    %52 = arith.addi %50, %51 : vector<8x16xi32>
    %53 = arith.cmpi eq, %42, %52 : vector<8x16xi32>
    %cst_26 = arith.constant 1.000000e+00 : f32
    %cst_27 = arith.constant 0.000000e+00 : f32
    %54 = vector.broadcast %cst_26 : f32 to vector<8x16xf32>
    %55 = vector.broadcast %cst_27 : f32 to vector<8x16xf32>
    %56 = arith.select %53, %54, %55 : vector<8x16xi1>, vector<8x16xf32>
    %cst_28 = arith.constant dense<0.000000e+00> : vector<8x256xf32>
    %57 = tpu.matmul %48, %40, %cst_28 {dimension_numbers = #tpu.dot_dimension_numbers<[1], [0], [0], [1], [0, 0, 1, 1], [], []>} : vector<8x16xf32>, vector<16x256xf32>, vector<8x256xf32> -> vector<8x256xf32>
    %cst_29 = arith.constant dense<0.000000e+00> : vector<8x256xf32>
    %58 = tpu.matmul %56, %40, %cst_29 {dimension_numbers = #tpu.dot_dimension_numbers<[1], [0], [0], [1], [0, 0, 1, 1], [], []>} : vector<8x16xf32>, vector<16x256xf32>, vector<8x256xf32> -> vector<8x256xf32>
    %59 = arith.maximumf %57, %58 : vector<8x256xf32>
    %60 = tpu.iota {dimensions = array<i32: 0>} : vector<256x128xi32>
    %61 = tpu.iota {dimensions = array<i32: 1>} : vector<256x128xi32>
    %c2_i32_30 = arith.constant 2 : i32
    %62 = vector.broadcast %c2_i32_30 : i32 to vector<256x128xi32>
    %63 = arith.muli %62, %61 : vector<256x128xi32>
    %c31_i32 = arith.constant 31 : i32
    %64 = vector.broadcast %c31_i32 : i32 to vector<256x128xi32>
    %65 = arith.andi %61, %64 : vector<256x128xi32>
    %66 = arith.subi %63, %65 : vector<256x128xi32>
    %67 = arith.cmpi eq, %60, %66 : vector<256x128xi32>
    %cst_31 = arith.constant 1.000000e+00 : f32
    %cst_32 = arith.constant 0.000000e+00 : f32
    %68 = vector.broadcast %cst_31 : f32 to vector<256x128xf32>
    %69 = vector.broadcast %cst_32 : f32 to vector<256x128xf32>
    %70 = arith.select %67, %68, %69 : vector<256x128xi1>, vector<256x128xf32>
    %c32_i32 = arith.constant 32 : i32
    %71 = vector.broadcast %c32_i32 : i32 to vector<256x128xi32>
    %72 = arith.addi %66, %71 : vector<256x128xi32>
    %73 = arith.cmpi eq, %60, %72 : vector<256x128xi32>
    %cst_33 = arith.constant 1.000000e+00 : f32
    %cst_34 = arith.constant 0.000000e+00 : f32
    %74 = vector.broadcast %cst_33 : f32 to vector<256x128xf32>
    %75 = vector.broadcast %cst_34 : f32 to vector<256x128xf32>
    %76 = arith.select %73, %74, %75 : vector<256x128xi1>, vector<256x128xf32>
    %cst_35 = arith.constant dense<0.000000e+00> : vector<8x128xf32>
    %77 = tpu.matmul %59, %70, %cst_35 {dimension_numbers = #tpu.dot_dimension_numbers<[1], [0], [0], [1], [0, 0, 1, 1], [], []>} : vector<8x256xf32>, vector<256x128xf32>, vector<8x128xf32> -> vector<8x128xf32>
    %cst_36 = arith.constant dense<0.000000e+00> : vector<8x128xf32>
    %78 = tpu.matmul %59, %76, %cst_36 {dimension_numbers = #tpu.dot_dimension_numbers<[1], [0], [0], [1], [0, 0, 1, 1], [], []>} : vector<8x256xf32>, vector<256x128xf32>, vector<8x128xf32> -> vector<8x128xf32>
    %79 = arith.maximumf %77, %78 : vector<8x128xf32>
    %80 = tpu.iota {dimensions = array<i32: 0>} : vector<128x32xi32>
    %c31_i32_37 = arith.constant 31 : i32
    %81 = vector.broadcast %c31_i32_37 : i32 to vector<128x32xi32>
    %82 = arith.andi %80, %81 : vector<128x32xi32>
    %83 = tpu.iota {dimensions = array<i32: 1>} : vector<128x32xi32>
    %84 = arith.cmpi eq, %82, %83 : vector<128x32xi32>
    %cst_38 = arith.constant 1.000000e+00 : f32
    %cst_39 = arith.constant 0.000000e+00 : f32
    %85 = vector.broadcast %cst_38 : f32 to vector<128x32xf32>
    %86 = vector.broadcast %cst_39 : f32 to vector<128x32xf32>
    %87 = arith.select %84, %85, %86 : vector<128x32xi1>, vector<128x32xf32>
    %cst_40 = arith.constant dense<0.000000e+00> : vector<128xf32>
    %88 = vector.multi_reduction <add>, %79, %cst_40 [0] : vector<8x128xf32> to vector<128xf32>
    %89 = vector.shape_cast %88 : vector<128xf32> to vector<1x128xf32>
    %cst_41 = arith.constant dense<0.000000e+00> : vector<1x32xf32>
    %90 = tpu.matmul %89, %87, %cst_41 {dimension_numbers = #tpu.dot_dimension_numbers<[1], [0], [0], [1], [0, 0, 1, 1], [], []>} : vector<1x128xf32>, vector<128x32xf32>, vector<1x32xf32> -> vector<1x32xf32>
    %91 = arith.mulf %79, %79 : vector<8x128xf32>
    %cst_42 = arith.constant dense<0.000000e+00> : vector<128xf32>
    %92 = vector.multi_reduction <add>, %91, %cst_42 [0] : vector<8x128xf32> to vector<128xf32>
    %93 = vector.shape_cast %92 : vector<128xf32> to vector<1x128xf32>
    %cst_43 = arith.constant dense<0.000000e+00> : vector<1x32xf32>
    %94 = tpu.matmul %93, %87, %cst_43 {dimension_numbers = #tpu.dot_dimension_numbers<[1], [0], [0], [1], [0, 0, 1, 1], [], []>} : vector<1x128xf32>, vector<128x32xf32>, vector<1x32xf32> -> vector<1x32xf32>
    %cst_44 = arith.constant 3.200000e+01 : f32
    %95 = vector.broadcast %cst_44 : f32 to vector<1x32xf32>
    %96 = arith.divf %90, %95 : vector<1x32xf32>
    %cst_45 = arith.constant 3.200000e+01 : f32
    %97 = vector.broadcast %cst_45 : f32 to vector<1x32xf32>
    %98 = arith.divf %94, %97 : vector<1x32xf32>
    %99 = arith.mulf %96, %96 : vector<1x32xf32>
    %100 = arith.subf %98, %99 : vector<1x32xf32>
    %cst_46 = arith.constant 9.99999974E-6 : f32
    %101 = vector.broadcast %cst_46 : f32 to vector<1x32xf32>
    %102 = arith.addf %100, %101 : vector<1x32xf32>
    %103 = math.rsqrt %102 : vector<1x32xf32>
    %c0_47 = arith.constant 0 : index
    %c0_48 = arith.constant 0 : index
    %104 = vector.load %arg4[%c0_47, %c0_48] : memref<1x32xf32, #tpu.memory_space<vmem>>, vector<1x32xf32>
    %105 = arith.mulf %104, %103 : vector<1x32xf32>
    %c0_49 = arith.constant 0 : index
    %c0_50 = arith.constant 0 : index
    %106 = vector.load %arg5[%c0_49, %c0_50] : memref<1x32xf32, #tpu.memory_space<vmem>>, vector<1x32xf32>
    %107 = arith.mulf %96, %105 : vector<1x32xf32>
    %108 = arith.subf %106, %107 : vector<1x32xf32>
    %109 = tpu.iota {dimensions = array<i32: 0>} : vector<32x128xi32>
    %110 = tpu.iota {dimensions = array<i32: 1>} : vector<32x128xi32>
    %c31_i32_51 = arith.constant 31 : i32
    %111 = vector.broadcast %c31_i32_51 : i32 to vector<32x128xi32>
    %112 = arith.andi %110, %111 : vector<32x128xi32>
    %113 = arith.cmpi eq, %109, %112 : vector<32x128xi32>
    %cst_52 = arith.constant 1.000000e+00 : f32
    %cst_53 = arith.constant 0.000000e+00 : f32
    %114 = vector.broadcast %cst_52 : f32 to vector<32x128xf32>
    %115 = vector.broadcast %cst_53 : f32 to vector<32x128xf32>
    %116 = arith.select %113, %114, %115 : vector<32x128xi1>, vector<32x128xf32>
    %cst_54 = arith.constant dense<0.000000e+00> : vector<1x128xf32>
    %117 = tpu.matmul %105, %116, %cst_54 {dimension_numbers = #tpu.dot_dimension_numbers<[1], [0], [0], [1], [0, 0, 1, 1], [], []>} : vector<1x32xf32>, vector<32x128xf32>, vector<1x128xf32> -> vector<1x128xf32>
    %cst_55 = arith.constant dense<0.000000e+00> : vector<1x128xf32>
    %118 = tpu.matmul %108, %116, %cst_55 {dimension_numbers = #tpu.dot_dimension_numbers<[1], [0], [0], [1], [0, 0, 1, 1], [], []>} : vector<1x32xf32>, vector<32x128xf32>, vector<1x128xf32> -> vector<1x128xf32>
    %119 = vector.broadcast %117 : vector<1x128xf32> to vector<8x128xf32>
    %120 = arith.mulf %79, %119 : vector<8x128xf32>
    %121 = vector.broadcast %118 : vector<1x128xf32> to vector<8x128xf32>
    %122 = arith.addf %120, %121 : vector<8x128xf32>
    %c0_56 = arith.constant 0 : index
    %c0_57 = arith.constant 0 : index
    %123 = vector.load %arg6[%c0_56, %c0_57] : memref<8x128xf32, #tpu.memory_space<vmem>>, vector<8x128xf32>
    tpu.vector_store %arg6[%c0_56, %c0_57], %122 {strides = array<i32>} : memref<8x128xf32, #tpu.memory_space<vmem>>, vector<8x128xf32>,
    return
  }
  func.func @transform_0(%arg0: i32) -> (i32, i32) {
    %c0_i32 = arith.constant 0 : i32
    %c0_i32_0 = arith.constant 0 : i32
    %c0_i32_1 = arith.constant 0 : i32
    return %c0_i32, %c0_i32_0 : i32, i32
  }
  func.func @transform_1(%arg0: i32) -> (i32, i32, i32) {
    %c0_i32 = arith.constant 0 : i32
    %c0_i32_0 = arith.constant 0 : i32
    %c0_i32_1 = arith.constant 0 : i32
    %c0_i32_2 = arith.constant 0 : i32
    return %c0_i32, %c0_i32_0, %c0_i32_1 : i32, i32, i32
  }
  func.func @transform_2(%arg0: i32) -> (i32, i32) {
    %c0_i32 = arith.constant 0 : i32
    %c0_i32_0 = arith.constant 0 : i32
    %c0_i32_1 = arith.constant 0 : i32
    return %c0_i32, %c0_i32_0 : i32, i32
  }
  func.func @transform_3(%arg0: i32) -> (i32, i32) {
    %c0_i32 = arith.constant 0 : i32
    %c0_i32_0 = arith.constant 0 : i32
    %c0_i32_1 = arith.constant 0 : i32
    return %c0_i32, %c0_i32_0 : i32, i32
  }
  func.func @transform_4(%arg0: i32) -> (i32, i32) {
    %c0_i32 = arith.constant 0 : i32
    %c0_i32_0 = arith.constant 0 : i32
    %c0_i32_1 = arith.constant 0 : i32
    return %c0_i32, %c0_i32_0 : i32, i32
  }
  func.func @transform_5(%arg0: i32) -> (i32, i32) {
    %c0_i32 = arith.constant 0 : i32
    %c0_i32_0 = arith.constant 0 : i32
    %c0_i32_1 = arith.constant 0 : i32
    return %c0_i32, %c0_i32_0 : i32, i32
  }
}

module attributes {stable_mosaic.version = 11 : i64} {
  func.func @_fc_head_kernel(%arg0: i32, %arg1: memref<2x512xf32, #tpu.memory_space<vmem>>, %arg2: memref<512x128xbf16, #tpu.memory_space<vmem>>, %arg3: memref<1x128xf32, #tpu.memory_space<vmem>>, %arg4: memref<128x128xbf16, #tpu.memory_space<vmem>>, %arg5: memref<1x128xf32, #tpu.memory_space<vmem>>, %arg6: memref<128x128xbf16, #tpu.memory_space<vmem>>, %arg7: memref<1x128xf32, #tpu.memory_space<vmem>>, %arg8: memref<2x128xf32, #tpu.memory_space<vmem>>) attributes {dimension_semantics = [#tpu.dimension_semantics<arbitrary>], iteration_bounds = array<i64: 1>, scalar_prefetch = 0 : i64, scratch_operands = 0 : i64, tpu.core_type = #tpu.core_type<tc>, window_params = [{pipeline_mode = #tpu.pipeline_mode<synchronous>, transform_indices = @transform_0, window_bounds = array<i64: 2, 512>}, {pipeline_mode = #tpu.pipeline_mode<synchronous>, transform_indices = @transform_1, window_bounds = array<i64: 512, 128>}, {pipeline_mode = #tpu.pipeline_mode<synchronous>, transform_indices = @transform_2, window_bounds = array<i64: 1, 128>}, {pipeline_mode = #tpu.pipeline_mode<synchronous>, transform_indices = @transform_3, window_bounds = array<i64: 128, 128>}, {pipeline_mode = #tpu.pipeline_mode<synchronous>, transform_indices = @transform_4, window_bounds = array<i64: 1, 128>}, {pipeline_mode = #tpu.pipeline_mode<synchronous>, transform_indices = @transform_5, window_bounds = array<i64: 128, 128>}, {pipeline_mode = #tpu.pipeline_mode<synchronous>, transform_indices = @transform_6, window_bounds = array<i64: 1, 128>}, {pipeline_mode = #tpu.pipeline_mode<synchronous>, transform_indices = @transform_7, window_bounds = array<i64: 2, 128>}]} {
    %c0 = arith.constant 0 : index
    %c0_0 = arith.constant 0 : index
    %0 = vector.load %arg1[%c0, %c0_0] : memref<2x512xf32, #tpu.memory_space<vmem>>, vector<2x512xf32>
    %1 = arith.truncf %0 : vector<2x512xf32> to vector<2x512xbf16>
    %c0_1 = arith.constant 0 : index
    %c0_2 = arith.constant 0 : index
    %2 = vector.load %arg2[%c0_1, %c0_2] : memref<512x128xbf16, #tpu.memory_space<vmem>>, vector<512x128xbf16>
    %cst = arith.constant dense<0.000000e+00> : vector<2x128xf32>
    %3 = tpu.matmul %1, %2, %cst {dimension_numbers = #tpu.dot_dimension_numbers<[1], [0], [0], [1], [0, 0, 1, 1], [], []>} : vector<2x512xbf16>, vector<512x128xbf16>, vector<2x128xf32> -> vector<2x128xf32>
    %c0_3 = arith.constant 0 : index
    %c0_4 = arith.constant 0 : index
    %4 = vector.load %arg3[%c0_3, %c0_4] : memref<1x128xf32, #tpu.memory_space<vmem>>, vector<1x128xf32>
    %5 = vector.broadcast %4 : vector<1x128xf32> to vector<2x128xf32>
    %6 = arith.addf %3, %5 : vector<2x128xf32>
    %cst_5 = arith.constant 0.000000e+00 : f32
    %7 = vector.broadcast %cst_5 : f32 to vector<2x128xf32>
    %8 = arith.maximumf %6, %7 : vector<2x128xf32>
    %9 = arith.truncf %8 : vector<2x128xf32> to vector<2x128xbf16>
    %c0_6 = arith.constant 0 : index
    %c0_7 = arith.constant 0 : index
    %10 = vector.load %arg4[%c0_6, %c0_7] : memref<128x128xbf16, #tpu.memory_space<vmem>>, vector<128x128xbf16>
    %cst_8 = arith.constant dense<0.000000e+00> : vector<2x128xf32>
    %11 = tpu.matmul %9, %10, %cst_8 {dimension_numbers = #tpu.dot_dimension_numbers<[1], [0], [0], [1], [0, 0, 1, 1], [], []>} : vector<2x128xbf16>, vector<128x128xbf16>, vector<2x128xf32> -> vector<2x128xf32>
    %c0_9 = arith.constant 0 : index
    %c0_10 = arith.constant 0 : index
    %12 = vector.load %arg5[%c0_9, %c0_10] : memref<1x128xf32, #tpu.memory_space<vmem>>, vector<1x128xf32>
    %13 = vector.broadcast %12 : vector<1x128xf32> to vector<2x128xf32>
    %14 = arith.addf %11, %13 : vector<2x128xf32>
    %cst_11 = arith.constant 0.000000e+00 : f32
    %15 = vector.broadcast %cst_11 : f32 to vector<2x128xf32>
    %16 = arith.maximumf %14, %15 : vector<2x128xf32>
    %17 = arith.truncf %16 : vector<2x128xf32> to vector<2x128xbf16>
    %c0_12 = arith.constant 0 : index
    %c0_13 = arith.constant 0 : index
    %18 = vector.load %arg6[%c0_12, %c0_13] : memref<128x128xbf16, #tpu.memory_space<vmem>>, vector<128x128xbf16>
    %cst_14 = arith.constant dense<0.000000e+00> : vector<2x128xf32>
    %19 = tpu.matmul %17, %18, %cst_14 {dimension_numbers = #tpu.dot_dimension_numbers<[1], [0], [0], [1], [0, 0, 1, 1], [], []>} : vector<2x128xbf16>, vector<128x128xbf16>, vector<2x128xf32> -> vector<2x128xf32>
    %c0_15 = arith.constant 0 : index
    %c0_16 = arith.constant 0 : index
    %20 = vector.load %arg7[%c0_15, %c0_16] : memref<1x128xf32, #tpu.memory_space<vmem>>, vector<1x128xf32>
    %21 = vector.broadcast %20 : vector<1x128xf32> to vector<2x128xf32>
    %22 = arith.addf %19, %21 : vector<2x128xf32>
    %23 = tpu.iota {dimensions = array<i32: 1>} : vector<2x128xi32>
    %c10_i32 = arith.constant 10 : i32
    %24 = vector.broadcast %c10_i32 : i32 to vector<2x128xi32>
    %25 = arith.cmpi slt, %23, %24 : vector<2x128xi32>
    %cst_17 = arith.constant -1.000000e+30 : f32
    %26 = vector.broadcast %cst_17 : f32 to vector<2x128xf32>
    %27 = arith.select %25, %22, %26 : vector<2x128xi1>, vector<2x128xf32>
    %cst_18 = arith.constant dense<0xFF800000> : vector<2xf32>
    %28 = vector.multi_reduction <maximumf>, %27, %cst_18 [1] : vector<2x128xf32> to vector<2xf32>
    %29 = vector.shape_cast %28 : vector<2xf32> to vector<2x1xf32>
    %30 = vector.broadcast %29 : vector<2x1xf32> to vector<2x128xf32>
    %31 = arith.subf %27, %30 : vector<2x128xf32>
    %32 = math.exp %31 : vector<2x128xf32>
    %cst_19 = arith.constant dense<0.000000e+00> : vector<2xf32>
    %33 = vector.multi_reduction <add>, %32, %cst_19 [1] : vector<2x128xf32> to vector<2xf32>
    %34 = vector.shape_cast %33 : vector<2xf32> to vector<2x1xf32>
    %35 = math.log %34 : vector<2x1xf32>
    %36 = vector.broadcast %35 : vector<2x1xf32> to vector<2x128xf32>
    %37 = arith.subf %31, %36 : vector<2x128xf32>
    %c0_20 = arith.constant 0 : index
    %c0_21 = arith.constant 0 : index
    %38 = vector.load %arg8[%c0_20, %c0_21] : memref<2x128xf32, #tpu.memory_space<vmem>>, vector<2x128xf32>
    tpu.vector_store %arg8[%c0_20, %c0_21], %37 {strides = array<i32>} : memref<2x128xf32, #tpu.memory_space<vmem>>, vector<2x128xf32>,
    return
  }
  func.func @transform_0(%arg0: i32) -> (i32, i32) {
    %c0_i32 = arith.constant 0 : i32
    %c0_i32_0 = arith.constant 0 : i32
    %c0_i32_1 = arith.constant 0 : i32
    return %c0_i32, %c0_i32_0 : i32, i32
  }
  func.func @transform_1(%arg0: i32) -> (i32, i32) {
    %c0_i32 = arith.constant 0 : i32
    %c0_i32_0 = arith.constant 0 : i32
    %c0_i32_1 = arith.constant 0 : i32
    return %c0_i32, %c0_i32_0 : i32, i32
  }
  func.func @transform_2(%arg0: i32) -> (i32, i32) {
    %c0_i32 = arith.constant 0 : i32
    %c0_i32_0 = arith.constant 0 : i32
    %c0_i32_1 = arith.constant 0 : i32
    return %c0_i32, %c0_i32_0 : i32, i32
  }
  func.func @transform_3(%arg0: i32) -> (i32, i32) {
    %c0_i32 = arith.constant 0 : i32
    %c0_i32_0 = arith.constant 0 : i32
    %c0_i32_1 = arith.constant 0 : i32
    return %c0_i32, %c0_i32_0 : i32, i32
  }
  func.func @transform_4(%arg0: i32) -> (i32, i32) {
    %c0_i32 = arith.constant 0 : i32
    %c0_i32_0 = arith.constant 0 : i32
    %c0_i32_1 = arith.constant 0 : i32
    return %c0_i32, %c0_i32_0 : i32, i32
  }
  func.func @transform_5(%arg0: i32) -> (i32, i32) {
    %c0_i32 = arith.constant 0 : i32
    %c0_i32_0 = arith.constant 0 : i32
    %c0_i32_1 = arith.constant 0 : i32
    return %c0_i32, %c0_i32_0 : i32, i32
  }
  func.func @transform_6(%arg0: i32) -> (i32, i32) {
    %c0_i32 = arith.constant 0 : i32
    %c0_i32_0 = arith.constant 0 : i32
    %c0_i32_1 = arith.constant 0 : i32
    return %c0_i32, %c0_i32_0 : i32, i32
  }
  func.func @transform_7(%arg0: i32) -> (i32, i32) {
    %c0_i32 = arith.constant 0 : i32
    %c0_i32_0 = arith.constant 0 : i32
    %c0_i32_1 = arith.constant 0 : i32
    return %c0_i32, %c0_i32_0 : i32, i32
  }
}

</mosaic_0001>

<llo_original>
// kernel: lenet_forward.7
$region0: #{lenet_forward.7}
  #allocation0 [shape = 'u32[]', space=smem, size = 0x4, offset = 0x4, fixed_abs, tag = 'smem constant byte address 0x4 - core index']
  #allocation1 [shape = 'u32[144,128]{1,0:T(1,128)}', space=vmem, size = 0x12000, scoped, tag = 'internal scratch']
  %s0 = inlined_call_operand.vmem [shape: f32[2,512], index: 0, kind: input, shape index: {}]
  %s1 = inlined_call_operand.vmem [shape: bf16[512,128], index: 1, kind: input, shape index: {}]
  %s2 = inlined_call_operand.vmem [shape: f32[1,128], index: 2, kind: input, shape index: {}]
  %s3 = inlined_call_operand.vmem [shape: bf16[128,128], index: 3, kind: input, shape index: {}]
  %s4 = inlined_call_operand.vmem [shape: f32[1,128], index: 4, kind: input, shape index: {}]
  %s5 = inlined_call_operand.vmem [shape: bf16[128,128], index: 5, kind: input, shape index: {}]
  %s6 = inlined_call_operand.vmem [shape: f32[1,128], index: 6, kind: input, shape index: {}]
  %s7 = inlined_call_operand.hbm [shape: f32[2,128], index: 7, kind: output, shape index: {}]
  %s8 = sld [smem:[#allocation0]]
  $region38: #{lenet_forward.7} parent=0
    _
  %s10 = ssub.s32 1, %s8
  %s11 = scalar_select 0, %s10, %s8
  $region1: #{lenet_forward.7} parent=0
    #allocation2 [shape = 'u8[1024]{0}', space=vmem, size = 0x400, scoped, tag = 'output window, operand 0, single buffered']
    #allocation3 [shape = 's32[1]{0}', space=sflag, size = 0x4, scoped, tag = 'scoped memory for lenet_forward.7']
    %12 = vsyncpa [#allocation3], 0
    // Predicated region
    $region2: #{lenet_forward.7} parent=1 // pred_check
      _
    $region3: #{lenet_forward.7} parent=1 // pred_check_branch
      %14 = sbr.rel (0) target = $region5
    $region4: #{lenet_forward.7} parent=1 // pred_region
      _
    $region5: #{lenet_forward.7} parent=1 // pred_fallthru
      _
    // Predicated region
    $region6: #{lenet_forward.7} parent=1 // pred_check
      _
    $region7: #{lenet_forward.7} parent=1 // pred_check_branch
      %16 = sbr.rel (0) target = $region9
    $region8: #{lenet_forward.7} parent=1 // pred_region
      _
    $region9: #{lenet_forward.7} parent=1 // pred_fallthru
      _
    // Predicated region
    $region10: #{lenet_forward.7} parent=1 // pred_check
      _
    $region11: #{lenet_forward.7} parent=1 // pred_check_branch
      %18 = sbr.rel (0) target = $region13
    $region12: #{lenet_forward.7} parent=1 // pred_region
      _
    $region13: #{lenet_forward.7} parent=1 // pred_fallthru
      _
    // Predicated region
    $region14: #{lenet_forward.7} parent=1 // pred_check
      _
    $region15: #{lenet_forward.7} parent=1 // pred_check_branch
      %20 = sbr.rel (0) target = $region17
    $region16: #{lenet_forward.7} parent=1 // pred_region
      _
    $region17: #{lenet_forward.7} parent=1 // pred_fallthru
      _
    // Predicated region
    $region18: #{lenet_forward.7} parent=1 // pred_check
      _
    $region19: #{lenet_forward.7} parent=1 // pred_check_branch
      %22 = sbr.rel (0) target = $region21
    $region20: #{lenet_forward.7} parent=1 // pred_region
      _
    $region21: #{lenet_forward.7} parent=1 // pred_fallthru
      _
    // Predicated region
    $region22: #{lenet_forward.7} parent=1 // pred_check
      _
    $region23: #{lenet_forward.7} parent=1 // pred_check_branch
      %24 = sbr.rel (0) target = $region25
    $region24: #{lenet_forward.7} parent=1 // pred_region
      _
    $region25: #{lenet_forward.7} parent=1 // pred_fallthru
      _
    // Predicated region
    $region26: #{lenet_forward.7} parent=1 // pred_check
      _
    $region27: #{lenet_forward.7} parent=1 // pred_check_branch
      %26 = sbr.rel (0) target = $region29
    $region28: #{lenet_forward.7} parent=1 // pred_region
      _
    $region29: #{lenet_forward.7} parent=1 // pred_fallthru
      _
    %v28 = vld [vmem:[%s0] sm:$0xff]
    %v30 = vcombine.high %v28, %v28
    %v32 = vunpack.c.l.s4 1983009808
    %v33 = vunpack.c.0.s8 %v32
    %v34 = vlaneseq
    %v35 = vshrl.u32 %v34, 7
    %v36 = vsub.s32 %v33, %v35
    %v37 = vrot.slane %v28, %v36
    %v39 = vunpack.c.l.s4 1983009808
    %v40 = vunpack.c.0.s8 %v39
    %v41 = vlaneseq
    %v42 = vshrl.u32 %v41, 7
    %v43 = vsub.s32 %v40, %v42
    %v44 = vrot.slane %v30, %v43
    %v45 = vcombine.high %v37, %v37
    %v46 = vcombine.high %v44, %v44
    %v51 = vpack.c.bf16 %v37, %v37
    %v52 = vpack.c.bf16 %v45, %v45
    %v53 = vpack.c.bf16 %v44, %v44
    %v54 = vpack.c.bf16 %v46, %v46
    %v55 = vld [vmem:[%s1] sm:$0xf]
    %v56 = vld [vmem:[%s1 + $0x4] sm:$0xf]
    %v57 = vld [vmem:[%s1 + $0x8] sm:$0xf]
    %v58 = vld [vmem:[%s1 + $0xc] sm:$0xf]
    %v59 = vld [vmem:[%s1 + $0x10] sm:$0xf]
    %v60 = vld [vmem:[%s1 + $0x14] sm:$0xf]
    %v61 = vld [vmem:[%s1 + $0x18] sm:$0xf]
    %v62 = vld [vmem:[%s1 + $0x1c] sm:$0xf]
    %v63 = vld [vmem:[%s1 + $0x20] sm:$0xf]
    %v64 = vld [vmem:[%s1 + $0x24] sm:$0xf]
    %v65 = vld [vmem:[%s1 + $0x28] sm:$0xf]
    %v66 = vld [vmem:[%s1 + $0x2c] sm:$0xf]
    %v67 = vld [vmem:[%s1 + $0x30] sm:$0xf]
    %v68 = vld [vmem:[%s1 + $0x34] sm:$0xf]
    %v69 = vld [vmem:[%s1 + $0x38] sm:$0xf]
    %v70 = vld [vmem:[%s1 + $0x3c] sm:$0xf]
    %v71 = vld [vmem:[%s1 + $0x40] sm:$0xf]
    %v72 = vld [vmem:[%s1 + $0x44] sm:$0xf]
    %v73 = vld [vmem:[%s1 + $0x48] sm:$0xf]
    %v74 = vld [vmem:[%s1 + $0x4c] sm:$0xf]
    %v75 = vld [vmem:[%s1 + $0x50] sm:$0xf]
    %v76 = vld [vmem:[%s1 + $0x54] sm:$0xf]
    %v77 = vld [vmem:[%s1 + $0x58] sm:$0xf]
    %v78 = vld [vmem:[%s1 + $0x5c] sm:$0xf]
    %v79 = vld [vmem:[%s1 + $0x60] sm:$0xf]
    %v80 = vld [vmem:[%s1 + $0x64] sm:$0xf]
    %v81 = vld [vmem:[%s1 + $0x68] sm:$0xf]
    %v82 = vld [vmem:[%s1 + $0x6c] sm:$0xf]
    %v83 = vld [vmem:[%s1 + $0x70] sm:$0xf]
    %v84 = vld [vmem:[%s1 + $0x74] sm:$0xf]
    %v85 = vld [vmem:[%s1 + $0x78] sm:$0xf]
    %v86 = vld [vmem:[%s1 + $0x7c] sm:$0xf]
    %v87 = vld [vmem:[%s1 + $0x80] sm:$0xf]
    %v88 = vld [vmem:[%s1 + $0x84] sm:$0xf]
    %v89 = vld [vmem:[%s1 + $0x88] sm:$0xf]
    %v90 = vld [vmem:[%s1 + $0x8c] sm:$0xf]
    %v91 = vld [vmem:[%s1 + $0x90] sm:$0xf]
    %v92 = vld [vmem:[%s1 + $0x94] sm:$0xf]
    %v93 = vld [vmem:[%s1 + $0x98] sm:$0xf]
    %v94 = vld [vmem:[%s1 + $0x9c] sm:$0xf]
    %v95 = vld [vmem:[%s1 + $0xa0] sm:$0xf]
    %v96 = vld [vmem:[%s1 + $0xa4] sm:$0xf]
    %v97 = vld [vmem:[%s1 + $0xa8] sm:$0xf]
    %v98 = vld [vmem:[%s1 + $0xac] sm:$0xf]
    %v99 = vld [vmem:[%s1 + $0xb0] sm:$0xf]
    %v100 = vld [vmem:[%s1 + $0xb4] sm:$0xf]
    %v101 = vld [vmem:[%s1 + $0xb8] sm:$0xf]
    %v102 = vld [vmem:[%s1 + $0xbc] sm:$0xf]
    %v103 = vld [vmem:[%s1 + $0xc0] sm:$0xf]
    %v104 = vld [vmem:[%s1 + $0xc4] sm:$0xf]
    %v105 = vld [vmem:[%s1 + $0xc8] sm:$0xf]
    %v106 = vld [vmem:[%s1 + $0xcc] sm:$0xf]
    %v107 = vld [vmem:[%s1 + $0xd0] sm:$0xf]
    %v108 = vld [vmem:[%s1 + $0xd4] sm:$0xf]
    %v109 = vld [vmem:[%s1 + $0xd8] sm:$0xf]
    %v110 = vld [vmem:[%s1 + $0xdc] sm:$0xf]
    %v111 = vld [vmem:[%s1 + $0xe0] sm:$0xf]
    %v112 = vld [vmem:[%s1 + $0xe4] sm:$0xf]
    %v113 = vld [vmem:[%s1 + $0xe8] sm:$0xf]
    %v114 = vld [vmem:[%s1 + $0xec] sm:$0xf]
    %v115 = vld [vmem:[%s1 + $0xf0] sm:$0xf]
    %v116 = vld [vmem:[%s1 + $0xf4] sm:$0xf]
    %v117 = vld [vmem:[%s1 + $0xf8] sm:$0xf]
    %v118 = vld [vmem:[%s1 + $0xfc] sm:$0xf]
    %v119 = vld [vmem:[%s2] sm:$0x1]
    %v121 = vlaneseq
    %v122 = vshrl.u32 %v121, 7
    %v123 = vsub.s32 0, %v122
    %v124 = vrot.slane %v119, %v123
    %v190 = vunpack.c.l.b16 %v55
    %v191 = vunpack.c.l.b16 %v56
    %v192 = vunpack.c.l.b16 %v57
    %v193 = vunpack.c.l.b16 %v58
    %v194 = vunpack.c.l.b16 %v59
    %v195 = vunpack.c.l.b16 %v60
    %v196 = vunpack.c.l.b16 %v61
    %v197 = vunpack.c.l.b16 %v62
    %v198 = vunpack.c.l.b16 %v63
    %v199 = vunpack.c.l.b16 %v64
    %v200 = vunpack.c.l.b16 %v65
    %v201 = vunpack.c.l.b16 %v66
    %v202 = vunpack.c.l.b16 %v67
    %v203 = vunpack.c.l.b16 %v68
    %v204 = vunpack.c.l.b16 %v69
    %v205 = vunpack.c.l.b16 %v70
    %v206 = vunpack.c.l.b16 %v71
    %v207 = vunpack.c.l.b16 %v72
    %v208 = vunpack.c.l.b16 %v73
    %v209 = vunpack.c.l.b16 %v74
    %v210 = vunpack.c.l.b16 %v75
    %v211 = vunpack.c.l.b16 %v76
    %v212 = vunpack.c.l.b16 %v77
    %v213 = vunpack.c.l.b16 %v78
    %v214 = vunpack.c.l.b16 %v79
    %v215 = vunpack.c.l.b16 %v80
    %v216 = vunpack.c.l.b16 %v81
    %v217 = vunpack.c.l.b16 %v82
    %v218 = vunpack.c.l.b16 %v83
    %v219 = vunpack.c.l.b16 %v84
    %v220 = vunpack.c.l.b16 %v85
    %v221 = vunpack.c.l.b16 %v86
    %v222 = vunpack.c.l.b16 %v87
    %v223 = vunpack.c.l.b16 %v88
    %v224 = vunpack.c.l.b16 %v89
    %v225 = vunpack.c.l.b16 %v90
    %v226 = vunpack.c.l.b16 %v91
    %v227 = vunpack.c.l.b16 %v92
    %v228 = vunpack.c.l.b16 %v93
    %v229 = vunpack.c.l.b16 %v94
    %v230 = vunpack.c.l.b16 %v95
    %v231 = vunpack.c.l.b16 %v96
    %v232 = vunpack.c.l.b16 %v97
    %v233 = vunpack.c.l.b16 %v98
    %v234 = vunpack.c.l.b16 %v99
    %v235 = vunpack.c.l.b16 %v100
    %v236 = vunpack.c.l.b16 %v101
    %v237 = vunpack.c.l.b16 %v102
    %v238 = vunpack.c.l.b16 %v103
    %v239 = vunpack.c.l.b16 %v104
    %v240 = vunpack.c.l.b16 %v105
    %v241 = vunpack.c.l.b16 %v106
    %v242 = vunpack.c.l.b16 %v107
    %v243 = vunpack.c.l.b16 %v108
    %v244 = vunpack.c.l.b16 %v109
    %v245 = vunpack.c.l.b16 %v110
    %v246 = vunpack.c.l.b16 %v111
    %v247 = vunpack.c.l.b16 %v112
    %v248 = vunpack.c.l.b16 %v113
    %v249 = vunpack.c.l.b16 %v114
    %v250 = vunpack.c.l.b16 %v115
    %v251 = vunpack.c.l.b16 %v116
    %v252 = vunpack.c.l.b16 %v117
    %v253 = vunpack.c.l.b16 %v118
    %v254 = vpack.c.b16 %v191, %v190
    %v255 = vpack.c.b16 %v193, %v192
    %v256 = vpack.c.b16 %v195, %v194
    %v257 = vpack.c.b16 %v197, %v196
    %v258 = vpack.c.b16 %v199, %v198
    %v259 = vpack.c.b16 %v201, %v200
    %v260 = vpack.c.b16 %v203, %v202
    %v261 = vpack.c.b16 %v205, %v204
    %v262 = vpack.c.b16 %v207, %v206
    %v263 = vpack.c.b16 %v209, %v208
    %v264 = vpack.c.b16 %v211, %v210
    %v265 = vpack.c.b16 %v213, %v212
    %v266 = vpack.c.b16 %v215, %v214
    %v267 = vpack.c.b16 %v217, %v216
    %v268 = vpack.c.b16 %v219, %v218
    %v269 = vpack.c.b16 %v221, %v220
    %v270 = vpack.c.b16 %v223, %v222
    %v271 = vpack.c.b16 %v225, %v224
    %v272 = vpack.c.b16 %v227, %v226
    %v273 = vpack.c.b16 %v229, %v228
    %v274 = vpack.c.b16 %v231, %v230
    %v275 = vpack.c.b16 %v233, %v232
    %v276 = vpack.c.b16 %v235, %v234
    %v277 = vpack.c.b16 %v237, %v236
    %v278 = vpack.c.b16 %v239, %v238
    %v279 = vpack.c.b16 %v241, %v240
    %v280 = vpack.c.b16 %v243, %v242
    %v281 = vpack.c.b16 %v245, %v244
    %v282 = vpack.c.b16 %v247, %v246
    %v283 = vpack.c.b16 %v249, %v248
    %v284 = vpack.c.b16 %v251, %v250
    %v285 = vpack.c.b16 %v253, %v252
    %318 = vmatprep.subr.bf16.mxu0 0
    %319 = vmatpush1.bf16.msra.mxu0 %v254
    %320 = vmatprep.subr.bf16.mxu0 0
    %321 = vmatpush1.bf16.msra.mxu0 %v255
    %322 = vmatprep.subr.bf16.mxu0 0
    %323 = vmatpush1.bf16.msra.mxu0 %v256
    %324 = vmatprep.subr.bf16.mxu0 0
    %325 = vmatpush1.bf16.msra.mxu0 %v257
    %326 = vmatprep.subr.bf16.mxu0 0
    %327 = vmatpush1.bf16.msra.mxu0 %v258
    %328 = vmatprep.subr.bf16.mxu0 0
    %329 = vmatpush1.bf16.msra.mxu0 %v259
    %330 = vmatprep.subr.bf16.mxu0 0
    %331 = vmatpush1.bf16.msra.mxu0 %v260
    %332 = vmatprep.subr.bf16.mxu0 0
    %333 = vmatpush1.bf16.msra.mxu0 %v261
    %334 = vmatprep.subr.bf16.mxu0 0
    %335 = vmatpush1.bf16.msra.mxu0 %v262
    %336 = vmatprep.subr.bf16.mxu0 0
    %337 = vmatpush1.bf16.msra.mxu0 %v263
    %338 = vmatprep.subr.bf16.mxu0 0
    %339 = vmatpush1.bf16.msra.mxu0 %v264
    %340 = vmatprep.subr.bf16.mxu0 0
    %341 = vmatpush1.bf16.msra.mxu0 %v265
    %342 = vmatprep.subr.bf16.mxu0 0
    %343 = vmatpush1.bf16.msra.mxu0 %v266
    %344 = vmatprep.subr.bf16.mxu0 0
    %345 = vmatpush1.bf16.msra.mxu0 %v267
    %346 = vmatprep.subr.bf16.mxu0 0
    %347 = vmatpush1.bf16.msra.mxu0 %v268
    %348 = vmatprep.subr.bf16.mxu0 0
    %349 = vmatpush1.bf16.msra.mxu0 %v269
    %350 = vmatprep.mubr.bf16.mxu0 %v52
    %351 = vmatmul.mubr.bf16.gmra.mrb[0].mxu0 %v51
    %v352 = vpop.f32.mrb[0].mxu0
    %v353 = vadd.f32 %v124, %v352
    %v354 = vpop.f32.mrb[0].mxu0
    %v355 = vpop.f32.mrb[0].mxu0
    %v356 = vpop.f32.mrb[0].mxu0
    %357 = vdwg.mxu0
    %358 = vmatprep.subr.bf16.mxu0 0
    %359 = vmatpush1.bf16.msra.mxu0 %v270
    %360 = vmatprep.subr.bf16.mxu0 0
    %361 = vmatpush1.bf16.msra.mxu0 %v271
    %362 = vmatprep.subr.bf16.mxu0 0
    %363 = vmatpush1.bf16.msra.mxu0 %v272
    %364 = vmatprep.subr.bf16.mxu0 0
    %365 = vmatpush1.bf16.msra.mxu0 %v273
    %366 = vmatprep.subr.bf16.mxu0 0
    %367 = vmatpush1.bf16.msra.mxu0 %v274
    %368 = vmatprep.subr.bf16.mxu0 0
    %369 = vmatpush1.bf16.msra.mxu0 %v275
    %370 = vmatprep.subr.bf16.mxu0 0
    %371 = vmatpush1.bf16.msra.mxu0 %v276
    %372 = vmatprep.subr.bf16.mxu0 0
    %373 = vmatpush1.bf16.msra.mxu0 %v277
    %374 = vmatprep.subr.bf16.mxu0 0
    %375 = vmatpush1.bf16.msra.mxu0 %v278
    %376 = vmatprep.subr.bf16.mxu0 0
    %377 = vmatpush1.bf16.msra.mxu0 %v279
    %378 = vmatprep.subr.bf16.mxu0 0
    %379 = vmatpush1.bf16.msra.mxu0 %v280
    %380 = vmatprep.subr.bf16.mxu0 0
    %381 = vmatpush1.bf16.msra.mxu0 %v281
    %382 = vmatprep.subr.bf16.mxu0 0
    %383 = vmatpush1.bf16.msra.mxu0 %v282
    %384 = vmatprep.subr.bf16.mxu0 0
    %385 = vmatpush1.bf16.msra.mxu0 %v283
    %386 = vmatprep.subr.bf16.mxu0 0
    %387 = vmatpush1.bf16.msra.mxu0 %v284
    %388 = vmatprep.subr.bf16.mxu0 0
    %389 = vmatpush1.bf16.msra.mxu0 %v285
    %390 = vmatprep.mubr.bf16.mxu0 %v54
    %391 = vmatmul.mubr.bf16.gmra.mrb[0].mxu0 %v53
    %v392 = vpop.f32.mrb[0].mxu0
    %v393 = vadd.f32 %v353, %v392
    %v394 = vpop.f32.mrb[0].mxu0
    %v395 = vpop.f32.mrb[0].mxu0
    %v396 = vpop.f32.mrb[0].mxu0
    %397 = vdwg.mxu0
    %v398 = vmax.f32 %v393, 0.0
    %v399 = vpack.c.bf16 %v398, %v398
    %v400 = vld [vmem:[%s3] sm:$0xf]
    %v401 = vld [vmem:[%s3 + $0x4] sm:$0xf]
    %v402 = vld [vmem:[%s3 + $0x8] sm:$0xf]
    %v403 = vld [vmem:[%s3 + $0xc] sm:$0xf]
    %v404 = vld [vmem:[%s3 + $0x10] sm:$0xf]
    %v405 = vld [vmem:[%s3 + $0x14] sm:$0xf]
    %v406 = vld [vmem:[%s3 + $0x18] sm:$0xf]
    %v407 = vld [vmem:[%s3 + $0x1c] sm:$0xf]
    %v408 = vld [vmem:[%s3 + $0x20] sm:$0xf]
    %v409 = vld [vmem:[%s3 + $0x24] sm:$0xf]
    %v410 = vld [vmem:[%s3 + $0x28] sm:$0xf]
    %v411 = vld [vmem:[%s3 + $0x2c] sm:$0xf]
    %v412 = vld [vmem:[%s3 + $0x30] sm:$0xf]
    %v413 = vld [vmem:[%s3 + $0x34] sm:$0xf]
    %v414 = vld [vmem:[%s3 + $0x38] sm:$0xf]
    %v415 = vld [vmem:[%s3 + $0x3c] sm:$0xf]
    %v416 = vld [vmem:[%s4] sm:$0x1]
    %v418 = vlaneseq
    %v419 = vshrl.u32 %v418, 7
    %v420 = vsub.s32 0, %v419
    %v421 = vrot.slane %v416, %v420
    %v439 = vunpack.c.l.b16 %v400
    %v440 = vunpack.c.l.b16 %v401
    %v441 = vunpack.c.l.b16 %v402
    %v442 = vunpack.c.l.b16 %v403
    %v443 = vunpack.c.l.b16 %v404
    %v444 = vunpack.c.l.b16 %v405
    %v445 = vunpack.c.l.b16 %v406
    %v446 = vunpack.c.l.b16 %v407
    %v447 = vunpack.c.l.b16 %v408
    %v448 = vunpack.c.l.b16 %v409
    %v449 = vunpack.c.l.b16 %v410
    %v450 = vunpack.c.l.b16 %v411
    %v451 = vunpack.c.l.b16 %v412
    %v452 = vunpack.c.l.b16 %v413
    %v453 = vunpack.c.l.b16 %v414
    %v454 = vunpack.c.l.b16 %v415
    %v455 = vpack.c.b16 %v440, %v439
    %v456 = vpack.c.b16 %v442, %v441
    %v457 = vpack.c.b16 %v444, %v443
    %v458 = vpack.c.b16 %v446, %v445
    %v459 = vpack.c.b16 %v448, %v447
    %v460 = vpack.c.b16 %v450, %v449
    %v461 = vpack.c.b16 %v452, %v451
    %v462 = vpack.c.b16 %v454, %v453
    %471 = vmatprep.subr.bf16.mxu0 0
    %472 = vmatpush1.bf16.msra.mxu0 %v455
    %473 = vmatprep.subr.bf16.mxu0 0
    %474 = vmatpush1.bf16.msra.mxu0 %v456
    %475 = vmatprep.subr.bf16.mxu0 0
    %476 = vmatpush1.bf16.msra.mxu0 %v457
    %477 = vmatprep.subr.bf16.mxu0 0
    %478 = vmatpush1.bf16.msra.mxu0 %v458
    %479 = vmatprep.subr.bf16.mxu0 0
    %480 = vmatpush1.bf16.msra.mxu0 %v459
    %481 = vmatprep.subr.bf16.mxu0 0
    %482 = vmatpush1.bf16.msra.mxu0 %v460
    %483 = vmatprep.subr.bf16.mxu0 0
    %484 = vmatpush1.bf16.msra.mxu0 %v461
    %485 = vmatprep.subr.bf16.mxu0 0
    %486 = vmatpush1.bf16.msra.mxu0 %v462
    %487 = vmatprep.subr.bf16.mxu0 0
    %488 = vmatpush1.bf16.msra.mxu0 0
    %489 = vmatprep.subr.bf16.mxu0 0
    %490 = vmatpush1.bf16.msra.mxu0 0
    %491 = vmatprep.subr.bf16.mxu0 0
    %492 = vmatpush1.bf16.msra.mxu0 0
    %493 = vmatprep.subr.bf16.mxu0 0
    %494 = vmatpush1.bf16.msra.mxu0 0
    %495 = vmatprep.subr.bf16.mxu0 0
    %496 = vmatpush1.bf16.msra.mxu0 0
    %497 = vmatprep.subr.bf16.mxu0 0
    %498 = vmatpush1.bf16.msra.mxu0 0
    %499 = vmatprep.subr.bf16.mxu0 0
    %500 = vmatpush1.bf16.msra.mxu0 0
    %501 = vmatprep.subr.bf16.mxu0 0
    %502 = vmatpush1.bf16.msra.mxu0 0
    %503 = vmatprep.mubr.bf16.mxu0 0
    %504 = vmatmul.mubr.bf16.gmra.mrb[0].mxu0 %v399
    %v505 = vpop.f32.mrb[0].mxu0
    %v506 = vadd.f32 %v421, %v505
    %v507 = vpop.f32.mrb[0].mxu0
    %v508 = vpop.f32.mrb[0].mxu0
    %v509 = vpop.f32.mrb[0].mxu0
    %510 = vdwg.mxu0
    %v511 = vmax.f32 %v506, 0.0
    %v512 = vpack.c.bf16 %v511, %v511
    %v513 = vld [vmem:[%s5] sm:$0xf]
    %v514 = vld [vmem:[%s5 + $0x4] sm:$0xf]
    %v515 = vld [vmem:[%s5 + $0x8] sm:$0xf]
    %v516 = vld [vmem:[%s5 + $0xc] sm:$0xf]
    %v517 = vld [vmem:[%s5 + $0x10] sm:$0xf]
    %v518 = vld [vmem:[%s5 + $0x14] sm:$0xf]
    %v519 = vld [vmem:[%s5 + $0x18] sm:$0xf]
    %v520 = vld [vmem:[%s5 + $0x1c] sm:$0xf]
    %v521 = vld [vmem:[%s5 + $0x20] sm:$0xf]
    %v522 = vld [vmem:[%s5 + $0x24] sm:$0xf]
    %v523 = vld [vmem:[%s5 + $0x28] sm:$0xf]
    %v524 = vld [vmem:[%s5 + $0x2c] sm:$0xf]
    %v525 = vld [vmem:[%s5 + $0x30] sm:$0xf]
    %v526 = vld [vmem:[%s5 + $0x34] sm:$0xf]
    %v527 = vld [vmem:[%s5 + $0x38] sm:$0xf]
    %v528 = vld [vmem:[%s5 + $0x3c] sm:$0xf]
    %v529 = vld [vmem:[%s6] sm:$0x1]
    %v531 = vlaneseq
    %v532 = vshrl.u32 %v531, 7
    %v533 = vsub.s32 0, %v532
    %v534 = vrot.slane %v529, %v533
    %v552 = vunpack.c.l.b16 %v513
    %v553 = vunpack.c.l.b16 %v514
    %v554 = vunpack.c.l.b16 %v515
    %v555 = vunpack.c.l.b16 %v516
    %v556 = vunpack.c.l.b16 %v517
    %v557 = vunpack.c.l.b16 %v518
    %v558 = vunpack.c.l.b16 %v519
    %v559 = vunpack.c.l.b16 %v520
    %v560 = vunpack.c.l.b16 %v521
    %v561 = vunpack.c.l.b16 %v522
    %v562 = vunpack.c.l.b16 %v523
    %v563 = vunpack.c.l.b16 %v524
    %v564 = vunpack.c.l.b16 %v525
    %v565 = vunpack.c.l.b16 %v526
    %v566 = vunpack.c.l.b16 %v527
    %v567 = vunpack.c.l.b16 %v528
    %v568 = vpack.c.b16 %v553, %v552
    %v569 = vpack.c.b16 %v555, %v554
    %v570 = vpack.c.b16 %v557, %v556
    %v571 = vpack.c.b16 %v559, %v558
    %v572 = vpack.c.b16 %v561, %v560
    %v573 = vpack.c.b16 %v563, %v562
    %v574 = vpack.c.b16 %v565, %v564
    %v575 = vpack.c.b16 %v567, %v566
    %584 = vmatprep.subr.bf16.mxu0 0
    %585 = vmatpush1.bf16.msra.mxu0 %v568
    %586 = vmatprep.subr.bf16.mxu0 0
    %587 = vmatpush1.bf16.msra.mxu0 %v569
    %588 = vmatprep.subr.bf16.mxu0 0
    %589 = vmatpush1.bf16.msra.mxu0 %v570
    %590 = vmatprep.subr.bf16.mxu0 0
    %591 = vmatpush1.bf16.msra.mxu0 %v571
    %592 = vmatprep.subr.bf16.mxu0 0
    %593 = vmatpush1.bf16.msra.mxu0 %v572
    %594 = vmatprep.subr.bf16.mxu0 0
    %595 = vmatpush1.bf16.msra.mxu0 %v573
    %596 = vmatprep.subr.bf16.mxu0 0
    %597 = vmatpush1.bf16.msra.mxu0 %v574
    %598 = vmatprep.subr.bf16.mxu0 0
    %599 = vmatpush1.bf16.msra.mxu0 %v575
    %600 = vmatprep.subr.bf16.mxu0 0
    %601 = vmatpush1.bf16.msra.mxu0 0
    %602 = vmatprep.subr.bf16.mxu0 0
    %603 = vmatpush1.bf16.msra.mxu0 0
    %604 = vmatprep.subr.bf16.mxu0 0
    %605 = vmatpush1.bf16.msra.mxu0 0
    %606 = vmatprep.subr.bf16.mxu0 0
    %607 = vmatpush1.bf16.msra.mxu0 0
    %608 = vmatprep.subr.bf16.mxu0 0
    %609 = vmatpush1.bf16.msra.mxu0 0
    %610 = vmatprep.subr.bf16.mxu0 0
    %611 = vmatpush1.bf16.msra.mxu0 0
    %612 = vmatprep.subr.bf16.mxu0 0
    %613 = vmatpush1.bf16.msra.mxu0 0
    %614 = vmatprep.subr.bf16.mxu0 0
    %615 = vmatpush1.bf16.msra.mxu0 0
    %616 = vmatprep.mubr.bf16.mxu0 0
    %617 = vmatmul.mubr.bf16.gmra.mrb[0].mxu0 %v512
    %v618 = vpop.f32.mrb[0].mxu0
    %v619 = vadd.f32 %v534, %v618
    %v620 = vpop.f32.mrb[0].mxu0
    %v621 = vpop.f32.mrb[0].mxu0
    %v622 = vpop.f32.mrb[0].mxu0
    %623 = vdwg.mxu0
    %v624 = vlaneseq
    %v625 = vand.u32 %v624, 127
    %vm626 = vcmp.lt.s32.totalorder %v625, 10
    %v627 = vsel %vm626, %v619, -1e+30
    %vm628 = vcmask 1041408
    %v629 = vsel %vm628, %v627, -inf
    %630 = vmax.xlane.f32.xlu0 %v629
    %v631 = vpop.xlane.xlu0 %630
    %v632 = vsub.f32 %v627, %v631
    %v633 = vmul.f32 %v632, 1.442695
    %v634 = vpow.pop %v633
    %v635 = vsel %vm628, %v634, 0.0
    %636 = vadd.xlane.f32.xlu0 %v635
    %v637 = vpop.xlane.xlu0 %636
    %v638 = vlog2.pop %v637
    %v639 = vmul.f32 %v638, 0.6931472
    %v640 = vsub.f32 %v632, %v639
    %641 = vst [vmem:[#allocation2] sm:$0x3] %v640
    // Predicated region
    $region30: #{lenet_forward.7} parent=1 // pred_check
      _
    $region31: #{lenet_forward.7} parent=1 // pred_check_branch
      %643 = sbr.rel (0) target = $region33
    $region32: #{lenet_forward.7} parent=1 // pred_region
      %s645 = ssub.s32 32, 32
      %646 = vsyncadd [#allocation3], %s645
      %s648 = sshll.u32 [#allocation2], 4
      %s649 = int_to_ptr.vmem [resolvable:$true] %s648
      %651 = dma.vmem_to_hbm [thread:$0]  %s649, 32, %s7, [#allocation3]
    $region33: #{lenet_forward.7} parent=1 // pred_fallthru
      _
    // Predicated region
    $region34: #{lenet_forward.7} parent=1 // pred_check
      _
    $region35: #{lenet_forward.7} parent=1 // pred_check_branch
      %653 = sbr.rel (0) target = $region37
    $region36: #{lenet_forward.7} parent=1 // pred_region
      %654 = dma.done [#allocation3], 32
    $region37: #{lenet_forward.7} parent=1 // pred_fallthru
      _
    %655 = vsyncpa [#allocation3], 1

// kernel: lenet_forward.6
$region0: #{lenet_forward.6}
  #allocation0 [shape = 'u32[]', space=smem, size = 0x4, offset = 0x4, fixed_abs, tag = 'smem constant byte address 0x4 - core index']
  #allocation1 [shape = 'u32[144,128]{1,0:T(1,128)}', space=vmem, size = 0x12000, scoped, tag = 'internal scratch']
  %s0 = inlined_call_operand.vmem [shape: f32[18,256], index: 0, kind: input, shape index: {}]
  %s1 = inlined_call_operand.vmem [shape: bf16[3,256,256], index: 1, kind: input, shape index: {}]
  %s2 = inlined_call_operand.vmem [shape: f32[1,256], index: 2, kind: input, shape index: {}]
  %s3 = inlined_call_operand.vmem [shape: f32[1,32], index: 3, kind: input, shape index: {}]
  %s4 = inlined_call_operand.vmem [shape: f32[1,32], index: 4, kind: input, shape index: {}]
  %s5 = inlined_call_operand.vmem [shape: f32[8,128], index: 5, kind: output, shape index: {}]
  %s6 = sld [smem:[#allocation0]]
  $region30: #{lenet_forward.6} parent=0
    _
  %s8 = ssub.s32 1, %s6
  %s9 = scalar_select 0, %s8, %s6
  // Predicated region
  $region2: #{lenet_forward.6} parent=0 // pred_check
    _
  $region3: #{lenet_forward.6} parent=0 // pred_check_branch
    %11 = sbr.rel (0) target = $region5
  $region4: #{lenet_forward.6} parent=0 // pred_region
    _
  $region5: #{lenet_forward.6} parent=0 // pred_fallthru
    _
  // Predicated region
  $region6: #{lenet_forward.6} parent=0 // pred_check
    _
  $region7: #{lenet_forward.6} parent=0 // pred_check_branch
    %13 = sbr.rel (0) target = $region9
  $region8: #{lenet_forward.6} parent=0 // pred_region
    _
  $region9: #{lenet_forward.6} parent=0 // pred_fallthru
    _
  // Predicated region
  $region10: #{lenet_forward.6} parent=0 // pred_check
    _
  $region11: #{lenet_forward.6} parent=0 // pred_check_branch
    %15 = sbr.rel (0) target = $region13
  $region12: #{lenet_forward.6} parent=0 // pred_region
    _
  $region13: #{lenet_forward.6} parent=0 // pred_fallthru
    _
  // Predicated region
  $region14: #{lenet_forward.6} parent=0 // pred_check
    _
  $region15: #{lenet_forward.6} parent=0 // pred_check_branch
    %17 = sbr.rel (0) target = $region17
  $region16: #{lenet_forward.6} parent=0 // pred_region
    _
  $region17: #{lenet_forward.6} parent=0 // pred_fallthru
    _
  // Predicated region
  $region18: #{lenet_forward.6} parent=0 // pred_check
    _
  $region19: #{lenet_forward.6} parent=0 // pred_check_branch
    %19 = sbr.rel (0) target = $region21
  $region20: #{lenet_forward.6} parent=0 // pred_region
    _
  $region21: #{lenet_forward.6} parent=0 // pred_fallthru
    _
  %v20 = vlaneseq
  %v21 = vshrl.u32 %v20, 7
  %v22 = vadd.s32 %v21, 8
  %v23 = vand.u32 %v21, 7
  %v24 = vand.u32 %v22, 7
  %v25 = vld [vmem:[%s0] sm:$0xff]
  %v26 = vld [vmem:[%s0 + $0x8] sm:$0xff]
  %v27 = vld [vmem:[%s0 + $0x10] sm:$0xff]
  %v28 = vld [vmem:[%s0 + $0x18] sm:$0xff]
  %v29 = vpack.c.bf16 %v27, %v25
  %v30 = vpack.c.bf16 %v28, %v26
  %v31 = vld [vmem:[%s1] sm:$0xff]
  %v32 = vld [vmem:[%s1 + $0x8] sm:$0xff]
  %v33 = vld [vmem:[%s1 + $0x10] sm:$0xff]
  %v34 = vld [vmem:[%s1 + $0x18] sm:$0xff]
  %v35 = vld [vmem:[%s1 + $0x20] sm:$0xff]
  %v36 = vld [vmem:[%s1 + $0x28] sm:$0xff]
  %v37 = vld [vmem:[%s1 + $0x30] sm:$0xff]
  %v38 = vld [vmem:[%s1 + $0x38] sm:$0xff]
  %v39 = vld [vmem:[%s1 + $0x40] sm:$0xff]
  %v40 = vld [vmem:[%s1 + $0x48] sm:$0xff]
  %v41 = vld [vmem:[%s1 + $0x50] sm:$0xff]
  %v42 = vld [vmem:[%s1 + $0x58] sm:$0xff]
  %v43 = vld [vmem:[%s1 + $0x60] sm:$0xff]
  %v44 = vld [vmem:[%s1 + $0x68] sm:$0xff]
  %v45 = vld [vmem:[%s1 + $0x70] sm:$0xff]
  %v46 = vld [vmem:[%s1 + $0x78] sm:$0xff]
  %v47 = vld [vmem:[%s1 + $0x80] sm:$0xff]
  %v48 = vld [vmem:[%s1 + $0x88] sm:$0xff]
  %v49 = vld [vmem:[%s1 + $0x90] sm:$0xff]
  %v50 = vld [vmem:[%s1 + $0x98] sm:$0xff]
  %v51 = vld [vmem:[%s1 + $0xa0] sm:$0xff]
  %v52 = vld [vmem:[%s1 + $0xa8] sm:$0xff]
  %v53 = vld [vmem:[%s1 + $0xb0] sm:$0xff]
  %v54 = vld [vmem:[%s1 + $0xb8] sm:$0xff]
  %v55 = vld [vmem:[%s1 + $0xc0] sm:$0xff]
  %v56 = vld [vmem:[%s1 + $0xc8] sm:$0xff]
  %v57 = vld [vmem:[%s1 + $0xd0] sm:$0xff]
  %v58 = vld [vmem:[%s1 + $0xd8] sm:$0xff]
  %v59 = vld [vmem:[%s1 + $0xe0] sm:$0xff]
  %v60 = vld [vmem:[%s1 + $0xe8] sm:$0xff]
  %v61 = vld [vmem:[%s1 + $0xf0] sm:$0xff]
  %v62 = vld [vmem:[%s1 + $0xf8] sm:$0xff]
  %v95 = vunpack.c.l.b16 %v31
  %v96 = vunpack.c.h.b16 %v31
  %v97 = vunpack.c.l.b16 %v32
  %v98 = vunpack.c.h.b16 %v32
  %v99 = vunpack.c.l.b16 %v33
  %v100 = vunpack.c.h.b16 %v33
  %v101 = vunpack.c.l.b16 %v34
  %v102 = vunpack.c.h.b16 %v34
  %v103 = vunpack.c.l.b16 %v35
  %v104 = vunpack.c.h.b16 %v35
  %v105 = vunpack.c.l.b16 %v36
  %v106 = vunpack.c.h.b16 %v36
  %v107 = vunpack.c.l.b16 %v37
  %v108 = vunpack.c.h.b16 %v37
  %v109 = vunpack.c.l.b16 %v38
  %v110 = vunpack.c.h.b16 %v38
  %v111 = vunpack.c.l.b16 %v39
  %v112 = vunpack.c.h.b16 %v39
  %v113 = vunpack.c.l.b16 %v40
  %v114 = vunpack.c.h.b16 %v40
  %v115 = vunpack.c.l.b16 %v41
  %v116 = vunpack.c.h.b16 %v41
  %v117 = vunpack.c.l.b16 %v42
  %v118 = vunpack.c.h.b16 %v42
  %v119 = vunpack.c.l.b16 %v43
  %v120 = vunpack.c.h.b16 %v43
  %v121 = vunpack.c.l.b16 %v44
  %v122 = vunpack.c.h.b16 %v44
  %v123 = vunpack.c.l.b16 %v45
  %v124 = vunpack.c.h.b16 %v45
  %v125 = vunpack.c.l.b16 %v46
  %v126 = vunpack.c.h.b16 %v46
  %v127 = vunpack.c.l.b16 %v47
  %v128 = vunpack.c.h.b16 %v47
  %v129 = vunpack.c.l.b16 %v48
  %v130 = vunpack.c.h.b16 %v48
  %v131 = vunpack.c.l.b16 %v49
  %v132 = vunpack.c.h.b16 %v49
  %v133 = vunpack.c.l.b16 %v50
  %v134 = vunpack.c.h.b16 %v50
  %v135 = vunpack.c.l.b16 %v51
  %v136 = vunpack.c.h.b16 %v51
  %v137 = vunpack.c.l.b16 %v52
  %v138 = vunpack.c.h.b16 %v52
  %v139 = vunpack.c.l.b16 %v53
  %v140 = vunpack.c.h.b16 %v53
  %v141 = vunpack.c.l.b16 %v54
  %v142 = vunpack.c.h.b16 %v54
  %v143 = vunpack.c.l.b16 %v55
  %v144 = vunpack.c.h.b16 %v55
  %v145 = vunpack.c.l.b16 %v56
  %v146 = vunpack.c.h.b16 %v56
  %v147 = vunpack.c.l.b16 %v57
  %v148 = vunpack.c.h.b16 %v57
  %v149 = vunpack.c.l.b16 %v58
  %v150 = vunpack.c.h.b16 %v58
  %v151 = vunpack.c.l.b16 %v59
  %v152 = vunpack.c.h.b16 %v59
  %v153 = vunpack.c.l.b16 %v60
  %v154 = vunpack.c.h.b16 %v60
  %v155 = vunpack.c.l.b16 %v61
  %v156 = vunpack.c.h.b16 %v61
  %v157 = vunpack.c.l.b16 %v62
  %v158 = vunpack.c.h.b16 %v62
  %v159 = vpack.c.b16 %v97, %v95
  %v160 = vpack.c.b16 %v98, %v96
  %v161 = vpack.c.b16 %v101, %v99
  %v162 = vpack.c.b16 %v102, %v100
  %v163 = vpack.c.b16 %v105, %v103
  %v164 = vpack.c.b16 %v106, %v104
  %v165 = vpack.c.b16 %v109, %v107
  %v166 = vpack.c.b16 %v110, %v108
  %v167 = vpack.c.b16 %v113, %v111
  %v168 = vpack.c.b16 %v114, %v112
  %v169 = vpack.c.b16 %v117, %v115
  %v170 = vpack.c.b16 %v118, %v116
  %v171 = vpack.c.b16 %v121, %v119
  %v172 = vpack.c.b16 %v122, %v120
  %v173 = vpack.c.b16 %v125, %v123
  %v174 = vpack.c.b16 %v126, %v124
  %v175 = vpack.c.b16 %v129, %v127
  %v176 = vpack.c.b16 %v130, %v128
  %v177 = vpack.c.b16 %v133, %v131
  %v178 = vpack.c.b16 %v134, %v132
  %v179 = vpack.c.b16 %v137, %v135
  %v180 = vpack.c.b16 %v138, %v136
  %v181 = vpack.c.b16 %v141, %v139
  %v182 = vpack.c.b16 %v142, %v140
  %v183 = vpack.c.b16 %v145, %v143
  %v184 = vpack.c.b16 %v146, %v144
  %v185 = vpack.c.b16 %v149, %v147
  %v186 = vpack.c.b16 %v150, %v148
  %v187 = vpack.c.b16 %v153, %v151
  %v188 = vpack.c.b16 %v154, %v152
  %v189 = vpack.c.b16 %v157, %v155
  %v190 = vpack.c.b16 %v158, %v156
  %223 = vmatprep.subr.bf16.mxu0 %v160
  %224 = vmatpush1.bf16.msra.mxu0 %v159
  %225 = vmatprep.subr.bf16.mxu0 %v162
  %226 = vmatpush1.bf16.msra.mxu0 %v161
  %227 = vmatprep.subr.bf16.mxu0 %v164
  %228 = vmatpush1.bf16.msra.mxu0 %v163
  %229 = vmatprep.subr.bf16.mxu0 %v166
  %230 = vmatpush1.bf16.msra.mxu0 %v165
  %231 = vmatprep.subr.bf16.mxu0 %v168
  %232 = vmatpush1.bf16.msra.mxu0 %v167
  %233 = vmatprep.subr.bf16.mxu0 %v170
  %234 = vmatpush1.bf16.msra.mxu0 %v169
  %235 = vmatprep.subr.bf16.mxu0 %v172
  %236 = vmatpush1.bf16.msra.mxu0 %v171
  %237 = vmatprep.subr.bf16.mxu0 %v174
  %238 = vmatpush1.bf16.msra.mxu0 %v173
  %239 = vmatprep.subr.bf16.mxu0 %v176
  %240 = vmatpush1.bf16.msra.mxu0 %v175
  %241 = vmatprep.subr.bf16.mxu0 %v178
  %242 = vmatpush1.bf16.msra.mxu0 %v177
  %243 = vmatprep.subr.bf16.mxu0 %v180
  %244 = vmatpush1.bf16.msra.mxu0 %v179
  %245 = vmatprep.subr.bf16.mxu0 %v182
  %246 = vmatpush1.bf16.msra.mxu0 %v181
  %247 = vmatprep.subr.bf16.mxu0 %v184
  %248 = vmatpush1.bf16.msra.mxu0 %v183
  %249 = vmatprep.subr.bf16.mxu0 %v186
  %250 = vmatpush1.bf16.msra.mxu0 %v185
  %251 = vmatprep.subr.bf16.mxu0 %v188
  %252 = vmatpush1.bf16.msra.mxu0 %v187
  %253 = vmatprep.subr.bf16.mxu0 %v190
  %254 = vmatpush1.bf16.msra.mxu0 %v189
  %255 = vmatprep.mubr.bf16.mxu0 %v30
  %256 = vmatmul.mubr.bf16.gmra.mrb[0].mxu0 %v29
  %v257 = vpop.f32.mrb[0].mxu0
  %v258 = vadd.f32 0.0, %v257
  %v259 = vpop.f32.mrb[0].mxu0
  %v260 = vadd.f32 0.0, %v259
  %v261 = vpop.f32.mrb[0].mxu0
  %v262 = vadd.f32 0.0, %v261
  %v263 = vpop.f32.mrb[0].mxu0
  %v264 = vadd.f32 0.0, %v263
  %265 = vdwg.mxu0
  %vm266 = vcmp.ne.s32.totalorder %v23, 0
  %vm267 = vcmp.ne.s32.totalorder %v24, 0
  %v268 = vsel %vm266, 1.0, 0.0
  %v269 = vsel %vm267, 1.0, 0.0
  %v270 = vmul.f32 %v258, %v268
  %v271 = vmul.f32 %v260, %v268
  %v272 = vmul.f32 %v262, %v269
  %v273 = vmul.f32 %v264, %v269
  %v274 = vadd.f32 %v270, 0.0
  %v275 = vadd.f32 %v271, 0.0
  %v276 = vadd.f32 %v272, 0.0
  %v277 = vadd.f32 %v273, 0.0
  %v278 = vld [vmem:[%s0] sm:$0xfe]
  %v279 = vld [vmem:[%s0 + $0x8] sm:$0xfe]
  %v280 = vld [vmem:[%s0 + $0x10] sm:$0xff]
  %v281 = vld [vmem:[%s0 + $0x18] sm:$0xff]
  %v282 = vld [vmem:[%s0 + $0x20] sm:$0x1]
  %v283 = vld [vmem:[%s0 + $0x28] sm:$0x1]
  %v284 = vpack.c.bf16 %v280, %v278
  %v285 = vpack.c.bf16 %v281, %v279
  %v286 = vpack.c.bf16 %v282, %v282
  %v287 = vpack.c.bf16 %v283, %v283
  %s288 = scalar_lea.vmem %s1, 256
  %v289 = vld [vmem:[%s288] sm:$0xff]
  %v290 = vld [vmem:[%s288 + $0x8] sm:$0xff]
  %v291 = vld [vmem:[%s288 + $0x10] sm:$0xff]
  %v292 = vld [vmem:[%s288 + $0x18] sm:$0xff]
  %v293 = vld [vmem:[%s288 + $0x20] sm:$0xff]
  %v294 = vld [vmem:[%s288 + $0x28] sm:$0xff]
  %v295 = vld [vmem:[%s288 + $0x30] sm:$0xff]
  %v296 = vld [vmem:[%s288 + $0x38] sm:$0xff]
  %v297 = vld [vmem:[%s288 + $0x40] sm:$0xff]
  %v298 = vld [vmem:[%s288 + $0x48] sm:$0xff]
  %v299 = vld [vmem:[%s288 + $0x50] sm:$0xff]
  %v300 = vld [vmem:[%s288 + $0x58] sm:$0xff]
  %v301 = vld [vmem:[%s288 + $0x60] sm:$0xff]
  %v302 = vld [vmem:[%s288 + $0x68] sm:$0xff]
  %v303 = vld [vmem:[%s288 + $0x70] sm:$0xff]
  %v304 = vld [vmem:[%s288 + $0x78] sm:$0xff]
  %v305 = vld [vmem:[%s288 + $0x80] sm:$0xff]
  %v306 = vld [vmem:[%s288 + $0x88] sm:$0xff]
  %v307 = vld [vmem:[%s288 + $0x90] sm:$0xff]
  %v308 = vld [vmem:[%s288 + $0x98] sm:$0xff]
  %v309 = vld [vmem:[%s288 + $0xa0] sm:$0xff]
  %v310 = vld [vmem:[%s288 + $0xa8] sm:$0xff]
  %v311 = vld [vmem:[%s288 + $0xb0] sm:$0xff]
  %v312 = vld [vmem:[%s288 + $0xb8] sm:$0xff]
  %v313 = vld [vmem:[%s288 + $0xc0] sm:$0xff]
  %v314 = vld [vmem:[%s288 + $0xc8] sm:$0xff]
  %v315 = vld [vmem:[%s288 + $0xd0] sm:$0xff]
  %v316 = vld [vmem:[%s288 + $0xd8] sm:$0xff]
  %v317 = vld [vmem:[%s288 + $0xe0] sm:$0xff]
  %v318 = vld [vmem:[%s288 + $0xe8] sm:$0xff]
  %v319 = vld [vmem:[%s288 + $0xf0] sm:$0xff]
  %v320 = vld [vmem:[%s288 + $0xf8] sm:$0xff]
  %vm321 = vsmask.f32 7424
  %v323 = vshrl.u32 %v284, 16
  %v325 = vshll.u32 %v284, 16
  %v327 = vrot.slane %v325, 1
  %v328 = vor.u32 %v323, %v327
  %v330 = vshll.u32 %v286, 16
  %v332 = vrot.slane %v330, 1
  %v333 = vsel %vm321, %v328, %v332
  %v335 = vshrl.u32 %v285, 16
  %v337 = vshll.u32 %v285, 16
  %v339 = vrot.slane %v337, 1
  %v340 = vor.u32 %v335, %v339
  %v342 = vshll.u32 %v287, 16
  %v344 = vrot.slane %v342, 1
  %v345 = vsel %vm321, %v340, %v344
  %v380 = vunpack.c.l.b16 %v289
  %v381 = vunpack.c.h.b16 %v289
  %v382 = vunpack.c.l.b16 %v290
  %v383 = vunpack.c.h.b16 %v290
  %v384 = vunpack.c.l.b16 %v291
  %v385 = vunpack.c.h.b16 %v291
  %v386 = vunpack.c.l.b16 %v292
  %v387 = vunpack.c.h.b16 %v292
  %v388 = vunpack.c.l.b16 %v293
  %v389 = vunpack.c.h.b16 %v293
  %v390 = vunpack.c.l.b16 %v294
  %v391 = vunpack.c.h.b16 %v294
  %v392 = vunpack.c.l.b16 %v295
  %v393 = vunpack.c.h.b16 %v295
  %v394 = vunpack.c.l.b16 %v296
  %v395 = vunpack.c.h.b16 %v296
  %v396 = vunpack.c.l.b16 %v297
  %v397 = vunpack.c.h.b16 %v297
  %v398 = vunpack.c.l.b16 %v298
  %v399 = vunpack.c.h.b16 %v298
  %v400 = vunpack.c.l.b16 %v299
  %v401 = vunpack.c.h.b16 %v299
  %v402 = vunpack.c.l.b16 %v300
  %v403 = vunpack.c.h.b16 %v300
  %v404 = vunpack.c.l.b16 %v301
  %v405 = vunpack.c.h.b16 %v301
  %v406 = vunpack.c.l.b16 %v302
  %v407 = vunpack.c.h.b16 %v302
  %v408 = vunpack.c.l.b16 %v303
  %v409 = vunpack.c.h.b16 %v303
  %v410 = vunpack.c.l.b16 %v304
  %v411 = vunpack.c.h.b16 %v304
  %v412 = vunpack.c.l.b16 %v305
  %v413 = vunpack.c.h.b16 %v305
  %v414 = vunpack.c.l.b16 %v306
  %v415 = vunpack.c.h.b16 %v306
  %v416 = vunpack.c.l.b16 %v307
  %v417 = vunpack.c.h.b16 %v307
  %v418 = vunpack.c.l.b16 %v308
  %v419 = vunpack.c.h.b16 %v308
  %v420 = vunpack.c.l.b16 %v309
  %v421 = vunpack.c.h.b16 %v309
  %v422 = vunpack.c.l.b16 %v310
  %v423 = vunpack.c.h.b16 %v310
  %v424 = vunpack.c.l.b16 %v311
  %v425 = vunpack.c.h.b16 %v311
  %v426 = vunpack.c.l.b16 %v312
  %v427 = vunpack.c.h.b16 %v312
  %v428 = vunpack.c.l.b16 %v313
  %v429 = vunpack.c.h.b16 %v313
  %v430 = vunpack.c.l.b16 %v314
  %v431 = vunpack.c.h.b16 %v314
  %v432 = vunpack.c.l.b16 %v315
  %v433 = vunpack.c.h.b16 %v315
  %v434 = vunpack.c.l.b16 %v316
  %v435 = vunpack.c.h.b16 %v316
  %v436 = vunpack.c.l.b16 %v317
  %v437 = vunpack.c.h.b16 %v317
  %v438 = vunpack.c.l.b16 %v318
  %v439 = vunpack.c.h.b16 %v318
  %v440 = vunpack.c.l.b16 %v319
  %v441 = vunpack.c.h.b16 %v319
  %v442 = vunpack.c.l.b16 %v320
  %v443 = vunpack.c.h.b16 %v320
  %v444 = vpack.c.b16 %v382, %v380
  %v445 = vpack.c.b16 %v383, %v381
  %v446 = vpack.c.b16 %v386, %v384
  %v447 = vpack.c.b16 %v387, %v385
  %v448 = vpack.c.b16 %v390, %v388
  %v449 = vpack.c.b16 %v391, %v389
  %v450 = vpack.c.b16 %v394, %v392
  %v451 = vpack.c.b16 %v395, %v393
  %v452 = vpack.c.b16 %v398, %v396
  %v453 = vpack.c.b16 %v399, %v397
  %v454 = vpack.c.b16 %v402, %v400
  %v455 = vpack.c.b16 %v403, %v401
  %v456 = vpack.c.b16 %v406, %v404
  %v457 = vpack.c.b16 %v407, %v405
  %v458 = vpack.c.b16 %v410, %v408
  %v459 = vpack.c.b16 %v411, %v409
  %v460 = vpack.c.b16 %v414, %v412
  %v461 = vpack.c.b16 %v415, %v413
  %v462 = vpack.c.b16 %v418, %v416
  %v463 = vpack.c.b16 %v419, %v417
  %v464 = vpack.c.b16 %v422, %v420
  %v465 = vpack.c.b16 %v423, %v421
  %v466 = vpack.c.b16 %v426, %v424
  %v467 = vpack.c.b16 %v427, %v425
  %v468 = vpack.c.b16 %v430, %v428
  %v469 = vpack.c.b16 %v431, %v429
  %v470 = vpack.c.b16 %v434, %v432
  %v471 = vpack.c.b16 %v435, %v433
  %v472 = vpack.c.b16 %v438, %v436
  %v473 = vpack.c.b16 %v439, %v437
  %v474 = vpack.c.b16 %v442, %v440
  %v475 = vpack.c.b16 %v443, %v441
  %508 = vmatprep.subr.bf16.mxu0 %v445
  %509 = vmatpush1.bf16.msra.mxu0 %v444
  %510 = vmatprep.subr.bf16.mxu0 %v447
  %511 = vmatpush1.bf16.msra.mxu0 %v446
  %512 = vmatprep.subr.bf16.mxu0 %v449
  %513 = vmatpush1.bf16.msra.mxu0 %v448
  %514 = vmatprep.subr.bf16.mxu0 %v451
  %515 = vmatpush1.bf16.msra.mxu0 %v450
  %516 = vmatprep.subr.bf16.mxu0 %v453
  %517 = vmatpush1.bf16.msra.mxu0 %v452
  %518 = vmatprep.subr.bf16.mxu0 %v455
  %519 = vmatpush1.bf16.msra.mxu0 %v454
  %520 = vmatprep.subr.bf16.mxu0 %v457
  %521 = vmatpush1.bf16.msra.mxu0 %v456
  %522 = vmatprep.subr.bf16.mxu0 %v459
  %523 = vmatpush1.bf16.msra.mxu0 %v458
  %524 = vmatprep.subr.bf16.mxu0 %v461
  %525 = vmatpush1.bf16.msra.mxu0 %v460
  %526 = vmatprep.subr.bf16.mxu0 %v463
  %527 = vmatpush1.bf16.msra.mxu0 %v462
  %528 = vmatprep.subr.bf16.mxu0 %v465
  %529 = vmatpush1.bf16.msra.mxu0 %v464
  %530 = vmatprep.subr.bf16.mxu0 %v467
  %531 = vmatpush1.bf16.msra.mxu0 %v466
  %532 = vmatprep.subr.bf16.mxu0 %v469
  %533 = vmatpush1.bf16.msra.mxu0 %v468
  %534 = vmatprep.subr.bf16.mxu0 %v471
  %535 = vmatpush1.bf16.msra.mxu0 %v470
  %536 = vmatprep.subr.bf16.mxu0 %v473
  %537 = vmatpush1.bf16.msra.mxu0 %v472
  %538 = vmatprep.subr.bf16.mxu0 %v475
  %539 = vmatpush1.bf16.msra.mxu0 %v474
  %540 = vmatprep.mubr.bf16.mxu0 %v345
  %541 = vmatmul.mubr.bf16.gmra.mrb[0].mxu0 %v333
  %v542 = vpop.f32.mrb[0].mxu0
  %v543 = vadd.f32 0.0, %v542
  %v544 = vpop.f32.mrb[0].mxu0
  %v545 = vadd.f32 0.0, %v544
  %v546 = vpop.f32.mrb[0].mxu0
  %v547 = vadd.f32 0.0, %v546
  %v548 = vpop.f32.mrb[0].mxu0
  %v549 = vadd.f32 0.0, %v548
  %550 = vdwg.mxu0
  %v551 = vadd.f32 %v274, %v543
  %v552 = vadd.f32 %v275, %v545
  %v553 = vadd.f32 %v276, %v547
  %v554 = vadd.f32 %v277, %v549
  %v555 = vld [vmem:[%s0] sm:$0xfc]
  %v556 = vld [vmem:[%s0 + $0x8] sm:$0xfc]
  %v557 = vld [vmem:[%s0 + $0x20] sm:$0x3]
  %v558 = vld [vmem:[%s0 + $0x28] sm:$0x3]
  %v559 = vpack.c.bf16 %v280, %v555
  %v560 = vpack.c.bf16 %v281, %v556
  %v561 = vpack.c.bf16 %v557, %v557
  %v562 = vpack.c.bf16 %v558, %v558
  %s563 = scalar_lea.vmem %s1, 512
  %v564 = vld [vmem:[%s563] sm:$0xff]
  %v565 = vld [vmem:[%s563 + $0x8] sm:$0xff]
  %v566 = vld [vmem:[%s563 + $0x10] sm:$0xff]
  %v567 = vld [vmem:[%s563 + $0x18] sm:$0xff]
  %v568 = vld [vmem:[%s563 + $0x20] sm:$0xff]
  %v569 = vld [vmem:[%s563 + $0x28] sm:$0xff]
  %v570 = vld [vmem:[%s563 + $0x30] sm:$0xff]
  %v571 = vld [vmem:[%s563 + $0x38] sm:$0xff]
  %v572 = vld [vmem:[%s563 + $0x40] sm:$0xff]
  %v573 = vld [vmem:[%s563 + $0x48] sm:$0xff]
  %v574 = vld [vmem:[%s563 + $0x50] sm:$0xff]
  %v575 = vld [vmem:[%s563 + $0x58] sm:$0xff]
  %v576 = vld [vmem:[%s563 + $0x60] sm:$0xff]
  %v577 = vld [vmem:[%s563 + $0x68] sm:$0xff]
  %v578 = vld [vmem:[%s563 + $0x70] sm:$0xff]
  %v579 = vld [vmem:[%s563 + $0x78] sm:$0xff]
  %v580 = vld [vmem:[%s563 + $0x80] sm:$0xff]
  %v581 = vld [vmem:[%s563 + $0x88] sm:$0xff]
  %v582 = vld [vmem:[%s563 + $0x90] sm:$0xff]
  %v583 = vld [vmem:[%s563 + $0x98] sm:$0xff]
  %v584 = vld [vmem:[%s563 + $0xa0] sm:$0xff]
  %v585 = vld [vmem:[%s563 + $0xa8] sm:$0xff]
  %v586 = vld [vmem:[%s563 + $0xb0] sm:$0xff]
  %v587 = vld [vmem:[%s563 + $0xb8] sm:$0xff]
  %v588 = vld [vmem:[%s563 + $0xc0] sm:$0xff]
  %v589 = vld [vmem:[%s563 + $0xc8] sm:$0xff]
  %v590 = vld [vmem:[%s563 + $0xd0] sm:$0xff]
  %v591 = vld [vmem:[%s563 + $0xd8] sm:$0xff]
  %v592 = vld [vmem:[%s563 + $0xe0] sm:$0xff]
  %v593 = vld [vmem:[%s563 + $0xe8] sm:$0xff]
  %v594 = vld [vmem:[%s563 + $0xf0] sm:$0xff]
  %v595 = vld [vmem:[%s563 + $0xf8] sm:$0xff]
  %vm600 = vcmask 1046528
  %v601 = vrot.slane %v559, 1
  %v602 = vrot.slane %v561, 1
  %v603 = vsel %vm600, %v601, %v602
  %v604 = vrot.slane %v560, 1
  %v605 = vrot.slane %v562, 1
  %v606 = vsel %vm600, %v604, %v605
  %v641 = vunpack.c.l.b16 %v564
  %v642 = vunpack.c.h.b16 %v564
  %v643 = vunpack.c.l.b16 %v565
  %v644 = vunpack.c.h.b16 %v565
  %v645 = vunpack.c.l.b16 %v566
  %v646 = vunpack.c.h.b16 %v566
  %v647 = vunpack.c.l.b16 %v567
  %v648 = vunpack.c.h.b16 %v567
  %v649 = vunpack.c.l.b16 %v568
  %v650 = vunpack.c.h.b16 %v568
  %v651 = vunpack.c.l.b16 %v569
  %v652 = vunpack.c.h.b16 %v569
  %v653 = vunpack.c.l.b16 %v570
  %v654 = vunpack.c.h.b16 %v570
  %v655 = vunpack.c.l.b16 %v571
  %v656 = vunpack.c.h.b16 %v571
  %v657 = vunpack.c.l.b16 %v572
  %v658 = vunpack.c.h.b16 %v572
  %v659 = vunpack.c.l.b16 %v573
  %v660 = vunpack.c.h.b16 %v573
  %v661 = vunpack.c.l.b16 %v574
  %v662 = vunpack.c.h.b16 %v574
  %v663 = vunpack.c.l.b16 %v575
  %v664 = vunpack.c.h.b16 %v575
  %v665 = vunpack.c.l.b16 %v576
  %v666 = vunpack.c.h.b16 %v576
  %v667 = vunpack.c.l.b16 %v577
  %v668 = vunpack.c.h.b16 %v577
  %v669 = vunpack.c.l.b16 %v578
  %v670 = vunpack.c.h.b16 %v578
  %v671 = vunpack.c.l.b16 %v579
  %v672 = vunpack.c.h.b16 %v579
  %v673 = vunpack.c.l.b16 %v580
  %v674 = vunpack.c.h.b16 %v580
  %v675 = vunpack.c.l.b16 %v581
  %v676 = vunpack.c.h.b16 %v581
  %v677 = vunpack.c.l.b16 %v582
  %v678 = vunpack.c.h.b16 %v582
  %v679 = vunpack.c.l.b16 %v583
  %v680 = vunpack.c.h.b16 %v583
  %v681 = vunpack.c.l.b16 %v584
  %v682 = vunpack.c.h.b16 %v584
  %v683 = vunpack.c.l.b16 %v585
  %v684 = vunpack.c.h.b16 %v585
  %v685 = vunpack.c.l.b16 %v586
  %v686 = vunpack.c.h.b16 %v586
  %v687 = vunpack.c.l.b16 %v587
  %v688 = vunpack.c.h.b16 %v587
  %v689 = vunpack.c.l.b16 %v588
  %v690 = vunpack.c.h.b16 %v588
  %v691 = vunpack.c.l.b16 %v589
  %v692 = vunpack.c.h.b16 %v589
  %v693 = vunpack.c.l.b16 %v590
  %v694 = vunpack.c.h.b16 %v590
  %v695 = vunpack.c.l.b16 %v591
  %v696 = vunpack.c.h.b16 %v591
  %v697 = vunpack.c.l.b16 %v592
  %v698 = vunpack.c.h.b16 %v592
  %v699 = vunpack.c.l.b16 %v593
  %v700 = vunpack.c.h.b16 %v593
  %v701 = vunpack.c.l.b16 %v594
  %v702 = vunpack.c.h.b16 %v594
  %v703 = vunpack.c.l.b16 %v595
  %v704 = vunpack.c.h.b16 %v595
  %v705 = vpack.c.b16 %v643, %v641
  %v706 = vpack.c.b16 %v644, %v642
  %v707 = vpack.c.b16 %v647, %v645
  %v708 = vpack.c.b16 %v648, %v646
  %v709 = vpack.c.b16 %v651, %v649
  %v710 = vpack.c.b16 %v652, %v650
  %v711 = vpack.c.b16 %v655, %v653
  %v712 = vpack.c.b16 %v656, %v654
  %v713 = vpack.c.b16 %v659, %v657
  %v714 = vpack.c.b16 %v660, %v658
  %v715 = vpack.c.b16 %v663, %v661
  %v716 = vpack.c.b16 %v664, %v662
  %v717 = vpack.c.b16 %v667, %v665
  %v718 = vpack.c.b16 %v668, %v666
  %v719 = vpack.c.b16 %v671, %v669
  %v720 = vpack.c.b16 %v672, %v670
  %v721 = vpack.c.b16 %v675, %v673
  %v722 = vpack.c.b16 %v676, %v674
  %v723 = vpack.c.b16 %v679, %v677
  %v724 = vpack.c.b16 %v680, %v678
  %v725 = vpack.c.b16 %v683, %v681
  %v726 = vpack.c.b16 %v684, %v682
  %v727 = vpack.c.b16 %v687, %v685
  %v728 = vpack.c.b16 %v688, %v686
  %v729 = vpack.c.b16 %v691, %v689
  %v730 = vpack.c.b16 %v692, %v690
  %v731 = vpack.c.b16 %v695, %v693
  %v732 = vpack.c.b16 %v696, %v694
  %v733 = vpack.c.b16 %v699, %v697
  %v734 = vpack.c.b16 %v700, %v698
  %v735 = vpack.c.b16 %v703, %v701
  %v736 = vpack.c.b16 %v704, %v702
  %769 = vmatprep.subr.bf16.mxu0 %v706
  %770 = vmatpush1.bf16.msra.mxu0 %v705
  %771 = vmatprep.subr.bf16.mxu0 %v708
  %772 = vmatpush1.bf16.msra.mxu0 %v707
  %773 = vmatprep.subr.bf16.mxu0 %v710
  %774 = vmatpush1.bf16.msra.mxu0 %v709
  %775 = vmatprep.subr.bf16.mxu0 %v712
  %776 = vmatpush1.bf16.msra.mxu0 %v711
  %777 = vmatprep.subr.bf16.mxu0 %v714
  %778 = vmatpush1.bf16.msra.mxu0 %v713
  %779 = vmatprep.subr.bf16.mxu0 %v716
  %780 = vmatpush1.bf16.msra.mxu0 %v715
  %781 = vmatprep.subr.bf16.mxu0 %v718
  %782 = vmatpush1.bf16.msra.mxu0 %v717
  %783 = vmatprep.subr.bf16.mxu0 %v720
  %784 = vmatpush1.bf16.msra.mxu0 %v719
  %785 = vmatprep.subr.bf16.mxu0 %v722
  %786 = vmatpush1.bf16.msra.mxu0 %v721
  %787 = vmatprep.subr.bf16.mxu0 %v724
  %788 = vmatpush1.bf16.msra.mxu0 %v723
  %789 = vmatprep.subr.bf16.mxu0 %v726
  %790 = vmatpush1.bf16.msra.mxu0 %v725
  %791 = vmatprep.subr.bf16.mxu0 %v728
  %792 = vmatpush1.bf16.msra.mxu0 %v727
  %793 = vmatprep.subr.bf16.mxu0 %v730
  %794 = vmatpush1.bf16.msra.mxu0 %v729
  %795 = vmatprep.subr.bf16.mxu0 %v732
  %796 = vmatpush1.bf16.msra.mxu0 %v731
  %797 = vmatprep.subr.bf16.mxu0 %v734
  %798 = vmatpush1.bf16.msra.mxu0 %v733
  %799 = vmatprep.subr.bf16.mxu0 %v736
  %800 = vmatpush1.bf16.msra.mxu0 %v735
  %801 = vmatprep.mubr.bf16.mxu0 %v606
  %802 = vmatmul.mubr.bf16.gmra.mrb[0].mxu0 %v603
  %v803 = vpop.f32.mrb[0].mxu0
  %v804 = vadd.f32 0.0, %v803
  %v805 = vpop.f32.mrb[0].mxu0
  %v806 = vadd.f32 0.0, %v805
  %v807 = vpop.f32.mrb[0].mxu0
  %v808 = vadd.f32 0.0, %v807
  %v809 = vpop.f32.mrb[0].mxu0
  %v810 = vadd.f32 0.0, %v809
  %811 = vdwg.mxu0
  %vm812 = vcmp.ne.s32.totalorder %v23, 7
  %vm813 = vcmp.ne.s32.totalorder %v24, 7
  %v814 = vsel %vm812, 1.0, 0.0
  %v815 = vsel %vm813, 1.0, 0.0
  %v816 = vmul.f32 %v804, %v814
  %v817 = vmul.f32 %v806, %v814
  %v818 = vmul.f32 %v808, %v815
  %v819 = vmul.f32 %v810, %v815
  %v820 = vadd.f32 %v551, %v816
  %v821 = vadd.f32 %v552, %v817
  %v822 = vadd.f32 %v553, %v818
  %v823 = vadd.f32 %v554, %v819
  %v824 = vld [vmem:[%s2] sm:$0x3]
  %v826 = vlaneseq
  %v827 = vshrl.u32 %v826, 7
  %v828 = vsub.s32 0, %v827
  %v829 = vrot.slane %v824, %v828
  %v830 = vlaneseq
  %v831 = vshrl.u32 %v830, 7
  %v832 = vsub.s32 1, %v831
  %v833 = vrot.slane %v824, %v832
  %v836 = vadd.f32 %v820, %v829
  %v837 = vadd.f32 %v821, %v833
  %v838 = vadd.f32 %v822, %v829
  %v839 = vadd.f32 %v823, %v833
  %v840 = vmax.f32 %v836, 0.0
  %v841 = vmax.f32 %v837, 0.0
  %v842 = vmax.f32 %v838, 0.0
  %v843 = vmax.f32 %v839, 0.0
  %v844 = vlaneseq
  %v845 = vand.u32 %v844, 127
  %v846 = vmul.u32 %v21, 2
  %vm847 = vcmp.eq.s32.totalorder %v845, %v846
  %v848 = vsel %vm847, 1.0, 0.0
  %v849 = vadd.s32 %v846, 1
  %vm850 = vcmp.eq.s32.totalorder %v845, %v849
  %v851 = vsel %vm850, 1.0, 0.0
  %vm852 = vcmask 130048
  %v854 = vsel %vm852, %v848, 0
  %856 = vmatprep.subr.mxu0 %v841
  %857 = vmatpush1.msra.mxu0 %v840
  %858 = vmatprep.subr.mxu0 %v843
  %859 = vmatpush1.msra.mxu0 %v842
  %860 = vmatprep.subr.mxu0 0.0
  %861 = vmatpush1.msra.mxu0 0.0
  %862 = vmatprep.subr.mxu0 0.0
  %863 = vmatpush1.msra.mxu0 0.0
  %864 = vmatprep.subr.mxu0 0.0
  %865 = vmatpush1.msra.mxu0 0.0
  %866 = vmatprep.subr.mxu0 0.0
  %867 = vmatpush1.msra.mxu0 0.0
  %868 = vmatprep.subr.mxu0 0.0
  %869 = vmatpush1.msra.mxu0 0.0
  %870 = vmatprep.subr.mxu0 0.0
  %871 = vmatpush1.msra.mxu0 0.0
  %872 = vmatprep.subr.mxu0 0.0
  %873 = vmatpush1.msra.mxu0 0.0
  %874 = vmatprep.subr.mxu0 0.0
  %875 = vmatpush1.msra.mxu0 0.0
  %876 = vmatprep.subr.mxu0 0.0
  %877 = vmatpush1.msra.mxu0 0.0
  %878 = vmatprep.subr.mxu0 0.0
  %879 = vmatpush1.msra.mxu0 0.0
  %880 = vmatprep.subr.mxu0 0.0
  %881 = vmatpush1.msra.mxu0 0.0
  %882 = vmatprep.subr.mxu0 0.0
  %883 = vmatpush1.msra.mxu0 0.0
  %884 = vmatprep.subr.mxu0 0.0
  %885 = vmatpush1.msra.mxu0 0.0
  %886 = vmatprep.subr.mxu0 0.0
  %887 = vmatpush1.msra.mxu0 0.0
  %888 = vmatprep.subr.mxu0 0.0
  %889 = vmatpush1.msra.mxu0 0.0
  %890 = vmatprep.subr.mxu0 0.0
  %891 = vmatpush1.msra.mxu0 0.0
  %892 = vmatprep.subr.mxu0 0.0
  %893 = vmatpush1.msra.mxu0 0.0
  %894 = vmatprep.subr.mxu0 0.0
  %895 = vmatpush1.msra.mxu0 0.0
  %896 = vmatprep.subr.mxu0 0.0
  %897 = vmatpush1.msra.mxu0 0.0
  %898 = vmatprep.subr.mxu0 0.0
  %899 = vmatpush1.msra.mxu0 0.0
  %900 = vmatprep.subr.mxu0 0.0
  %901 = vmatpush1.msra.mxu0 0.0
  %902 = vmatprep.subr.mxu0 0.0
  %903 = vmatpush1.msra.mxu0 0.0
  %904 = vmatprep.subr.mxu0 0.0
  %905 = vmatpush1.msra.mxu0 0.0
  %906 = vmatprep.subr.mxu0 0.0
  %907 = vmatpush1.msra.mxu0 0.0
  %908 = vmatprep.subr.mxu0 0.0
  %909 = vmatpush1.msra.mxu0 0.0
  %910 = vmatprep.subr.mxu0 0.0
  %911 = vmatpush1.msra.mxu0 0.0
  %912 = vmatprep.subr.mxu0 0.0
  %913 = vmatpush1.msra.mxu0 0.0
  %914 = vmatprep.subr.mxu0 0.0
  %915 = vmatpush1.msra.mxu0 0.0
  %916 = vmatprep.subr.mxu0 0.0
  %917 = vmatpush1.msra.mxu0 0.0
  %918 = vmatprep.subr.mxu0 0.0
  %919 = vmatpush1.msra.mxu0 0.0
  %920 = vmatprep.mubr.f32.mxu0 0.0
  %921 = vmatmul.mubr.f32.gmra.mrb[0].mxu0 %v854
  %v922 = vpop.f32.mrb[0].mxu0
  %v923 = vadd.f32 0.0, %v922
  %v924 = vpop.f32.mrb[0].mxu0
  %v925 = vadd.f32 0.0, %v924
  %926 = vdwg.mxu0
  %v928 = vsel %vm852, %v851, 0
  %930 = vmatprep.subr.mxu0 %v841
  %931 = vmatpush1.msra.mxu0 %v840
  %932 = vmatprep.subr.mxu0 %v843
  %933 = vmatpush1.msra.mxu0 %v842
  %934 = vmatprep.subr.mxu0 0.0
  %935 = vmatpush1.msra.mxu0 0.0
  %936 = vmatprep.subr.mxu0 0.0
  %937 = vmatpush1.msra.mxu0 0.0
  %938 = vmatprep.subr.mxu0 0.0
  %939 = vmatpush1.msra.mxu0 0.0
  %940 = vmatprep.subr.mxu0 0.0
  %941 = vmatpush1.msra.mxu0 0.0
  %942 = vmatprep.subr.mxu0 0.0
  %943 = vmatpush1.msra.mxu0 0.0
  %944 = vmatprep.subr.mxu0 0.0
  %945 = vmatpush1.msra.mxu0 0.0
  %946 = vmatprep.subr.mxu0 0.0
  %947 = vmatpush1.msra.mxu0 0.0
  %948 = vmatprep.subr.mxu0 0.0
  %949 = vmatpush1.msra.mxu0 0.0
  %950 = vmatprep.subr.mxu0 0.0
  %951 = vmatpush1.msra.mxu0 0.0
  %952 = vmatprep.subr.mxu0 0.0
  %953 = vmatpush1.msra.mxu0 0.0
  %954 = vmatprep.subr.mxu0 0.0
  %955 = vmatpush1.msra.mxu0 0.0
  %956 = vmatprep.subr.mxu0 0.0
  %957 = vmatpush1.msra.mxu0 0.0
  %958 = vmatprep.subr.mxu0 0.0
  %959 = vmatpush1.msra.mxu0 0.0
  %960 = vmatprep.subr.mxu0 0.0
  %961 = vmatpush1.msra.mxu0 0.0
  %962 = vmatprep.subr.mxu0 0.0
  %963 = vmatpush1.msra.mxu0 0.0
  %964 = vmatprep.subr.mxu0 0.0
  %965 = vmatpush1.msra.mxu0 0.0
  %966 = vmatprep.subr.mxu0 0.0
  %967 = vmatpush1.msra.mxu0 0.0
  %968 = vmatprep.subr.mxu0 0.0
  %969 = vmatpush1.msra.mxu0 0.0
  %970 = vmatprep.subr.mxu0 0.0
  %971 = vmatpush1.msra.mxu0 0.0
  %972 = vmatprep.subr.mxu0 0.0
  %973 = vmatpush1.msra.mxu0 0.0
  %974 = vmatprep.subr.mxu0 0.0
  %975 = vmatpush1.msra.mxu0 0.0
  %976 = vmatprep.subr.mxu0 0.0
  %977 = vmatpush1.msra.mxu0 0.0
  %978 = vmatprep.subr.mxu0 0.0
  %979 = vmatpush1.msra.mxu0 0.0
  %980 = vmatprep.subr.mxu0 0.0
  %981 = vmatpush1.msra.mxu0 0.0
  %982 = vmatprep.subr.mxu0 0.0
  %983 = vmatpush1.msra.mxu0 0.0
  %984 = vmatprep.subr.mxu0 0.0
  %985 = vmatpush1.msra.mxu0 0.0
  %986 = vmatprep.subr.mxu0 0.0
  %987 = vmatpush1.msra.mxu0 0.0
  %988 = vmatprep.subr.mxu0 0.0
  %989 = vmatpush1.msra.mxu0 0.0
  %990 = vmatprep.subr.mxu0 0.0
  %991 = vmatpush1.msra.mxu0 0.0
  %992 = vmatprep.subr.mxu0 0.0
  %993 = vmatpush1.msra.mxu0 0.0
  %994 = vmatprep.mubr.f32.mxu0 0.0
  %995 = vmatmul.mubr.f32.gmra.mrb[0].mxu0 %v928
  %v996 = vpop.f32.mrb[0].mxu0
  %v997 = vadd.f32 0.0, %v996
  %v998 = vpop.f32.mrb[0].mxu0
  %v999 = vadd.f32 0.0, %v998
  %1000 = vdwg.mxu0
  %v1001 = vmax.f32 %v923, %v997
  %v1002 = vmax.f32 %v925, %v999
  %v1003 = vadd.s32 %v21, 16
  %v1004 = vadd.s32 %v21, 24
  %v1005 = vadd.s32 %v21, 32
  %v1006 = vadd.s32 %v21, 40
  %v1007 = vadd.s32 %v21, 48
  %v1008 = vadd.s32 %v21, 56
  %v1009 = vadd.s32 %v21, 64
  %v1010 = vadd.s32 %v21, 72
  %v1011 = vadd.s32 %v21, 80
  %v1012 = vadd.s32 %v21, 88
  %v1013 = vadd.s32 %v21, 96
  %v1014 = vadd.s32 %v21, 104
  %v1015 = vadd.s32 %v21, 112
  %v1016 = vadd.s32 %v21, 120
  %v1017 = vadd.s32 %v21, 128
  %v1018 = vadd.s32 %v21, 136
  %v1019 = vadd.s32 %v21, 144
  %v1020 = vadd.s32 %v21, 152
  %v1021 = vadd.s32 %v21, 160
  %v1022 = vadd.s32 %v21, 168
  %v1023 = vadd.s32 %v21, 176
  %v1024 = vadd.s32 %v21, 184
  %v1025 = vadd.s32 %v21, 192
  %v1026 = vadd.s32 %v21, 200
  %v1027 = vadd.s32 %v21, 208
  %v1028 = vadd.s32 %v21, 216
  %v1029 = vadd.s32 %v21, 224
  %v1030 = vadd.s32 %v21, 232
  %v1031 = vadd.s32 %v21, 240
  %v1032 = vadd.s32 %v21, 248
  %v1033 = vmul.u32 %v845, 2
  %v1034 = vand.u32 %v845, 31
  %v1035 = vsub.s32 %v1033, %v1034
  %vm1036 = vcmp.eq.s32.totalorder %v21, %v1035
  %vm1037 = vcmp.eq.s32.totalorder %v22, %v1035
  %vm1038 = vcmp.eq.s32.totalorder %v1003, %v1035
  %vm1039 = vcmp.eq.s32.totalorder %v1004, %v1035
  %vm1040 = vcmp.eq.s32.totalorder %v1005, %v1035
  %vm1041 = vcmp.eq.s32.totalorder %v1006, %v1035
  %vm1042 = vcmp.eq.s32.totalorder %v1007, %v1035
  %vm1043 = vcmp.eq.s32.totalorder %v1008, %v1035
  %vm1044 = vcmp.eq.s32.totalorder %v1009, %v1035
  %vm1045 = vcmp.eq.s32.totalorder %v1010, %v1035
  %vm1046 = vcmp.eq.s32.totalorder %v1011, %v1035
  %vm1047 = vcmp.eq.s32.totalorder %v1012, %v1035
  %vm1048 = vcmp.eq.s32.totalorder %v1013, %v1035
  %vm1049 = vcmp.eq.s32.totalorder %v1014, %v1035
  %vm1050 = vcmp.eq.s32.totalorder %v1015, %v1035
  %vm1051 = vcmp.eq.s32.totalorder %v1016, %v1035
  %vm1052 = vcmp.eq.s32.totalorder %v1017, %v1035
  %vm1053 = vcmp.eq.s32.totalorder %v1018, %v1035
  %vm1054 = vcmp.eq.s32.totalorder %v1019, %v1035
  %vm1055 = vcmp.eq.s32.totalorder %v1020, %v1035
  %vm1056 = vcmp.eq.s32.totalorder %v1021, %v1035
  %vm1057 = vcmp.eq.s32.totalorder %v1022, %v1035
  %vm1058 = vcmp.eq.s32.totalorder %v1023, %v1035
  %vm1059 = vcmp.eq.s32.totalorder %v1024, %v1035
  %vm1060 = vcmp.eq.s32.totalorder %v1025, %v1035
  %vm1061 = vcmp.eq.s32.totalorder %v1026, %v1035
  %vm1062 = vcmp.eq.s32.totalorder %v1027, %v1035
  %vm1063 = vcmp.eq.s32.totalorder %v1028, %v1035
  %vm1064 = vcmp.eq.s32.totalorder %v1029, %v1035
  %vm1065 = vcmp.eq.s32.totalorder %v1030, %v1035
  %vm1066 = vcmp.eq.s32.totalorder %v1031, %v1035
  %vm1067 = vcmp.eq.s32.totalorder %v1032, %v1035
  %v1068 = vsel %vm1036, 1.0, 0.0
  %v1069 = vsel %vm1037, 1.0, 0.0
  %v1070 = vsel %vm1038, 1.0, 0.0
  %v1071 = vsel %vm1039, 1.0, 0.0
  %v1072 = vsel %vm1040, 1.0, 0.0
  %v1073 = vsel %vm1041, 1.0, 0.0
  %v1074 = vsel %vm1042, 1.0, 0.0
  %v1075 = vsel %vm1043, 1.0, 0.0
  %v1076 = vsel %vm1044, 1.0, 0.0
  %v1077 = vsel %vm1045, 1.0, 0.0
  %v1078 = vsel %vm1046, 1.0, 0.0
  %v1079 = vsel %vm1047, 1.0, 0.0
  %v1080 = vsel %vm1048, 1.0, 0.0
  %v1081 = vsel %vm1049, 1.0, 0.0
  %v1082 = vsel %vm1050, 1.0, 0.0
  %v1083 = vsel %vm1051, 1.0, 0.0
  %v1084 = vsel %vm1052, 1.0, 0.0
  %v1085 = vsel %vm1053, 1.0, 0.0
  %v1086 = vsel %vm1054, 1.0, 0.0
  %v1087 = vsel %vm1055, 1.0, 0.0
  %v1088 = vsel %vm1056, 1.0, 0.0
  %v1089 = vsel %vm1057, 1.0, 0.0
  %v1090 = vsel %vm1058, 1.0, 0.0
  %v1091 = vsel %vm1059, 1.0, 0.0
  %v1092 = vsel %vm1060, 1.0, 0.0
  %v1093 = vsel %vm1061, 1.0, 0.0
  %v1094 = vsel %vm1062, 1.0, 0.0
  %v1095 = vsel %vm1063, 1.0, 0.0
  %v1096 = vsel %vm1064, 1.0, 0.0
  %v1097 = vsel %vm1065, 1.0, 0.0
  %v1098 = vsel %vm1066, 1.0, 0.0
  %v1099 = vsel %vm1067, 1.0, 0.0
  %v1100 = vadd.s32 %v1035, 32
  %vm1101 = vcmp.eq.s32.totalorder %v21, %v1100
  %vm1102 = vcmp.eq.s32.totalorder %v22, %v1100
  %vm1103 = vcmp.eq.s32.totalorder %v1003, %v1100
  %vm1104 = vcmp.eq.s32.totalorder %v1004, %v1100
  %vm1105 = vcmp.eq.s32.totalorder %v1005, %v1100
  %vm1106 = vcmp.eq.s32.totalorder %v1006, %v1100
  %vm1107 = vcmp.eq.s32.totalorder %v1007, %v1100
  %vm1108 = vcmp.eq.s32.totalorder %v1008, %v1100
  %vm1109 = vcmp.eq.s32.totalorder %v1009, %v1100
  %vm1110 = vcmp.eq.s32.totalorder %v1010, %v1100
  %vm1111 = vcmp.eq.s32.totalorder %v1011, %v1100
  %vm1112 = vcmp.eq.s32.totalorder %v1012, %v1100
  %vm1113 = vcmp.eq.s32.totalorder %v1013, %v1100
  %vm1114 = vcmp.eq.s32.totalorder %v1014, %v1100
  %vm1115 = vcmp.eq.s32.totalorder %v1015, %v1100
  %vm1116 = vcmp.eq.s32.totalorder %v1016, %v1100
  %vm1117 = vcmp.eq.s32.totalorder %v1017, %v1100
  %vm1118 = vcmp.eq.s32.totalorder %v1018, %v1100
  %vm1119 = vcmp.eq.s32.totalorder %v1019, %v1100
  %vm1120 = vcmp.eq.s32.totalorder %v1020, %v1100
  %vm1121 = vcmp.eq.s32.totalorder %v1021, %v1100
  %vm1122 = vcmp.eq.s32.totalorder %v1022, %v1100
  %vm1123 = vcmp.eq.s32.totalorder %v1023, %v1100
  %vm1124 = vcmp.eq.s32.totalorder %v1024, %v1100
  %vm1125 = vcmp.eq.s32.totalorder %v1025, %v1100
  %vm1126 = vcmp.eq.s32.totalorder %v1026, %v1100
  %vm1127 = vcmp.eq.s32.totalorder %v1027, %v1100
  %vm1128 = vcmp.eq.s32.totalorder %v1028, %v1100
  %vm1129 = vcmp.eq.s32.totalorder %v1029, %v1100
  %vm1130 = vcmp.eq.s32.totalorder %v1030, %v1100
  %vm1131 = vcmp.eq.s32.totalorder %v1031, %v1100
  %vm1132 = vcmp.eq.s32.totalorder %v1032, %v1100
  %v1133 = vsel %vm1101, 1.0, 0.0
  %v1134 = vsel %vm1102, 1.0, 0.0
  %v1135 = vsel %vm1103, 1.0, 0.0
  %v1136 = vsel %vm1104, 1.0, 0.0
  %v1137 = vsel %vm1105, 1.0, 0.0
  %v1138 = vsel %vm1106, 1.0, 0.0
  %v1139 = vsel %vm1107, 1.0, 0.0
  %v1140 = vsel %vm1108, 1.0, 0.0
  %v1141 = vsel %vm1109, 1.0, 0.0
  %v1142 = vsel %vm1110, 1.0, 0.0
  %v1143 = vsel %vm1111, 1.0, 0.0
  %v1144 = vsel %vm1112, 1.0, 0.0
  %v1145 = vsel %vm1113, 1.0, 0.0
  %v1146 = vsel %vm1114, 1.0, 0.0
  %v1147 = vsel %vm1115, 1.0, 0.0
  %v1148 = vsel %vm1116, 1.0, 0.0
  %v1149 = vsel %vm1117, 1.0, 0.0
  %v1150 = vsel %vm1118, 1.0, 0.0
  %v1151 = vsel %vm1119, 1.0, 0.0
  %v1152 = vsel %vm1120, 1.0, 0.0
  %v1153 = vsel %vm1121, 1.0, 0.0
  %v1154 = vsel %vm1122, 1.0, 0.0
  %v1155 = vsel %vm1123, 1.0, 0.0
  %v1156 = vsel %vm1124, 1.0, 0.0
  %v1157 = vsel %vm1125, 1.0, 0.0
  %v1158 = vsel %vm1126, 1.0, 0.0
  %v1159 = vsel %vm1127, 1.0, 0.0
  %v1160 = vsel %vm1128, 1.0, 0.0
  %v1161 = vsel %vm1129, 1.0, 0.0
  %v1162 = vsel %vm1130, 1.0, 0.0
  %v1163 = vsel %vm1131, 1.0, 0.0
  %v1164 = vsel %vm1132, 1.0, 0.0
  %1165 = vmatprep.subr.mxu0 0.0
  %1166 = vmatpush1.msra.mxu0 %v1068
  %1167 = vmatprep.subr.mxu0 0.0
  %1168 = vmatpush1.msra.mxu0 %v1069
  %1169 = vmatprep.subr.mxu0 0.0
  %1170 = vmatpush1.msra.mxu0 %v1070
  %1171 = vmatprep.subr.mxu0 0.0
  %1172 = vmatpush1.msra.mxu0 %v1071
  %1173 = vmatprep.subr.mxu0 0.0
  %1174 = vmatpush1.msra.mxu0 %v1072
  %1175 = vmatprep.subr.mxu0 0.0
  %1176 = vmatpush1.msra.mxu0 %v1073
  %1177 = vmatprep.subr.mxu0 0.0
  %1178 = vmatpush1.msra.mxu0 %v1074
  %1179 = vmatprep.subr.mxu0 0.0
  %1180 = vmatpush1.msra.mxu0 %v1075
  %1181 = vmatprep.subr.mxu0 0.0
  %1182 = vmatpush1.msra.mxu0 %v1076
  %1183 = vmatprep.subr.mxu0 0.0
  %1184 = vmatpush1.msra.mxu0 %v1077
  %1185 = vmatprep.subr.mxu0 0.0
  %1186 = vmatpush1.msra.mxu0 %v1078
  %1187 = vmatprep.subr.mxu0 0.0
  %1188 = vmatpush1.msra.mxu0 %v1079
  %1189 = vmatprep.subr.mxu0 0.0
  %1190 = vmatpush1.msra.mxu0 %v1080
  %1191 = vmatprep.subr.mxu0 0.0
  %1192 = vmatpush1.msra.mxu0 %v1081
  %1193 = vmatprep.subr.mxu0 0.0
  %1194 = vmatpush1.msra.mxu0 %v1082
  %1195 = vmatprep.subr.mxu0 0.0
  %1196 = vmatpush1.msra.mxu0 %v1083
  %1197 = vmatprep.subr.mxu0 0.0
  %1198 = vmatpush1.msra.mxu0 %v1084
  %1199 = vmatprep.subr.mxu0 0.0
  %1200 = vmatpush1.msra.mxu0 %v1085
  %1201 = vmatprep.subr.mxu0 0.0
  %1202 = vmatpush1.msra.mxu0 %v1086
  %1203 = vmatprep.subr.mxu0 0.0
  %1204 = vmatpush1.msra.mxu0 %v1087
  %1205 = vmatprep.subr.mxu0 0.0
  %1206 = vmatpush1.msra.mxu0 %v1088
  %1207 = vmatprep.subr.mxu0 0.0
  %1208 = vmatpush1.msra.mxu0 %v1089
  %1209 = vmatprep.subr.mxu0 0.0
  %1210 = vmatpush1.msra.mxu0 %v1090
  %1211 = vmatprep.subr.mxu0 0.0
  %1212 = vmatpush1.msra.mxu0 %v1091
  %1213 = vmatprep.subr.mxu0 0.0
  %1214 = vmatpush1.msra.mxu0 %v1092
  %1215 = vmatprep.subr.mxu0 0.0
  %1216 = vmatpush1.msra.mxu0 %v1093
  %1217 = vmatprep.subr.mxu0 0.0
  %1218 = vmatpush1.msra.mxu0 %v1094
  %1219 = vmatprep.subr.mxu0 0.0
  %1220 = vmatpush1.msra.mxu0 %v1095
  %1221 = vmatprep.subr.mxu0 0.0
  %1222 = vmatpush1.msra.mxu0 %v1096
  %1223 = vmatprep.subr.mxu0 0.0
  %1224 = vmatpush1.msra.mxu0 %v1097
  %1225 = vmatprep.subr.mxu0 0.0
  %1226 = vmatpush1.msra.mxu0 %v1098
  %1227 = vmatprep.subr.mxu0 0.0
  %1228 = vmatpush1.msra.mxu0 %v1099
  %1229 = vmatprep.mubr.f32.mxu0 %v1002
  %1230 = vmatmul.mubr.f32.gmra.mrb[0].mxu0 %v1001
  %v1231 = vpop.f32.mrb[0].mxu0
  %v1232 = vadd.f32 0.0, %v1231
  %v1233 = vpop.f32.mrb[0].mxu0
  %1234 = vdwg.mxu0
  %1235 = vmatprep.subr.mxu0 0.0
  %1236 = vmatpush1.msra.mxu0 %v1133
  %1237 = vmatprep.subr.mxu0 0.0
  %1238 = vmatpush1.msra.mxu0 %v1134
  %1239 = vmatprep.subr.mxu0 0.0
  %1240 = vmatpush1.msra.mxu0 %v1135
  %1241 = vmatprep.subr.mxu0 0.0
  %1242 = vmatpush1.msra.mxu0 %v1136
  %1243 = vmatprep.subr.mxu0 0.0
  %1244 = vmatpush1.msra.mxu0 %v1137
  %1245 = vmatprep.subr.mxu0 0.0
  %1246 = vmatpush1.msra.mxu0 %v1138
  %1247 = vmatprep.subr.mxu0 0.0
  %1248 = vmatpush1.msra.mxu0 %v1139
  %1249 = vmatprep.subr.mxu0 0.0
  %1250 = vmatpush1.msra.mxu0 %v1140
  %1251 = vmatprep.subr.mxu0 0.0
  %1252 = vmatpush1.msra.mxu0 %v1141
  %1253 = vmatprep.subr.mxu0 0.0
  %1254 = vmatpush1.msra.mxu0 %v1142
  %1255 = vmatprep.subr.mxu0 0.0
  %1256 = vmatpush1.msra.mxu0 %v1143
  %1257 = vmatprep.subr.mxu0 0.0
  %1258 = vmatpush1.msra.mxu0 %v1144
  %1259 = vmatprep.subr.mxu0 0.0
  %1260 = vmatpush1.msra.mxu0 %v1145
  %1261 = vmatprep.subr.mxu0 0.0
  %1262 = vmatpush1.msra.mxu0 %v1146
  %1263 = vmatprep.subr.mxu0 0.0
  %1264 = vmatpush1.msra.mxu0 %v1147
  %1265 = vmatprep.subr.mxu0 0.0
  %1266 = vmatpush1.msra.mxu0 %v1148
  %1267 = vmatprep.subr.mxu0 0.0
  %1268 = vmatpush1.msra.mxu0 %v1149
  %1269 = vmatprep.subr.mxu0 0.0
  %1270 = vmatpush1.msra.mxu0 %v1150
  %1271 = vmatprep.subr.mxu0 0.0
  %1272 = vmatpush1.msra.mxu0 %v1151
  %1273 = vmatprep.subr.mxu0 0.0
  %1274 = vmatpush1.msra.mxu0 %v1152
  %1275 = vmatprep.subr.mxu0 0.0
  %1276 = vmatpush1.msra.mxu0 %v1153
  %1277 = vmatprep.subr.mxu0 0.0
  %1278 = vmatpush1.msra.mxu0 %v1154
  %1279 = vmatprep.subr.mxu0 0.0
  %1280 = vmatpush1.msra.mxu0 %v1155
  %1281 = vmatprep.subr.mxu0 0.0
  %1282 = vmatpush1.msra.mxu0 %v1156
  %1283 = vmatprep.subr.mxu0 0.0
  %1284 = vmatpush1.msra.mxu0 %v1157
  %1285 = vmatprep.subr.mxu0 0.0
  %1286 = vmatpush1.msra.mxu0 %v1158
  %1287 = vmatprep.subr.mxu0 0.0
  %1288 = vmatpush1.msra.mxu0 %v1159
  %1289 = vmatprep.subr.mxu0 0.0
  %1290 = vmatpush1.msra.mxu0 %v1160
  %1291 = vmatprep.subr.mxu0 0.0
  %1292 = vmatpush1.msra.mxu0 %v1161
  %1293 = vmatprep.subr.mxu0 0.0
  %1294 = vmatpush1.msra.mxu0 %v1162
  %1295 = vmatprep.subr.mxu0 0.0
  %1296 = vmatpush1.msra.mxu0 %v1163
  %1297 = vmatprep.subr.mxu0 0.0
  %1298 = vmatpush1.msra.mxu0 %v1164
  %1299 = vmatprep.mubr.f32.mxu0 %v1002
  %1300 = vmatmul.mubr.f32.gmra.mrb[0].mxu0 %v1001
  %v1301 = vpop.f32.mrb[0].mxu0
  %v1302 = vadd.f32 0.0, %v1301
  %v1303 = vpop.f32.mrb[0].mxu0
  %1304 = vdwg.mxu0
  %v1305 = vmax.f32 %v1232, %v1302
  %v1306 = vand.u32 %v21, 31
  %v1307 = vand.u32 %v22, 31
  %v1308 = vand.u32 %v1003, 31
  %v1309 = vand.u32 %v1004, 31
  %v1310 = vand.u32 %v1005, 31
  %v1311 = vand.u32 %v1006, 31
  %v1312 = vand.u32 %v1007, 31
  %v1313 = vand.u32 %v1008, 31
  %v1314 = vand.u32 %v1009, 31
  %v1315 = vand.u32 %v1010, 31
  %v1316 = vand.u32 %v1011, 31
  %v1317 = vand.u32 %v1012, 31
  %v1318 = vand.u32 %v1013, 31
  %v1319 = vand.u32 %v1014, 31
  %v1320 = vand.u32 %v1015, 31
  %v1321 = vand.u32 %v1016, 31
  %vm1322 = vcmp.eq.s32.totalorder %v1306, %v845
  %vm1323 = vcmp.eq.s32.totalorder %v1307, %v845
  %vm1324 = vcmp.eq.s32.totalorder %v1308, %v845
  %vm1325 = vcmp.eq.s32.totalorder %v1309, %v845
  %vm1326 = vcmp.eq.s32.totalorder %v1310, %v845
  %vm1327 = vcmp.eq.s32.totalorder %v1311, %v845
  %vm1328 = vcmp.eq.s32.totalorder %v1312, %v845
  %vm1329 = vcmp.eq.s32.totalorder %v1313, %v845
  %vm1330 = vcmp.eq.s32.totalorder %v1314, %v845
  %vm1331 = vcmp.eq.s32.totalorder %v1315, %v845
  %vm1332 = vcmp.eq.s32.totalorder %v1316, %v845
  %vm1333 = vcmp.eq.s32.totalorder %v1317, %v845
  %vm1334 = vcmp.eq.s32.totalorder %v1318, %v845
  %vm1335 = vcmp.eq.s32.totalorder %v1319, %v845
  %vm1336 = vcmp.eq.s32.totalorder %v1320, %v845
  %vm1337 = vcmp.eq.s32.totalorder %v1321, %v845
  %v1338 = vsel %vm1322, 1.0, 0.0
  %v1339 = vsel %vm1323, 1.0, 0.0
  %v1340 = vsel %vm1324, 1.0, 0.0
  %v1341 = vsel %vm1325, 1.0, 0.0
  %v1342 = vsel %vm1326, 1.0, 0.0
  %v1343 = vsel %vm1327, 1.0, 0.0
  %v1344 = vsel %vm1328, 1.0, 0.0
  %v1345 = vsel %vm1329, 1.0, 0.0
  %v1346 = vsel %vm1330, 1.0, 0.0
  %v1347 = vsel %vm1331, 1.0, 0.0
  %v1348 = vsel %vm1332, 1.0, 0.0
  %v1349 = vsel %vm1333, 1.0, 0.0
  %v1350 = vsel %vm1334, 1.0, 0.0
  %v1351 = vsel %vm1335, 1.0, 0.0
  %v1352 = vsel %vm1336, 1.0, 0.0
  %v1353 = vsel %vm1337, 1.0, 0.0
  %v1354 = vrot.slane %v1305, 4
  %v1355 = vadd.f32 %v1305, %v1354
  %v1356 = vrot.slane %v1355, 2
  %v1357 = vadd.f32 %v1355, %v1356
  %v1358 = vrot.slane %v1357, 1
  %v1359 = vadd.f32 %v1357, %v1358
  %1360 = vmatprep.subr.mxu0 0.0
  %1361 = vmatpush1.msra.mxu0 %v1338
  %1362 = vmatprep.subr.mxu0 0.0
  %1363 = vmatpush1.msra.mxu0 %v1339
  %1364 = vmatprep.subr.mxu0 0.0
  %1365 = vmatpush1.msra.mxu0 %v1340
  %1366 = vmatprep.subr.mxu0 0.0
  %1367 = vmatpush1.msra.mxu0 %v1341
  %1368 = vmatprep.subr.mxu0 0.0
  %1369 = vmatpush1.msra.mxu0 %v1342
  %1370 = vmatprep.subr.mxu0 0.0
  %1371 = vmatpush1.msra.mxu0 %v1343
  %1372 = vmatprep.subr.mxu0 0.0
  %1373 = vmatpush1.msra.mxu0 %v1344
  %1374 = vmatprep.subr.mxu0 0.0
  %1375 = vmatpush1.msra.mxu0 %v1345
  %1376 = vmatprep.subr.mxu0 0.0
  %1377 = vmatpush1.msra.mxu0 %v1346
  %1378 = vmatprep.subr.mxu0 0.0
  %1379 = vmatpush1.msra.mxu0 %v1347
  %1380 = vmatprep.subr.mxu0 0.0
  %1381 = vmatpush1.msra.mxu0 %v1348
  %1382 = vmatprep.subr.mxu0 0.0
  %1383 = vmatpush1.msra.mxu0 %v1349
  %1384 = vmatprep.subr.mxu0 0.0
  %1385 = vmatpush1.msra.mxu0 %v1350
  %1386 = vmatprep.subr.mxu0 0.0
  %1387 = vmatpush1.msra.mxu0 %v1351
  %1388 = vmatprep.subr.mxu0 0.0
  %1389 = vmatpush1.msra.mxu0 %v1352
  %1390 = vmatprep.subr.mxu0 0.0
  %1391 = vmatpush1.msra.mxu0 %v1353
  %1392 = vmatprep.subr.mxu0 0.0
  %1393 = vmatpush1.msra.mxu0 0.0
  %1394 = vmatprep.subr.mxu0 0.0
  %1395 = vmatpush1.msra.mxu0 0.0
  %1396 = vmatprep.subr.mxu0 0.0
  %1397 = vmatpush1.msra.mxu0 0.0
  %1398 = vmatprep.subr.mxu0 0.0
  %1399 = vmatpush1.msra.mxu0 0.0
  %1400 = vmatprep.subr.mxu0 0.0
  %1401 = vmatpush1.msra.mxu0 0.0
  %1402 = vmatprep.subr.mxu0 0.0
  %1403 = vmatpush1.msra.mxu0 0.0
  %1404 = vmatprep.subr.mxu0 0.0
  %1405 = vmatpush1.msra.mxu0 0.0
  %1406 = vmatprep.subr.mxu0 0.0
  %1407 = vmatpush1.msra.mxu0 0.0
  %1408 = vmatprep.subr.mxu0 0.0
  %1409 = vmatpush1.msra.mxu0 0.0
  %1410 = vmatprep.subr.mxu0 0.0
  %1411 = vmatpush1.msra.mxu0 0.0
  %1412 = vmatprep.subr.mxu0 0.0
  %1413 = vmatpush1.msra.mxu0 0.0
  %1414 = vmatprep.subr.mxu0 0.0
  %1415 = vmatpush1.msra.mxu0 0.0
  %1416 = vmatprep.subr.mxu0 0.0
  %1417 = vmatpush1.msra.mxu0 0.0
  %1418 = vmatprep.subr.mxu0 0.0
  %1419 = vmatpush1.msra.mxu0 0.0
  %1420 = vmatprep.subr.mxu0 0.0
  %1421 = vmatpush1.msra.mxu0 0.0
  %1422 = vmatprep.subr.mxu0 0.0
  %1423 = vmatpush1.msra.mxu0 0.0
  %1424 = vmatprep.mubr.f32.mxu0 0.0
  %1425 = vmatmul.mubr.f32.gmra.mrb[0].mxu0 %v1359
  %v1426 = vpop.f32.mrb[0].mxu0
  %v1427 = vadd.f32 0.0, %v1426
  %v1428 = vpop.f32.mrb[0].mxu0
  %1429 = vdwg.mxu0
  %v1430 = vmul.f32 %v1305, %v1305
  %v1431 = vrot.slane %v1430, 4
  %v1432 = vadd.f32 %v1430, %v1431
  %v1433 = vrot.slane %v1432, 2
  %v1434 = vadd.f32 %v1432, %v1433
  %v1435 = vrot.slane %v1434, 1
  %v1436 = vadd.f32 %v1434, %v1435
  %1437 = vmatprep.subr.mxu0 0.0
  %1438 = vmatpush1.msra.mxu0 %v1338
  %1439 = vmatprep.subr.mxu0 0.0
  %1440 = vmatpush1.msra.mxu0 %v1339
  %1441 = vmatprep.subr.mxu0 0.0
  %1442 = vmatpush1.msra.mxu0 %v1340
  %1443 = vmatprep.subr.mxu0 0.0
  %1444 = vmatpush1.msra.mxu0 %v1341
  %1445 = vmatprep.subr.mxu0 0.0
  %1446 = vmatpush1.msra.mxu0 %v1342
  %1447 = vmatprep.subr.mxu0 0.0
  %1448 = vmatpush1.msra.mxu0 %v1343
  %1449 = vmatprep.subr.mxu0 0.0
  %1450 = vmatpush1.msra.mxu0 %v1344
  %1451 = vmatprep.subr.mxu0 0.0
  %1452 = vmatpush1.msra.mxu0 %v1345
  %1453 = vmatprep.subr.mxu0 0.0
  %1454 = vmatpush1.msra.mxu0 %v1346
  %1455 = vmatprep.subr.mxu0 0.0
  %1456 = vmatpush1.msra.mxu0 %v1347
  %1457 = vmatprep.subr.mxu0 0.0
  %1458 = vmatpush1.msra.mxu0 %v1348
  %1459 = vmatprep.subr.mxu0 0.0
  %1460 = vmatpush1.msra.mxu0 %v1349
  %1461 = vmatprep.subr.mxu0 0.0
  %1462 = vmatpush1.msra.mxu0 %v1350
  %1463 = vmatprep.subr.mxu0 0.0
  %1464 = vmatpush1.msra.mxu0 %v1351
  %1465 = vmatprep.subr.mxu0 0.0
  %1466 = vmatpush1.msra.mxu0 %v1352
  %1467 = vmatprep.subr.mxu0 0.0
  %1468 = vmatpush1.msra.mxu0 %v1353
  %1469 = vmatprep.subr.mxu0 0.0
  %1470 = vmatpush1.msra.mxu0 0.0
  %1471 = vmatprep.subr.mxu0 0.0
  %1472 = vmatpush1.msra.mxu0 0.0
  %1473 = vmatprep.subr.mxu0 0.0
  %1474 = vmatpush1.msra.mxu0 0.0
  %1475 = vmatprep.subr.mxu0 0.0
  %1476 = vmatpush1.msra.mxu0 0.0
  %1477 = vmatprep.subr.mxu0 0.0
  %1478 = vmatpush1.msra.mxu0 0.0
  %1479 = vmatprep.subr.mxu0 0.0
  %1480 = vmatpush1.msra.mxu0 0.0
  %1481 = vmatprep.subr.mxu0 0.0
  %1482 = vmatpush1.msra.mxu0 0.0
  %1483 = vmatprep.subr.mxu0 0.0
  %1484 = vmatpush1.msra.mxu0 0.0
  %1485 = vmatprep.subr.mxu0 0.0
  %1486 = vmatpush1.msra.mxu0 0.0
  %1487 = vmatprep.subr.mxu0 0.0
  %1488 = vmatpush1.msra.mxu0 0.0
  %1489 = vmatprep.subr.mxu0 0.0
  %1490 = vmatpush1.msra.mxu0 0.0
  %1491 = vmatprep.subr.mxu0 0.0
  %1492 = vmatpush1.msra.mxu0 0.0
  %1493 = vmatprep.subr.mxu0 0.0
  %1494 = vmatpush1.msra.mxu0 0.0
  %1495 = vmatprep.subr.mxu0 0.0
  %1496 = vmatpush1.msra.mxu0 0.0
  %1497 = vmatprep.subr.mxu0 0.0
  %1498 = vmatpush1.msra.mxu0 0.0
  %1499 = vmatprep.subr.mxu0 0.0
  %1500 = vmatpush1.msra.mxu0 0.0
  %1501 = vmatprep.mubr.f32.mxu0 0.0
  %1502 = vmatmul.mubr.f32.gmra.mrb[0].mxu0 %v1436
  %v1503 = vpop.f32.mrb[0].mxu0
  %v1504 = vadd.f32 0.0, %v1503
  %v1505 = vpop.f32.mrb[0].mxu0
  %1506 = vdwg.mxu0
  %v1507 = vrcp.pop 32.0
  %v1508 = vmul.f32 %v1427, %v1507
  %v1509 = vmul.f32 %v1504, %v1507
  %v1510 = vmul.f32 %v1508, %v1508
  %v1511 = vsub.f32 %v1509, %v1510
  %v1512 = vadd.f32 %v1511, 1e-05
  %v1513 = vrsqrt.pop %v1512
  %v1514 = vld [vmem:[%s3] sm:$0x1]
  %v1515 = vmul.f32 %v1514, %v1513
  %v1516 = vld [vmem:[%s4] sm:$0x1]
  %v1517 = vmul.f32 %v1508, %v1515
  %v1518 = vsub.f32 %v1516, %v1517
  %vm1519 = vcmp.eq.s32.totalorder %v21, %v1034
  %vm1520 = vcmp.eq.s32.totalorder %v22, %v1034
  %vm1521 = vcmp.eq.s32.totalorder %v1003, %v1034
  %vm1522 = vcmp.eq.s32.totalorder %v1004, %v1034
  %v1523 = vsel %vm1519, 1.0, 0.0
  %v1524 = vsel %vm1520, 1.0, 0.0
  %v1525 = vsel %vm1521, 1.0, 0.0
  %v1526 = vsel %vm1522, 1.0, 0.0
  %vm1527 = vcmask 261120
  %v1529 = vsel %vm1527, %v1515, 0
  %1531 = vmatprep.subr.mxu0 0.0
  %1532 = vmatpush1.msra.mxu0 %v1523
  %1533 = vmatprep.subr.mxu0 0.0
  %1534 = vmatpush1.msra.mxu0 %v1524
  %1535 = vmatprep.subr.mxu0 0.0
  %1536 = vmatpush1.msra.mxu0 %v1525
  %1537 = vmatprep.subr.mxu0 0.0
  %1538 = vmatpush1.msra.mxu0 %v1526
  %1539 = vmatprep.subr.mxu0 0.0
  %1540 = vmatpush1.msra.mxu0 0.0
  %1541 = vmatprep.subr.mxu0 0.0
  %1542 = vmatpush1.msra.mxu0 0.0
  %1543 = vmatprep.subr.mxu0 0.0
  %1544 = vmatpush1.msra.mxu0 0.0
  %1545 = vmatprep.subr.mxu0 0.0
  %1546 = vmatpush1.msra.mxu0 0.0
  %1547 = vmatprep.subr.mxu0 0.0
  %1548 = vmatpush1.msra.mxu0 0.0
  %1549 = vmatprep.subr.mxu0 0.0
  %1550 = vmatpush1.msra.mxu0 0.0
  %1551 = vmatprep.subr.mxu0 0.0
  %1552 = vmatpush1.msra.mxu0 0.0
  %1553 = vmatprep.subr.mxu0 0.0
  %1554 = vmatpush1.msra.mxu0 0.0
  %1555 = vmatprep.subr.mxu0 0.0
  %1556 = vmatpush1.msra.mxu0 0.0
  %1557 = vmatprep.subr.mxu0 0.0
  %1558 = vmatpush1.msra.mxu0 0.0
  %1559 = vmatprep.subr.mxu0 0.0
  %1560 = vmatpush1.msra.mxu0 0.0
  %1561 = vmatprep.subr.mxu0 0.0
  %1562 = vmatpush1.msra.mxu0 0.0
  %1563 = vmatprep.subr.mxu0 0.0
  %1564 = vmatpush1.msra.mxu0 0.0
  %1565 = vmatprep.subr.mxu0 0.0
  %1566 = vmatpush1.msra.mxu0 0.0
  %1567 = vmatprep.subr.mxu0 0.0
  %1568 = vmatpush1.msra.mxu0 0.0
  %1569 = vmatprep.subr.mxu0 0.0
  %1570 = vmatpush1.msra.mxu0 0.0
  %1571 = vmatprep.subr.mxu0 0.0
  %1572 = vmatpush1.msra.mxu0 0.0
  %1573 = vmatprep.subr.mxu0 0.0
  %1574 = vmatpush1.msra.mxu0 0.0
  %1575 = vmatprep.subr.mxu0 0.0
  %1576 = vmatpush1.msra.mxu0 0.0
  %1577 = vmatprep.subr.mxu0 0.0
  %1578 = vmatpush1.msra.mxu0 0.0
  %1579 = vmatprep.subr.mxu0 0.0
  %1580 = vmatpush1.msra.mxu0 0.0
  %1581 = vmatprep.subr.mxu0 0.0
  %1582 = vmatpush1.msra.mxu0 0.0
  %1583 = vmatprep.subr.mxu0 0.0
  %1584 = vmatpush1.msra.mxu0 0.0
  %1585 = vmatprep.subr.mxu0 0.0
  %1586 = vmatpush1.msra.mxu0 0.0
  %1587 = vmatprep.subr.mxu0 0.0
  %1588 = vmatpush1.msra.mxu0 0.0
  %1589 = vmatprep.subr.mxu0 0.0
  %1590 = vmatpush1.msra.mxu0 0.0
  %1591 = vmatprep.subr.mxu0 0.0
  %1592 = vmatpush1.msra.mxu0 0.0
  %1593 = vmatprep.subr.mxu0 0.0
  %1594 = vmatpush1.msra.mxu0 0.0
  %1595 = vmatprep.mubr.f32.mxu0 0.0
  %1596 = vmatmul.mubr.f32.gmra.mrb[0].mxu0 %v1529
  %v1597 = vpop.f32.mrb[0].mxu0
  %v1598 = vadd.f32 0.0, %v1597
  %v1599 = vpop.f32.mrb[0].mxu0
  %1600 = vdwg.mxu0
  %v1602 = vsel %vm1527, %v1518, 0
  %1604 = vmatprep.subr.mxu0 0.0
  %1605 = vmatpush1.msra.mxu0 %v1523
  %1606 = vmatprep.subr.mxu0 0.0
  %1607 = vmatpush1.msra.mxu0 %v1524
  %1608 = vmatprep.subr.mxu0 0.0
  %1609 = vmatpush1.msra.mxu0 %v1525
  %1610 = vmatprep.subr.mxu0 0.0
  %1611 = vmatpush1.msra.mxu0 %v1526
  %1612 = vmatprep.subr.mxu0 0.0
  %1613 = vmatpush1.msra.mxu0 0.0
  %1614 = vmatprep.subr.mxu0 0.0
  %1615 = vmatpush1.msra.mxu0 0.0
  %1616 = vmatprep.subr.mxu0 0.0
  %1617 = vmatpush1.msra.mxu0 0.0
  %1618 = vmatprep.subr.mxu0 0.0
  %1619 = vmatpush1.msra.mxu0 0.0
  %1620 = vmatprep.subr.mxu0 0.0
  %1621 = vmatpush1.msra.mxu0 0.0
  %1622 = vmatprep.subr.mxu0 0.0
  %1623 = vmatpush1.msra.mxu0 0.0
  %1624 = vmatprep.subr.mxu0 0.0
  %1625 = vmatpush1.msra.mxu0 0.0
  %1626 = vmatprep.subr.mxu0 0.0
  %1627 = vmatpush1.msra.mxu0 0.0
  %1628 = vmatprep.subr.mxu0 0.0
  %1629 = vmatpush1.msra.mxu0 0.0
  %1630 = vmatprep.subr.mxu0 0.0
  %1631 = vmatpush1.msra.mxu0 0.0
  %1632 = vmatprep.subr.mxu0 0.0
  %1633 = vmatpush1.msra.mxu0 0.0
  %1634 = vmatprep.subr.mxu0 0.0
  %1635 = vmatpush1.msra.mxu0 0.0
  %1636 = vmatprep.subr.mxu0 0.0
  %1637 = vmatpush1.msra.mxu0 0.0
  %1638 = vmatprep.subr.mxu0 0.0
  %1639 = vmatpush1.msra.mxu0 0.0
  %1640 = vmatprep.subr.mxu0 0.0
  %1641 = vmatpush1.msra.mxu0 0.0
  %1642 = vmatprep.subr.mxu0 0.0
  %1643 = vmatpush1.msra.mxu0 0.0
  %1644 = vmatprep.subr.mxu0 0.0
  %1645 = vmatpush1.msra.mxu0 0.0
  %1646 = vmatprep.subr.mxu0 0.0
  %1647 = vmatpush1.msra.mxu0 0.0
  %1648 = vmatprep.subr.mxu0 0.0
  %1649 = vmatpush1.msra.mxu0 0.0
  %1650 = vmatprep.subr.mxu0 0.0
  %1651 = vmatpush1.msra.mxu0 0.0
  %1652 = vmatprep.subr.mxu0 0.0
  %1653 = vmatpush1.msra.mxu0 0.0
  %1654 = vmatprep.subr.mxu0 0.0
  %1655 = vmatpush1.msra.mxu0 0.0
  %1656 = vmatprep.subr.mxu0 0.0
  %1657 = vmatpush1.msra.mxu0 0.0
  %1658 = vmatprep.subr.mxu0 0.0
  %1659 = vmatpush1.msra.mxu0 0.0
  %1660 = vmatprep.subr.mxu0 0.0
  %1661 = vmatpush1.msra.mxu0 0.0
  %1662 = vmatprep.subr.mxu0 0.0
  %1663 = vmatpush1.msra.mxu0 0.0
  %1664 = vmatprep.subr.mxu0 0.0
  %1665 = vmatpush1.msra.mxu0 0.0
  %1666 = vmatprep.subr.mxu0 0.0
  %1667 = vmatpush1.msra.mxu0 0.0
  %1668 = vmatprep.mubr.f32.mxu0 0.0
  %1669 = vmatmul.mubr.f32.gmra.mrb[0].mxu0 %v1602
  %v1670 = vpop.f32.mrb[0].mxu0
  %v1671 = vadd.f32 0.0, %v1670
  %v1672 = vpop.f32.mrb[0].mxu0
  %1673 = vdwg.mxu0
  %v1674 = vlaneseq
  %v1675 = vshrl.u32 %v1674, 7
  %v1676 = vsub.s32 0, %v1675
  %v1677 = vrot.slane %v1598, %v1676
  %v1678 = vmul.f32 %v1305, %v1677
  %v1679 = vlaneseq
  %v1680 = vshrl.u32 %v1679, 7
  %v1681 = vsub.s32 0, %v1680
  %v1682 = vrot.slane %v1671, %v1681
  %v1683 = vadd.f32 %v1678, %v1682
  %1684 = vst [vmem:[%s5] sm:$0xff] %v1683
  // Predicated region
  $region22: #{lenet_forward.6} parent=0 // pred_check
    _
  $region23: #{lenet_forward.6} parent=0 // pred_check_branch
    %1686 = sbr.rel (0) target = $region25
  $region24: #{lenet_forward.6} parent=0 // pred_region
    _
  $region25: #{lenet_forward.6} parent=0 // pred_fallthru
    _
  // Predicated region
  $region26: #{lenet_forward.6} parent=0 // pred_check
    _
  $region27: #{lenet_forward.6} parent=0 // pred_check_branch
    %1688 = sbr.rel (0) target = $region29
  $region28: #{lenet_forward.6} parent=0 // pred_region
    _
  $region29: #{lenet_forward.6} parent=0 // pred_fallthru
    _

// kernel: lenet_forward.4
$region0: #{lenet_forward.4}
  #allocation0 [shape = 'u32[]', space=smem, size = 0x4, offset = 0x4, fixed_abs, tag = 'smem constant byte address 0x4 - core index']
  #allocation1 [shape = 'u32[144,128]{1,0:T(1,128)}', space=vmem, size = 0x12000, scoped, tag = 'internal scratch']
  %s0 = inlined_call_operand.vmem [shape: f32[66,96], index: 0, kind: input, shape index: {}]
  %s1 = inlined_call_operand.hbm [shape: bf16[3,96,512], index: 1, kind: input, shape index: {}]
  %s2 = inlined_call_operand.hbm [shape: f32[1,512], index: 2, kind: input, shape index: {}]
  %s3 = inlined_call_operand.hbm [shape: f32[1,16], index: 3, kind: input, shape index: {}]
  %s4 = inlined_call_operand.hbm [shape: f32[1,16], index: 4, kind: input, shape index: {}]
  %s5 = inlined_call_operand.vmem [shape: f32[34,256], index: 5, kind: output, shape index: {}]
  %s6 = sld [smem:[#allocation0]]
  $region46: #{lenet_forward.4} parent=0
    _
  %s8 = ssub.s32 1, %s6
  %s9 = scalar_select 0, %s8, %s6
  $region1: #{lenet_forward.4} parent=0
    #allocation2 [shape = 'u8[294912]{0}', space=vmem, size = 0x48000, scoped, tag = 'input window, operand 1, single buffered']
    #allocation3 [shape = 's32[1]{0}', space=sflag, size = 0x4, scoped, tag = 'scoped memory for lenet_forward.4']
    #allocation4 [shape = 'u8[2048]{0}', space=vmem, size = 0x800, scoped, tag = 'input window, operand 2, single buffered']
    #allocation5 [shape = 's32[1]{0}', space=sflag, size = 0x4, scoped, tag = 'scoped memory for lenet_forward.4']
    #allocation6 [shape = 'u8[512]{0}', space=vmem, size = 0x400, scoped, tag = 'input window, operand 3, single buffered']
    #allocation7 [shape = 'u8[512]{0}', space=vmem, size = 0x400, scoped, tag = 'input window, operand 4, single buffered']
    #allocation8 [shape = 's32[1]{0}', space=sflag, size = 0x4, scoped, tag = 'scoped memory for lenet_forward.4']
    %10 = vsyncpa [#allocation3], 0
    %11 = vsyncpa [#allocation5], 0
    %12 = vsyncpa [#allocation8], 0
    // Predicated region
    $region2: #{lenet_forward.4} parent=1 // pred_check
      _
    $region3: #{lenet_forward.4} parent=1 // pred_check_branch
      %14 = sbr.rel (0) target = $region5
    $region4: #{lenet_forward.4} parent=1 // pred_region
      _
    $region5: #{lenet_forward.4} parent=1 // pred_fallthru
      _
    // Predicated region
    $region6: #{lenet_forward.4} parent=1 // pred_check
      _
    $region7: #{lenet_forward.4} parent=1 // pred_check_branch
      %16 = sbr.rel (0) target = $region9
    $region8: #{lenet_forward.4} parent=1 // pred_region
      %s18 = ssub.s32 9216, 9216
      %19 = vsyncadd [#allocation3], %s18
      %s20 = sshll.u32 [#allocation2], 4
      %s21 = int_to_ptr.vmem [resolvable:$true] %s20
      %26 = dma.hbm_to_vmem [thread:$0]  %s1, 9216, %s21, [#allocation3], 256, 256, 16
    $region9: #{lenet_forward.4} parent=1 // pred_fallthru
      _
    // Predicated region
    $region10: #{lenet_forward.4} parent=1 // pred_check
      _
    $region11: #{lenet_forward.4} parent=1 // pred_check_branch
      %28 = sbr.rel (0) target = $region13
    $region12: #{lenet_forward.4} parent=1 // pred_region
      %s30 = ssub.s32 64, 64
      %31 = vsyncadd [#allocation5], %s30
      %s33 = sshll.u32 [#allocation4], 4
      %s34 = int_to_ptr.vmem [resolvable:$true] %s33
      %36 = dma.hbm_to_vmem [thread:$0]  %s2, 64, %s34, [#allocation5]
    $region13: #{lenet_forward.4} parent=1 // pred_fallthru
      _
    // Predicated region
    $region14: #{lenet_forward.4} parent=1 // pred_check
      _
    $region15: #{lenet_forward.4} parent=1 // pred_check_branch
      %38 = sbr.rel (0) target = $region17
    $region16: #{lenet_forward.4} parent=1 // pred_region
      %s40 = ssub.s32 16, 16
      %41 = vsyncadd [#allocation5], %s40
      %s43 = sshll.u32 [#allocation6], 4
      %s44 = int_to_ptr.vmem [resolvable:$true] %s43
      %46 = dma.hbm_to_vmem [thread:$0]  %s3, 16, %s44, [#allocation5]
    $region17: #{lenet_forward.4} parent=1 // pred_fallthru
      _
    // Predicated region
    $region18: #{lenet_forward.4} parent=1 // pred_check
      _
    $region19: #{lenet_forward.4} parent=1 // pred_check_branch
      %48 = sbr.rel (0) target = $region21
    $region20: #{lenet_forward.4} parent=1 // pred_region
      %s50 = ssub.s32 16, 16
      %51 = vsyncadd [#allocation8], %s50
      %s53 = sshll.u32 [#allocation7], 4
      %s54 = int_to_ptr.vmem [resolvable:$true] %s53
      %56 = dma.hbm_to_vmem [thread:$0]  %s4, 16, %s54, [#allocation8]
    $region21: #{lenet_forward.4} parent=1 // pred_fallthru
      _
    // Predicated region
    $region22: #{lenet_forward.4} parent=1 // pred_check
      _
    $region23: #{lenet_forward.4} parent=1 // pred_check_branch
      %58 = sbr.rel (0) target = $region25
    $region24: #{lenet_forward.4} parent=1 // pred_region
      %59 = dma.done [#allocation3], 9216
    $region25: #{lenet_forward.4} parent=1 // pred_fallthru
      _
    // Predicated region
    $region26: #{lenet_forward.4} parent=1 // pred_check
      _
    $region27: #{lenet_forward.4} parent=1 // pred_check_branch
      %61 = sbr.rel (0) target = $region29
    $region28: #{lenet_forward.4} parent=1 // pred_region
      %62 = dma.done [#allocation5], 64
    $region29: #{lenet_forward.4} parent=1 // pred_fallthru
      _
    // Predicated region
    $region30: #{lenet_forward.4} parent=1 // pred_check
      _
    $region31: #{lenet_forward.4} parent=1 // pred_check_branch
      %64 = sbr.rel (0) target = $region33
    $region32: #{lenet_forward.4} parent=1 // pred_region
      %65 = dma.done [#allocation5], 16
    $region33: #{lenet_forward.4} parent=1 // pred_fallthru
      _
    // Predicated region
    $region34: #{lenet_forward.4} parent=1 // pred_check
      _
    $region35: #{lenet_forward.4} parent=1 // pred_check_branch
      %67 = sbr.rel (0) target = $region37
    $region36: #{lenet_forward.4} parent=1 // pred_region
      %68 = dma.done [#allocation8], 16
    $region37: #{lenet_forward.4} parent=1 // pred_fallthru
      _
    %v70 = vlaneseq
    %v71 = vshrl.u32 %v70, 7
    %v72 = vadd.s32 %v71, 8
    %v73 = vadd.s32 %v71, 16
    %v74 = vadd.s32 %v71, 24
    %v75 = vadd.s32 %v71, 32
    %v76 = vadd.s32 %v71, 40
    %v77 = vadd.s32 %v71, 48
    %v78 = vadd.s32 %v71, 56
    %v79 = vand.u32 %v71, 31
    %v80 = vand.u32 %v72, 31
    %v81 = vand.u32 %v73, 31
    %v82 = vand.u32 %v74, 31
    %v83 = vand.u32 %v75, 31
    %v84 = vand.u32 %v76, 31
    %v85 = vand.u32 %v77, 31
    %v86 = vand.u32 %v78, 31
    %v87 = vld [vmem:[%s0] sm:$0xff]
    %v88 = vld [vmem:[%s0 + $0x8] sm:$0xff]
    %v89 = vld [vmem:[%s0 + $0x10] sm:$0xff]
    %v90 = vld [vmem:[%s0 + $0x18] sm:$0xff]
    %v91 = vld [vmem:[%s0 + $0x20] sm:$0xff]
    %v92 = vld [vmem:[%s0 + $0x28] sm:$0xff]
    %v93 = vld [vmem:[%s0 + $0x30] sm:$0xff]
    %v94 = vld [vmem:[%s0 + $0x38] sm:$0xff]
    %v95 = vpack.c.bf16 %v88, %v87
    %v96 = vpack.c.bf16 %v90, %v89
    %v97 = vpack.c.bf16 %v92, %v91
    %v98 = vpack.c.bf16 %v94, %v93
    %v99 = vld [vmem:[#allocation2] sm:$0xff]
    %v100 = vld [vmem:[#allocation2 + $0x8] sm:$0xff]
    %v101 = vld [vmem:[#allocation2 + $0x10] sm:$0xff]
    %v102 = vld [vmem:[#allocation2 + $0x18] sm:$0xff]
    %v103 = vld [vmem:[#allocation2 + $0x20] sm:$0xff]
    %v104 = vld [vmem:[#allocation2 + $0x28] sm:$0xff]
    %v105 = vld [vmem:[#allocation2 + $0x30] sm:$0xff]
    %v106 = vld [vmem:[#allocation2 + $0x38] sm:$0xff]
    %v107 = vld [vmem:[#allocation2 + $0x40] sm:$0xff]
    %v108 = vld [vmem:[#allocation2 + $0x48] sm:$0xff]
    %v109 = vld [vmem:[#allocation2 + $0x50] sm:$0xff]
    %v110 = vld [vmem:[#allocation2 + $0x58] sm:$0xff]
    %v111 = vld [vmem:[#allocation2 + $0x60] sm:$0xff]
    %v112 = vld [vmem:[#allocation2 + $0x68] sm:$0xff]
    %v113 = vld [vmem:[#allocation2 + $0x70] sm:$0xff]
    %v114 = vld [vmem:[#allocation2 + $0x78] sm:$0xff]
    %v115 = vld [vmem:[#allocation2 + $0x80] sm:$0xff]
    %v116 = vld [vmem:[#allocation2 + $0x88] sm:$0xff]
    %v117 = vld [vmem:[#allocation2 + $0x90] sm:$0xff]
    %v118 = vld [vmem:[#allocation2 + $0x98] sm:$0xff]
    %v119 = vld [vmem:[#allocation2 + $0xa0] sm:$0xff]
    %v120 = vld [vmem:[#allocation2 + $0xa8] sm:$0xff]
    %v121 = vld [vmem:[#allocation2 + $0xb0] sm:$0xff]
    %v122 = vld [vmem:[#allocation2 + $0xb8] sm:$0xff]
    %v147 = vunpack.c.l.b16 %v99
    %v148 = vunpack.c.h.b16 %v99
    %v149 = vunpack.c.l.b16 %v100
    %v150 = vunpack.c.h.b16 %v100
    %v151 = vunpack.c.l.b16 %v101
    %v152 = vunpack.c.h.b16 %v101
    %v153 = vunpack.c.l.b16 %v102
    %v154 = vunpack.c.h.b16 %v102
    %v155 = vunpack.c.l.b16 %v103
    %v156 = vunpack.c.h.b16 %v103
    %v157 = vunpack.c.l.b16 %v104
    %v158 = vunpack.c.h.b16 %v104
    %v159 = vunpack.c.l.b16 %v105
    %v160 = vunpack.c.h.b16 %v105
    %v161 = vunpack.c.l.b16 %v106
    %v162 = vunpack.c.h.b16 %v106
    %v163 = vunpack.c.l.b16 %v107
    %v164 = vunpack.c.h.b16 %v107
    %v165 = vunpack.c.l.b16 %v108
    %v166 = vunpack.c.h.b16 %v108
    %v167 = vunpack.c.l.b16 %v109
    %v168 = vunpack.c.h.b16 %v109
    %v169 = vunpack.c.l.b16 %v110
    %v170 = vunpack.c.h.b16 %v110
    %v171 = vunpack.c.l.b16 %v111
    %v172 = vunpack.c.h.b16 %v111
    %v173 = vunpack.c.l.b16 %v112
    %v174 = vunpack.c.h.b16 %v112
    %v175 = vunpack.c.l.b16 %v113
    %v176 = vunpack.c.h.b16 %v113
    %v177 = vunpack.c.l.b16 %v114
    %v178 = vunpack.c.h.b16 %v114
    %v179 = vunpack.c.l.b16 %v115
    %v180 = vunpack.c.h.b16 %v115
    %v181 = vunpack.c.l.b16 %v116
    %v182 = vunpack.c.h.b16 %v116
    %v183 = vunpack.c.l.b16 %v117
    %v184 = vunpack.c.h.b16 %v117
    %v185 = vunpack.c.l.b16 %v118
    %v186 = vunpack.c.h.b16 %v118
    %v187 = vunpack.c.l.b16 %v119
    %v188 = vunpack.c.h.b16 %v119
    %v189 = vunpack.c.l.b16 %v120
    %v190 = vunpack.c.h.b16 %v120
    %v191 = vunpack.c.l.b16 %v121
    %v192 = vunpack.c.h.b16 %v121
    %v193 = vunpack.c.l.b16 %v122
    %v194 = vunpack.c.h.b16 %v122
    %v195 = vpack.c.b16 %v151, %v147
    %v196 = vpack.c.b16 %v152, %v148
    %v197 = vpack.c.b16 %v153, %v149
    %v198 = vpack.c.b16 %v154, %v150
    %v199 = vpack.c.b16 %v159, %v155
    %v200 = vpack.c.b16 %v160, %v156
    %v201 = vpack.c.b16 %v161, %v157
    %v202 = vpack.c.b16 %v162, %v158
    %v203 = vpack.c.b16 %v167, %v163
    %v204 = vpack.c.b16 %v168, %v164
    %v205 = vpack.c.b16 %v169, %v165
    %v206 = vpack.c.b16 %v170, %v166
    %v207 = vpack.c.b16 %v175, %v171
    %v208 = vpack.c.b16 %v176, %v172
    %v209 = vpack.c.b16 %v177, %v173
    %v210 = vpack.c.b16 %v178, %v174
    %v211 = vpack.c.b16 %v183, %v179
    %v212 = vpack.c.b16 %v184, %v180
    %v213 = vpack.c.b16 %v185, %v181
    %v214 = vpack.c.b16 %v186, %v182
    %v215 = vpack.c.b16 %v191, %v187
    %v216 = vpack.c.b16 %v192, %v188
    %v217 = vpack.c.b16 %v193, %v189
    %v218 = vpack.c.b16 %v194, %v190
    %vm243 = vcmask 785408
    %v245 = vsel %vm243, %v95, 0
    %v248 = vsel %vm243, %v96, 0
    %v251 = vsel %vm243, %v97, 0
    %v254 = vsel %vm243, %v98, 0
    %256 = vmatprep.subr.bf16.mxu0 %v196
    %257 = vmatpush1.bf16.msra.mxu0 %v195
    %258 = vmatprep.subr.bf16.mxu0 %v200
    %259 = vmatpush1.bf16.msra.mxu0 %v199
    %260 = vmatprep.subr.bf16.mxu0 %v204
    %261 = vmatpush1.bf16.msra.mxu0 %v203
    %262 = vmatprep.subr.bf16.mxu0 %v208
    %263 = vmatpush1.bf16.msra.mxu0 %v207
    %264 = vmatprep.subr.bf16.mxu0 %v212
    %265 = vmatpush1.bf16.msra.mxu0 %v211
    %266 = vmatprep.subr.bf16.mxu0 %v216
    %267 = vmatpush1.bf16.msra.mxu0 %v215
    %268 = vmatprep.subr.bf16.mxu0 0
    %269 = vmatpush1.bf16.msra.mxu0 0
    %270 = vmatprep.subr.bf16.mxu0 0
    %271 = vmatpush1.bf16.msra.mxu0 0
    %272 = vmatprep.subr.bf16.mxu0 0
    %273 = vmatpush1.bf16.msra.mxu0 0
    %274 = vmatprep.subr.bf16.mxu0 0
    %275 = vmatpush1.bf16.msra.mxu0 0
    %276 = vmatprep.subr.bf16.mxu0 0
    %277 = vmatpush1.bf16.msra.mxu0 0
    %278 = vmatprep.subr.bf16.mxu0 0
    %279 = vmatpush1.bf16.msra.mxu0 0
    %280 = vmatprep.subr.bf16.mxu0 0
    %281 = vmatpush1.bf16.msra.mxu0 0
    %282 = vmatprep.subr.bf16.mxu0 0
    %283 = vmatpush1.bf16.msra.mxu0 0
    %284 = vmatprep.subr.bf16.mxu0 0
    %285 = vmatpush1.bf16.msra.mxu0 0
    %286 = vmatprep.subr.bf16.mxu0 0
    %287 = vmatpush1.bf16.msra.mxu0 0
    %288 = vmatprep.mubr.bf16.mxu0 0
    %289 = vmatmul.mubr.bf16.gmra.mrb[0].mxu0 %v245
    %v290 = vpop.f32.mrb[0].mxu0
    %v291 = vadd.f32 0.0, %v290
    %v292 = vpop.f32.mrb[0].mxu0
    %v293 = vadd.f32 0.0, %v292
    %v294 = vpop.f32.mrb[0].mxu0
    %v295 = vadd.f32 0.0, %v294
    %v296 = vpop.f32.mrb[0].mxu0
    %v297 = vadd.f32 0.0, %v296
    %298 = vmatprep.mubr.bf16.mxu0 0
    %299 = vmatmul.mubr.bf16.gmra.mrb[0].mxu0 %v248
    %v300 = vpop.f32.mrb[0].mxu0
    %v301 = vadd.f32 0.0, %v300
    %v302 = vpop.f32.mrb[0].mxu0
    %v303 = vadd.f32 0.0, %v302
    %v304 = vpop.f32.mrb[0].mxu0
    %v305 = vadd.f32 0.0, %v304
    %v306 = vpop.f32.mrb[0].mxu0
    %v307 = vadd.f32 0.0, %v306
    %308 = vmatprep.mubr.bf16.mxu0 0
    %309 = vmatmul.mubr.bf16.gmra.mrb[0].mxu0 %v251
    %v310 = vpop.f32.mrb[0].mxu0
    %v311 = vadd.f32 0.0, %v310
    %v312 = vpop.f32.mrb[0].mxu0
    %v313 = vadd.f32 0.0, %v312
    %v314 = vpop.f32.mrb[0].mxu0
    %v315 = vadd.f32 0.0, %v314
    %v316 = vpop.f32.mrb[0].mxu0
    %v317 = vadd.f32 0.0, %v316
    %318 = vmatprep.mubr.bf16.mxu0 0
    %319 = vmatmul.mubr.bf16.gmra.mrb[0].mxu0 %v254
    %v320 = vpop.f32.mrb[0].mxu0
    %v321 = vadd.f32 0.0, %v320
    %v322 = vpop.f32.mrb[0].mxu0
    %v323 = vadd.f32 0.0, %v322
    %v324 = vpop.f32.mrb[0].mxu0
    %v325 = vadd.f32 0.0, %v324
    %v326 = vpop.f32.mrb[0].mxu0
    %v327 = vadd.f32 0.0, %v326
    %328 = vdwg.mxu0
    %329 = vmatprep.subr.bf16.mxu0 %v198
    %330 = vmatpush1.bf16.msra.mxu0 %v197
    %331 = vmatprep.subr.bf16.mxu0 %v202
    %332 = vmatpush1.bf16.msra.mxu0 %v201
    %333 = vmatprep.subr.bf16.mxu0 %v206
    %334 = vmatpush1.bf16.msra.mxu0 %v205
    %335 = vmatprep.subr.bf16.mxu0 %v210
    %336 = vmatpush1.bf16.msra.mxu0 %v209
    %337 = vmatprep.subr.bf16.mxu0 %v214
    %338 = vmatpush1.bf16.msra.mxu0 %v213
    %339 = vmatprep.subr.bf16.mxu0 %v218
    %340 = vmatpush1.bf16.msra.mxu0 %v217
    %341 = vmatprep.subr.bf16.mxu0 0
    %342 = vmatpush1.bf16.msra.mxu0 0
    %343 = vmatprep.subr.bf16.mxu0 0
    %344 = vmatpush1.bf16.msra.mxu0 0
    %345 = vmatprep.subr.bf16.mxu0 0
    %346 = vmatpush1.bf16.msra.mxu0 0
    %347 = vmatprep.subr.bf16.mxu0 0
    %348 = vmatpush1.bf16.msra.mxu0 0
    %349 = vmatprep.subr.bf16.mxu0 0
    %350 = vmatpush1.bf16.msra.mxu0 0
    %351 = vmatprep.subr.bf16.mxu0 0
    %352 = vmatpush1.bf16.msra.mxu0 0
    %353 = vmatprep.subr.bf16.mxu0 0
    %354 = vmatpush1.bf16.msra.mxu0 0
    %355 = vmatprep.subr.bf16.mxu0 0
    %356 = vmatpush1.bf16.msra.mxu0 0
    %357 = vmatprep.subr.bf16.mxu0 0
    %358 = vmatpush1.bf16.msra.mxu0 0
    %359 = vmatprep.subr.bf16.mxu0 0
    %360 = vmatpush1.bf16.msra.mxu0 0
    %361 = vmatprep.mubr.bf16.mxu0 0
    %362 = vmatmul.mubr.bf16.gmra.mrb[0].mxu0 %v245
    %v363 = vpop.f32.mrb[0].mxu0
    %v364 = vadd.f32 0.0, %v363
    %v365 = vpop.f32.mrb[0].mxu0
    %v366 = vadd.f32 0.0, %v365
    %v367 = vpop.f32.mrb[0].mxu0
    %v368 = vadd.f32 0.0, %v367
    %v369 = vpop.f32.mrb[0].mxu0
    %v370 = vadd.f32 0.0, %v369
    %371 = vmatprep.mubr.bf16.mxu0 0
    %372 = vmatmul.mubr.bf16.gmra.mrb[0].mxu0 %v248
    %v373 = vpop.f32.mrb[0].mxu0
    %v374 = vadd.f32 0.0, %v373
    %v375 = vpop.f32.mrb[0].mxu0
    %v376 = vadd.f32 0.0, %v375
    %v377 = vpop.f32.mrb[0].mxu0
    %v378 = vadd.f32 0.0, %v377
    %v379 = vpop.f32.mrb[0].mxu0
    %v380 = vadd.f32 0.0, %v379
    %381 = vmatprep.mubr.bf16.mxu0 0
    %382 = vmatmul.mubr.bf16.gmra.mrb[0].mxu0 %v251
    %v383 = vpop.f32.mrb[0].mxu0
    %v384 = vadd.f32 0.0, %v383
    %v385 = vpop.f32.mrb[0].mxu0
    %v386 = vadd.f32 0.0, %v385
    %v387 = vpop.f32.mrb[0].mxu0
    %v388 = vadd.f32 0.0, %v387
    %v389 = vpop.f32.mrb[0].mxu0
    %v390 = vadd.f32 0.0, %v389
    %391 = vmatprep.mubr.bf16.mxu0 0
    %392 = vmatmul.mubr.bf16.gmra.mrb[0].mxu0 %v254
    %v393 = vpop.f32.mrb[0].mxu0
    %v394 = vadd.f32 0.0, %v393
    %v395 = vpop.f32.mrb[0].mxu0
    %v396 = vadd.f32 0.0, %v395
    %v397 = vpop.f32.mrb[0].mxu0
    %v398 = vadd.f32 0.0, %v397
    %v399 = vpop.f32.mrb[0].mxu0
    %v400 = vadd.f32 0.0, %v399
    %401 = vdwg.mxu0
    %vm402 = vcmp.ne.s32.totalorder %v79, 0
    %vm403 = vcmp.ne.s32.totalorder %v80, 0
    %vm404 = vcmp.ne.s32.totalorder %v81, 0
    %vm405 = vcmp.ne.s32.totalorder %v82, 0
    %vm406 = vcmp.ne.s32.totalorder %v83, 0
    %vm407 = vcmp.ne.s32.totalorder %v84, 0
    %vm408 = vcmp.ne.s32.totalorder %v85, 0
    %vm409 = vcmp.ne.s32.totalorder %v86, 0
    %v410 = vsel %vm402, 1.0, 0.0
    %v411 = vsel %vm403, 1.0, 0.0
    %v412 = vsel %vm404, 1.0, 0.0
    %v413 = vsel %vm405, 1.0, 0.0
    %v414 = vsel %vm406, 1.0, 0.0
    %v415 = vsel %vm407, 1.0, 0.0
    %v416 = vsel %vm408, 1.0, 0.0
    %v417 = vsel %vm409, 1.0, 0.0
    %v418 = vmul.f32 %v291, %v410
    %v419 = vmul.f32 %v293, %v410
    %v420 = vmul.f32 %v364, %v410
    %v421 = vmul.f32 %v366, %v410
    %v422 = vmul.f32 %v295, %v411
    %v423 = vmul.f32 %v297, %v411
    %v424 = vmul.f32 %v368, %v411
    %v425 = vmul.f32 %v370, %v411
    %v426 = vmul.f32 %v301, %v412
    %v427 = vmul.f32 %v303, %v412
    %v428 = vmul.f32 %v374, %v412
    %v429 = vmul.f32 %v376, %v412
    %v430 = vmul.f32 %v305, %v413
    %v431 = vmul.f32 %v307, %v413
    %v432 = vmul.f32 %v378, %v413
    %v433 = vmul.f32 %v380, %v413
    %v434 = vmul.f32 %v311, %v414
    %v435 = vmul.f32 %v313, %v414
    %v436 = vmul.f32 %v384, %v414
    %v437 = vmul.f32 %v386, %v414
    %v438 = vmul.f32 %v315, %v415
    %v439 = vmul.f32 %v317, %v415
    %v440 = vmul.f32 %v388, %v415
    %v441 = vmul.f32 %v390, %v415
    %v442 = vmul.f32 %v321, %v416
    %v443 = vmul.f32 %v323, %v416
    %v444 = vmul.f32 %v394, %v416
    %v445 = vmul.f32 %v396, %v416
    %v446 = vmul.f32 %v325, %v417
    %v447 = vmul.f32 %v327, %v417
    %v448 = vmul.f32 %v398, %v417
    %v449 = vmul.f32 %v400, %v417
    %v450 = vadd.f32 %v418, 0.0
    %v451 = vadd.f32 %v419, 0.0
    %v452 = vadd.f32 %v420, 0.0
    %v453 = vadd.f32 %v421, 0.0
    %v454 = vadd.f32 %v422, 0.0
    %v455 = vadd.f32 %v423, 0.0
    %v456 = vadd.f32 %v424, 0.0
    %v457 = vadd.f32 %v425, 0.0
    %v458 = vadd.f32 %v426, 0.0
    %v459 = vadd.f32 %v427, 0.0
    %v460 = vadd.f32 %v428, 0.0
    %v461 = vadd.f32 %v429, 0.0
    %v462 = vadd.f32 %v430, 0.0
    %v463 = vadd.f32 %v431, 0.0
    %v464 = vadd.f32 %v432, 0.0
    %v465 = vadd.f32 %v433, 0.0
    %v466 = vadd.f32 %v434, 0.0
    %v467 = vadd.f32 %v435, 0.0
    %v468 = vadd.f32 %v436, 0.0
    %v469 = vadd.f32 %v437, 0.0
    %v470 = vadd.f32 %v438, 0.0
    %v471 = vadd.f32 %v439, 0.0
    %v472 = vadd.f32 %v440, 0.0
    %v473 = vadd.f32 %v441, 0.0
    %v474 = vadd.f32 %v442, 0.0
    %v475 = vadd.f32 %v443, 0.0
    %v476 = vadd.f32 %v444, 0.0
    %v477 = vadd.f32 %v445, 0.0
    %v478 = vadd.f32 %v446, 0.0
    %v479 = vadd.f32 %v447, 0.0
    %v480 = vadd.f32 %v448, 0.0
    %v481 = vadd.f32 %v449, 0.0
    %v482 = vld [vmem:[%s0 + $0x1] sm:$0xff]
    %v483 = vld [vmem:[%s0 + $0x9] sm:$0xff]
    %v484 = vld [vmem:[%s0 + $0x11] sm:$0xff]
    %v485 = vld [vmem:[%s0 + $0x19] sm:$0xff]
    %v486 = vld [vmem:[%s0 + $0x21] sm:$0xff]
    %v487 = vld [vmem:[%s0 + $0x29] sm:$0xff]
    %v488 = vld [vmem:[%s0 + $0x31] sm:$0xff]
    %v489 = vld [vmem:[%s0 + $0x39] sm:$0xff]
    %v490 = vpack.c.bf16 %v483, %v482
    %v491 = vpack.c.bf16 %v485, %v484
    %v492 = vpack.c.bf16 %v487, %v486
    %v493 = vpack.c.bf16 %v489, %v488
    %s494 = scalar_lea.vmem [#allocation2], 192
    %v495 = vld [vmem:[%s494] sm:$0xff]
    %v496 = vld [vmem:[%s494 + $0x8] sm:$0xff]
    %v497 = vld [vmem:[%s494 + $0x10] sm:$0xff]
    %v498 = vld [vmem:[%s494 + $0x18] sm:$0xff]
    %v499 = vld [vmem:[%s494 + $0x20] sm:$0xff]
    %v500 = vld [vmem:[%s494 + $0x28] sm:$0xff]
    %v501 = vld [vmem:[%s494 + $0x30] sm:$0xff]
    %v502 = vld [vmem:[%s494 + $0x38] sm:$0xff]
    %v503 = vld [vmem:[%s494 + $0x40] sm:$0xff]
    %v504 = vld [vmem:[%s494 + $0x48] sm:$0xff]
    %v505 = vld [vmem:[%s494 + $0x50] sm:$0xff]
    %v506 = vld [vmem:[%s494 + $0x58] sm:$0xff]
    %v507 = vld [vmem:[%s494 + $0x60] sm:$0xff]
    %v508 = vld [vmem:[%s494 + $0x68] sm:$0xff]
    %v509 = vld [vmem:[%s494 + $0x70] sm:$0xff]
    %v510 = vld [vmem:[%s494 + $0x78] sm:$0xff]
    %v511 = vld [vmem:[%s494 + $0x80] sm:$0xff]
    %v512 = vld [vmem:[%s494 + $0x88] sm:$0xff]
    %v513 = vld [vmem:[%s494 + $0x90] sm:$0xff]
    %v514 = vld [vmem:[%s494 + $0x98] sm:$0xff]
    %v515 = vld [vmem:[%s494 + $0xa0] sm:$0xff]
    %v516 = vld [vmem:[%s494 + $0xa8] sm:$0xff]
    %v517 = vld [vmem:[%s494 + $0xb0] sm:$0xff]
    %v518 = vld [vmem:[%s494 + $0xb8] sm:$0xff]
    %v543 = vunpack.c.l.b16 %v495
    %v544 = vunpack.c.h.b16 %v495
    %v545 = vunpack.c.l.b16 %v496
    %v546 = vunpack.c.h.b16 %v496
    %v547 = vunpack.c.l.b16 %v497
    %v548 = vunpack.c.h.b16 %v497
    %v549 = vunpack.c.l.b16 %v498
    %v550 = vunpack.c.h.b16 %v498
    %v551 = vunpack.c.l.b16 %v499
    %v552 = vunpack.c.h.b16 %v499
    %v553 = vunpack.c.l.b16 %v500
    %v554 = vunpack.c.h.b16 %v500
    %v555 = vunpack.c.l.b16 %v501
    %v556 = vunpack.c.h.b16 %v501
    %v557 = vunpack.c.l.b16 %v502
    %v558 = vunpack.c.h.b16 %v502
    %v559 = vunpack.c.l.b16 %v503
    %v560 = vunpack.c.h.b16 %v503
    %v561 = vunpack.c.l.b16 %v504
    %v562 = vunpack.c.h.b16 %v504
    %v563 = vunpack.c.l.b16 %v505
    %v564 = vunpack.c.h.b16 %v505
    %v565 = vunpack.c.l.b16 %v506
    %v566 = vunpack.c.h.b16 %v506
    %v567 = vunpack.c.l.b16 %v507
    %v568 = vunpack.c.h.b16 %v507
    %v569 = vunpack.c.l.b16 %v508
    %v570 = vunpack.c.h.b16 %v508
    %v571 = vunpack.c.l.b16 %v509
    %v572 = vunpack.c.h.b16 %v509
    %v573 = vunpack.c.l.b16 %v510
    %v574 = vunpack.c.h.b16 %v510
    %v575 = vunpack.c.l.b16 %v511
    %v576 = vunpack.c.h.b16 %v511
    %v577 = vunpack.c.l.b16 %v512
    %v578 = vunpack.c.h.b16 %v512
    %v579 = vunpack.c.l.b16 %v513
    %v580 = vunpack.c.h.b16 %v513
    %v581 = vunpack.c.l.b16 %v514
    %v582 = vunpack.c.h.b16 %v514
    %v583 = vunpack.c.l.b16 %v515
    %v584 = vunpack.c.h.b16 %v515
    %v585 = vunpack.c.l.b16 %v516
    %v586 = vunpack.c.h.b16 %v516
    %v587 = vunpack.c.l.b16 %v517
    %v588 = vunpack.c.h.b16 %v517
    %v589 = vunpack.c.l.b16 %v518
    %v590 = vunpack.c.h.b16 %v518
    %v591 = vpack.c.b16 %v547, %v543
    %v592 = vpack.c.b16 %v548, %v544
    %v593 = vpack.c.b16 %v549, %v545
    %v594 = vpack.c.b16 %v550, %v546
    %v595 = vpack.c.b16 %v555, %v551
    %v596 = vpack.c.b16 %v556, %v552
    %v597 = vpack.c.b16 %v557, %v553
    %v598 = vpack.c.b16 %v558, %v554
    %v599 = vpack.c.b16 %v563, %v559
    %v600 = vpack.c.b16 %v564, %v560
    %v601 = vpack.c.b16 %v565, %v561
    %v602 = vpack.c.b16 %v566, %v562
    %v603 = vpack.c.b16 %v571, %v567
    %v604 = vpack.c.b16 %v572, %v568
    %v605 = vpack.c.b16 %v573, %v569
    %v606 = vpack.c.b16 %v574, %v570
    %v607 = vpack.c.b16 %v579, %v575
    %v608 = vpack.c.b16 %v580, %v576
    %v609 = vpack.c.b16 %v581, %v577
    %v610 = vpack.c.b16 %v582, %v578
    %v611 = vpack.c.b16 %v587, %v583
    %v612 = vpack.c.b16 %v588, %v584
    %v613 = vpack.c.b16 %v589, %v585
    %v614 = vpack.c.b16 %v590, %v586
    %v640 = vsel %vm243, %v490, 0
    %v643 = vsel %vm243, %v491, 0
    %v646 = vsel %vm243, %v492, 0
    %v649 = vsel %vm243, %v493, 0
    %651 = vmatprep.subr.bf16.mxu0 %v592
    %652 = vmatpush1.bf16.msra.mxu0 %v591
    %653 = vmatprep.subr.bf16.mxu0 %v596
    %654 = vmatpush1.bf16.msra.mxu0 %v595
    %655 = vmatprep.subr.bf16.mxu0 %v600
    %656 = vmatpush1.bf16.msra.mxu0 %v599
    %657 = vmatprep.subr.bf16.mxu0 %v604
    %658 = vmatpush1.bf16.msra.mxu0 %v603
    %659 = vmatprep.subr.bf16.mxu0 %v608
    %660 = vmatpush1.bf16.msra.mxu0 %v607
    %661 = vmatprep.subr.bf16.mxu0 %v612
    %662 = vmatpush1.bf16.msra.mxu0 %v611
    %663 = vmatprep.subr.bf16.mxu0 0
    %664 = vmatpush1.bf16.msra.mxu0 0
    %665 = vmatprep.subr.bf16.mxu0 0
    %666 = vmatpush1.bf16.msra.mxu0 0
    %667 = vmatprep.subr.bf16.mxu0 0
    %668 = vmatpush1.bf16.msra.mxu0 0
    %669 = vmatprep.subr.bf16.mxu0 0
    %670 = vmatpush1.bf16.msra.mxu0 0
    %671 = vmatprep.subr.bf16.mxu0 0
    %672 = vmatpush1.bf16.msra.mxu0 0
    %673 = vmatprep.subr.bf16.mxu0 0
    %674 = vmatpush1.bf16.msra.mxu0 0
    %675 = vmatprep.subr.bf16.mxu0 0
    %676 = vmatpush1.bf16.msra.mxu0 0
    %677 = vmatprep.subr.bf16.mxu0 0
    %678 = vmatpush1.bf16.msra.mxu0 0
    %679 = vmatprep.subr.bf16.mxu0 0
    %680 = vmatpush1.bf16.msra.mxu0 0
    %681 = vmatprep.subr.bf16.mxu0 0
    %682 = vmatpush1.bf16.msra.mxu0 0
    %683 = vmatprep.mubr.bf16.mxu0 0
    %684 = vmatmul.mubr.bf16.gmra.mrb[0].mxu0 %v640
    %v685 = vpop.f32.mrb[0].mxu0
    %v686 = vadd.f32 0.0, %v685
    %v687 = vpop.f32.mrb[0].mxu0
    %v688 = vadd.f32 0.0, %v687
    %v689 = vpop.f32.mrb[0].mxu0
    %v690 = vadd.f32 0.0, %v689
    %v691 = vpop.f32.mrb[0].mxu0
    %v692 = vadd.f32 0.0, %v691
    %693 = vmatprep.mubr.bf16.mxu0 0
    %694 = vmatmul.mubr.bf16.gmra.mrb[0].mxu0 %v643
    %v695 = vpop.f32.mrb[0].mxu0
    %v696 = vadd.f32 0.0, %v695
    %v697 = vpop.f32.mrb[0].mxu0
    %v698 = vadd.f32 0.0, %v697
    %v699 = vpop.f32.mrb[0].mxu0
    %v700 = vadd.f32 0.0, %v699
    %v701 = vpop.f32.mrb[0].mxu0
    %v702 = vadd.f32 0.0, %v701
    %703 = vmatprep.mubr.bf16.mxu0 0
    %704 = vmatmul.mubr.bf16.gmra.mrb[0].mxu0 %v646
    %v705 = vpop.f32.mrb[0].mxu0
    %v706 = vadd.f32 0.0, %v705
    %v707 = vpop.f32.mrb[0].mxu0
    %v708 = vadd.f32 0.0, %v707
    %v709 = vpop.f32.mrb[0].mxu0
    %v710 = vadd.f32 0.0, %v709
    %v711 = vpop.f32.mrb[0].mxu0
    %v712 = vadd.f32 0.0, %v711
    %713 = vmatprep.mubr.bf16.mxu0 0
    %714 = vmatmul.mubr.bf16.gmra.mrb[0].mxu0 %v649
    %v715 = vpop.f32.mrb[0].mxu0
    %v716 = vadd.f32 0.0, %v715
    %v717 = vpop.f32.mrb[0].mxu0
    %v718 = vadd.f32 0.0, %v717
    %v719 = vpop.f32.mrb[0].mxu0
    %v720 = vadd.f32 0.0, %v719
    %v721 = vpop.f32.mrb[0].mxu0
    %v722 = vadd.f32 0.0, %v721
    %723 = vdwg.mxu0
    %724 = vmatprep.subr.bf16.mxu0 %v594
    %725 = vmatpush1.bf16.msra.mxu0 %v593
    %726 = vmatprep.subr.bf16.mxu0 %v598
    %727 = vmatpush1.bf16.msra.mxu0 %v597
    %728 = vmatprep.subr.bf16.mxu0 %v602
    %729 = vmatpush1.bf16.msra.mxu0 %v601
    %730 = vmatprep.subr.bf16.mxu0 %v606
    %731 = vmatpush1.bf16.msra.mxu0 %v605
    %732 = vmatprep.subr.bf16.mxu0 %v610
    %733 = vmatpush1.bf16.msra.mxu0 %v609
    %734 = vmatprep.subr.bf16.mxu0 %v614
    %735 = vmatpush1.bf16.msra.mxu0 %v613
    %736 = vmatprep.subr.bf16.mxu0 0
    %737 = vmatpush1.bf16.msra.mxu0 0
    %738 = vmatprep.subr.bf16.mxu0 0
    %739 = vmatpush1.bf16.msra.mxu0 0
    %740 = vmatprep.subr.bf16.mxu0 0
    %741 = vmatpush1.bf16.msra.mxu0 0
    %742 = vmatprep.subr.bf16.mxu0 0
    %743 = vmatpush1.bf16.msra.mxu0 0
    %744 = vmatprep.subr.bf16.mxu0 0
    %745 = vmatpush1.bf16.msra.mxu0 0
    %746 = vmatprep.subr.bf16.mxu0 0
    %747 = vmatpush1.bf16.msra.mxu0 0
    %748 = vmatprep.subr.bf16.mxu0 0
    %749 = vmatpush1.bf16.msra.mxu0 0
    %750 = vmatprep.subr.bf16.mxu0 0
    %751 = vmatpush1.bf16.msra.mxu0 0
    %752 = vmatprep.subr.bf16.mxu0 0
    %753 = vmatpush1.bf16.msra.mxu0 0
    %754 = vmatprep.subr.bf16.mxu0 0
    %755 = vmatpush1.bf16.msra.mxu0 0
    %756 = vmatprep.mubr.bf16.mxu0 0
    %757 = vmatmul.mubr.bf16.gmra.mrb[0].mxu0 %v640
    %v758 = vpop.f32.mrb[0].mxu0
    %v759 = vadd.f32 0.0, %v758
    %v760 = vpop.f32.mrb[0].mxu0
    %v761 = vadd.f32 0.0, %v760
    %v762 = vpop.f32.mrb[0].mxu0
    %v763 = vadd.f32 0.0, %v762
    %v764 = vpop.f32.mrb[0].mxu0
    %v765 = vadd.f32 0.0, %v764
    %766 = vmatprep.mubr.bf16.mxu0 0
    %767 = vmatmul.mubr.bf16.gmra.mrb[0].mxu0 %v643
    %v768 = vpop.f32.mrb[0].mxu0
    %v769 = vadd.f32 0.0, %v768
    %v770 = vpop.f32.mrb[0].mxu0
    %v771 = vadd.f32 0.0, %v770
    %v772 = vpop.f32.mrb[0].mxu0
    %v773 = vadd.f32 0.0, %v772
    %v774 = vpop.f32.mrb[0].mxu0
    %v775 = vadd.f32 0.0, %v774
    %776 = vmatprep.mubr.bf16.mxu0 0
    %777 = vmatmul.mubr.bf16.gmra.mrb[0].mxu0 %v646
    %v778 = vpop.f32.mrb[0].mxu0
    %v779 = vadd.f32 0.0, %v778
    %v780 = vpop.f32.mrb[0].mxu0
    %v781 = vadd.f32 0.0, %v780
    %v782 = vpop.f32.mrb[0].mxu0
    %v783 = vadd.f32 0.0, %v782
    %v784 = vpop.f32.mrb[0].mxu0
    %v785 = vadd.f32 0.0, %v784
    %786 = vmatprep.mubr.bf16.mxu0 0
    %787 = vmatmul.mubr.bf16.gmra.mrb[0].mxu0 %v649
    %v788 = vpop.f32.mrb[0].mxu0
    %v789 = vadd.f32 0.0, %v788
    %v790 = vpop.f32.mrb[0].mxu0
    %v791 = vadd.f32 0.0, %v790
    %v792 = vpop.f32.mrb[0].mxu0
    %v793 = vadd.f32 0.0, %v792
    %v794 = vpop.f32.mrb[0].mxu0
    %v795 = vadd.f32 0.0, %v794
    %796 = vdwg.mxu0
    %v797 = vadd.f32 %v450, %v686
    %v798 = vadd.f32 %v451, %v688
    %v799 = vadd.f32 %v452, %v759
    %v800 = vadd.f32 %v453, %v761
    %v801 = vadd.f32 %v454, %v690
    %v802 = vadd.f32 %v455, %v692
    %v803 = vadd.f32 %v456, %v763
    %v804 = vadd.f32 %v457, %v765
    %v805 = vadd.f32 %v458, %v696
    %v806 = vadd.f32 %v459, %v698
    %v807 = vadd.f32 %v460, %v769
    %v808 = vadd.f32 %v461, %v771
    %v809 = vadd.f32 %v462, %v700
    %v810 = vadd.f32 %v463, %v702
    %v811 = vadd.f32 %v464, %v773
    %v812 = vadd.f32 %v465, %v775
    %v813 = vadd.f32 %v466, %v706
    %v814 = vadd.f32 %v467, %v708
    %v815 = vadd.f32 %v468, %v779
    %v816 = vadd.f32 %v469, %v781
    %v817 = vadd.f32 %v470, %v710
    %v818 = vadd.f32 %v471, %v712
    %v819 = vadd.f32 %v472, %v783
    %v820 = vadd.f32 %v473, %v785
    %v821 = vadd.f32 %v474, %v716
    %v822 = vadd.f32 %v475, %v718
    %v823 = vadd.f32 %v476, %v789
    %v824 = vadd.f32 %v477, %v791
    %v825 = vadd.f32 %v478, %v720
    %v826 = vadd.f32 %v479, %v722
    %v827 = vadd.f32 %v480, %v793
    %v828 = vadd.f32 %v481, %v795
    %v829 = vld [vmem:[%s0 + $0x2] sm:$0xff]
    %v830 = vld [vmem:[%s0 + $0xa] sm:$0xff]
    %v831 = vld [vmem:[%s0 + $0x12] sm:$0xff]
    %v832 = vld [vmem:[%s0 + $0x1a] sm:$0xff]
    %v833 = vld [vmem:[%s0 + $0x22] sm:$0xff]
    %v834 = vld [vmem:[%s0 + $0x2a] sm:$0xff]
    %v835 = vld [vmem:[%s0 + $0x32] sm:$0xff]
    %v836 = vld [vmem:[%s0 + $0x3a] sm:$0xff]
    %v837 = vpack.c.bf16 %v830, %v829
    %v838 = vpack.c.bf16 %v832, %v831
    %v839 = vpack.c.bf16 %v834, %v833
    %v840 = vpack.c.bf16 %v836, %v835
    %s841 = scalar_lea.vmem [#allocation2], 384
    %v842 = vld [vmem:[%s841] sm:$0xff]
    %v843 = vld [vmem:[%s841 + $0x8] sm:$0xff]
    %v844 = vld [vmem:[%s841 + $0x10] sm:$0xff]
    %v845 = vld [vmem:[%s841 + $0x18] sm:$0xff]
    %v846 = vld [vmem:[%s841 + $0x20] sm:$0xff]
    %v847 = vld [vmem:[%s841 + $0x28] sm:$0xff]
    %v848 = vld [vmem:[%s841 + $0x30] sm:$0xff]
    %v849 = vld [vmem:[%s841 + $0x38] sm:$0xff]
    %v850 = vld [vmem:[%s841 + $0x40] sm:$0xff]
    %v851 = vld [vmem:[%s841 + $0x48] sm:$0xff]
    %v852 = vld [vmem:[%s841 + $0x50] sm:$0xff]
    %v853 = vld [vmem:[%s841 + $0x58] sm:$0xff]
    %v854 = vld [vmem:[%s841 + $0x60] sm:$0xff]
    %v855 = vld [vmem:[%s841 + $0x68] sm:$0xff]
    %v856 = vld [vmem:[%s841 + $0x70] sm:$0xff]
    %v857 = vld [vmem:[%s841 + $0x78] sm:$0xff]
    %v858 = vld [vmem:[%s841 + $0x80] sm:$0xff]
    %v859 = vld [vmem:[%s841 + $0x88] sm:$0xff]
    %v860 = vld [vmem:[%s841 + $0x90] sm:$0xff]
    %v861 = vld [vmem:[%s841 + $0x98] sm:$0xff]
    %v862 = vld [vmem:[%s841 + $0xa0] sm:$0xff]
    %v863 = vld [vmem:[%s841 + $0xa8] sm:$0xff]
    %v864 = vld [vmem:[%s841 + $0xb0] sm:$0xff]
    %v865 = vld [vmem:[%s841 + $0xb8] sm:$0xff]
    %v890 = vunpack.c.l.b16 %v842
    %v891 = vunpack.c.h.b16 %v842
    %v892 = vunpack.c.l.b16 %v843
    %v893 = vunpack.c.h.b16 %v843
    %v894 = vunpack.c.l.b16 %v844
    %v895 = vunpack.c.h.b16 %v844
    %v896 = vunpack.c.l.b16 %v845
    %v897 = vunpack.c.h.b16 %v845
    %v898 = vunpack.c.l.b16 %v846
    %v899 = vunpack.c.h.b16 %v846
    %v900 = vunpack.c.l.b16 %v847
    %v901 = vunpack.c.h.b16 %v847
    %v902 = vunpack.c.l.b16 %v848
    %v903 = vunpack.c.h.b16 %v848
    %v904 = vunpack.c.l.b16 %v849
    %v905 = vunpack.c.h.b16 %v849
    %v906 = vunpack.c.l.b16 %v850
    %v907 = vunpack.c.h.b16 %v850
    %v908 = vunpack.c.l.b16 %v851
    %v909 = vunpack.c.h.b16 %v851
    %v910 = vunpack.c.l.b16 %v852
    %v911 = vunpack.c.h.b16 %v852
    %v912 = vunpack.c.l.b16 %v853
    %v913 = vunpack.c.h.b16 %v853
    %v914 = vunpack.c.l.b16 %v854
    %v915 = vunpack.c.h.b16 %v854
    %v916 = vunpack.c.l.b16 %v855
    %v917 = vunpack.c.h.b16 %v855
    %v918 = vunpack.c.l.b16 %v856
    %v919 = vunpack.c.h.b16 %v856
    %v920 = vunpack.c.l.b16 %v857
    %v921 = vunpack.c.h.b16 %v857
    %v922 = vunpack.c.l.b16 %v858
    %v923 = vunpack.c.h.b16 %v858
    %v924 = vunpack.c.l.b16 %v859
    %v925 = vunpack.c.h.b16 %v859
    %v926 = vunpack.c.l.b16 %v860
    %v927 = vunpack.c.h.b16 %v860
    %v928 = vunpack.c.l.b16 %v861
    %v929 = vunpack.c.h.b16 %v861
    %v930 = vunpack.c.l.b16 %v862
    %v931 = vunpack.c.h.b16 %v862
    %v932 = vunpack.c.l.b16 %v863
    %v933 = vunpack.c.h.b16 %v863
    %v934 = vunpack.c.l.b16 %v864
    %v935 = vunpack.c.h.b16 %v864
    %v936 = vunpack.c.l.b16 %v865
    %v937 = vunpack.c.h.b16 %v865
    %v938 = vpack.c.b16 %v894, %v890
    %v939 = vpack.c.b16 %v895, %v891
    %v940 = vpack.c.b16 %v896, %v892
    %v941 = vpack.c.b16 %v897, %v893
    %v942 = vpack.c.b16 %v902, %v898
    %v943 = vpack.c.b16 %v903, %v899
    %v944 = vpack.c.b16 %v904, %v900
    %v945 = vpack.c.b16 %v905, %v901
    %v946 = vpack.c.b16 %v910, %v906
    %v947 = vpack.c.b16 %v911, %v907
    %v948 = vpack.c.b16 %v912, %v908
    %v949 = vpack.c.b16 %v913, %v909
    %v950 = vpack.c.b16 %v918, %v914
    %v951 = vpack.c.b16 %v919, %v915
    %v952 = vpack.c.b16 %v920, %v916
    %v953 = vpack.c.b16 %v921, %v917
    %v954 = vpack.c.b16 %v926, %v922
    %v955 = vpack.c.b16 %v927, %v923
    %v956 = vpack.c.b16 %v928, %v924
    %v957 = vpack.c.b16 %v929, %v925
    %v958 = vpack.c.b16 %v934, %v930
    %v959 = vpack.c.b16 %v935, %v931
    %v960 = vpack.c.b16 %v936, %v932
    %v961 = vpack.c.b16 %v937, %v933
    %v987 = vsel %vm243, %v837, 0
    %v990 = vsel %vm243, %v838, 0
    %v993 = vsel %vm243, %v839, 0
    %v996 = vsel %vm243, %v840, 0
    %998 = vmatprep.subr.bf16.mxu0 %v939
    %999 = vmatpush1.bf16.msra.mxu0 %v938
    %1000 = vmatprep.subr.bf16.mxu0 %v943
    %1001 = vmatpush1.bf16.msra.mxu0 %v942
    %1002 = vmatprep.subr.bf16.mxu0 %v947
    %1003 = vmatpush1.bf16.msra.mxu0 %v946
    %1004 = vmatprep.subr.bf16.mxu0 %v951
    %1005 = vmatpush1.bf16.msra.mxu0 %v950
    %1006 = vmatprep.subr.bf16.mxu0 %v955
    %1007 = vmatpush1.bf16.msra.mxu0 %v954
    %1008 = vmatprep.subr.bf16.mxu0 %v959
    %1009 = vmatpush1.bf16.msra.mxu0 %v958
    %1010 = vmatprep.subr.bf16.mxu0 0
    %1011 = vmatpush1.bf16.msra.mxu0 0
    %1012 = vmatprep.subr.bf16.mxu0 0
    %1013 = vmatpush1.bf16.msra.mxu0 0
    %1014 = vmatprep.subr.bf16.mxu0 0
    %1015 = vmatpush1.bf16.msra.mxu0 0
    %1016 = vmatprep.subr.bf16.mxu0 0
    %1017 = vmatpush1.bf16.msra.mxu0 0
    %1018 = vmatprep.subr.bf16.mxu0 0
    %1019 = vmatpush1.bf16.msra.mxu0 0
    %1020 = vmatprep.subr.bf16.mxu0 0
    %1021 = vmatpush1.bf16.msra.mxu0 0
    %1022 = vmatprep.subr.bf16.mxu0 0
    %1023 = vmatpush1.bf16.msra.mxu0 0
    %1024 = vmatprep.subr.bf16.mxu0 0
    %1025 = vmatpush1.bf16.msra.mxu0 0
    %1026 = vmatprep.subr.bf16.mxu0 0
    %1027 = vmatpush1.bf16.msra.mxu0 0
    %1028 = vmatprep.subr.bf16.mxu0 0
    %1029 = vmatpush1.bf16.msra.mxu0 0
    %1030 = vmatprep.mubr.bf16.mxu0 0
    %1031 = vmatmul.mubr.bf16.gmra.mrb[0].mxu0 %v987
    %v1032 = vpop.f32.mrb[0].mxu0
    %v1033 = vadd.f32 0.0, %v1032
    %v1034 = vpop.f32.mrb[0].mxu0
    %v1035 = vadd.f32 0.0, %v1034
    %v1036 = vpop.f32.mrb[0].mxu0
    %v1037 = vadd.f32 0.0, %v1036
    %v1038 = vpop.f32.mrb[0].mxu0
    %v1039 = vadd.f32 0.0, %v1038
    %1040 = vmatprep.mubr.bf16.mxu0 0
    %1041 = vmatmul.mubr.bf16.gmra.mrb[0].mxu0 %v990
    %v1042 = vpop.f32.mrb[0].mxu0
    %v1043 = vadd.f32 0.0, %v1042
    %v1044 = vpop.f32.mrb[0].mxu0
    %v1045 = vadd.f32 0.0, %v1044
    %v1046 = vpop.f32.mrb[0].mxu0
    %v1047 = vadd.f32 0.0, %v1046
    %v1048 = vpop.f32.mrb[0].mxu0
    %v1049 = vadd.f32 0.0, %v1048
    %1050 = vmatprep.mubr.bf16.mxu0 0
    %1051 = vmatmul.mubr.bf16.gmra.mrb[0].mxu0 %v993
    %v1052 = vpop.f32.mrb[0].mxu0
    %v1053 = vadd.f32 0.0, %v1052
    %v1054 = vpop.f32.mrb[0].mxu0
    %v1055 = vadd.f32 0.0, %v1054
    %v1056 = vpop.f32.mrb[0].mxu0
    %v1057 = vadd.f32 0.0, %v1056
    %v1058 = vpop.f32.mrb[0].mxu0
    %v1059 = vadd.f32 0.0, %v1058
    %1060 = vmatprep.mubr.bf16.mxu0 0
    %1061 = vmatmul.mubr.bf16.gmra.mrb[0].mxu0 %v996
    %v1062 = vpop.f32.mrb[0].mxu0
    %v1063 = vadd.f32 0.0, %v1062
    %v1064 = vpop.f32.mrb[0].mxu0
    %v1065 = vadd.f32 0.0, %v1064
    %v1066 = vpop.f32.mrb[0].mxu0
    %v1067 = vadd.f32 0.0, %v1066
    %v1068 = vpop.f32.mrb[0].mxu0
    %v1069 = vadd.f32 0.0, %v1068
    %1070 = vdwg.mxu0
    %1071 = vmatprep.subr.bf16.mxu0 %v941
    %1072 = vmatpush1.bf16.msra.mxu0 %v940
    %1073 = vmatprep.subr.bf16.mxu0 %v945
    %1074 = vmatpush1.bf16.msra.mxu0 %v944
    %1075 = vmatprep.subr.bf16.mxu0 %v949
    %1076 = vmatpush1.bf16.msra.mxu0 %v948
    %1077 = vmatprep.subr.bf16.mxu0 %v953
    %1078 = vmatpush1.bf16.msra.mxu0 %v952
    %1079 = vmatprep.subr.bf16.mxu0 %v957
    %1080 = vmatpush1.bf16.msra.mxu0 %v956
    %1081 = vmatprep.subr.bf16.mxu0 %v961
    %1082 = vmatpush1.bf16.msra.mxu0 %v960
    %1083 = vmatprep.subr.bf16.mxu0 0
    %1084 = vmatpush1.bf16.msra.mxu0 0
    %1085 = vmatprep.subr.bf16.mxu0 0
    %1086 = vmatpush1.bf16.msra.mxu0 0
    %1087 = vmatprep.subr.bf16.mxu0 0
    %1088 = vmatpush1.bf16.msra.mxu0 0
    %1089 = vmatprep.subr.bf16.mxu0 0
    %1090 = vmatpush1.bf16.msra.mxu0 0
    %1091 = vmatprep.subr.bf16.mxu0 0
    %1092 = vmatpush1.bf16.msra.mxu0 0
    %1093 = vmatprep.subr.bf16.mxu0 0
    %1094 = vmatpush1.bf16.msra.mxu0 0
    %1095 = vmatprep.subr.bf16.mxu0 0
    %1096 = vmatpush1.bf16.msra.mxu0 0
    %1097 = vmatprep.subr.bf16.mxu0 0
    %1098 = vmatpush1.bf16.msra.mxu0 0
    %1099 = vmatprep.subr.bf16.mxu0 0
    %1100 = vmatpush1.bf16.msra.mxu0 0
    %1101 = vmatprep.subr.bf16.mxu0 0
    %1102 = vmatpush1.bf16.msra.mxu0 0
    %1103 = vmatprep.mubr.bf16.mxu0 0
    %1104 = vmatmul.mubr.bf16.gmra.mrb[0].mxu0 %v987
    %v1105 = vpop.f32.mrb[0].mxu0
    %v1106 = vadd.f32 0.0, %v1105
    %v1107 = vpop.f32.mrb[0].mxu0
    %v1108 = vadd.f32 0.0, %v1107
    %v1109 = vpop.f32.mrb[0].mxu0
    %v1110 = vadd.f32 0.0, %v1109
    %v1111 = vpop.f32.mrb[0].mxu0
    %v1112 = vadd.f32 0.0, %v1111
    %1113 = vmatprep.mubr.bf16.mxu0 0
    %1114 = vmatmul.mubr.bf16.gmra.mrb[0].mxu0 %v990
    %v1115 = vpop.f32.mrb[0].mxu0
    %v1116 = vadd.f32 0.0, %v1115
    %v1117 = vpop.f32.mrb[0].mxu0
    %v1118 = vadd.f32 0.0, %v1117
    %v1119 = vpop.f32.mrb[0].mxu0
    %v1120 = vadd.f32 0.0, %v1119
    %v1121 = vpop.f32.mrb[0].mxu0
    %v1122 = vadd.f32 0.0, %v1121
    %1123 = vmatprep.mubr.bf16.mxu0 0
    %1124 = vmatmul.mubr.bf16.gmra.mrb[0].mxu0 %v993
    %v1125 = vpop.f32.mrb[0].mxu0
    %v1126 = vadd.f32 0.0, %v1125
    %v1127 = vpop.f32.mrb[0].mxu0
    %v1128 = vadd.f32 0.0, %v1127
    %v1129 = vpop.f32.mrb[0].mxu0
    %v1130 = vadd.f32 0.0, %v1129
    %v1131 = vpop.f32.mrb[0].mxu0
    %v1132 = vadd.f32 0.0, %v1131
    %1133 = vmatprep.mubr.bf16.mxu0 0
    %1134 = vmatmul.mubr.bf16.gmra.mrb[0].mxu0 %v996
    %v1135 = vpop.f32.mrb[0].mxu0
    %v1136 = vadd.f32 0.0, %v1135
    %v1137 = vpop.f32.mrb[0].mxu0
    %v1138 = vadd.f32 0.0, %v1137
    %v1139 = vpop.f32.mrb[0].mxu0
    %v1140 = vadd.f32 0.0, %v1139
    %v1141 = vpop.f32.mrb[0].mxu0
    %v1142 = vadd.f32 0.0, %v1141
    %1143 = vdwg.mxu0
    %vm1144 = vcmp.ne.s32.totalorder %v79, 31
    %vm1145 = vcmp.ne.s32.totalorder %v80, 31
    %vm1146 = vcmp.ne.s32.totalorder %v81, 31
    %vm1147 = vcmp.ne.s32.totalorder %v82, 31
    %vm1148 = vcmp.ne.s32.totalorder %v83, 31
    %vm1149 = vcmp.ne.s32.totalorder %v84, 31
    %vm1150 = vcmp.ne.s32.totalorder %v85, 31
    %vm1151 = vcmp.ne.s32.totalorder %v86, 31
    %v1152 = vsel %vm1144, 1.0, 0.0
    %v1153 = vsel %vm1145, 1.0, 0.0
    %v1154 = vsel %vm1146, 1.0, 0.0
    %v1155 = vsel %vm1147, 1.0, 0.0
    %v1156 = vsel %vm1148, 1.0, 0.0
    %v1157 = vsel %vm1149, 1.0, 0.0
    %v1158 = vsel %vm1150, 1.0, 0.0
    %v1159 = vsel %vm1151, 1.0, 0.0
    %v1160 = vmul.f32 %v1033, %v1152
    %v1161 = vmul.f32 %v1035, %v1152
    %v1162 = vmul.f32 %v1106, %v1152
    %v1163 = vmul.f32 %v1108, %v1152
    %v1164 = vmul.f32 %v1037, %v1153
    %v1165 = vmul.f32 %v1039, %v1153
    %v1166 = vmul.f32 %v1110, %v1153
    %v1167 = vmul.f32 %v1112, %v1153
    %v1168 = vmul.f32 %v1043, %v1154
    %v1169 = vmul.f32 %v1045, %v1154
    %v1170 = vmul.f32 %v1116, %v1154
    %v1171 = vmul.f32 %v1118, %v1154
    %v1172 = vmul.f32 %v1047, %v1155
    %v1173 = vmul.f32 %v1049, %v1155
    %v1174 = vmul.f32 %v1120, %v1155
    %v1175 = vmul.f32 %v1122, %v1155
    %v1176 = vmul.f32 %v1053, %v1156
    %v1177 = vmul.f32 %v1055, %v1156
    %v1178 = vmul.f32 %v1126, %v1156
    %v1179 = vmul.f32 %v1128, %v1156
    %v1180 = vmul.f32 %v1057, %v1157
    %v1181 = vmul.f32 %v1059, %v1157
    %v1182 = vmul.f32 %v1130, %v1157
    %v1183 = vmul.f32 %v1132, %v1157
    %v1184 = vmul.f32 %v1063, %v1158
    %v1185 = vmul.f32 %v1065, %v1158
    %v1186 = vmul.f32 %v1136, %v1158
    %v1187 = vmul.f32 %v1138, %v1158
    %v1188 = vmul.f32 %v1067, %v1159
    %v1189 = vmul.f32 %v1069, %v1159
    %v1190 = vmul.f32 %v1140, %v1159
    %v1191 = vmul.f32 %v1142, %v1159
    %v1192 = vadd.f32 %v797, %v1160
    %v1193 = vadd.f32 %v798, %v1161
    %v1194 = vadd.f32 %v799, %v1162
    %v1195 = vadd.f32 %v800, %v1163
    %v1196 = vadd.f32 %v801, %v1164
    %v1197 = vadd.f32 %v802, %v1165
    %v1198 = vadd.f32 %v803, %v1166
    %v1199 = vadd.f32 %v804, %v1167
    %v1200 = vadd.f32 %v805, %v1168
    %v1201 = vadd.f32 %v806, %v1169
    %v1202 = vadd.f32 %v807, %v1170
    %v1203 = vadd.f32 %v808, %v1171
    %v1204 = vadd.f32 %v809, %v1172
    %v1205 = vadd.f32 %v810, %v1173
    %v1206 = vadd.f32 %v811, %v1174
    %v1207 = vadd.f32 %v812, %v1175
    %v1208 = vadd.f32 %v813, %v1176
    %v1209 = vadd.f32 %v814, %v1177
    %v1210 = vadd.f32 %v815, %v1178
    %v1211 = vadd.f32 %v816, %v1179
    %v1212 = vadd.f32 %v817, %v1180
    %v1213 = vadd.f32 %v818, %v1181
    %v1214 = vadd.f32 %v819, %v1182
    %v1215 = vadd.f32 %v820, %v1183
    %v1216 = vadd.f32 %v821, %v1184
    %v1217 = vadd.f32 %v822, %v1185
    %v1218 = vadd.f32 %v823, %v1186
    %v1219 = vadd.f32 %v824, %v1187
    %v1220 = vadd.f32 %v825, %v1188
    %v1221 = vadd.f32 %v826, %v1189
    %v1222 = vadd.f32 %v827, %v1190
    %v1223 = vadd.f32 %v828, %v1191
    %v1224 = vld [vmem:[#allocation4] sm:$0xf]
    %v1226 = vlaneseq
    %v1227 = vshrl.u32 %v1226, 7
    %v1228 = vsub.s32 0, %v1227
    %v1229 = vrot.slane %v1224, %v1228
    %v1230 = vlaneseq
    %v1231 = vshrl.u32 %v1230, 7
    %v1232 = vsub.s32 1, %v1231
    %v1233 = vrot.slane %v1224, %v1232
    %v1234 = vlaneseq
    %v1235 = vshrl.u32 %v1234, 7
    %v1236 = vsub.s32 2, %v1235
    %v1237 = vrot.slane %v1224, %v1236
    %v1238 = vlaneseq
    %v1239 = vshrl.u32 %v1238, 7
    %v1240 = vsub.s32 3, %v1239
    %v1241 = vrot.slane %v1224, %v1240
    %v1246 = vadd.f32 %v1192, %v1229
    %v1247 = vadd.f32 %v1193, %v1233
    %v1248 = vadd.f32 %v1194, %v1237
    %v1249 = vadd.f32 %v1195, %v1241
    %v1250 = vadd.f32 %v1196, %v1229
    %v1251 = vadd.f32 %v1197, %v1233
    %v1252 = vadd.f32 %v1198, %v1237
    %v1253 = vadd.f32 %v1199, %v1241
    %v1254 = vadd.f32 %v1200, %v1229
    %v1255 = vadd.f32 %v1201, %v1233
    %v1256 = vadd.f32 %v1202, %v1237
    %v1257 = vadd.f32 %v1203, %v1241
    %v1258 = vadd.f32 %v1204, %v1229
    %v1259 = vadd.f32 %v1205, %v1233
    %v1260 = vadd.f32 %v1206, %v1237
    %v1261 = vadd.f32 %v1207, %v1241
    %v1262 = vadd.f32 %v1208, %v1229
    %v1263 = vadd.f32 %v1209, %v1233
    %v1264 = vadd.f32 %v1210, %v1237
    %v1265 = vadd.f32 %v1211, %v1241
    %v1266 = vadd.f32 %v1212, %v1229
    %v1267 = vadd.f32 %v1213, %v1233
    %v1268 = vadd.f32 %v1214, %v1237
    %v1269 = vadd.f32 %v1215, %v1241
    %v1270 = vadd.f32 %v1216, %v1229
    %v1271 = vadd.f32 %v1217, %v1233
    %v1272 = vadd.f32 %v1218, %v1237
    %v1273 = vadd.f32 %v1219, %v1241
    %v1274 = vadd.f32 %v1220, %v1229
    %v1275 = vadd.f32 %v1221, %v1233
    %v1276 = vadd.f32 %v1222, %v1237
    %v1277 = vadd.f32 %v1223, %v1241
    %v1278 = vmax.f32 %v1246, 0.0
    %v1279 = vmax.f32 %v1247, 0.0
    %v1280 = vmax.f32 %v1248, 0.0
    %v1281 = vmax.f32 %v1249, 0.0
    %v1282 = vmax.f32 %v1250, 0.0
    %v1283 = vmax.f32 %v1251, 0.0
    %v1284 = vmax.f32 %v1252, 0.0
    %v1285 = vmax.f32 %v1253, 0.0
    %v1286 = vmax.f32 %v1254, 0.0
    %v1287 = vmax.f32 %v1255, 0.0
    %v1288 = vmax.f32 %v1256, 0.0
    %v1289 = vmax.f32 %v1257, 0.0
    %v1290 = vmax.f32 %v1258, 0.0
    %v1291 = vmax.f32 %v1259, 0.0
    %v1292 = vmax.f32 %v1260, 0.0
    %v1293 = vmax.f32 %v1261, 0.0
    %v1294 = vmax.f32 %v1262, 0.0
    %v1295 = vmax.f32 %v1263, 0.0
    %v1296 = vmax.f32 %v1264, 0.0
    %v1297 = vmax.f32 %v1265, 0.0
    %v1298 = vmax.f32 %v1266, 0.0
    %v1299 = vmax.f32 %v1267, 0.0
    %v1300 = vmax.f32 %v1268, 0.0
    %v1301 = vmax.f32 %v1269, 0.0
    %v1302 = vmax.f32 %v1270, 0.0
    %v1303 = vmax.f32 %v1271, 0.0
    %v1304 = vmax.f32 %v1272, 0.0
    %v1305 = vmax.f32 %v1273, 0.0
    %v1306 = vmax.f32 %v1274, 0.0
    %v1307 = vmax.f32 %v1275, 0.0
    %v1308 = vmax.f32 %v1276, 0.0
    %v1309 = vmax.f32 %v1277, 0.0
    %v1310 = vlaneseq
    %v1311 = vand.u32 %v1310, 127
    %v1312 = vmul.u32 %v71, 2
    %v1313 = vmul.u32 %v72, 2
    %v1314 = vmul.u32 %v73, 2
    %v1315 = vmul.u32 %v74, 2
    %vm1316 = vcmp.eq.s32.totalorder %v1311, %v1312
    %vm1317 = vcmp.eq.s32.totalorder %v1311, %v1313
    %vm1318 = vcmp.eq.s32.totalorder %v1311, %v1314
    %vm1319 = vcmp.eq.s32.totalorder %v1311, %v1315
    %v1320 = vsel %vm1316, 1.0, 0.0
    %v1321 = vsel %vm1317, 1.0, 0.0
    %v1322 = vsel %vm1318, 1.0, 0.0
    %v1323 = vsel %vm1319, 1.0, 0.0
    %v1324 = vadd.s32 %v1312, 1
    %v1325 = vadd.s32 %v1313, 1
    %v1326 = vadd.s32 %v1314, 1
    %v1327 = vadd.s32 %v1315, 1
    %vm1328 = vcmp.eq.s32.totalorder %v1311, %v1324
    %vm1329 = vcmp.eq.s32.totalorder %v1311, %v1325
    %vm1330 = vcmp.eq.s32.totalorder %v1311, %v1326
    %vm1331 = vcmp.eq.s32.totalorder %v1311, %v1327
    %v1332 = vsel %vm1328, 1.0, 0.0
    %v1333 = vsel %vm1329, 1.0, 0.0
    %v1334 = vsel %vm1330, 1.0, 0.0
    %v1335 = vsel %vm1331, 1.0, 0.0
    %vm1336 = vcmask 523264
    %v1338 = vsel %vm1336, %v1320, 0
    %v1341 = vsel %vm1336, %v1321, 0
    %v1344 = vsel %vm1336, %v1322, 0
    %v1347 = vsel %vm1336, %v1323, 0
    %1349 = vmatprep.subr.mxu0 %v1279
    %1350 = vmatpush1.msra.mxu0 %v1278
    %1351 = vmatprep.subr.mxu0 %v1283
    %1352 = vmatpush1.msra.mxu0 %v1282
    %1353 = vmatprep.subr.mxu0 %v1287
    %1354 = vmatpush1.msra.mxu0 %v1286
    %1355 = vmatprep.subr.mxu0 %v1291
    %1356 = vmatpush1.msra.mxu0 %v1290
    %1357 = vmatprep.subr.mxu0 %v1295
    %1358 = vmatpush1.msra.mxu0 %v1294
    %1359 = vmatprep.subr.mxu0 %v1299
    %1360 = vmatpush1.msra.mxu0 %v1298
    %1361 = vmatprep.subr.mxu0 %v1303
    %1362 = vmatpush1.msra.mxu0 %v1302
    %1363 = vmatprep.subr.mxu0 %v1307
    %1364 = vmatpush1.msra.mxu0 %v1306
    %1365 = vmatprep.subr.mxu0 0.0
    %1366 = vmatpush1.msra.mxu0 0.0
    %1367 = vmatprep.subr.mxu0 0.0
    %1368 = vmatpush1.msra.mxu0 0.0
    %1369 = vmatprep.subr.mxu0 0.0
    %1370 = vmatpush1.msra.mxu0 0.0
    %1371 = vmatprep.subr.mxu0 0.0
    %1372 = vmatpush1.msra.mxu0 0.0
    %1373 = vmatprep.subr.mxu0 0.0
    %1374 = vmatpush1.msra.mxu0 0.0
    %1375 = vmatprep.subr.mxu0 0.0
    %1376 = vmatpush1.msra.mxu0 0.0
    %1377 = vmatprep.subr.mxu0 0.0
    %1378 = vmatpush1.msra.mxu0 0.0
    %1379 = vmatprep.subr.mxu0 0.0
    %1380 = vmatpush1.msra.mxu0 0.0
    %1381 = vmatprep.subr.mxu0 0.0
    %1382 = vmatpush1.msra.mxu0 0.0
    %1383 = vmatprep.subr.mxu0 0.0
    %1384 = vmatpush1.msra.mxu0 0.0
    %1385 = vmatprep.subr.mxu0 0.0
    %1386 = vmatpush1.msra.mxu0 0.0
    %1387 = vmatprep.subr.mxu0 0.0
    %1388 = vmatpush1.msra.mxu0 0.0
    %1389 = vmatprep.subr.mxu0 0.0
    %1390 = vmatpush1.msra.mxu0 0.0
    %1391 = vmatprep.subr.mxu0 0.0
    %1392 = vmatpush1.msra.mxu0 0.0
    %1393 = vmatprep.subr.mxu0 0.0
    %1394 = vmatpush1.msra.mxu0 0.0
    %1395 = vmatprep.subr.mxu0 0.0
    %1396 = vmatpush1.msra.mxu0 0.0
    %1397 = vmatprep.subr.mxu0 0.0
    %1398 = vmatpush1.msra.mxu0 0.0
    %1399 = vmatprep.subr.mxu0 0.0
    %1400 = vmatpush1.msra.mxu0 0.0
    %1401 = vmatprep.subr.mxu0 0.0
    %1402 = vmatpush1.msra.mxu0 0.0
    %1403 = vmatprep.subr.mxu0 0.0
    %1404 = vmatpush1.msra.mxu0 0.0
    %1405 = vmatprep.subr.mxu0 0.0
    %1406 = vmatpush1.msra.mxu0 0.0
    %1407 = vmatprep.subr.mxu0 0.0
    %1408 = vmatpush1.msra.mxu0 0.0
    %1409 = vmatprep.subr.mxu0 0.0
    %1410 = vmatpush1.msra.mxu0 0.0
    %1411 = vmatprep.subr.mxu0 0.0
    %1412 = vmatpush1.msra.mxu0 0.0
    %1413 = vmatprep.mubr.f32.mxu0 0.0
    %1414 = vmatmul.mubr.f32.gmra.mrb[0].mxu0 %v1338
    %v1415 = vpop.f32.mrb[0].mxu0
    %v1416 = vadd.f32 0.0, %v1415
    %v1417 = vpop.f32.mrb[0].mxu0
    %v1418 = vadd.f32 0.0, %v1417
    %1419 = vmatprep.mubr.f32.mxu0 0.0
    %1420 = vmatmul.mubr.f32.gmra.mrb[0].mxu0 %v1341
    %v1421 = vpop.f32.mrb[0].mxu0
    %v1422 = vadd.f32 0.0, %v1421
    %v1423 = vpop.f32.mrb[0].mxu0
    %v1424 = vadd.f32 0.0, %v1423
    %1425 = vmatprep.mubr.f32.mxu0 0.0
    %1426 = vmatmul.mubr.f32.gmra.mrb[0].mxu0 %v1344
    %v1427 = vpop.f32.mrb[0].mxu0
    %v1428 = vadd.f32 0.0, %v1427
    %v1429 = vpop.f32.mrb[0].mxu0
    %v1430 = vadd.f32 0.0, %v1429
    %1431 = vmatprep.mubr.f32.mxu0 0.0
    %1432 = vmatmul.mubr.f32.gmra.mrb[0].mxu0 %v1347
    %v1433 = vpop.f32.mrb[0].mxu0
    %v1434 = vadd.f32 0.0, %v1433
    %v1435 = vpop.f32.mrb[0].mxu0
    %v1436 = vadd.f32 0.0, %v1435
    %1437 = vdwg.mxu0
    %1438 = vmatprep.subr.mxu0 %v1281
    %1439 = vmatpush1.msra.mxu0 %v1280
    %1440 = vmatprep.subr.mxu0 %v1285
    %1441 = vmatpush1.msra.mxu0 %v1284
    %1442 = vmatprep.subr.mxu0 %v1289
    %1443 = vmatpush1.msra.mxu0 %v1288
    %1444 = vmatprep.subr.mxu0 %v1293
    %1445 = vmatpush1.msra.mxu0 %v1292
    %1446 = vmatprep.subr.mxu0 %v1297
    %1447 = vmatpush1.msra.mxu0 %v1296
    %1448 = vmatprep.subr.mxu0 %v1301
    %1449 = vmatpush1.msra.mxu0 %v1300
    %1450 = vmatprep.subr.mxu0 %v1305
    %1451 = vmatpush1.msra.mxu0 %v1304
    %1452 = vmatprep.subr.mxu0 %v1309
    %1453 = vmatpush1.msra.mxu0 %v1308
    %1454 = vmatprep.subr.mxu0 0.0
    %1455 = vmatpush1.msra.mxu0 0.0
    %1456 = vmatprep.subr.mxu0 0.0
    %1457 = vmatpush1.msra.mxu0 0.0
    %1458 = vmatprep.subr.mxu0 0.0
    %1459 = vmatpush1.msra.mxu0 0.0
    %1460 = vmatprep.subr.mxu0 0.0
    %1461 = vmatpush1.msra.mxu0 0.0
    %1462 = vmatprep.subr.mxu0 0.0
    %1463 = vmatpush1.msra.mxu0 0.0
    %1464 = vmatprep.subr.mxu0 0.0
    %1465 = vmatpush1.msra.mxu0 0.0
    %1466 = vmatprep.subr.mxu0 0.0
    %1467 = vmatpush1.msra.mxu0 0.0
    %1468 = vmatprep.subr.mxu0 0.0
    %1469 = vmatpush1.msra.mxu0 0.0
    %1470 = vmatprep.subr.mxu0 0.0
    %1471 = vmatpush1.msra.mxu0 0.0
    %1472 = vmatprep.subr.mxu0 0.0
    %1473 = vmatpush1.msra.mxu0 0.0
    %1474 = vmatprep.subr.mxu0 0.0
    %1475 = vmatpush1.msra.mxu0 0.0
    %1476 = vmatprep.subr.mxu0 0.0
    %1477 = vmatpush1.msra.mxu0 0.0
    %1478 = vmatprep.subr.mxu0 0.0
    %1479 = vmatpush1.msra.mxu0 0.0
    %1480 = vmatprep.subr.mxu0 0.0
    %1481 = vmatpush1.msra.mxu0 0.0
    %1482 = vmatprep.subr.mxu0 0.0
    %1483 = vmatpush1.msra.mxu0 0.0
    %1484 = vmatprep.subr.mxu0 0.0
    %1485 = vmatpush1.msra.mxu0 0.0
    %1486 = vmatprep.subr.mxu0 0.0
    %1487 = vmatpush1.msra.mxu0 0.0
    %1488 = vmatprep.subr.mxu0 0.0
    %1489 = vmatpush1.msra.mxu0 0.0
    %1490 = vmatprep.subr.mxu0 0.0
    %1491 = vmatpush1.msra.mxu0 0.0
    %1492 = vmatprep.subr.mxu0 0.0
    %1493 = vmatpush1.msra.mxu0 0.0
    %1494 = vmatprep.subr.mxu0 0.0
    %1495 = vmatpush1.msra.mxu0 0.0
    %1496 = vmatprep.subr.mxu0 0.0
    %1497 = vmatpush1.msra.mxu0 0.0
    %1498 = vmatprep.subr.mxu0 0.0
    %1499 = vmatpush1.msra.mxu0 0.0
    %1500 = vmatprep.subr.mxu0 0.0
    %1501 = vmatpush1.msra.mxu0 0.0
    %1502 = vmatprep.mubr.f32.mxu0 0.0
    %1503 = vmatmul.mubr.f32.gmra.mrb[0].mxu0 %v1338
    %v1504 = vpop.f32.mrb[0].mxu0
    %v1505 = vadd.f32 0.0, %v1504
    %v1506 = vpop.f32.mrb[0].mxu0
    %v1507 = vadd.f32 0.0, %v1506
    %1508 = vmatprep.mubr.f32.mxu0 0.0
    %1509 = vmatmul.mubr.f32.gmra.mrb[0].mxu0 %v1341
    %v1510 = vpop.f32.mrb[0].mxu0
    %v1511 = vadd.f32 0.0, %v1510
    %v1512 = vpop.f32.mrb[0].mxu0
    %v1513 = vadd.f32 0.0, %v1512
    %1514 = vmatprep.mubr.f32.mxu0 0.0
    %1515 = vmatmul.mubr.f32.gmra.mrb[0].mxu0 %v1344
    %v1516 = vpop.f32.mrb[0].mxu0
    %v1517 = vadd.f32 0.0, %v1516
    %v1518 = vpop.f32.mrb[0].mxu0
    %v1519 = vadd.f32 0.0, %v1518
    %1520 = vmatprep.mubr.f32.mxu0 0.0
    %1521 = vmatmul.mubr.f32.gmra.mrb[0].mxu0 %v1347
    %v1522 = vpop.f32.mrb[0].mxu0
    %v1523 = vadd.f32 0.0, %v1522
    %v1524 = vpop.f32.mrb[0].mxu0
    %v1525 = vadd.f32 0.0, %v1524
    %1526 = vdwg.mxu0
    %v1528 = vsel %vm1336, %v1332, 0
    %v1531 = vsel %vm1336, %v1333, 0
    %v1534 = vsel %vm1336, %v1334, 0
    %v1537 = vsel %vm1336, %v1335, 0
    %1539 = vmatprep.subr.mxu0 %v1279
    %1540 = vmatpush1.msra.mxu0 %v1278
    %1541 = vmatprep.subr.mxu0 %v1283
    %1542 = vmatpush1.msra.mxu0 %v1282
    %1543 = vmatprep.subr.mxu0 %v1287
    %1544 = vmatpush1.msra.mxu0 %v1286
    %1545 = vmatprep.subr.mxu0 %v1291
    %1546 = vmatpush1.msra.mxu0 %v1290
    %1547 = vmatprep.subr.mxu0 %v1295
    %1548 = vmatpush1.msra.mxu0 %v1294
    %1549 = vmatprep.subr.mxu0 %v1299
    %1550 = vmatpush1.msra.mxu0 %v1298
    %1551 = vmatprep.subr.mxu0 %v1303
    %1552 = vmatpush1.msra.mxu0 %v1302
    %1553 = vmatprep.subr.mxu0 %v1307
    %1554 = vmatpush1.msra.mxu0 %v1306
    %1555 = vmatprep.subr.mxu0 0.0
    %1556 = vmatpush1.msra.mxu0 0.0
    %1557 = vmatprep.subr.mxu0 0.0
    %1558 = vmatpush1.msra.mxu0 0.0
    %1559 = vmatprep.subr.mxu0 0.0
    %1560 = vmatpush1.msra.mxu0 0.0
    %1561 = vmatprep.subr.mxu0 0.0
    %1562 = vmatpush1.msra.mxu0 0.0
    %1563 = vmatprep.subr.mxu0 0.0
    %1564 = vmatpush1.msra.mxu0 0.0
    %1565 = vmatprep.subr.mxu0 0.0
    %1566 = vmatpush1.msra.mxu0 0.0
    %1567 = vmatprep.subr.mxu0 0.0
    %1568 = vmatpush1.msra.mxu0 0.0
    %1569 = vmatprep.subr.mxu0 0.0
    %1570 = vmatpush1.msra.mxu0 0.0
    %1571 = vmatprep.subr.mxu0 0.0
    %1572 = vmatpush1.msra.mxu0 0.0
    %1573 = vmatprep.subr.mxu0 0.0
    %1574 = vmatpush1.msra.mxu0 0.0
    %1575 = vmatprep.subr.mxu0 0.0
    %1576 = vmatpush1.msra.mxu0 0.0
    %1577 = vmatprep.subr.mxu0 0.0
    %1578 = vmatpush1.msra.mxu0 0.0
    %1579 = vmatprep.subr.mxu0 0.0
    %1580 = vmatpush1.msra.mxu0 0.0
    %1581 = vmatprep.subr.mxu0 0.0
    %1582 = vmatpush1.msra.mxu0 0.0
    %1583 = vmatprep.subr.mxu0 0.0
    %1584 = vmatpush1.msra.mxu0 0.0
    %1585 = vmatprep.subr.mxu0 0.0
    %1586 = vmatpush1.msra.mxu0 0.0
    %1587 = vmatprep.subr.mxu0 0.0
    %1588 = vmatpush1.msra.mxu0 0.0
    %1589 = vmatprep.subr.mxu0 0.0
    %1590 = vmatpush1.msra.mxu0 0.0
    %1591 = vmatprep.subr.mxu0 0.0
    %1592 = vmatpush1.msra.mxu0 0.0
    %1593 = vmatprep.subr.mxu0 0.0
    %1594 = vmatpush1.msra.mxu0 0.0
    %1595 = vmatprep.subr.mxu0 0.0
    %1596 = vmatpush1.msra.mxu0 0.0
    %1597 = vmatprep.subr.mxu0 0.0
    %1598 = vmatpush1.msra.mxu0 0.0
    %1599 = vmatprep.subr.mxu0 0.0
    %1600 = vmatpush1.msra.mxu0 0.0
    %1601 = vmatprep.subr.mxu0 0.0
    %1602 = vmatpush1.msra.mxu0 0.0
    %1603 = vmatprep.mubr.f32.mxu0 0.0
    %1604 = vmatmul.mubr.f32.gmra.mrb[0].mxu0 %v1528
    %v1605 = vpop.f32.mrb[0].mxu0
    %v1606 = vadd.f32 0.0, %v1605
    %v1607 = vpop.f32.mrb[0].mxu0
    %v1608 = vadd.f32 0.0, %v1607
    %1609 = vmatprep.mubr.f32.mxu0 0.0
    %1610 = vmatmul.mubr.f32.gmra.mrb[0].mxu0 %v1531
    %v1611 = vpop.f32.mrb[0].mxu0
    %v1612 = vadd.f32 0.0, %v1611
    %v1613 = vpop.f32.mrb[0].mxu0
    %v1614 = vadd.f32 0.0, %v1613
    %1615 = vmatprep.mubr.f32.mxu0 0.0
    %1616 = vmatmul.mubr.f32.gmra.mrb[0].mxu0 %v1534
    %v1617 = vpop.f32.mrb[0].mxu0
    %v1618 = vadd.f32 0.0, %v1617
    %v1619 = vpop.f32.mrb[0].mxu0
    %v1620 = vadd.f32 0.0, %v1619
    %1621 = vmatprep.mubr.f32.mxu0 0.0
    %1622 = vmatmul.mubr.f32.gmra.mrb[0].mxu0 %v1537
    %v1623 = vpop.f32.mrb[0].mxu0
    %v1624 = vadd.f32 0.0, %v1623
    %v1625 = vpop.f32.mrb[0].mxu0
    %v1626 = vadd.f32 0.0, %v1625
    %1627 = vdwg.mxu0
    %1628 = vmatprep.subr.mxu0 %v1281
    %1629 = vmatpush1.msra.mxu0 %v1280
    %1630 = vmatprep.subr.mxu0 %v1285
    %1631 = vmatpush1.msra.mxu0 %v1284
    %1632 = vmatprep.subr.mxu0 %v1289
    %1633 = vmatpush1.msra.mxu0 %v1288
    %1634 = vmatprep.subr.mxu0 %v1293
    %1635 = vmatpush1.msra.mxu0 %v1292
    %1636 = vmatprep.subr.mxu0 %v1297
    %1637 = vmatpush1.msra.mxu0 %v1296
    %1638 = vmatprep.subr.mxu0 %v1301
    %1639 = vmatpush1.msra.mxu0 %v1300
    %1640 = vmatprep.subr.mxu0 %v1305
    %1641 = vmatpush1.msra.mxu0 %v1304
    %1642 = vmatprep.subr.mxu0 %v1309
    %1643 = vmatpush1.msra.mxu0 %v1308
    %1644 = vmatprep.subr.mxu0 0.0
    %1645 = vmatpush1.msra.mxu0 0.0
    %1646 = vmatprep.subr.mxu0 0.0
    %1647 = vmatpush1.msra.mxu0 0.0
    %1648 = vmatprep.subr.mxu0 0.0
    %1649 = vmatpush1.msra.mxu0 0.0
    %1650 = vmatprep.subr.mxu0 0.0
    %1651 = vmatpush1.msra.mxu0 0.0
    %1652 = vmatprep.subr.mxu0 0.0
    %1653 = vmatpush1.msra.mxu0 0.0
    %1654 = vmatprep.subr.mxu0 0.0
    %1655 = vmatpush1.msra.mxu0 0.0
    %1656 = vmatprep.subr.mxu0 0.0
    %1657 = vmatpush1.msra.mxu0 0.0
    %1658 = vmatprep.subr.mxu0 0.0
    %1659 = vmatpush1.msra.mxu0 0.0
    %1660 = vmatprep.subr.mxu0 0.0
    %1661 = vmatpush1.msra.mxu0 0.0
    %1662 = vmatprep.subr.mxu0 0.0
    %1663 = vmatpush1.msra.mxu0 0.0
    %1664 = vmatprep.subr.mxu0 0.0
    %1665 = vmatpush1.msra.mxu0 0.0
    %1666 = vmatprep.subr.mxu0 0.0
    %1667 = vmatpush1.msra.mxu0 0.0
    %1668 = vmatprep.subr.mxu0 0.0
    %1669 = vmatpush1.msra.mxu0 0.0
    %1670 = vmatprep.subr.mxu0 0.0
    %1671 = vmatpush1.msra.mxu0 0.0
    %1672 = vmatprep.subr.mxu0 0.0
    %1673 = vmatpush1.msra.mxu0 0.0
    %1674 = vmatprep.subr.mxu0 0.0
    %1675 = vmatpush1.msra.mxu0 0.0
    %1676 = vmatprep.subr.mxu0 0.0
    %1677 = vmatpush1.msra.mxu0 0.0
    %1678 = vmatprep.subr.mxu0 0.0
    %1679 = vmatpush1.msra.mxu0 0.0
    %1680 = vmatprep.subr.mxu0 0.0
    %1681 = vmatpush1.msra.mxu0 0.0
    %1682 = vmatprep.subr.mxu0 0.0
    %1683 = vmatpush1.msra.mxu0 0.0
    %1684 = vmatprep.subr.mxu0 0.0
    %1685 = vmatpush1.msra.mxu0 0.0
    %1686 = vmatprep.subr.mxu0 0.0
    %1687 = vmatpush1.msra.mxu0 0.0
    %1688 = vmatprep.subr.mxu0 0.0
    %1689 = vmatpush1.msra.mxu0 0.0
    %1690 = vmatprep.subr.mxu0 0.0
    %1691 = vmatpush1.msra.mxu0 0.0
    %1692 = vmatprep.mubr.f32.mxu0 0.0
    %1693 = vmatmul.mubr.f32.gmra.mrb[0].mxu0 %v1528
    %v1694 = vpop.f32.mrb[0].mxu0
    %v1695 = vadd.f32 0.0, %v1694
    %v1696 = vpop.f32.mrb[0].mxu0
    %v1697 = vadd.f32 0.0, %v1696
    %1698 = vmatprep.mubr.f32.mxu0 0.0
    %1699 = vmatmul.mubr.f32.gmra.mrb[0].mxu0 %v1531
    %v1700 = vpop.f32.mrb[0].mxu0
    %v1701 = vadd.f32 0.0, %v1700
    %v1702 = vpop.f32.mrb[0].mxu0
    %v1703 = vadd.f32 0.0, %v1702
    %1704 = vmatprep.mubr.f32.mxu0 0.0
    %1705 = vmatmul.mubr.f32.gmra.mrb[0].mxu0 %v1534
    %v1706 = vpop.f32.mrb[0].mxu0
    %v1707 = vadd.f32 0.0, %v1706
    %v1708 = vpop.f32.mrb[0].mxu0
    %v1709 = vadd.f32 0.0, %v1708
    %1710 = vmatprep.mubr.f32.mxu0 0.0
    %1711 = vmatmul.mubr.f32.gmra.mrb[0].mxu0 %v1537
    %v1712 = vpop.f32.mrb[0].mxu0
    %v1713 = vadd.f32 0.0, %v1712
    %v1714 = vpop.f32.mrb[0].mxu0
    %v1715 = vadd.f32 0.0, %v1714
    %1716 = vdwg.mxu0
    %v1717 = vmax.f32 %v1416, %v1606
    %v1718 = vmax.f32 %v1418, %v1608
    %v1719 = vmax.f32 %v1505, %v1695
    %v1720 = vmax.f32 %v1507, %v1697
    %v1721 = vmax.f32 %v1422, %v1612
    %v1722 = vmax.f32 %v1424, %v1614
    %v1723 = vmax.f32 %v1511, %v1701
    %v1724 = vmax.f32 %v1513, %v1703
    %v1725 = vmax.f32 %v1428, %v1618
    %v1726 = vmax.f32 %v1430, %v1620
    %v1727 = vmax.f32 %v1517, %v1707
    %v1728 = vmax.f32 %v1519, %v1709
    %v1729 = vmax.f32 %v1434, %v1624
    %v1730 = vmax.f32 %v1436, %v1626
    %v1731 = vmax.f32 %v1523, %v1713
    %v1732 = vmax.f32 %v1525, %v1715
    %v1733 = vadd.s32 %v71, 64
    %v1734 = vadd.s32 %v71, 72
    %v1735 = vadd.s32 %v71, 80
    %v1736 = vadd.s32 %v71, 88
    %v1737 = vadd.s32 %v71, 96
    %v1738 = vadd.s32 %v71, 104
    %v1739 = vadd.s32 %v71, 112
    %v1740 = vadd.s32 %v71, 120
    %v1741 = vadd.s32 %v71, 128
    %v1742 = vadd.s32 %v71, 136
    %v1743 = vadd.s32 %v71, 144
    %v1744 = vadd.s32 %v71, 152
    %v1745 = vadd.s32 %v71, 160
    %v1746 = vadd.s32 %v71, 168
    %v1747 = vadd.s32 %v71, 176
    %v1748 = vadd.s32 %v71, 184
    %v1749 = vadd.s32 %v71, 192
    %v1750 = vadd.s32 %v71, 200
    %v1751 = vadd.s32 %v71, 208
    %v1752 = vadd.s32 %v71, 216
    %v1753 = vadd.s32 %v71, 224
    %v1754 = vadd.s32 %v71, 232
    %v1755 = vadd.s32 %v71, 240
    %v1756 = vadd.s32 %v71, 248
    %v1757 = vadd.s32 %v71, 256
    %v1758 = vadd.s32 %v71, 264
    %v1759 = vadd.s32 %v71, 272
    %v1760 = vadd.s32 %v71, 280
    %v1761 = vadd.s32 %v71, 288
    %v1762 = vadd.s32 %v71, 296
    %v1763 = vadd.s32 %v71, 304
    %v1764 = vadd.s32 %v71, 312
    %v1765 = vadd.s32 %v71, 320
    %v1766 = vadd.s32 %v71, 328
    %v1767 = vadd.s32 %v71, 336
    %v1768 = vadd.s32 %v71, 344
    %v1769 = vadd.s32 %v71, 352
    %v1770 = vadd.s32 %v71, 360
    %v1771 = vadd.s32 %v71, 368
    %v1772 = vadd.s32 %v71, 376
    %v1773 = vadd.s32 %v71, 384
    %v1774 = vadd.s32 %v71, 392
    %v1775 = vadd.s32 %v71, 400
    %v1776 = vadd.s32 %v71, 408
    %v1777 = vadd.s32 %v71, 416
    %v1778 = vadd.s32 %v71, 424
    %v1779 = vadd.s32 %v71, 432
    %v1780 = vadd.s32 %v71, 440
    %v1781 = vadd.s32 %v71, 448
    %v1782 = vadd.s32 %v71, 456
    %v1783 = vadd.s32 %v71, 464
    %v1784 = vadd.s32 %v71, 472
    %v1785 = vadd.s32 %v71, 480
    %v1786 = vadd.s32 %v71, 488
    %v1787 = vadd.s32 %v71, 496
    %v1788 = vadd.s32 %v71, 504
    %v1789 = vadd.s32 %v1311, 128
    %v1790 = vmul.u32 %v1311, 2
    %v1791 = vmul.u32 %v1789, 2
    %v1792 = vand.u32 %v1311, 15
    %v1793 = vand.u32 %v1789, 15
    %v1794 = vsub.s32 %v1790, %v1792
    %v1795 = vsub.s32 %v1791, %v1793
    %vm1796 = vcmp.eq.s32.totalorder %v71, %v1794
    %vm1797 = vcmp.eq.s32.totalorder %v71, %v1795
    %vm1798 = vcmp.eq.s32.totalorder %v72, %v1794
    %vm1799 = vcmp.eq.s32.totalorder %v72, %v1795
    %vm1800 = vcmp.eq.s32.totalorder %v73, %v1794
    %vm1801 = vcmp.eq.s32.totalorder %v73, %v1795
    %vm1802 = vcmp.eq.s32.totalorder %v74, %v1794
    %vm1803 = vcmp.eq.s32.totalorder %v74, %v1795
    %vm1804 = vcmp.eq.s32.totalorder %v75, %v1794
    %vm1805 = vcmp.eq.s32.totalorder %v75, %v1795
    %vm1806 = vcmp.eq.s32.totalorder %v76, %v1794
    %vm1807 = vcmp.eq.s32.totalorder %v76, %v1795
    %vm1808 = vcmp.eq.s32.totalorder %v77, %v1794
    %vm1809 = vcmp.eq.s32.totalorder %v77, %v1795
    %vm1810 = vcmp.eq.s32.totalorder %v78, %v1794
    %vm1811 = vcmp.eq.s32.totalorder %v78, %v1795
    %vm1812 = vcmp.eq.s32.totalorder %v1733, %v1794
    %vm1813 = vcmp.eq.s32.totalorder %v1733, %v1795
    %vm1814 = vcmp.eq.s32.totalorder %v1734, %v1794
    %vm1815 = vcmp.eq.s32.totalorder %v1734, %v1795
    %vm1816 = vcmp.eq.s32.totalorder %v1735, %v1794
    %vm1817 = vcmp.eq.s32.totalorder %v1735, %v1795
    %vm1818 = vcmp.eq.s32.totalorder %v1736, %v1794
    %vm1819 = vcmp.eq.s32.totalorder %v1736, %v1795
    %vm1820 = vcmp.eq.s32.totalorder %v1737, %v1794
    %vm1821 = vcmp.eq.s32.totalorder %v1737, %v1795
    %vm1822 = vcmp.eq.s32.totalorder %v1738, %v1794
    %vm1823 = vcmp.eq.s32.totalorder %v1738, %v1795
    %vm1824 = vcmp.eq.s32.totalorder %v1739, %v1794
    %vm1825 = vcmp.eq.s32.totalorder %v1739, %v1795
    %vm1826 = vcmp.eq.s32.totalorder %v1740, %v1794
    %vm1827 = vcmp.eq.s32.totalorder %v1740, %v1795
    %vm1828 = vcmp.eq.s32.totalorder %v1741, %v1794
    %vm1829 = vcmp.eq.s32.totalorder %v1741, %v1795
    %vm1830 = vcmp.eq.s32.totalorder %v1742, %v1794
    %vm1831 = vcmp.eq.s32.totalorder %v1742, %v1795
    %vm1832 = vcmp.eq.s32.totalorder %v1743, %v1794
    %vm1833 = vcmp.eq.s32.totalorder %v1743, %v1795
    %vm1834 = vcmp.eq.s32.totalorder %v1744, %v1794
    %vm1835 = vcmp.eq.s32.totalorder %v1744, %v1795
    %vm1836 = vcmp.eq.s32.totalorder %v1745, %v1794
    %vm1837 = vcmp.eq.s32.totalorder %v1745, %v1795
    %vm1838 = vcmp.eq.s32.totalorder %v1746, %v1794
    %vm1839 = vcmp.eq.s32.totalorder %v1746, %v1795
    %vm1840 = vcmp.eq.s32.totalorder %v1747, %v1794
    %vm1841 = vcmp.eq.s32.totalorder %v1747, %v1795
    %vm1842 = vcmp.eq.s32.totalorder %v1748, %v1794
    %vm1843 = vcmp.eq.s32.totalorder %v1748, %v1795
    %vm1844 = vcmp.eq.s32.totalorder %v1749, %v1794
    %vm1845 = vcmp.eq.s32.totalorder %v1749, %v1795
    %vm1846 = vcmp.eq.s32.totalorder %v1750, %v1794
    %vm1847 = vcmp.eq.s32.totalorder %v1750, %v1795
    %vm1848 = vcmp.eq.s32.totalorder %v1751, %v1794
    %vm1849 = vcmp.eq.s32.totalorder %v1751, %v1795
    %vm1850 = vcmp.eq.s32.totalorder %v1752, %v1794
    %vm1851 = vcmp.eq.s32.totalorder %v1752, %v1795
    %vm1852 = vcmp.eq.s32.totalorder %v1753, %v1794
    %vm1853 = vcmp.eq.s32.totalorder %v1753, %v1795
    %vm1854 = vcmp.eq.s32.totalorder %v1754, %v1794
    %vm1855 = vcmp.eq.s32.totalorder %v1754, %v1795
    %vm1856 = vcmp.eq.s32.totalorder %v1755, %v1794
    %vm1857 = vcmp.eq.s32.totalorder %v1755, %v1795
    %vm1858 = vcmp.eq.s32.totalorder %v1756, %v1794
    %vm1859 = vcmp.eq.s32.totalorder %v1756, %v1795
    %vm1860 = vcmp.eq.s32.totalorder %v1757, %v1794
    %vm1861 = vcmp.eq.s32.totalorder %v1757, %v1795
    %vm1862 = vcmp.eq.s32.totalorder %v1758, %v1794
    %vm1863 = vcmp.eq.s32.totalorder %v1758, %v1795
    %vm1864 = vcmp.eq.s32.totalorder %v1759, %v1794
    %vm1865 = vcmp.eq.s32.totalorder %v1759, %v1795
    %vm1866 = vcmp.eq.s32.totalorder %v1760, %v1794
    %vm1867 = vcmp.eq.s32.totalorder %v1760, %v1795
    %vm1868 = vcmp.eq.s32.totalorder %v1761, %v1794
    %vm1869 = vcmp.eq.s32.totalorder %v1761, %v1795
    %vm1870 = vcmp.eq.s32.totalorder %v1762, %v1794
    %vm1871 = vcmp.eq.s32.totalorder %v1762, %v1795
    %vm1872 = vcmp.eq.s32.totalorder %v1763, %v1794
    %vm1873 = vcmp.eq.s32.totalorder %v1763, %v1795
    %vm1874 = vcmp.eq.s32.totalorder %v1764, %v1794
    %vm1875 = vcmp.eq.s32.totalorder %v1764, %v1795
    %vm1876 = vcmp.eq.s32.totalorder %v1765, %v1794
    %vm1877 = vcmp.eq.s32.totalorder %v1765, %v1795
    %vm1878 = vcmp.eq.s32.totalorder %v1766, %v1794
    %vm1879 = vcmp.eq.s32.totalorder %v1766, %v1795
    %vm1880 = vcmp.eq.s32.totalorder %v1767, %v1794
    %vm1881 = vcmp.eq.s32.totalorder %v1767, %v1795
    %vm1882 = vcmp.eq.s32.totalorder %v1768, %v1794
    %vm1883 = vcmp.eq.s32.totalorder %v1768, %v1795
    %vm1884 = vcmp.eq.s32.totalorder %v1769, %v1794
    %vm1885 = vcmp.eq.s32.totalorder %v1769, %v1795
    %vm1886 = vcmp.eq.s32.totalorder %v1770, %v1794
    %vm1887 = vcmp.eq.s32.totalorder %v1770, %v1795
    %vm1888 = vcmp.eq.s32.totalorder %v1771, %v1794
    %vm1889 = vcmp.eq.s32.totalorder %v1771, %v1795
    %vm1890 = vcmp.eq.s32.totalorder %v1772, %v1794
    %vm1891 = vcmp.eq.s32.totalorder %v1772, %v1795
    %vm1892 = vcmp.eq.s32.totalorder %v1773, %v1794
    %vm1893 = vcmp.eq.s32.totalorder %v1773, %v1795
    %vm1894 = vcmp.eq.s32.totalorder %v1774, %v1794
    %vm1895 = vcmp.eq.s32.totalorder %v1774, %v1795
    %vm1896 = vcmp.eq.s32.totalorder %v1775, %v1794
    %vm1897 = vcmp.eq.s32.totalorder %v1775, %v1795
    %vm1898 = vcmp.eq.s32.totalorder %v1776, %v1794
    %vm1899 = vcmp.eq.s32.totalorder %v1776, %v1795
    %vm1900 = vcmp.eq.s32.totalorder %v1777, %v1794
    %vm1901 = vcmp.eq.s32.totalorder %v1777, %v1795
    %vm1902 = vcmp.eq.s32.totalorder %v1778, %v1794
    %vm1903 = vcmp.eq.s32.totalorder %v1778, %v1795
    %vm1904 = vcmp.eq.s32.totalorder %v1779, %v1794
    %vm1905 = vcmp.eq.s32.totalorder %v1779, %v1795
    %vm1906 = vcmp.eq.s32.totalorder %v1780, %v1794
    %vm1907 = vcmp.eq.s32.totalorder %v1780, %v1795
    %vm1908 = vcmp.eq.s32.totalorder %v1781, %v1794
    %vm1909 = vcmp.eq.s32.totalorder %v1781, %v1795
    %vm1910 = vcmp.eq.s32.totalorder %v1782, %v1794
    %vm1911 = vcmp.eq.s32.totalorder %v1782, %v1795
    %vm1912 = vcmp.eq.s32.totalorder %v1783, %v1794
    %vm1913 = vcmp.eq.s32.totalorder %v1783, %v1795
    %vm1914 = vcmp.eq.s32.totalorder %v1784, %v1794
    %vm1915 = vcmp.eq.s32.totalorder %v1784, %v1795
    %vm1916 = vcmp.eq.s32.totalorder %v1785, %v1794
    %vm1917 = vcmp.eq.s32.totalorder %v1785, %v1795
    %vm1918 = vcmp.eq.s32.totalorder %v1786, %v1794
    %vm1919 = vcmp.eq.s32.totalorder %v1786, %v1795
    %vm1920 = vcmp.eq.s32.totalorder %v1787, %v1794
    %vm1921 = vcmp.eq.s32.totalorder %v1787, %v1795
    %vm1922 = vcmp.eq.s32.totalorder %v1788, %v1794
    %vm1923 = vcmp.eq.s32.totalorder %v1788, %v1795
    %v1924 = vsel %vm1796, 1.0, 0.0
    %v1925 = vsel %vm1797, 1.0, 0.0
    %v1926 = vsel %vm1798, 1.0, 0.0
    %v1927 = vsel %vm1799, 1.0, 0.0
    %v1928 = vsel %vm1800, 1.0, 0.0
    %v1929 = vsel %vm1801, 1.0, 0.0
    %v1930 = vsel %vm1802, 1.0, 0.0
    %v1931 = vsel %vm1803, 1.0, 0.0
    %v1932 = vsel %vm1804, 1.0, 0.0
    %v1933 = vsel %vm1805, 1.0, 0.0
    %v1934 = vsel %vm1806, 1.0, 0.0
    %v1935 = vsel %vm1807, 1.0, 0.0
    %v1936 = vsel %vm1808, 1.0, 0.0
    %v1937 = vsel %vm1809, 1.0, 0.0
    %v1938 = vsel %vm1810, 1.0, 0.0
    %v1939 = vsel %vm1811, 1.0, 0.0
    %v1940 = vsel %vm1812, 1.0, 0.0
    %v1941 = vsel %vm1813, 1.0, 0.0
    %v1942 = vsel %vm1814, 1.0, 0.0
    %v1943 = vsel %vm1815, 1.0, 0.0
    %v1944 = vsel %vm1816, 1.0, 0.0
    %v1945 = vsel %vm1817, 1.0, 0.0
    %v1946 = vsel %vm1818, 1.0, 0.0
    %v1947 = vsel %vm1819, 1.0, 0.0
    %v1948 = vsel %vm1820, 1.0, 0.0
    %v1949 = vsel %vm1821, 1.0, 0.0
    %v1950 = vsel %vm1822, 1.0, 0.0
    %v1951 = vsel %vm1823, 1.0, 0.0
    %v1952 = vsel %vm1824, 1.0, 0.0
    %v1953 = vsel %vm1825, 1.0, 0.0
    %v1954 = vsel %vm1826, 1.0, 0.0
    %v1955 = vsel %vm1827, 1.0, 0.0
    %v1956 = vsel %vm1828, 1.0, 0.0
    %v1957 = vsel %vm1829, 1.0, 0.0
    %v1958 = vsel %vm1830, 1.0, 0.0
    %v1959 = vsel %vm1831, 1.0, 0.0
    %v1960 = vsel %vm1832, 1.0, 0.0
    %v1961 = vsel %vm1833, 1.0, 0.0
    %v1962 = vsel %vm1834, 1.0, 0.0
    %v1963 = vsel %vm1835, 1.0, 0.0
    %v1964 = vsel %vm1836, 1.0, 0.0
    %v1965 = vsel %vm1837, 1.0, 0.0
    %v1966 = vsel %vm1838, 1.0, 0.0
    %v1967 = vsel %vm1839, 1.0, 0.0
    %v1968 = vsel %vm1840, 1.0, 0.0
    %v1969 = vsel %vm1841, 1.0, 0.0
    %v1970 = vsel %vm1842, 1.0, 0.0
    %v1971 = vsel %vm1843, 1.0, 0.0
    %v1972 = vsel %vm1844, 1.0, 0.0
    %v1973 = vsel %vm1845, 1.0, 0.0
    %v1974 = vsel %vm1846, 1.0, 0.0
    %v1975 = vsel %vm1847, 1.0, 0.0
    %v1976 = vsel %vm1848, 1.0, 0.0
    %v1977 = vsel %vm1849, 1.0, 0.0
    %v1978 = vsel %vm1850, 1.0, 0.0
    %v1979 = vsel %vm1851, 1.0, 0.0
    %v1980 = vsel %vm1852, 1.0, 0.0
    %v1981 = vsel %vm1853, 1.0, 0.0
    %v1982 = vsel %vm1854, 1.0, 0.0
    %v1983 = vsel %vm1855, 1.0, 0.0
    %v1984 = vsel %vm1856, 1.0, 0.0
    %v1985 = vsel %vm1857, 1.0, 0.0
    %v1986 = vsel %vm1858, 1.0, 0.0
    %v1987 = vsel %vm1859, 1.0, 0.0
    %v1988 = vsel %vm1860, 1.0, 0.0
    %v1989 = vsel %vm1861, 1.0, 0.0
    %v1990 = vsel %vm1862, 1.0, 0.0
    %v1991 = vsel %vm1863, 1.0, 0.0
    %v1992 = vsel %vm1864, 1.0, 0.0
    %v1993 = vsel %vm1865, 1.0, 0.0
    %v1994 = vsel %vm1866, 1.0, 0.0
    %v1995 = vsel %vm1867, 1.0, 0.0
    %v1996 = vsel %vm1868, 1.0, 0.0
    %v1997 = vsel %vm1869, 1.0, 0.0
    %v1998 = vsel %vm1870, 1.0, 0.0
    %v1999 = vsel %vm1871, 1.0, 0.0
    %v2000 = vsel %vm1872, 1.0, 0.0
    %v2001 = vsel %vm1873, 1.0, 0.0
    %v2002 = vsel %vm1874, 1.0, 0.0
    %v2003 = vsel %vm1875, 1.0, 0.0
    %v2004 = vsel %vm1876, 1.0, 0.0
    %v2005 = vsel %vm1877, 1.0, 0.0
    %v2006 = vsel %vm1878, 1.0, 0.0
    %v2007 = vsel %vm1879, 1.0, 0.0
    %v2008 = vsel %vm1880, 1.0, 0.0
    %v2009 = vsel %vm1881, 1.0, 0.0
    %v2010 = vsel %vm1882, 1.0, 0.0
    %v2011 = vsel %vm1883, 1.0, 0.0
    %v2012 = vsel %vm1884, 1.0, 0.0
    %v2013 = vsel %vm1885, 1.0, 0.0
    %v2014 = vsel %vm1886, 1.0, 0.0
    %v2015 = vsel %vm1887, 1.0, 0.0
    %v2016 = vsel %vm1888, 1.0, 0.0
    %v2017 = vsel %vm1889, 1.0, 0.0
    %v2018 = vsel %vm1890, 1.0, 0.0
    %v2019 = vsel %vm1891, 1.0, 0.0
    %v2020 = vsel %vm1892, 1.0, 0.0
    %v2021 = vsel %vm1893, 1.0, 0.0
    %v2022 = vsel %vm1894, 1.0, 0.0
    %v2023 = vsel %vm1895, 1.0, 0.0
    %v2024 = vsel %vm1896, 1.0, 0.0
    %v2025 = vsel %vm1897, 1.0, 0.0
    %v2026 = vsel %vm1898, 1.0, 0.0
    %v2027 = vsel %vm1899, 1.0, 0.0
    %v2028 = vsel %vm1900, 1.0, 0.0
    %v2029 = vsel %vm1901, 1.0, 0.0
    %v2030 = vsel %vm1902, 1.0, 0.0
    %v2031 = vsel %vm1903, 1.0, 0.0
    %v2032 = vsel %vm1904, 1.0, 0.0
    %v2033 = vsel %vm1905, 1.0, 0.0
    %v2034 = vsel %vm1906, 1.0, 0.0
    %v2035 = vsel %vm1907, 1.0, 0.0
    %v2036 = vsel %vm1908, 1.0, 0.0
    %v2037 = vsel %vm1909, 1.0, 0.0
    %v2038 = vsel %vm1910, 1.0, 0.0
    %v2039 = vsel %vm1911, 1.0, 0.0
    %v2040 = vsel %vm1912, 1.0, 0.0
    %v2041 = vsel %vm1913, 1.0, 0.0
    %v2042 = vsel %vm1914, 1.0, 0.0
    %v2043 = vsel %vm1915, 1.0, 0.0
    %v2044 = vsel %vm1916, 1.0, 0.0
    %v2045 = vsel %vm1917, 1.0, 0.0
    %v2046 = vsel %vm1918, 1.0, 0.0
    %v2047 = vsel %vm1919, 1.0, 0.0
    %v2048 = vsel %vm1920, 1.0, 0.0
    %v2049 = vsel %vm1921, 1.0, 0.0
    %v2050 = vsel %vm1922, 1.0, 0.0
    %v2051 = vsel %vm1923, 1.0, 0.0
    %v2052 = vadd.s32 %v1794, 16
    %v2053 = vadd.s32 %v1795, 16
    %vm2054 = vcmp.eq.s32.totalorder %v71, %v2052
    %vm2055 = vcmp.eq.s32.totalorder %v71, %v2053
    %vm2056 = vcmp.eq.s32.totalorder %v72, %v2052
    %vm2057 = vcmp.eq.s32.totalorder %v72, %v2053
    %vm2058 = vcmp.eq.s32.totalorder %v73, %v2052
    %vm2059 = vcmp.eq.s32.totalorder %v73, %v2053
    %vm2060 = vcmp.eq.s32.totalorder %v74, %v2052
    %vm2061 = vcmp.eq.s32.totalorder %v74, %v2053
    %vm2062 = vcmp.eq.s32.totalorder %v75, %v2052
    %vm2063 = vcmp.eq.s32.totalorder %v75, %v2053
    %vm2064 = vcmp.eq.s32.totalorder %v76, %v2052
    %vm2065 = vcmp.eq.s32.totalorder %v76, %v2053
    %vm2066 = vcmp.eq.s32.totalorder %v77, %v2052
    %vm2067 = vcmp.eq.s32.totalorder %v77, %v2053
    %vm2068 = vcmp.eq.s32.totalorder %v78, %v2052
    %vm2069 = vcmp.eq.s32.totalorder %v78, %v2053
    %vm2070 = vcmp.eq.s32.totalorder %v1733, %v2052
    %vm2071 = vcmp.eq.s32.totalorder %v1733, %v2053
    %vm2072 = vcmp.eq.s32.totalorder %v1734, %v2052
    %vm2073 = vcmp.eq.s32.totalorder %v1734, %v2053
    %vm2074 = vcmp.eq.s32.totalorder %v1735, %v2052
    %vm2075 = vcmp.eq.s32.totalorder %v1735, %v2053
    %vm2076 = vcmp.eq.s32.totalorder %v1736, %v2052
    %vm2077 = vcmp.eq.s32.totalorder %v1736, %v2053
    %vm2078 = vcmp.eq.s32.totalorder %v1737, %v2052
    %vm2079 = vcmp.eq.s32.totalorder %v1737, %v2053
    %vm2080 = vcmp.eq.s32.totalorder %v1738, %v2052
    %vm2081 = vcmp.eq.s32.totalorder %v1738, %v2053
    %vm2082 = vcmp.eq.s32.totalorder %v1739, %v2052
    %vm2083 = vcmp.eq.s32.totalorder %v1739, %v2053
    %vm2084 = vcmp.eq.s32.totalorder %v1740, %v2052
    %vm2085 = vcmp.eq.s32.totalorder %v1740, %v2053
    %vm2086 = vcmp.eq.s32.totalorder %v1741, %v2052
    %vm2087 = vcmp.eq.s32.totalorder %v1741, %v2053
    %vm2088 = vcmp.eq.s32.totalorder %v1742, %v2052
    %vm2089 = vcmp.eq.s32.totalorder %v1742, %v2053
    %vm2090 = vcmp.eq.s32.totalorder %v1743, %v2052
    %vm2091 = vcmp.eq.s32.totalorder %v1743, %v2053
    %vm2092 = vcmp.eq.s32.totalorder %v1744, %v2052
    %vm2093 = vcmp.eq.s32.totalorder %v1744, %v2053
    %vm2094 = vcmp.eq.s32.totalorder %v1745, %v2052
    %vm2095 = vcmp.eq.s32.totalorder %v1745, %v2053
    %vm2096 = vcmp.eq.s32.totalorder %v1746, %v2052
    %vm2097 = vcmp.eq.s32.totalorder %v1746, %v2053
    %vm2098 = vcmp.eq.s32.totalorder %v1747, %v2052
    %vm2099 = vcmp.eq.s32.totalorder %v1747, %v2053
    %vm2100 = vcmp.eq.s32.totalorder %v1748, %v2052
    %vm2101 = vcmp.eq.s32.totalorder %v1748, %v2053
    %vm2102 = vcmp.eq.s32.totalorder %v1749, %v2052
    %vm2103 = vcmp.eq.s32.totalorder %v1749, %v2053
    %vm2104 = vcmp.eq.s32.totalorder %v1750, %v2052
    %vm2105 = vcmp.eq.s32.totalorder %v1750, %v2053
    %vm2106 = vcmp.eq.s32.totalorder %v1751, %v2052
    %vm2107 = vcmp.eq.s32.totalorder %v1751, %v2053
    %vm2108 = vcmp.eq.s32.totalorder %v1752, %v2052
    %vm2109 = vcmp.eq.s32.totalorder %v1752, %v2053
    %vm2110 = vcmp.eq.s32.totalorder %v1753, %v2052
    %vm2111 = vcmp.eq.s32.totalorder %v1753, %v2053
    %vm2112 = vcmp.eq.s32.totalorder %v1754, %v2052
    %vm2113 = vcmp.eq.s32.totalorder %v1754, %v2053
    %vm2114 = vcmp.eq.s32.totalorder %v1755, %v2052
    %vm2115 = vcmp.eq.s32.totalorder %v1755, %v2053
    %vm2116 = vcmp.eq.s32.totalorder %v1756, %v2052
    %vm2117 = vcmp.eq.s32.totalorder %v1756, %v2053
    %vm2118 = vcmp.eq.s32.totalorder %v1757, %v2052
    %vm2119 = vcmp.eq.s32.totalorder %v1757, %v2053
    %vm2120 = vcmp.eq.s32.totalorder %v1758, %v2052
    %vm2121 = vcmp.eq.s32.totalorder %v1758, %v2053
    %vm2122 = vcmp.eq.s32.totalorder %v1759, %v2052
    %vm2123 = vcmp.eq.s32.totalorder %v1759, %v2053
    %vm2124 = vcmp.eq.s32.totalorder %v1760, %v2052
    %vm2125 = vcmp.eq.s32.totalorder %v1760, %v2053
    %vm2126 = vcmp.eq.s32.totalorder %v1761, %v2052
    %vm2127 = vcmp.eq.s32.totalorder %v1761, %v2053
    %vm2128 = vcmp.eq.s32.totalorder %v1762, %v2052
    %vm2129 = vcmp.eq.s32.totalorder %v1762, %v2053
    %vm2130 = vcmp.eq.s32.totalorder %v1763, %v2052
    %vm2131 = vcmp.eq.s32.totalorder %v1763, %v2053
    %vm2132 = vcmp.eq.s32.totalorder %v1764, %v2052
    %vm2133 = vcmp.eq.s32.totalorder %v1764, %v2053
    %vm2134 = vcmp.eq.s32.totalorder %v1765, %v2052
    %vm2135 = vcmp.eq.s32.totalorder %v1765, %v2053
    %vm2136 = vcmp.eq.s32.totalorder %v1766, %v2052
    %vm2137 = vcmp.eq.s32.totalorder %v1766, %v2053
    %vm2138 = vcmp.eq.s32.totalorder %v1767, %v2052
    %vm2139 = vcmp.eq.s32.totalorder %v1767, %v2053
    %vm2140 = vcmp.eq.s32.totalorder %v1768, %v2052
    %vm2141 = vcmp.eq.s32.totalorder %v1768, %v2053
    %vm2142 = vcmp.eq.s32.totalorder %v1769, %v2052
    %vm2143 = vcmp.eq.s32.totalorder %v1769, %v2053
    %vm2144 = vcmp.eq.s32.totalorder %v1770, %v2052
    %vm2145 = vcmp.eq.s32.totalorder %v1770, %v2053
    %vm2146 = vcmp.eq.s32.totalorder %v1771, %v2052
    %vm2147 = vcmp.eq.s32.totalorder %v1771, %v2053
    %vm2148 = vcmp.eq.s32.totalorder %v1772, %v2052
    %vm2149 = vcmp.eq.s32.totalorder %v1772, %v2053
    %vm2150 = vcmp.eq.s32.totalorder %v1773, %v2052
    %vm2151 = vcmp.eq.s32.totalorder %v1773, %v2053
    %vm2152 = vcmp.eq.s32.totalorder %v1774, %v2052
    %vm2153 = vcmp.eq.s32.totalorder %v1774, %v2053
    %vm2154 = vcmp.eq.s32.totalorder %v1775, %v2052
    %vm2155 = vcmp.eq.s32.totalorder %v1775, %v2053
    %vm2156 = vcmp.eq.s32.totalorder %v1776, %v2052
    %vm2157 = vcmp.eq.s32.totalorder %v1776, %v2053
    %vm2158 = vcmp.eq.s32.totalorder %v1777, %v2052
    %vm2159 = vcmp.eq.s32.totalorder %v1777, %v2053
    %vm2160 = vcmp.eq.s32.totalorder %v1778, %v2052
    %vm2161 = vcmp.eq.s32.totalorder %v1778, %v2053
    %vm2162 = vcmp.eq.s32.totalorder %v1779, %v2052
    %vm2163 = vcmp.eq.s32.totalorder %v1779, %v2053
    %vm2164 = vcmp.eq.s32.totalorder %v1780, %v2052
    %vm2165 = vcmp.eq.s32.totalorder %v1780, %v2053
    %vm2166 = vcmp.eq.s32.totalorder %v1781, %v2052
    %vm2167 = vcmp.eq.s32.totalorder %v1781, %v2053
    %vm2168 = vcmp.eq.s32.totalorder %v1782, %v2052
    %vm2169 = vcmp.eq.s32.totalorder %v1782, %v2053
    %vm2170 = vcmp.eq.s32.totalorder %v1783, %v2052
    %vm2171 = vcmp.eq.s32.totalorder %v1783, %v2053
    %vm2172 = vcmp.eq.s32.totalorder %v1784, %v2052
    %vm2173 = vcmp.eq.s32.totalorder %v1784, %v2053
    %vm2174 = vcmp.eq.s32.totalorder %v1785, %v2052
    %vm2175 = vcmp.eq.s32.totalorder %v1785, %v2053
    %vm2176 = vcmp.eq.s32.totalorder %v1786, %v2052
    %vm2177 = vcmp.eq.s32.totalorder %v1786, %v2053
    %vm2178 = vcmp.eq.s32.totalorder %v1787, %v2052
    %vm2179 = vcmp.eq.s32.totalorder %v1787, %v2053
    %vm2180 = vcmp.eq.s32.totalorder %v1788, %v2052
    %vm2181 = vcmp.eq.s32.totalorder %v1788, %v2053
    %v2182 = vsel %vm2054, 1.0, 0.0
    %v2183 = vsel %vm2055, 1.0, 0.0
    %v2184 = vsel %vm2056, 1.0, 0.0
    %v2185 = vsel %vm2057, 1.0, 0.0
    %v2186 = vsel %vm2058, 1.0, 0.0
    %v2187 = vsel %vm2059, 1.0, 0.0
    %v2188 = vsel %vm2060, 1.0, 0.0
    %v2189 = vsel %vm2061, 1.0, 0.0
    %v2190 = vsel %vm2062, 1.0, 0.0
    %v2191 = vsel %vm2063, 1.0, 0.0
    %v2192 = vsel %vm2064, 1.0, 0.0
    %v2193 = vsel %vm2065, 1.0, 0.0
    %v2194 = vsel %vm2066, 1.0, 0.0
    %v2195 = vsel %vm2067, 1.0, 0.0
    %v2196 = vsel %vm2068, 1.0, 0.0
    %v2197 = vsel %vm2069, 1.0, 0.0
    %v2198 = vsel %vm2070, 1.0, 0.0
    %v2199 = vsel %vm2071, 1.0, 0.0
    %v2200 = vsel %vm2072, 1.0, 0.0
    %v2201 = vsel %vm2073, 1.0, 0.0
    %v2202 = vsel %vm2074, 1.0, 0.0
    %v2203 = vsel %vm2075, 1.0, 0.0
    %v2204 = vsel %vm2076, 1.0, 0.0
    %v2205 = vsel %vm2077, 1.0, 0.0
    %v2206 = vsel %vm2078, 1.0, 0.0
    %v2207 = vsel %vm2079, 1.0, 0.0
    %v2208 = vsel %vm2080, 1.0, 0.0
    %v2209 = vsel %vm2081, 1.0, 0.0
    %v2210 = vsel %vm2082, 1.0, 0.0
    %v2211 = vsel %vm2083, 1.0, 0.0
    %v2212 = vsel %vm2084, 1.0, 0.0
    %v2213 = vsel %vm2085, 1.0, 0.0
    %v2214 = vsel %vm2086, 1.0, 0.0
    %v2215 = vsel %vm2087, 1.0, 0.0
    %v2216 = vsel %vm2088, 1.0, 0.0
    %v2217 = vsel %vm2089, 1.0, 0.0
    %v2218 = vsel %vm2090, 1.0, 0.0
    %v2219 = vsel %vm2091, 1.0, 0.0
    %v2220 = vsel %vm2092, 1.0, 0.0
    %v2221 = vsel %vm2093, 1.0, 0.0
    %v2222 = vsel %vm2094, 1.0, 0.0
    %v2223 = vsel %vm2095, 1.0, 0.0
    %v2224 = vsel %vm2096, 1.0, 0.0
    %v2225 = vsel %vm2097, 1.0, 0.0
    %v2226 = vsel %vm2098, 1.0, 0.0
    %v2227 = vsel %vm2099, 1.0, 0.0
    %v2228 = vsel %vm2100, 1.0, 0.0
    %v2229 = vsel %vm2101, 1.0, 0.0
    %v2230 = vsel %vm2102, 1.0, 0.0
    %v2231 = vsel %vm2103, 1.0, 0.0
    %v2232 = vsel %vm2104, 1.0, 0.0
    %v2233 = vsel %vm2105, 1.0, 0.0
    %v2234 = vsel %vm2106, 1.0, 0.0
    %v2235 = vsel %vm2107, 1.0, 0.0
    %v2236 = vsel %vm2108, 1.0, 0.0
    %v2237 = vsel %vm2109, 1.0, 0.0
    %v2238 = vsel %vm2110, 1.0, 0.0
    %v2239 = vsel %vm2111, 1.0, 0.0
    %v2240 = vsel %vm2112, 1.0, 0.0
    %v2241 = vsel %vm2113, 1.0, 0.0
    %v2242 = vsel %vm2114, 1.0, 0.0
    %v2243 = vsel %vm2115, 1.0, 0.0
    %v2244 = vsel %vm2116, 1.0, 0.0
    %v2245 = vsel %vm2117, 1.0, 0.0
    %v2246 = vsel %vm2118, 1.0, 0.0
    %v2247 = vsel %vm2119, 1.0, 0.0
    %v2248 = vsel %vm2120, 1.0, 0.0
    %v2249 = vsel %vm2121, 1.0, 0.0
    %v2250 = vsel %vm2122, 1.0, 0.0
    %v2251 = vsel %vm2123, 1.0, 0.0
    %v2252 = vsel %vm2124, 1.0, 0.0
    %v2253 = vsel %vm2125, 1.0, 0.0
    %v2254 = vsel %vm2126, 1.0, 0.0
    %v2255 = vsel %vm2127, 1.0, 0.0
    %v2256 = vsel %vm2128, 1.0, 0.0
    %v2257 = vsel %vm2129, 1.0, 0.0
    %v2258 = vsel %vm2130, 1.0, 0.0
    %v2259 = vsel %vm2131, 1.0, 0.0
    %v2260 = vsel %vm2132, 1.0, 0.0
    %v2261 = vsel %vm2133, 1.0, 0.0
    %v2262 = vsel %vm2134, 1.0, 0.0
    %v2263 = vsel %vm2135, 1.0, 0.0
    %v2264 = vsel %vm2136, 1.0, 0.0
    %v2265 = vsel %vm2137, 1.0, 0.0
    %v2266 = vsel %vm2138, 1.0, 0.0
    %v2267 = vsel %vm2139, 1.0, 0.0
    %v2268 = vsel %vm2140, 1.0, 0.0
    %v2269 = vsel %vm2141, 1.0, 0.0
    %v2270 = vsel %vm2142, 1.0, 0.0
    %v2271 = vsel %vm2143, 1.0, 0.0
    %v2272 = vsel %vm2144, 1.0, 0.0
    %v2273 = vsel %vm2145, 1.0, 0.0
    %v2274 = vsel %vm2146, 1.0, 0.0
    %v2275 = vsel %vm2147, 1.0, 0.0
    %v2276 = vsel %vm2148, 1.0, 0.0
    %v2277 = vsel %vm2149, 1.0, 0.0
    %v2278 = vsel %vm2150, 1.0, 0.0
    %v2279 = vsel %vm2151, 1.0, 0.0
    %v2280 = vsel %vm2152, 1.0, 0.0
    %v2281 = vsel %vm2153, 1.0, 0.0
    %v2282 = vsel %vm2154, 1.0, 0.0
    %v2283 = vsel %vm2155, 1.0, 0.0
    %v2284 = vsel %vm2156, 1.0, 0.0
    %v2285 = vsel %vm2157, 1.0, 0.0
    %v2286 = vsel %vm2158, 1.0, 0.0
    %v2287 = vsel %vm2159, 1.0, 0.0
    %v2288 = vsel %vm2160, 1.0, 0.0
    %v2289 = vsel %vm2161, 1.0, 0.0
    %v2290 = vsel %vm2162, 1.0, 0.0
    %v2291 = vsel %vm2163, 1.0, 0.0
    %v2292 = vsel %vm2164, 1.0, 0.0
    %v2293 = vsel %vm2165, 1.0, 0.0
    %v2294 = vsel %vm2166, 1.0, 0.0
    %v2295 = vsel %vm2167, 1.0, 0.0
    %v2296 = vsel %vm2168, 1.0, 0.0
    %v2297 = vsel %vm2169, 1.0, 0.0
    %v2298 = vsel %vm2170, 1.0, 0.0
    %v2299 = vsel %vm2171, 1.0, 0.0
    %v2300 = vsel %vm2172, 1.0, 0.0
    %v2301 = vsel %vm2173, 1.0, 0.0
    %v2302 = vsel %vm2174, 1.0, 0.0
    %v2303 = vsel %vm2175, 1.0, 0.0
    %v2304 = vsel %vm2176, 1.0, 0.0
    %v2305 = vsel %vm2177, 1.0, 0.0
    %v2306 = vsel %vm2178, 1.0, 0.0
    %v2307 = vsel %vm2179, 1.0, 0.0
    %v2308 = vsel %vm2180, 1.0, 0.0
    %v2309 = vsel %vm2181, 1.0, 0.0
    %2310 = vmatprep.subr.mxu0 %v1925
    %2311 = vmatpush1.msra.mxu0 %v1924
    %2312 = vmatprep.subr.mxu0 %v1927
    %2313 = vmatpush1.msra.mxu0 %v1926
    %2314 = vmatprep.subr.mxu0 %v1929
    %2315 = vmatpush1.msra.mxu0 %v1928
    %2316 = vmatprep.subr.mxu0 %v1931
    %2317 = vmatpush1.msra.mxu0 %v1930
    %2318 = vmatprep.subr.mxu0 %v1933
    %2319 = vmatpush1.msra.mxu0 %v1932
    %2320 = vmatprep.subr.mxu0 %v1935
    %2321 = vmatpush1.msra.mxu0 %v1934
    %2322 = vmatprep.subr.mxu0 %v1937
    %2323 = vmatpush1.msra.mxu0 %v1936
    %2324 = vmatprep.subr.mxu0 %v1939
    %2325 = vmatpush1.msra.mxu0 %v1938
    %2326 = vmatprep.subr.mxu0 %v1941
    %2327 = vmatpush1.msra.mxu0 %v1940
    %2328 = vmatprep.subr.mxu0 %v1943
    %2329 = vmatpush1.msra.mxu0 %v1942
    %2330 = vmatprep.subr.mxu0 %v1945
    %2331 = vmatpush1.msra.mxu0 %v1944
    %2332 = vmatprep.subr.mxu0 %v1947
    %2333 = vmatpush1.msra.mxu0 %v1946
    %2334 = vmatprep.subr.mxu0 %v1949
    %2335 = vmatpush1.msra.mxu0 %v1948
    %2336 = vmatprep.subr.mxu0 %v1951
    %2337 = vmatpush1.msra.mxu0 %v1950
    %2338 = vmatprep.subr.mxu0 %v1953
    %2339 = vmatpush1.msra.mxu0 %v1952
    %2340 = vmatprep.subr.mxu0 %v1955
    %2341 = vmatpush1.msra.mxu0 %v1954
    %2342 = vmatprep.subr.mxu0 %v1957
    %2343 = vmatpush1.msra.mxu0 %v1956
    %2344 = vmatprep.subr.mxu0 %v1959
    %2345 = vmatpush1.msra.mxu0 %v1958
    %2346 = vmatprep.subr.mxu0 %v1961
    %2347 = vmatpush1.msra.mxu0 %v1960
    %2348 = vmatprep.subr.mxu0 %v1963
    %2349 = vmatpush1.msra.mxu0 %v1962
    %2350 = vmatprep.subr.mxu0 %v1965
    %2351 = vmatpush1.msra.mxu0 %v1964
    %2352 = vmatprep.subr.mxu0 %v1967
    %2353 = vmatpush1.msra.mxu0 %v1966
    %2354 = vmatprep.subr.mxu0 %v1969
    %2355 = vmatpush1.msra.mxu0 %v1968
    %2356 = vmatprep.subr.mxu0 %v1971
    %2357 = vmatpush1.msra.mxu0 %v1970
    %2358 = vmatprep.subr.mxu0 %v1973
    %2359 = vmatpush1.msra.mxu0 %v1972
    %2360 = vmatprep.subr.mxu0 %v1975
    %2361 = vmatpush1.msra.mxu0 %v1974
    %2362 = vmatprep.subr.mxu0 %v1977
    %2363 = vmatpush1.msra.mxu0 %v1976
    %2364 = vmatprep.subr.mxu0 %v1979
    %2365 = vmatpush1.msra.mxu0 %v1978
    %2366 = vmatprep.subr.mxu0 %v1981
    %2367 = vmatpush1.msra.mxu0 %v1980
    %2368 = vmatprep.subr.mxu0 %v1983
    %2369 = vmatpush1.msra.mxu0 %v1982
    %2370 = vmatprep.subr.mxu0 %v1985
    %2371 = vmatpush1.msra.mxu0 %v1984
    %2372 = vmatprep.subr.mxu0 %v1987
    %2373 = vmatpush1.msra.mxu0 %v1986
    %2374 = vmatprep.mubr.f32.mxu0 %v1718
    %2375 = vmatmul.mubr.f32.gmra.mrb[0].mxu0 %v1717
    %v2376 = vpop.f32.mrb[0].mxu0
    %v2377 = vadd.f32 0.0, %v2376
    %v2378 = vpop.f32.mrb[0].mxu0
    %v2379 = vadd.f32 0.0, %v2378
    %2380 = vmatprep.mubr.f32.mxu0 %v1722
    %2381 = vmatmul.mubr.f32.gmra.mrb[0].mxu0 %v1721
    %v2382 = vpop.f32.mrb[0].mxu0
    %v2383 = vadd.f32 0.0, %v2382
    %v2384 = vpop.f32.mrb[0].mxu0
    %v2385 = vadd.f32 0.0, %v2384
    %2386 = vmatprep.mubr.f32.mxu0 %v1726
    %2387 = vmatmul.mubr.f32.gmra.mrb[0].mxu0 %v1725
    %v2388 = vpop.f32.mrb[0].mxu0
    %v2389 = vadd.f32 0.0, %v2388
    %v2390 = vpop.f32.mrb[0].mxu0
    %v2391 = vadd.f32 0.0, %v2390
    %2392 = vmatprep.mubr.f32.mxu0 %v1730
    %2393 = vmatmul.mubr.f32.gmra.mrb[0].mxu0 %v1729
    %v2394 = vpop.f32.mrb[0].mxu0
    %v2395 = vadd.f32 0.0, %v2394
    %v2396 = vpop.f32.mrb[0].mxu0
    %v2397 = vadd.f32 0.0, %v2396
    %2398 = vdwg.mxu0
    %2399 = vmatprep.subr.mxu0 %v1989
    %2400 = vmatpush1.msra.mxu0 %v1988
    %2401 = vmatprep.subr.mxu0 %v1991
    %2402 = vmatpush1.msra.mxu0 %v1990
    %2403 = vmatprep.subr.mxu0 %v1993
    %2404 = vmatpush1.msra.mxu0 %v1992
    %2405 = vmatprep.subr.mxu0 %v1995
    %2406 = vmatpush1.msra.mxu0 %v1994
    %2407 = vmatprep.subr.mxu0 %v1997
    %2408 = vmatpush1.msra.mxu0 %v1996
    %2409 = vmatprep.subr.mxu0 %v1999
    %2410 = vmatpush1.msra.mxu0 %v1998
    %2411 = vmatprep.subr.mxu0 %v2001
    %2412 = vmatpush1.msra.mxu0 %v2000
    %2413 = vmatprep.subr.mxu0 %v2003
    %2414 = vmatpush1.msra.mxu0 %v2002
    %2415 = vmatprep.subr.mxu0 %v2005
    %2416 = vmatpush1.msra.mxu0 %v2004
    %2417 = vmatprep.subr.mxu0 %v2007
    %2418 = vmatpush1.msra.mxu0 %v2006
    %2419 = vmatprep.subr.mxu0 %v2009
    %2420 = vmatpush1.msra.mxu0 %v2008
    %2421 = vmatprep.subr.mxu0 %v2011
    %2422 = vmatpush1.msra.mxu0 %v2010
    %2423 = vmatprep.subr.mxu0 %v2013
    %2424 = vmatpush1.msra.mxu0 %v2012
    %2425 = vmatprep.subr.mxu0 %v2015
    %2426 = vmatpush1.msra.mxu0 %v2014
    %2427 = vmatprep.subr.mxu0 %v2017
    %2428 = vmatpush1.msra.mxu0 %v2016
    %2429 = vmatprep.subr.mxu0 %v2019
    %2430 = vmatpush1.msra.mxu0 %v2018
    %2431 = vmatprep.subr.mxu0 %v2021
    %2432 = vmatpush1.msra.mxu0 %v2020
    %2433 = vmatprep.subr.mxu0 %v2023
    %2434 = vmatpush1.msra.mxu0 %v2022
    %2435 = vmatprep.subr.mxu0 %v2025
    %2436 = vmatpush1.msra.mxu0 %v2024
    %2437 = vmatprep.subr.mxu0 %v2027
    %2438 = vmatpush1.msra.mxu0 %v2026
    %2439 = vmatprep.subr.mxu0 %v2029
    %2440 = vmatpush1.msra.mxu0 %v2028
    %2441 = vmatprep.subr.mxu0 %v2031
    %2442 = vmatpush1.msra.mxu0 %v2030
    %2443 = vmatprep.subr.mxu0 %v2033
    %2444 = vmatpush1.msra.mxu0 %v2032
    %2445 = vmatprep.subr.mxu0 %v2035
    %2446 = vmatpush1.msra.mxu0 %v2034
    %2447 = vmatprep.subr.mxu0 %v2037
    %2448 = vmatpush1.msra.mxu0 %v2036
    %2449 = vmatprep.subr.mxu0 %v2039
    %2450 = vmatpush1.msra.mxu0 %v2038
    %2451 = vmatprep.subr.mxu0 %v2041
    %2452 = vmatpush1.msra.mxu0 %v2040
    %2453 = vmatprep.subr.mxu0 %v2043
    %2454 = vmatpush1.msra.mxu0 %v2042
    %2455 = vmatprep.subr.mxu0 %v2045
    %2456 = vmatpush1.msra.mxu0 %v2044
    %2457 = vmatprep.subr.mxu0 %v2047
    %2458 = vmatpush1.msra.mxu0 %v2046
    %2459 = vmatprep.subr.mxu0 %v2049
    %2460 = vmatpush1.msra.mxu0 %v2048
    %2461 = vmatprep.subr.mxu0 %v2051
    %2462 = vmatpush1.msra.mxu0 %v2050
    %2463 = vmatprep.mubr.f32.mxu0 %v1720
    %2464 = vmatmul.mubr.f32.gmra.mrb[0].mxu0 %v1719
    %v2465 = vpop.f32.mrb[0].mxu0
    %v2466 = vadd.f32 %v2377, %v2465
    %v2467 = vpop.f32.mrb[0].mxu0
    %v2468 = vadd.f32 %v2379, %v2467
    %2469 = vmatprep.mubr.f32.mxu0 %v1724
    %2470 = vmatmul.mubr.f32.gmra.mrb[0].mxu0 %v1723
    %v2471 = vpop.f32.mrb[0].mxu0
    %v2472 = vadd.f32 %v2383, %v2471
    %v2473 = vpop.f32.mrb[0].mxu0
    %v2474 = vadd.f32 %v2385, %v2473
    %2475 = vmatprep.mubr.f32.mxu0 %v1728
    %2476 = vmatmul.mubr.f32.gmra.mrb[0].mxu0 %v1727
    %v2477 = vpop.f32.mrb[0].mxu0
    %v2478 = vadd.f32 %v2389, %v2477
    %v2479 = vpop.f32.mrb[0].mxu0
    %v2480 = vadd.f32 %v2391, %v2479
    %2481 = vmatprep.mubr.f32.mxu0 %v1732
    %2482 = vmatmul.mubr.f32.gmra.mrb[0].mxu0 %v1731
    %v2483 = vpop.f32.mrb[0].mxu0
    %v2484 = vadd.f32 %v2395, %v2483
    %v2485 = vpop.f32.mrb[0].mxu0
    %v2486 = vadd.f32 %v2397, %v2485
    %2487 = vdwg.mxu0
    %2488 = vmatprep.subr.mxu0 %v2183
    %2489 = vmatpush1.msra.mxu0 %v2182
    %2490 = vmatprep.subr.mxu0 %v2185
    %2491 = vmatpush1.msra.mxu0 %v2184
    %2492 = vmatprep.subr.mxu0 %v2187
    %2493 = vmatpush1.msra.mxu0 %v2186
    %2494 = vmatprep.subr.mxu0 %v2189
    %2495 = vmatpush1.msra.mxu0 %v2188
    %2496 = vmatprep.subr.mxu0 %v2191
    %2497 = vmatpush1.msra.mxu0 %v2190
    %2498 = vmatprep.subr.mxu0 %v2193
    %2499 = vmatpush1.msra.mxu0 %v2192
    %2500 = vmatprep.subr.mxu0 %v2195
    %2501 = vmatpush1.msra.mxu0 %v2194
    %2502 = vmatprep.subr.mxu0 %v2197
    %2503 = vmatpush1.msra.mxu0 %v2196
    %2504 = vmatprep.subr.mxu0 %v2199
    %2505 = vmatpush1.msra.mxu0 %v2198
    %2506 = vmatprep.subr.mxu0 %v2201
    %2507 = vmatpush1.msra.mxu0 %v2200
    %2508 = vmatprep.subr.mxu0 %v2203
    %2509 = vmatpush1.msra.mxu0 %v2202
    %2510 = vmatprep.subr.mxu0 %v2205
    %2511 = vmatpush1.msra.mxu0 %v2204
    %2512 = vmatprep.subr.mxu0 %v2207
    %2513 = vmatpush1.msra.mxu0 %v2206
    %2514 = vmatprep.subr.mxu0 %v2209
    %2515 = vmatpush1.msra.mxu0 %v2208
    %2516 = vmatprep.subr.mxu0 %v2211
    %2517 = vmatpush1.msra.mxu0 %v2210
    %2518 = vmatprep.subr.mxu0 %v2213
    %2519 = vmatpush1.msra.mxu0 %v2212
    %2520 = vmatprep.subr.mxu0 %v2215
    %2521 = vmatpush1.msra.mxu0 %v2214
    %2522 = vmatprep.subr.mxu0 %v2217
    %2523 = vmatpush1.msra.mxu0 %v2216
    %2524 = vmatprep.subr.mxu0 %v2219
    %2525 = vmatpush1.msra.mxu0 %v2218
    %2526 = vmatprep.subr.mxu0 %v2221
    %2527 = vmatpush1.msra.mxu0 %v2220
    %2528 = vmatprep.subr.mxu0 %v2223
    %2529 = vmatpush1.msra.mxu0 %v2222
    %2530 = vmatprep.subr.mxu0 %v2225
    %2531 = vmatpush1.msra.mxu0 %v2224
    %2532 = vmatprep.subr.mxu0 %v2227
    %2533 = vmatpush1.msra.mxu0 %v2226
    %2534 = vmatprep.subr.mxu0 %v2229
    %2535 = vmatpush1.msra.mxu0 %v2228
    %2536 = vmatprep.subr.mxu0 %v2231
    %2537 = vmatpush1.msra.mxu0 %v2230
    %2538 = vmatprep.subr.mxu0 %v2233
    %2539 = vmatpush1.msra.mxu0 %v2232
    %2540 = vmatprep.subr.mxu0 %v2235
    %2541 = vmatpush1.msra.mxu0 %v2234
    %2542 = vmatprep.subr.mxu0 %v2237
    %2543 = vmatpush1.msra.mxu0 %v2236
    %2544 = vmatprep.subr.mxu0 %v2239
    %2545 = vmatpush1.msra.mxu0 %v2238
    %2546 = vmatprep.subr.mxu0 %v2241
    %2547 = vmatpush1.msra.mxu0 %v2240
    %2548 = vmatprep.subr.mxu0 %v2243
    %2549 = vmatpush1.msra.mxu0 %v2242
    %2550 = vmatprep.subr.mxu0 %v2245
    %2551 = vmatpush1.msra.mxu0 %v2244
    %2552 = vmatprep.mubr.f32.mxu0 %v1718
    %2553 = vmatmul.mubr.f32.gmra.mrb[0].mxu0 %v1717
    %v2554 = vpop.f32.mrb[0].mxu0
    %v2555 = vadd.f32 0.0, %v2554
    %v2556 = vpop.f32.mrb[0].mxu0
    %v2557 = vadd.f32 0.0, %v2556
    %2558 = vmatprep.mubr.f32.mxu0 %v1722
    %2559 = vmatmul.mubr.f32.gmra.mrb[0].mxu0 %v1721
    %v2560 = vpop.f32.mrb[0].mxu0
    %v2561 = vadd.f32 0.0, %v2560
    %v2562 = vpop.f32.mrb[0].mxu0
    %v2563 = vadd.f32 0.0, %v2562
    %2564 = vmatprep.mubr.f32.mxu0 %v1726
    %2565 = vmatmul.mubr.f32.gmra.mrb[0].mxu0 %v1725
    %v2566 = vpop.f32.mrb[0].mxu0
    %v2567 = vadd.f32 0.0, %v2566
    %v2568 = vpop.f32.mrb[0].mxu0
    %v2569 = vadd.f32 0.0, %v2568
    %2570 = vmatprep.mubr.f32.mxu0 %v1730
    %2571 = vmatmul.mubr.f32.gmra.mrb[0].mxu0 %v1729
    %v2572 = vpop.f32.mrb[0].mxu0
    %v2573 = vadd.f32 0.0, %v2572
    %v2574 = vpop.f32.mrb[0].mxu0
    %v2575 = vadd.f32 0.0, %v2574
    %2576 = vdwg.mxu0
    %2577 = vmatprep.subr.mxu0 %v2247
    %2578 = vmatpush1.msra.mxu0 %v2246
    %2579 = vmatprep.subr.mxu0 %v2249
    %2580 = vmatpush1.msra.mxu0 %v2248
    %2581 = vmatprep.subr.mxu0 %v2251
    %2582 = vmatpush1.msra.mxu0 %v2250
    %2583 = vmatprep.subr.mxu0 %v2253
    %2584 = vmatpush1.msra.mxu0 %v2252
    %2585 = vmatprep.subr.mxu0 %v2255
    %2586 = vmatpush1.msra.mxu0 %v2254
    %2587 = vmatprep.subr.mxu0 %v2257
    %2588 = vmatpush1.msra.mxu0 %v2256
    %2589 = vmatprep.subr.mxu0 %v2259
    %2590 = vmatpush1.msra.mxu0 %v2258
    %2591 = vmatprep.subr.mxu0 %v2261
    %2592 = vmatpush1.msra.mxu0 %v2260
    %2593 = vmatprep.subr.mxu0 %v2263
    %2594 = vmatpush1.msra.mxu0 %v2262
    %2595 = vmatprep.subr.mxu0 %v2265
    %2596 = vmatpush1.msra.mxu0 %v2264
    %2597 = vmatprep.subr.mxu0 %v2267
    %2598 = vmatpush1.msra.mxu0 %v2266
    %2599 = vmatprep.subr.mxu0 %v2269
    %2600 = vmatpush1.msra.mxu0 %v2268
    %2601 = vmatprep.subr.mxu0 %v2271
    %2602 = vmatpush1.msra.mxu0 %v2270
    %2603 = vmatprep.subr.mxu0 %v2273
    %2604 = vmatpush1.msra.mxu0 %v2272
    %2605 = vmatprep.subr.mxu0 %v2275
    %2606 = vmatpush1.msra.mxu0 %v2274
    %2607 = vmatprep.subr.mxu0 %v2277
    %2608 = vmatpush1.msra.mxu0 %v2276
    %2609 = vmatprep.subr.mxu0 %v2279
    %2610 = vmatpush1.msra.mxu0 %v2278
    %2611 = vmatprep.subr.mxu0 %v2281
    %2612 = vmatpush1.msra.mxu0 %v2280
    %2613 = vmatprep.subr.mxu0 %v2283
    %2614 = vmatpush1.msra.mxu0 %v2282
    %2615 = vmatprep.subr.mxu0 %v2285
    %2616 = vmatpush1.msra.mxu0 %v2284
    %2617 = vmatprep.subr.mxu0 %v2287
    %2618 = vmatpush1.msra.mxu0 %v2286
    %2619 = vmatprep.subr.mxu0 %v2289
    %2620 = vmatpush1.msra.mxu0 %v2288
    %2621 = vmatprep.subr.mxu0 %v2291
    %2622 = vmatpush1.msra.mxu0 %v2290
    %2623 = vmatprep.subr.mxu0 %v2293
    %2624 = vmatpush1.msra.mxu0 %v2292
    %2625 = vmatprep.subr.mxu0 %v2295
    %2626 = vmatpush1.msra.mxu0 %v2294
    %2627 = vmatprep.subr.mxu0 %v2297
    %2628 = vmatpush1.msra.mxu0 %v2296
    %2629 = vmatprep.subr.mxu0 %v2299
    %2630 = vmatpush1.msra.mxu0 %v2298
    %2631 = vmatprep.subr.mxu0 %v2301
    %2632 = vmatpush1.msra.mxu0 %v2300
    %2633 = vmatprep.subr.mxu0 %v2303
    %2634 = vmatpush1.msra.mxu0 %v2302
    %2635 = vmatprep.subr.mxu0 %v2305
    %2636 = vmatpush1.msra.mxu0 %v2304
    %2637 = vmatprep.subr.mxu0 %v2307
    %2638 = vmatpush1.msra.mxu0 %v2306
    %2639 = vmatprep.subr.mxu0 %v2309
    %2640 = vmatpush1.msra.mxu0 %v2308
    %2641 = vmatprep.mubr.f32.mxu0 %v1720
    %2642 = vmatmul.mubr.f32.gmra.mrb[0].mxu0 %v1719
    %v2643 = vpop.f32.mrb[0].mxu0
    %v2644 = vadd.f32 %v2555, %v2643
    %v2645 = vpop.f32.mrb[0].mxu0
    %v2646 = vadd.f32 %v2557, %v2645
    %2647 = vmatprep.mubr.f32.mxu0 %v1724
    %2648 = vmatmul.mubr.f32.gmra.mrb[0].mxu0 %v1723
    %v2649 = vpop.f32.mrb[0].mxu0
    %v2650 = vadd.f32 %v2561, %v2649
    %v2651 = vpop.f32.mrb[0].mxu0
    %v2652 = vadd.f32 %v2563, %v2651
    %2653 = vmatprep.mubr.f32.mxu0 %v1728
    %2654 = vmatmul.mubr.f32.gmra.mrb[0].mxu0 %v1727
    %v2655 = vpop.f32.mrb[0].mxu0
    %v2656 = vadd.f32 %v2567, %v2655
    %v2657 = vpop.f32.mrb[0].mxu0
    %v2658 = vadd.f32 %v2569, %v2657
    %2659 = vmatprep.mubr.f32.mxu0 %v1732
    %2660 = vmatmul.mubr.f32.gmra.mrb[0].mxu0 %v1731
    %v2661 = vpop.f32.mrb[0].mxu0
    %v2662 = vadd.f32 %v2573, %v2661
    %v2663 = vpop.f32.mrb[0].mxu0
    %v2664 = vadd.f32 %v2575, %v2663
    %2665 = vdwg.mxu0
    %v2666 = vmax.f32 %v2466, %v2644
    %v2667 = vmax.f32 %v2468, %v2646
    %v2668 = vmax.f32 %v2472, %v2650
    %v2669 = vmax.f32 %v2474, %v2652
    %v2670 = vmax.f32 %v2478, %v2656
    %v2671 = vmax.f32 %v2480, %v2658
    %v2672 = vmax.f32 %v2484, %v2662
    %v2673 = vmax.f32 %v2486, %v2664
    %v2674 = vand.u32 %v71, 15
    %v2675 = vand.u32 %v72, 15
    %v2676 = vand.u32 %v73, 15
    %v2677 = vand.u32 %v74, 15
    %v2678 = vand.u32 %v75, 15
    %v2679 = vand.u32 %v76, 15
    %v2680 = vand.u32 %v77, 15
    %v2681 = vand.u32 %v78, 15
    %v2682 = vand.u32 %v1733, 15
    %v2683 = vand.u32 %v1734, 15
    %v2684 = vand.u32 %v1735, 15
    %v2685 = vand.u32 %v1736, 15
    %v2686 = vand.u32 %v1737, 15
    %v2687 = vand.u32 %v1738, 15
    %v2688 = vand.u32 %v1739, 15
    %v2689 = vand.u32 %v1740, 15
    %v2690 = vand.u32 %v1741, 15
    %v2691 = vand.u32 %v1742, 15
    %v2692 = vand.u32 %v1743, 15
    %v2693 = vand.u32 %v1744, 15
    %v2694 = vand.u32 %v1745, 15
    %v2695 = vand.u32 %v1746, 15
    %v2696 = vand.u32 %v1747, 15
    %v2697 = vand.u32 %v1748, 15
    %v2698 = vand.u32 %v1749, 15
    %v2699 = vand.u32 %v1750, 15
    %v2700 = vand.u32 %v1751, 15
    %v2701 = vand.u32 %v1752, 15
    %v2702 = vand.u32 %v1753, 15
    %v2703 = vand.u32 %v1754, 15
    %v2704 = vand.u32 %v1755, 15
    %v2705 = vand.u32 %v1756, 15
    %vm2706 = vcmp.eq.s32.totalorder %v2674, %v1311
    %vm2707 = vcmp.eq.s32.totalorder %v2675, %v1311
    %vm2708 = vcmp.eq.s32.totalorder %v2676, %v1311
    %vm2709 = vcmp.eq.s32.totalorder %v2677, %v1311
    %vm2710 = vcmp.eq.s32.totalorder %v2678, %v1311
    %vm2711 = vcmp.eq.s32.totalorder %v2679, %v1311
    %vm2712 = vcmp.eq.s32.totalorder %v2680, %v1311
    %vm2713 = vcmp.eq.s32.totalorder %v2681, %v1311
    %vm2714 = vcmp.eq.s32.totalorder %v2682, %v1311
    %vm2715 = vcmp.eq.s32.totalorder %v2683, %v1311
    %vm2716 = vcmp.eq.s32.totalorder %v2684, %v1311
    %vm2717 = vcmp.eq.s32.totalorder %v2685, %v1311
    %vm2718 = vcmp.eq.s32.totalorder %v2686, %v1311
    %vm2719 = vcmp.eq.s32.totalorder %v2687, %v1311
    %vm2720 = vcmp.eq.s32.totalorder %v2688, %v1311
    %vm2721 = vcmp.eq.s32.totalorder %v2689, %v1311
    %vm2722 = vcmp.eq.s32.totalorder %v2690, %v1311
    %vm2723 = vcmp.eq.s32.totalorder %v2691, %v1311
    %vm2724 = vcmp.eq.s32.totalorder %v2692, %v1311
    %vm2725 = vcmp.eq.s32.totalorder %v2693, %v1311
    %vm2726 = vcmp.eq.s32.totalorder %v2694, %v1311
    %vm2727 = vcmp.eq.s32.totalorder %v2695, %v1311
    %vm2728 = vcmp.eq.s32.totalorder %v2696, %v1311
    %vm2729 = vcmp.eq.s32.totalorder %v2697, %v1311
    %vm2730 = vcmp.eq.s32.totalorder %v2698, %v1311
    %vm2731 = vcmp.eq.s32.totalorder %v2699, %v1311
    %vm2732 = vcmp.eq.s32.totalorder %v2700, %v1311
    %vm2733 = vcmp.eq.s32.totalorder %v2701, %v1311
    %vm2734 = vcmp.eq.s32.totalorder %v2702, %v1311
    %vm2735 = vcmp.eq.s32.totalorder %v2703, %v1311
    %vm2736 = vcmp.eq.s32.totalorder %v2704, %v1311
    %vm2737 = vcmp.eq.s32.totalorder %v2705, %v1311
    %v2738 = vsel %vm2706, 1.0, 0.0
    %v2739 = vsel %vm2707, 1.0, 0.0
    %v2740 = vsel %vm2708, 1.0, 0.0
    %v2741 = vsel %vm2709, 1.0, 0.0
    %v2742 = vsel %vm2710, 1.0, 0.0
    %v2743 = vsel %vm2711, 1.0, 0.0
    %v2744 = vsel %vm2712, 1.0, 0.0
    %v2745 = vsel %vm2713, 1.0, 0.0
    %v2746 = vsel %vm2714, 1.0, 0.0
    %v2747 = vsel %vm2715, 1.0, 0.0
    %v2748 = vsel %vm2716, 1.0, 0.0
    %v2749 = vsel %vm2717, 1.0, 0.0
    %v2750 = vsel %vm2718, 1.0, 0.0
    %v2751 = vsel %vm2719, 1.0, 0.0
    %v2752 = vsel %vm2720, 1.0, 0.0
    %v2753 = vsel %vm2721, 1.0, 0.0
    %v2754 = vsel %vm2722, 1.0, 0.0
    %v2755 = vsel %vm2723, 1.0, 0.0
    %v2756 = vsel %vm2724, 1.0, 0.0
    %v2757 = vsel %vm2725, 1.0, 0.0
    %v2758 = vsel %vm2726, 1.0, 0.0
    %v2759 = vsel %vm2727, 1.0, 0.0
    %v2760 = vsel %vm2728, 1.0, 0.0
    %v2761 = vsel %vm2729, 1.0, 0.0
    %v2762 = vsel %vm2730, 1.0, 0.0
    %v2763 = vsel %vm2731, 1.0, 0.0
    %v2764 = vsel %vm2732, 1.0, 0.0
    %v2765 = vsel %vm2733, 1.0, 0.0
    %v2766 = vsel %vm2734, 1.0, 0.0
    %v2767 = vsel %vm2735, 1.0, 0.0
    %v2768 = vsel %vm2736, 1.0, 0.0
    %v2769 = vsel %vm2737, 1.0, 0.0
    %v2770 = vadd.f32 %v2666, %v2668
    %v2771 = vadd.f32 %v2770, %v2670
    %v2772 = vadd.f32 %v2771, %v2672
    %v2773 = vrot.slane %v2772, 4
    %v2774 = vadd.f32 %v2772, %v2773
    %v2775 = vrot.slane %v2774, 2
    %v2776 = vadd.f32 %v2774, %v2775
    %v2777 = vrot.slane %v2776, 1
    %v2778 = vadd.f32 %v2776, %v2777
    %v2779 = vadd.f32 %v2667, %v2669
    %v2780 = vadd.f32 %v2779, %v2671
    %v2781 = vadd.f32 %v2780, %v2673
    %v2782 = vrot.slane %v2781, 4
    %v2783 = vadd.f32 %v2781, %v2782
    %v2784 = vrot.slane %v2783, 2
    %v2785 = vadd.f32 %v2783, %v2784
    %v2786 = vrot.slane %v2785, 1
    %v2787 = vadd.f32 %v2785, %v2786
    %2788 = vmatprep.subr.mxu0 0.0
    %2789 = vmatpush1.msra.mxu0 %v2738
    %2790 = vmatprep.subr.mxu0 0.0
    %2791 = vmatpush1.msra.mxu0 %v2739
    %2792 = vmatprep.subr.mxu0 0.0
    %2793 = vmatpush1.msra.mxu0 %v2740
    %2794 = vmatprep.subr.mxu0 0.0
    %2795 = vmatpush1.msra.mxu0 %v2741
    %2796 = vmatprep.subr.mxu0 0.0
    %2797 = vmatpush1.msra.mxu0 %v2742
    %2798 = vmatprep.subr.mxu0 0.0
    %2799 = vmatpush1.msra.mxu0 %v2743
    %2800 = vmatprep.subr.mxu0 0.0
    %2801 = vmatpush1.msra.mxu0 %v2744
    %2802 = vmatprep.subr.mxu0 0.0
    %2803 = vmatpush1.msra.mxu0 %v2745
    %2804 = vmatprep.subr.mxu0 0.0
    %2805 = vmatpush1.msra.mxu0 %v2746
    %2806 = vmatprep.subr.mxu0 0.0
    %2807 = vmatpush1.msra.mxu0 %v2747
    %2808 = vmatprep.subr.mxu0 0.0
    %2809 = vmatpush1.msra.mxu0 %v2748
    %2810 = vmatprep.subr.mxu0 0.0
    %2811 = vmatpush1.msra.mxu0 %v2749
    %2812 = vmatprep.subr.mxu0 0.0
    %2813 = vmatpush1.msra.mxu0 %v2750
    %2814 = vmatprep.subr.mxu0 0.0
    %2815 = vmatpush1.msra.mxu0 %v2751
    %2816 = vmatprep.subr.mxu0 0.0
    %2817 = vmatpush1.msra.mxu0 %v2752
    %2818 = vmatprep.subr.mxu0 0.0
    %2819 = vmatpush1.msra.mxu0 %v2753
    %2820 = vmatprep.subr.mxu0 0.0
    %2821 = vmatpush1.msra.mxu0 %v2754
    %2822 = vmatprep.subr.mxu0 0.0
    %2823 = vmatpush1.msra.mxu0 %v2755
    %2824 = vmatprep.subr.mxu0 0.0
    %2825 = vmatpush1.msra.mxu0 %v2756
    %2826 = vmatprep.subr.mxu0 0.0
    %2827 = vmatpush1.msra.mxu0 %v2757
    %2828 = vmatprep.subr.mxu0 0.0
    %2829 = vmatpush1.msra.mxu0 %v2758
    %2830 = vmatprep.subr.mxu0 0.0
    %2831 = vmatpush1.msra.mxu0 %v2759
    %2832 = vmatprep.subr.mxu0 0.0
    %2833 = vmatpush1.msra.mxu0 %v2760
    %2834 = vmatprep.subr.mxu0 0.0
    %2835 = vmatpush1.msra.mxu0 %v2761
    %2836 = vmatprep.subr.mxu0 0.0
    %2837 = vmatpush1.msra.mxu0 %v2762
    %2838 = vmatprep.subr.mxu0 0.0
    %2839 = vmatpush1.msra.mxu0 %v2763
    %2840 = vmatprep.subr.mxu0 0.0
    %2841 = vmatpush1.msra.mxu0 %v2764
    %2842 = vmatprep.subr.mxu0 0.0
    %2843 = vmatpush1.msra.mxu0 %v2765
    %2844 = vmatprep.subr.mxu0 0.0
    %2845 = vmatpush1.msra.mxu0 %v2766
    %2846 = vmatprep.subr.mxu0 0.0
    %2847 = vmatpush1.msra.mxu0 %v2767
    %2848 = vmatprep.subr.mxu0 0.0
    %2849 = vmatpush1.msra.mxu0 %v2768
    %2850 = vmatprep.subr.mxu0 0.0
    %2851 = vmatpush1.msra.mxu0 %v2769
    %2852 = vmatprep.mubr.f32.mxu0 %v2787
    %2853 = vmatmul.mubr.f32.gmra.mrb[0].mxu0 %v2778
    %v2854 = vpop.f32.mrb[0].mxu0
    %v2855 = vadd.f32 0.0, %v2854
    %v2856 = vpop.f32.mrb[0].mxu0
    %2857 = vdwg.mxu0
    %v2858 = vmul.f32 %v2666, %v2666
    %v2859 = vmul.f32 %v2667, %v2667
    %v2860 = vmul.f32 %v2668, %v2668
    %v2861 = vmul.f32 %v2669, %v2669
    %v2862 = vmul.f32 %v2670, %v2670
    %v2863 = vmul.f32 %v2671, %v2671
    %v2864 = vmul.f32 %v2672, %v2672
    %v2865 = vmul.f32 %v2673, %v2673
    %v2866 = vadd.f32 %v2858, %v2860
    %v2867 = vadd.f32 %v2866, %v2862
    %v2868 = vadd.f32 %v2867, %v2864
    %v2869 = vrot.slane %v2868, 4
    %v2870 = vadd.f32 %v2868, %v2869
    %v2871 = vrot.slane %v2870, 2
    %v2872 = vadd.f32 %v2870, %v2871
    %v2873 = vrot.slane %v2872, 1
    %v2874 = vadd.f32 %v2872, %v2873
    %v2875 = vadd.f32 %v2859, %v2861
    %v2876 = vadd.f32 %v2875, %v2863
    %v2877 = vadd.f32 %v2876, %v2865
    %v2878 = vrot.slane %v2877, 4
    %v2879 = vadd.f32 %v2877, %v2878
    %v2880 = vrot.slane %v2879, 2
    %v2881 = vadd.f32 %v2879, %v2880
    %v2882 = vrot.slane %v2881, 1
    %v2883 = vadd.f32 %v2881, %v2882
    %2884 = vmatprep.subr.mxu0 0.0
    %2885 = vmatpush1.msra.mxu0 %v2738
    %2886 = vmatprep.subr.mxu0 0.0
    %2887 = vmatpush1.msra.mxu0 %v2739
    %2888 = vmatprep.subr.mxu0 0.0
    %2889 = vmatpush1.msra.mxu0 %v2740
    %2890 = vmatprep.subr.mxu0 0.0
    %2891 = vmatpush1.msra.mxu0 %v2741
    %2892 = vmatprep.subr.mxu0 0.0
    %2893 = vmatpush1.msra.mxu0 %v2742
    %2894 = vmatprep.subr.mxu0 0.0
    %2895 = vmatpush1.msra.mxu0 %v2743
    %2896 = vmatprep.subr.mxu0 0.0
    %2897 = vmatpush1.msra.mxu0 %v2744
    %2898 = vmatprep.subr.mxu0 0.0
    %2899 = vmatpush1.msra.mxu0 %v2745
    %2900 = vmatprep.subr.mxu0 0.0
    %2901 = vmatpush1.msra.mxu0 %v2746
    %2902 = vmatprep.subr.mxu0 0.0
    %2903 = vmatpush1.msra.mxu0 %v2747
    %2904 = vmatprep.subr.mxu0 0.0
    %2905 = vmatpush1.msra.mxu0 %v2748
    %2906 = vmatprep.subr.mxu0 0.0
    %2907 = vmatpush1.msra.mxu0 %v2749
    %2908 = vmatprep.subr.mxu0 0.0
    %2909 = vmatpush1.msra.mxu0 %v2750
    %2910 = vmatprep.subr.mxu0 0.0
    %2911 = vmatpush1.msra.mxu0 %v2751
    %2912 = vmatprep.subr.mxu0 0.0
    %2913 = vmatpush1.msra.mxu0 %v2752
    %2914 = vmatprep.subr.mxu0 0.0
    %2915 = vmatpush1.msra.mxu0 %v2753
    %2916 = vmatprep.subr.mxu0 0.0
    %2917 = vmatpush1.msra.mxu0 %v2754
    %2918 = vmatprep.subr.mxu0 0.0
    %2919 = vmatpush1.msra.mxu0 %v2755
    %2920 = vmatprep.subr.mxu0 0.0
    %2921 = vmatpush1.msra.mxu0 %v2756
    %2922 = vmatprep.subr.mxu0 0.0
    %2923 = vmatpush1.msra.mxu0 %v2757
    %2924 = vmatprep.subr.mxu0 0.0
    %2925 = vmatpush1.msra.mxu0 %v2758
    %2926 = vmatprep.subr.mxu0 0.0
    %2927 = vmatpush1.msra.mxu0 %v2759
    %2928 = vmatprep.subr.mxu0 0.0
    %2929 = vmatpush1.msra.mxu0 %v2760
    %2930 = vmatprep.subr.mxu0 0.0
    %2931 = vmatpush1.msra.mxu0 %v2761
    %2932 = vmatprep.subr.mxu0 0.0
    %2933 = vmatpush1.msra.mxu0 %v2762
    %2934 = vmatprep.subr.mxu0 0.0
    %2935 = vmatpush1.msra.mxu0 %v2763
    %2936 = vmatprep.subr.mxu0 0.0
    %2937 = vmatpush1.msra.mxu0 %v2764
    %2938 = vmatprep.subr.mxu0 0.0
    %2939 = vmatpush1.msra.mxu0 %v2765
    %2940 = vmatprep.subr.mxu0 0.0
    %2941 = vmatpush1.msra.mxu0 %v2766
    %2942 = vmatprep.subr.mxu0 0.0
    %2943 = vmatpush1.msra.mxu0 %v2767
    %2944 = vmatprep.subr.mxu0 0.0
    %2945 = vmatpush1.msra.mxu0 %v2768
    %2946 = vmatprep.subr.mxu0 0.0
    %2947 = vmatpush1.msra.mxu0 %v2769
    %2948 = vmatprep.mubr.f32.mxu0 %v2883
    %2949 = vmatmul.mubr.f32.gmra.mrb[0].mxu0 %v2874
    %v2950 = vpop.f32.mrb[0].mxu0
    %v2951 = vadd.f32 0.0, %v2950
    %v2952 = vpop.f32.mrb[0].mxu0
    %2953 = vdwg.mxu0
    %v2954 = vrcp.pop 512.0
    %v2955 = vmul.f32 %v2855, %v2954
    %v2956 = vmul.f32 %v2951, %v2954
    %v2957 = vmul.f32 %v2955, %v2955
    %v2958 = vsub.f32 %v2956, %v2957
    %v2959 = vadd.f32 %v2958, 1e-05
    %v2960 = vrsqrt.pop %v2959
    %v2961 = vld [vmem:[#allocation6] sm:$0x1]
    %v2962 = vmul.f32 %v2961, %v2960
    %v2963 = vld [vmem:[#allocation7] sm:$0x1]
    %v2964 = vmul.f32 %v2955, %v2962
    %v2965 = vsub.f32 %v2963, %v2964
    %vm2966 = vcmp.eq.s32.totalorder %v71, %v1792
    %vm2967 = vcmp.eq.s32.totalorder %v71, %v1793
    %vm2968 = vcmp.eq.s32.totalorder %v72, %v1792
    %vm2969 = vcmp.eq.s32.totalorder %v72, %v1793
    %v2970 = vsel %vm2966, 1.0, 0.0
    %v2971 = vsel %vm2967, 1.0, 0.0
    %v2972 = vsel %vm2968, 1.0, 0.0
    %v2973 = vsel %vm2969, 1.0, 0.0
    %vm2974 = vcmask 130048
    %v2976 = vsel %vm2974, %v2962, 0
    %2978 = vmatprep.subr.mxu0 %v2971
    %2979 = vmatpush1.msra.mxu0 %v2970
    %2980 = vmatprep.subr.mxu0 %v2973
    %2981 = vmatpush1.msra.mxu0 %v2972
    %2982 = vmatprep.subr.mxu0 0.0
    %2983 = vmatpush1.msra.mxu0 0.0
    %2984 = vmatprep.subr.mxu0 0.0
    %2985 = vmatpush1.msra.mxu0 0.0
    %2986 = vmatprep.subr.mxu0 0.0
    %2987 = vmatpush1.msra.mxu0 0.0
    %2988 = vmatprep.subr.mxu0 0.0
    %2989 = vmatpush1.msra.mxu0 0.0
    %2990 = vmatprep.subr.mxu0 0.0
    %2991 = vmatpush1.msra.mxu0 0.0
    %2992 = vmatprep.subr.mxu0 0.0
    %2993 = vmatpush1.msra.mxu0 0.0
    %2994 = vmatprep.subr.mxu0 0.0
    %2995 = vmatpush1.msra.mxu0 0.0
    %2996 = vmatprep.subr.mxu0 0.0
    %2997 = vmatpush1.msra.mxu0 0.0
    %2998 = vmatprep.subr.mxu0 0.0
    %2999 = vmatpush1.msra.mxu0 0.0
    %3000 = vmatprep.subr.mxu0 0.0
    %3001 = vmatpush1.msra.mxu0 0.0
    %3002 = vmatprep.subr.mxu0 0.0
    %3003 = vmatpush1.msra.mxu0 0.0
    %3004 = vmatprep.subr.mxu0 0.0
    %3005 = vmatpush1.msra.mxu0 0.0
    %3006 = vmatprep.subr.mxu0 0.0
    %3007 = vmatpush1.msra.mxu0 0.0
    %3008 = vmatprep.subr.mxu0 0.0
    %3009 = vmatpush1.msra.mxu0 0.0
    %3010 = vmatprep.subr.mxu0 0.0
    %3011 = vmatpush1.msra.mxu0 0.0
    %3012 = vmatprep.subr.mxu0 0.0
    %3013 = vmatpush1.msra.mxu0 0.0
    %3014 = vmatprep.subr.mxu0 0.0
    %3015 = vmatpush1.msra.mxu0 0.0
    %3016 = vmatprep.subr.mxu0 0.0
    %3017 = vmatpush1.msra.mxu0 0.0
    %3018 = vmatprep.subr.mxu0 0.0
    %3019 = vmatpush1.msra.mxu0 0.0
    %3020 = vmatprep.subr.mxu0 0.0
    %3021 = vmatpush1.msra.mxu0 0.0
    %3022 = vmatprep.subr.mxu0 0.0
    %3023 = vmatpush1.msra.mxu0 0.0
    %3024 = vmatprep.subr.mxu0 0.0
    %3025 = vmatpush1.msra.mxu0 0.0
    %3026 = vmatprep.subr.mxu0 0.0
    %3027 = vmatpush1.msra.mxu0 0.0
    %3028 = vmatprep.subr.mxu0 0.0
    %3029 = vmatpush1.msra.mxu0 0.0
    %3030 = vmatprep.subr.mxu0 0.0
    %3031 = vmatpush1.msra.mxu0 0.0
    %3032 = vmatprep.subr.mxu0 0.0
    %3033 = vmatpush1.msra.mxu0 0.0
    %3034 = vmatprep.subr.mxu0 0.0
    %3035 = vmatpush1.msra.mxu0 0.0
    %3036 = vmatprep.subr.mxu0 0.0
    %3037 = vmatpush1.msra.mxu0 0.0
    %3038 = vmatprep.subr.mxu0 0.0
    %3039 = vmatpush1.msra.mxu0 0.0
    %3040 = vmatprep.subr.mxu0 0.0
    %3041 = vmatpush1.msra.mxu0 0.0
    %3042 = vmatprep.mubr.f32.mxu0 0.0
    %3043 = vmatmul.mubr.f32.gmra.mrb[0].mxu0 %v2976
    %v3044 = vpop.f32.mrb[0].mxu0
    %v3045 = vadd.f32 0.0, %v3044
    %v3046 = vpop.f32.mrb[0].mxu0
    %v3047 = vadd.f32 0.0, %v3046
    %3048 = vdwg.mxu0
    %v3050 = vsel %vm2974, %v2965, 0
    %3052 = vmatprep.subr.mxu0 %v2971
    %3053 = vmatpush1.msra.mxu0 %v2970
    %3054 = vmatprep.subr.mxu0 %v2973
    %3055 = vmatpush1.msra.mxu0 %v2972
    %3056 = vmatprep.subr.mxu0 0.0
    %3057 = vmatpush1.msra.mxu0 0.0
    %3058 = vmatprep.subr.mxu0 0.0
    %3059 = vmatpush1.msra.mxu0 0.0
    %3060 = vmatprep.subr.mxu0 0.0
    %3061 = vmatpush1.msra.mxu0 0.0
    %3062 = vmatprep.subr.mxu0 0.0
    %3063 = vmatpush1.msra.mxu0 0.0
    %3064 = vmatprep.subr.mxu0 0.0
    %3065 = vmatpush1.msra.mxu0 0.0
    %3066 = vmatprep.subr.mxu0 0.0
    %3067 = vmatpush1.msra.mxu0 0.0
    %3068 = vmatprep.subr.mxu0 0.0
    %3069 = vmatpush1.msra.mxu0 0.0
    %3070 = vmatprep.subr.mxu0 0.0
    %3071 = vmatpush1.msra.mxu0 0.0
    %3072 = vmatprep.subr.mxu0 0.0
    %3073 = vmatpush1.msra.mxu0 0.0
    %3074 = vmatprep.subr.mxu0 0.0
    %3075 = vmatpush1.msra.mxu0 0.0
    %3076 = vmatprep.subr.mxu0 0.0
    %3077 = vmatpush1.msra.mxu0 0.0
    %3078 = vmatprep.subr.mxu0 0.0
    %3079 = vmatpush1.msra.mxu0 0.0
    %3080 = vmatprep.subr.mxu0 0.0
    %3081 = vmatpush1.msra.mxu0 0.0
    %3082 = vmatprep.subr.mxu0 0.0
    %3083 = vmatpush1.msra.mxu0 0.0
    %3084 = vmatprep.subr.mxu0 0.0
    %3085 = vmatpush1.msra.mxu0 0.0
    %3086 = vmatprep.subr.mxu0 0.0
    %3087 = vmatpush1.msra.mxu0 0.0
    %3088 = vmatprep.subr.mxu0 0.0
    %3089 = vmatpush1.msra.mxu0 0.0
    %3090 = vmatprep.subr.mxu0 0.0
    %3091 = vmatpush1.msra.mxu0 0.0
    %3092 = vmatprep.subr.mxu0 0.0
    %3093 = vmatpush1.msra.mxu0 0.0
    %3094 = vmatprep.subr.mxu0 0.0
    %3095 = vmatpush1.msra.mxu0 0.0
    %3096 = vmatprep.subr.mxu0 0.0
    %3097 = vmatpush1.msra.mxu0 0.0
    %3098 = vmatprep.subr.mxu0 0.0
    %3099 = vmatpush1.msra.mxu0 0.0
    %3100 = vmatprep.subr.mxu0 0.0
    %3101 = vmatpush1.msra.mxu0 0.0
    %3102 = vmatprep.subr.mxu0 0.0
    %3103 = vmatpush1.msra.mxu0 0.0
    %3104 = vmatprep.subr.mxu0 0.0
    %3105 = vmatpush1.msra.mxu0 0.0
    %3106 = vmatprep.subr.mxu0 0.0
    %3107 = vmatpush1.msra.mxu0 0.0
    %3108 = vmatprep.subr.mxu0 0.0
    %3109 = vmatpush1.msra.mxu0 0.0
    %3110 = vmatprep.subr.mxu0 0.0
    %3111 = vmatpush1.msra.mxu0 0.0
    %3112 = vmatprep.subr.mxu0 0.0
    %3113 = vmatpush1.msra.mxu0 0.0
    %3114 = vmatprep.subr.mxu0 0.0
    %3115 = vmatpush1.msra.mxu0 0.0
    %3116 = vmatprep.mubr.f32.mxu0 0.0
    %3117 = vmatmul.mubr.f32.gmra.mrb[0].mxu0 %v3050
    %v3118 = vpop.f32.mrb[0].mxu0
    %v3119 = vadd.f32 0.0, %v3118
    %v3120 = vpop.f32.mrb[0].mxu0
    %v3121 = vadd.f32 0.0, %v3120
    %3122 = vdwg.mxu0
    %v3123 = vlaneseq
    %v3124 = vshrl.u32 %v3123, 7
    %v3125 = vsub.s32 0, %v3124
    %v3126 = vrot.slane %v3045, %v3125
    %v3127 = vlaneseq
    %v3128 = vshrl.u32 %v3127, 7
    %v3129 = vsub.s32 0, %v3128
    %v3130 = vrot.slane %v3047, %v3129
    %v3131 = vmul.f32 %v2666, %v3126
    %v3132 = vmul.f32 %v2667, %v3130
    %v3133 = vmul.f32 %v2668, %v3126
    %v3134 = vmul.f32 %v2669, %v3130
    %v3135 = vmul.f32 %v2670, %v3126
    %v3136 = vmul.f32 %v2671, %v3130
    %v3137 = vmul.f32 %v2672, %v3126
    %v3138 = vmul.f32 %v2673, %v3130
    %v3139 = vlaneseq
    %v3140 = vshrl.u32 %v3139, 7
    %v3141 = vsub.s32 0, %v3140
    %v3142 = vrot.slane %v3119, %v3141
    %v3143 = vlaneseq
    %v3144 = vshrl.u32 %v3143, 7
    %v3145 = vsub.s32 0, %v3144
    %v3146 = vrot.slane %v3121, %v3145
    %v3147 = vadd.f32 %v3131, %v3142
    %v3148 = vadd.f32 %v3132, %v3146
    %v3149 = vadd.f32 %v3133, %v3142
    %v3150 = vadd.f32 %v3134, %v3146
    %v3151 = vadd.f32 %v3135, %v3142
    %v3152 = vadd.f32 %v3136, %v3146
    %v3153 = vadd.f32 %v3137, %v3142
    %v3154 = vadd.f32 %v3138, %v3146
    %v3155 = vlaneseq
    %vm3156 = vcmp.ge.s32.totalorder %v3155, 0
    %vm3157 = vcmp.lt.s32.totalorder %v3155, 256
    %vm3158 = vmand %vm3156, %vm3157
    %3159 = vst.msk [vmem:[%s5] ss:$8 sm:$0x3] %vm3158, 0.0
    %3160 = vst.msk [vmem:[%s5] ss:$8 sm:$0x0] %vm3158, 0.0
    %vm3169 = vcmask 1040384
    %v3170 = vrot.slane %v3147, 7
    %v3171 = vrot.slane %v3148, 7
    %v3172 = vrot.slane %v3149, 7
    %v3173 = vsel %vm3169, %v3170, %v3172
    %v3174 = vrot.slane %v3150, 7
    %v3175 = vsel %vm3169, %v3171, %v3174
    %v3176 = vrot.slane %v3151, 7
    %v3177 = vsel %vm3169, %v3172, %v3176
    %v3178 = vrot.slane %v3152, 7
    %v3179 = vsel %vm3169, %v3174, %v3178
    %v3180 = vrot.slane %v3153, 7
    %v3181 = vsel %vm3169, %v3176, %v3180
    %v3182 = vrot.slane %v3154, 7
    %v3183 = vsel %vm3169, %v3178, %v3182
    %3194 = vst [vmem:[%s5] sm:$0xfe] %v3170
    %3195 = vst [vmem:[%s5 + $0x8] sm:$0xfe] %v3171
    %3196 = vst [vmem:[%s5 + $0x10] sm:$0xff] %v3173
    %3197 = vst [vmem:[%s5 + $0x18] sm:$0xff] %v3175
    %3198 = vst [vmem:[%s5 + $0x20] sm:$0xff] %v3177
    %3199 = vst [vmem:[%s5 + $0x28] sm:$0xff] %v3179
    %3200 = vst [vmem:[%s5 + $0x30] sm:$0xff] %v3181
    %3201 = vst [vmem:[%s5 + $0x38] sm:$0xff] %v3183
    %3202 = vst [vmem:[%s5 + $0x40] sm:$0x1] %v3180
    %3203 = vst [vmem:[%s5 + $0x48] sm:$0x1] %v3182
    %s3204 = scalar_lea.vmem %s5, 65
    %3205 = vst.msk [vmem:[%s3204] ss:$8 sm:$0x3] %vm3158, 0.0
    %3206 = vst.msk [vmem:[%s3204] ss:$8 sm:$0x0] %vm3158, 0.0
    // Predicated region
    $region38: #{lenet_forward.4} parent=1 // pred_check
      _
    $region39: #{lenet_forward.4} parent=1 // pred_check_branch
      %3208 = sbr.rel (0) target = $region41
    $region40: #{lenet_forward.4} parent=1 // pred_region
      _
    $region41: #{lenet_forward.4} parent=1 // pred_fallthru
      _
    // Predicated region
    $region42: #{lenet_forward.4} parent=1 // pred_check
      _
    $region43: #{lenet_forward.4} parent=1 // pred_check_branch
      %3210 = sbr.rel (0) target = $region45
    $region44: #{lenet_forward.4} parent=1 // pred_region
      _
    $region45: #{lenet_forward.4} parent=1 // pred_fallthru
      _
    %3211 = vsyncpa [#allocation3], 1
    %3212 = vsyncpa [#allocation5], 1
    %3213 = vsyncpa [#allocation8], 1

// kernel: lenet_forward.5
$region0: #{lenet_forward.5}
  #allocation0 [shape = 'u32[]', space=smem, size = 0x4, offset = 0x4, fixed_abs, tag = 'smem constant byte address 0x4 - core index']
  #allocation1 [shape = 'u32[144,128]{1,0:T(1,128)}', space=vmem, size = 0x12000, scoped, tag = 'internal scratch']
  %s0 = inlined_call_operand.vmem [shape: f32[34,256], index: 0, kind: input, shape index: {}]
  %s1 = inlined_call_operand.vmem [shape: bf16[3,256,512], index: 1, kind: input, shape index: {}]
  %s2 = inlined_call_operand.vmem [shape: f32[1,512], index: 2, kind: input, shape index: {}]
  %s3 = inlined_call_operand.vmem [shape: f32[1,32], index: 3, kind: input, shape index: {}]
  %s4 = inlined_call_operand.vmem [shape: f32[1,32], index: 4, kind: input, shape index: {}]
  %s5 = inlined_call_operand.vmem [shape: f32[18,256], index: 5, kind: output, shape index: {}]
  %s6 = sld [smem:[#allocation0]]
  $region30: #{lenet_forward.5} parent=0
    _
  %s8 = ssub.s32 1, %s6
  %s9 = scalar_select 0, %s8, %s6
  // Predicated region
  $region2: #{lenet_forward.5} parent=0 // pred_check
    _
  $region3: #{lenet_forward.5} parent=0 // pred_check_branch
    %11 = sbr.rel (0) target = $region5
  $region4: #{lenet_forward.5} parent=0 // pred_region
    _
  $region5: #{lenet_forward.5} parent=0 // pred_fallthru
    _
  // Predicated region
  $region6: #{lenet_forward.5} parent=0 // pred_check
    _
  $region7: #{lenet_forward.5} parent=0 // pred_check_branch
    %13 = sbr.rel (0) target = $region9
  $region8: #{lenet_forward.5} parent=0 // pred_region
    _
  $region9: #{lenet_forward.5} parent=0 // pred_fallthru
    _
  // Predicated region
  $region10: #{lenet_forward.5} parent=0 // pred_check
    _
  $region11: #{lenet_forward.5} parent=0 // pred_check_branch
    %15 = sbr.rel (0) target = $region13
  $region12: #{lenet_forward.5} parent=0 // pred_region
    _
  $region13: #{lenet_forward.5} parent=0 // pred_fallthru
    _
  // Predicated region
  $region14: #{lenet_forward.5} parent=0 // pred_check
    _
  $region15: #{lenet_forward.5} parent=0 // pred_check_branch
    %17 = sbr.rel (0) target = $region17
  $region16: #{lenet_forward.5} parent=0 // pred_region
    _
  $region17: #{lenet_forward.5} parent=0 // pred_fallthru
    _
  // Predicated region
  $region18: #{lenet_forward.5} parent=0 // pred_check
    _
  $region19: #{lenet_forward.5} parent=0 // pred_check_branch
    %19 = sbr.rel (0) target = $region21
  $region20: #{lenet_forward.5} parent=0 // pred_region
    _
  $region21: #{lenet_forward.5} parent=0 // pred_fallthru
    _
  %v20 = vlaneseq
  %v21 = vshrl.u32 %v20, 7
  %v22 = vadd.s32 %v21, 8
  %v23 = vadd.s32 %v21, 16
  %v24 = vadd.s32 %v21, 24
  %v25 = vand.u32 %v21, 15
  %v26 = vand.u32 %v22, 15
  %v27 = vand.u32 %v23, 15
  %v28 = vand.u32 %v24, 15
  %v29 = vld [vmem:[%s0] sm:$0xff]
  %v30 = vld [vmem:[%s0 + $0x8] sm:$0xff]
  %v31 = vld [vmem:[%s0 + $0x10] sm:$0xff]
  %v32 = vld [vmem:[%s0 + $0x18] sm:$0xff]
  %v33 = vld [vmem:[%s0 + $0x20] sm:$0xff]
  %v34 = vld [vmem:[%s0 + $0x28] sm:$0xff]
  %v35 = vld [vmem:[%s0 + $0x30] sm:$0xff]
  %v36 = vld [vmem:[%s0 + $0x38] sm:$0xff]
  %v37 = vpack.c.bf16 %v31, %v29
  %v38 = vpack.c.bf16 %v32, %v30
  %v39 = vpack.c.bf16 %v35, %v33
  %v40 = vpack.c.bf16 %v36, %v34
  %v41 = vld [vmem:[%s1] sm:$0xff]
  %v42 = vld [vmem:[%s1 + $0x8] sm:$0xff]
  %v43 = vld [vmem:[%s1 + $0x10] sm:$0xff]
  %v44 = vld [vmem:[%s1 + $0x18] sm:$0xff]
  %v45 = vld [vmem:[%s1 + $0x20] sm:$0xff]
  %v46 = vld [vmem:[%s1 + $0x28] sm:$0xff]
  %v47 = vld [vmem:[%s1 + $0x30] sm:$0xff]
  %v48 = vld [vmem:[%s1 + $0x38] sm:$0xff]
  %v49 = vld [vmem:[%s1 + $0x40] sm:$0xff]
  %v50 = vld [vmem:[%s1 + $0x48] sm:$0xff]
  %v51 = vld [vmem:[%s1 + $0x50] sm:$0xff]
  %v52 = vld [vmem:[%s1 + $0x58] sm:$0xff]
  %v53 = vld [vmem:[%s1 + $0x60] sm:$0xff]
  %v54 = vld [vmem:[%s1 + $0x68] sm:$0xff]
  %v55 = vld [vmem:[%s1 + $0x70] sm:$0xff]
  %v56 = vld [vmem:[%s1 + $0x78] sm:$0xff]
  %v57 = vld [vmem:[%s1 + $0x80] sm:$0xff]
  %v58 = vld [vmem:[%s1 + $0x88] sm:$0xff]
  %v59 = vld [vmem:[%s1 + $0x90] sm:$0xff]
  %v60 = vld [vmem:[%s1 + $0x98] sm:$0xff]
  %v61 = vld [vmem:[%s1 + $0xa0] sm:$0xff]
  %v62 = vld [vmem:[%s1 + $0xa8] sm:$0xff]
  %v63 = vld [vmem:[%s1 + $0xb0] sm:$0xff]
  %v64 = vld [vmem:[%s1 + $0xb8] sm:$0xff]
  %v65 = vld [vmem:[%s1 + $0xc0] sm:$0xff]
  %v66 = vld [vmem:[%s1 + $0xc8] sm:$0xff]
  %v67 = vld [vmem:[%s1 + $0xd0] sm:$0xff]
  %v68 = vld [vmem:[%s1 + $0xd8] sm:$0xff]
  %v69 = vld [vmem:[%s1 + $0xe0] sm:$0xff]
  %v70 = vld [vmem:[%s1 + $0xe8] sm:$0xff]
  %v71 = vld [vmem:[%s1 + $0xf0] sm:$0xff]
  %v72 = vld [vmem:[%s1 + $0xf8] sm:$0xff]
  %v73 = vld [vmem:[%s1 + $0x100] sm:$0xff]
  %v74 = vld [vmem:[%s1 + $0x108] sm:$0xff]
  %v75 = vld [vmem:[%s1 + $0x110] sm:$0xff]
  %v76 = vld [vmem:[%s1 + $0x118] sm:$0xff]
  %v77 = vld [vmem:[%s1 + $0x120] sm:$0xff]
  %v78 = vld [vmem:[%s1 + $0x128] sm:$0xff]
  %v79 = vld [vmem:[%s1 + $0x130] sm:$0xff]
  %v80 = vld [vmem:[%s1 + $0x138] sm:$0xff]
  %v81 = vld [vmem:[%s1 + $0x140] sm:$0xff]
  %v82 = vld [vmem:[%s1 + $0x148] sm:$0xff]
  %v83 = vld [vmem:[%s1 + $0x150] sm:$0xff]
  %v84 = vld [vmem:[%s1 + $0x158] sm:$0xff]
  %v85 = vld [vmem:[%s1 + $0x160] sm:$0xff]
  %v86 = vld [vmem:[%s1 + $0x168] sm:$0xff]
  %v87 = vld [vmem:[%s1 + $0x170] sm:$0xff]
  %v88 = vld [vmem:[%s1 + $0x178] sm:$0xff]
  %v89 = vld [vmem:[%s1 + $0x180] sm:$0xff]
  %v90 = vld [vmem:[%s1 + $0x188] sm:$0xff]
  %v91 = vld [vmem:[%s1 + $0x190] sm:$0xff]
  %v92 = vld [vmem:[%s1 + $0x198] sm:$0xff]
  %v93 = vld [vmem:[%s1 + $0x1a0] sm:$0xff]
  %v94 = vld [vmem:[%s1 + $0x1a8] sm:$0xff]
  %v95 = vld [vmem:[%s1 + $0x1b0] sm:$0xff]
  %v96 = vld [vmem:[%s1 + $0x1b8] sm:$0xff]
  %v97 = vld [vmem:[%s1 + $0x1c0] sm:$0xff]
  %v98 = vld [vmem:[%s1 + $0x1c8] sm:$0xff]
  %v99 = vld [vmem:[%s1 + $0x1d0] sm:$0xff]
  %v100 = vld [vmem:[%s1 + $0x1d8] sm:$0xff]
  %v101 = vld [vmem:[%s1 + $0x1e0] sm:$0xff]
  %v102 = vld [vmem:[%s1 + $0x1e8] sm:$0xff]
  %v103 = vld [vmem:[%s1 + $0x1f0] sm:$0xff]
  %v104 = vld [vmem:[%s1 + $0x1f8] sm:$0xff]
  %v169 = vunpack.c.l.b16 %v41
  %v170 = vunpack.c.h.b16 %v41
  %v171 = vunpack.c.l.b16 %v42
  %v172 = vunpack.c.h.b16 %v42
  %v173 = vunpack.c.l.b16 %v43
  %v174 = vunpack.c.h.b16 %v43
  %v175 = vunpack.c.l.b16 %v44
  %v176 = vunpack.c.h.b16 %v44
  %v177 = vunpack.c.l.b16 %v45
  %v178 = vunpack.c.h.b16 %v45
  %v179 = vunpack.c.l.b16 %v46
  %v180 = vunpack.c.h.b16 %v46
  %v181 = vunpack.c.l.b16 %v47
  %v182 = vunpack.c.h.b16 %v47
  %v183 = vunpack.c.l.b16 %v48
  %v184 = vunpack.c.h.b16 %v48
  %v185 = vunpack.c.l.b16 %v49
  %v186 = vunpack.c.h.b16 %v49
  %v187 = vunpack.c.l.b16 %v50
  %v188 = vunpack.c.h.b16 %v50
  %v189 = vunpack.c.l.b16 %v51
  %v190 = vunpack.c.h.b16 %v51
  %v191 = vunpack.c.l.b16 %v52
  %v192 = vunpack.c.h.b16 %v52
  %v193 = vunpack.c.l.b16 %v53
  %v194 = vunpack.c.h.b16 %v53
  %v195 = vunpack.c.l.b16 %v54
  %v196 = vunpack.c.h.b16 %v54
  %v197 = vunpack.c.l.b16 %v55
  %v198 = vunpack.c.h.b16 %v55
  %v199 = vunpack.c.l.b16 %v56
  %v200 = vunpack.c.h.b16 %v56
  %v201 = vunpack.c.l.b16 %v57
  %v202 = vunpack.c.h.b16 %v57
  %v203 = vunpack.c.l.b16 %v58
  %v204 = vunpack.c.h.b16 %v58
  %v205 = vunpack.c.l.b16 %v59
  %v206 = vunpack.c.h.b16 %v59
  %v207 = vunpack.c.l.b16 %v60
  %v208 = vunpack.c.h.b16 %v60
  %v209 = vunpack.c.l.b16 %v61
  %v210 = vunpack.c.h.b16 %v61
  %v211 = vunpack.c.l.b16 %v62
  %v212 = vunpack.c.h.b16 %v62
  %v213 = vunpack.c.l.b16 %v63
  %v214 = vunpack.c.h.b16 %v63
  %v215 = vunpack.c.l.b16 %v64
  %v216 = vunpack.c.h.b16 %v64
  %v217 = vunpack.c.l.b16 %v65
  %v218 = vunpack.c.h.b16 %v65
  %v219 = vunpack.c.l.b16 %v66
  %v220 = vunpack.c.h.b16 %v66
  %v221 = vunpack.c.l.b16 %v67
  %v222 = vunpack.c.h.b16 %v67
  %v223 = vunpack.c.l.b16 %v68
  %v224 = vunpack.c.h.b16 %v68
  %v225 = vunpack.c.l.b16 %v69
  %v226 = vunpack.c.h.b16 %v69
  %v227 = vunpack.c.l.b16 %v70
  %v228 = vunpack.c.h.b16 %v70
  %v229 = vunpack.c.l.b16 %v71
  %v230 = vunpack.c.h.b16 %v71
  %v231 = vunpack.c.l.b16 %v72
  %v232 = vunpack.c.h.b16 %v72
  %v233 = vunpack.c.l.b16 %v73
  %v234 = vunpack.c.h.b16 %v73
  %v235 = vunpack.c.l.b16 %v74
  %v236 = vunpack.c.h.b16 %v74
  %v237 = vunpack.c.l.b16 %v75
  %v238 = vunpack.c.h.b16 %v75
  %v239 = vunpack.c.l.b16 %v76
  %v240 = vunpack.c.h.b16 %v76
  %v241 = vunpack.c.l.b16 %v77
  %v242 = vunpack.c.h.b16 %v77
  %v243 = vunpack.c.l.b16 %v78
  %v244 = vunpack.c.h.b16 %v78
  %v245 = vunpack.c.l.b16 %v79
  %v246 = vunpack.c.h.b16 %v79
  %v247 = vunpack.c.l.b16 %v80
  %v248 = vunpack.c.h.b16 %v80
  %v249 = vunpack.c.l.b16 %v81
  %v250 = vunpack.c.h.b16 %v81
  %v251 = vunpack.c.l.b16 %v82
  %v252 = vunpack.c.h.b16 %v82
  %v253 = vunpack.c.l.b16 %v83
  %v254 = vunpack.c.h.b16 %v83
  %v255 = vunpack.c.l.b16 %v84
  %v256 = vunpack.c.h.b16 %v84
  %v257 = vunpack.c.l.b16 %v85
  %v258 = vunpack.c.h.b16 %v85
  %v259 = vunpack.c.l.b16 %v86
  %v260 = vunpack.c.h.b16 %v86
  %v261 = vunpack.c.l.b16 %v87
  %v262 = vunpack.c.h.b16 %v87
  %v263 = vunpack.c.l.b16 %v88
  %v264 = vunpack.c.h.b16 %v88
  %v265 = vunpack.c.l.b16 %v89
  %v266 = vunpack.c.h.b16 %v89
  %v267 = vunpack.c.l.b16 %v90
  %v268 = vunpack.c.h.b16 %v90
  %v269 = vunpack.c.l.b16 %v91
  %v270 = vunpack.c.h.b16 %v91
  %v271 = vunpack.c.l.b16 %v92
  %v272 = vunpack.c.h.b16 %v92
  %v273 = vunpack.c.l.b16 %v93
  %v274 = vunpack.c.h.b16 %v93
  %v275 = vunpack.c.l.b16 %v94
  %v276 = vunpack.c.h.b16 %v94
  %v277 = vunpack.c.l.b16 %v95
  %v278 = vunpack.c.h.b16 %v95
  %v279 = vunpack.c.l.b16 %v96
  %v280 = vunpack.c.h.b16 %v96
  %v281 = vunpack.c.l.b16 %v97
  %v282 = vunpack.c.h.b16 %v97
  %v283 = vunpack.c.l.b16 %v98
  %v284 = vunpack.c.h.b16 %v98
  %v285 = vunpack.c.l.b16 %v99
  %v286 = vunpack.c.h.b16 %v99
  %v287 = vunpack.c.l.b16 %v100
  %v288 = vunpack.c.h.b16 %v100
  %v289 = vunpack.c.l.b16 %v101
  %v290 = vunpack.c.h.b16 %v101
  %v291 = vunpack.c.l.b16 %v102
  %v292 = vunpack.c.h.b16 %v102
  %v293 = vunpack.c.l.b16 %v103
  %v294 = vunpack.c.h.b16 %v103
  %v295 = vunpack.c.l.b16 %v104
  %v296 = vunpack.c.h.b16 %v104
  %v297 = vpack.c.b16 %v173, %v169
  %v298 = vpack.c.b16 %v174, %v170
  %v299 = vpack.c.b16 %v175, %v171
  %v300 = vpack.c.b16 %v176, %v172
  %v301 = vpack.c.b16 %v181, %v177
  %v302 = vpack.c.b16 %v182, %v178
  %v303 = vpack.c.b16 %v183, %v179
  %v304 = vpack.c.b16 %v184, %v180
  %v305 = vpack.c.b16 %v189, %v185
  %v306 = vpack.c.b16 %v190, %v186
  %v307 = vpack.c.b16 %v191, %v187
  %v308 = vpack.c.b16 %v192, %v188
  %v309 = vpack.c.b16 %v197, %v193
  %v310 = vpack.c.b16 %v198, %v194
  %v311 = vpack.c.b16 %v199, %v195
  %v312 = vpack.c.b16 %v200, %v196
  %v313 = vpack.c.b16 %v205, %v201
  %v314 = vpack.c.b16 %v206, %v202
  %v315 = vpack.c.b16 %v207, %v203
  %v316 = vpack.c.b16 %v208, %v204
  %v317 = vpack.c.b16 %v213, %v209
  %v318 = vpack.c.b16 %v214, %v210
  %v319 = vpack.c.b16 %v215, %v211
  %v320 = vpack.c.b16 %v216, %v212
  %v321 = vpack.c.b16 %v221, %v217
  %v322 = vpack.c.b16 %v222, %v218
  %v323 = vpack.c.b16 %v223, %v219
  %v324 = vpack.c.b16 %v224, %v220
  %v325 = vpack.c.b16 %v229, %v225
  %v326 = vpack.c.b16 %v230, %v226
  %v327 = vpack.c.b16 %v231, %v227
  %v328 = vpack.c.b16 %v232, %v228
  %v329 = vpack.c.b16 %v237, %v233
  %v330 = vpack.c.b16 %v238, %v234
  %v331 = vpack.c.b16 %v239, %v235
  %v332 = vpack.c.b16 %v240, %v236
  %v333 = vpack.c.b16 %v245, %v241
  %v334 = vpack.c.b16 %v246, %v242
  %v335 = vpack.c.b16 %v247, %v243
  %v336 = vpack.c.b16 %v248, %v244
  %v337 = vpack.c.b16 %v253, %v249
  %v338 = vpack.c.b16 %v254, %v250
  %v339 = vpack.c.b16 %v255, %v251
  %v340 = vpack.c.b16 %v256, %v252
  %v341 = vpack.c.b16 %v261, %v257
  %v342 = vpack.c.b16 %v262, %v258
  %v343 = vpack.c.b16 %v263, %v259
  %v344 = vpack.c.b16 %v264, %v260
  %v345 = vpack.c.b16 %v269, %v265
  %v346 = vpack.c.b16 %v270, %v266
  %v347 = vpack.c.b16 %v271, %v267
  %v348 = vpack.c.b16 %v272, %v268
  %v349 = vpack.c.b16 %v277, %v273
  %v350 = vpack.c.b16 %v278, %v274
  %v351 = vpack.c.b16 %v279, %v275
  %v352 = vpack.c.b16 %v280, %v276
  %v353 = vpack.c.b16 %v285, %v281
  %v354 = vpack.c.b16 %v286, %v282
  %v355 = vpack.c.b16 %v287, %v283
  %v356 = vpack.c.b16 %v288, %v284
  %v357 = vpack.c.b16 %v293, %v289
  %v358 = vpack.c.b16 %v294, %v290
  %v359 = vpack.c.b16 %v295, %v291
  %v360 = vpack.c.b16 %v296, %v292
  %425 = vmatprep.subr.bf16.mxu0 %v298
  %426 = vmatpush1.bf16.msra.mxu0 %v297
  %427 = vmatprep.subr.bf16.mxu0 %v302
  %428 = vmatpush1.bf16.msra.mxu0 %v301
  %429 = vmatprep.subr.bf16.mxu0 %v306
  %430 = vmatpush1.bf16.msra.mxu0 %v305
  %431 = vmatprep.subr.bf16.mxu0 %v310
  %432 = vmatpush1.bf16.msra.mxu0 %v309
  %433 = vmatprep.subr.bf16.mxu0 %v314
  %434 = vmatpush1.bf16.msra.mxu0 %v313
  %435 = vmatprep.subr.bf16.mxu0 %v318
  %436 = vmatpush1.bf16.msra.mxu0 %v317
  %437 = vmatprep.subr.bf16.mxu0 %v322
  %438 = vmatpush1.bf16.msra.mxu0 %v321
  %439 = vmatprep.subr.bf16.mxu0 %v326
  %440 = vmatpush1.bf16.msra.mxu0 %v325
  %441 = vmatprep.subr.bf16.mxu0 %v330
  %442 = vmatpush1.bf16.msra.mxu0 %v329
  %443 = vmatprep.subr.bf16.mxu0 %v334
  %444 = vmatpush1.bf16.msra.mxu0 %v333
  %445 = vmatprep.subr.bf16.mxu0 %v338
  %446 = vmatpush1.bf16.msra.mxu0 %v337
  %447 = vmatprep.subr.bf16.mxu0 %v342
  %448 = vmatpush1.bf16.msra.mxu0 %v341
  %449 = vmatprep.subr.bf16.mxu0 %v346
  %450 = vmatpush1.bf16.msra.mxu0 %v345
  %451 = vmatprep.subr.bf16.mxu0 %v350
  %452 = vmatpush1.bf16.msra.mxu0 %v349
  %453 = vmatprep.subr.bf16.mxu0 %v354
  %454 = vmatpush1.bf16.msra.mxu0 %v353
  %455 = vmatprep.subr.bf16.mxu0 %v358
  %456 = vmatpush1.bf16.msra.mxu0 %v357
  %457 = vmatprep.mubr.bf16.mxu0 %v38
  %458 = vmatmul.mubr.bf16.gmra.mrb[0].mxu0 %v37
  %v459 = vpop.f32.mrb[0].mxu0
  %v460 = vadd.f32 0.0, %v459
  %v461 = vpop.f32.mrb[0].mxu0
  %v462 = vadd.f32 0.0, %v461
  %v463 = vpop.f32.mrb[0].mxu0
  %v464 = vadd.f32 0.0, %v463
  %v465 = vpop.f32.mrb[0].mxu0
  %v466 = vadd.f32 0.0, %v465
  %467 = vmatprep.mubr.bf16.mxu0 %v40
  %468 = vmatmul.mubr.bf16.gmra.mrb[0].mxu0 %v39
  %v469 = vpop.f32.mrb[0].mxu0
  %v470 = vadd.f32 0.0, %v469
  %v471 = vpop.f32.mrb[0].mxu0
  %v472 = vadd.f32 0.0, %v471
  %v473 = vpop.f32.mrb[0].mxu0
  %v474 = vadd.f32 0.0, %v473
  %v475 = vpop.f32.mrb[0].mxu0
  %v476 = vadd.f32 0.0, %v475
  %477 = vdwg.mxu0
  %478 = vmatprep.subr.bf16.mxu0 %v300
  %479 = vmatpush1.bf16.msra.mxu0 %v299
  %480 = vmatprep.subr.bf16.mxu0 %v304
  %481 = vmatpush1.bf16.msra.mxu0 %v303
  %482 = vmatprep.subr.bf16.mxu0 %v308
  %483 = vmatpush1.bf16.msra.mxu0 %v307
  %484 = vmatprep.subr.bf16.mxu0 %v312
  %485 = vmatpush1.bf16.msra.mxu0 %v311
  %486 = vmatprep.subr.bf16.mxu0 %v316
  %487 = vmatpush1.bf16.msra.mxu0 %v315
  %488 = vmatprep.subr.bf16.mxu0 %v320
  %489 = vmatpush1.bf16.msra.mxu0 %v319
  %490 = vmatprep.subr.bf16.mxu0 %v324
  %491 = vmatpush1.bf16.msra.mxu0 %v323
  %492 = vmatprep.subr.bf16.mxu0 %v328
  %493 = vmatpush1.bf16.msra.mxu0 %v327
  %494 = vmatprep.subr.bf16.mxu0 %v332
  %495 = vmatpush1.bf16.msra.mxu0 %v331
  %496 = vmatprep.subr.bf16.mxu0 %v336
  %497 = vmatpush1.bf16.msra.mxu0 %v335
  %498 = vmatprep.subr.bf16.mxu0 %v340
  %499 = vmatpush1.bf16.msra.mxu0 %v339
  %500 = vmatprep.subr.bf16.mxu0 %v344
  %501 = vmatpush1.bf16.msra.mxu0 %v343
  %502 = vmatprep.subr.bf16.mxu0 %v348
  %503 = vmatpush1.bf16.msra.mxu0 %v347
  %504 = vmatprep.subr.bf16.mxu0 %v352
  %505 = vmatpush1.bf16.msra.mxu0 %v351
  %506 = vmatprep.subr.bf16.mxu0 %v356
  %507 = vmatpush1.bf16.msra.mxu0 %v355
  %508 = vmatprep.subr.bf16.mxu0 %v360
  %509 = vmatpush1.bf16.msra.mxu0 %v359
  %510 = vmatprep.mubr.bf16.mxu0 %v38
  %511 = vmatmul.mubr.bf16.gmra.mrb[0].mxu0 %v37
  %v512 = vpop.f32.mrb[0].mxu0
  %v513 = vadd.f32 0.0, %v512
  %v514 = vpop.f32.mrb[0].mxu0
  %v515 = vadd.f32 0.0, %v514
  %v516 = vpop.f32.mrb[0].mxu0
  %v517 = vadd.f32 0.0, %v516
  %v518 = vpop.f32.mrb[0].mxu0
  %v519 = vadd.f32 0.0, %v518
  %520 = vmatprep.mubr.bf16.mxu0 %v40
  %521 = vmatmul.mubr.bf16.gmra.mrb[0].mxu0 %v39
  %v522 = vpop.f32.mrb[0].mxu0
  %v523 = vadd.f32 0.0, %v522
  %v524 = vpop.f32.mrb[0].mxu0
  %v525 = vadd.f32 0.0, %v524
  %v526 = vpop.f32.mrb[0].mxu0
  %v527 = vadd.f32 0.0, %v526
  %v528 = vpop.f32.mrb[0].mxu0
  %v529 = vadd.f32 0.0, %v528
  %530 = vdwg.mxu0
  %vm531 = vcmp.ne.s32.totalorder %v25, 0
  %vm532 = vcmp.ne.s32.totalorder %v26, 0
  %vm533 = vcmp.ne.s32.totalorder %v27, 0
  %vm534 = vcmp.ne.s32.totalorder %v28, 0
  %v535 = vsel %vm531, 1.0, 0.0
  %v536 = vsel %vm532, 1.0, 0.0
  %v537 = vsel %vm533, 1.0, 0.0
  %v538 = vsel %vm534, 1.0, 0.0
  %v539 = vmul.f32 %v460, %v535
  %v540 = vmul.f32 %v462, %v535
  %v541 = vmul.f32 %v513, %v535
  %v542 = vmul.f32 %v515, %v535
  %v543 = vmul.f32 %v464, %v536
  %v544 = vmul.f32 %v466, %v536
  %v545 = vmul.f32 %v517, %v536
  %v546 = vmul.f32 %v519, %v536
  %v547 = vmul.f32 %v470, %v537
  %v548 = vmul.f32 %v472, %v537
  %v549 = vmul.f32 %v523, %v537
  %v550 = vmul.f32 %v525, %v537
  %v551 = vmul.f32 %v474, %v538
  %v552 = vmul.f32 %v476, %v538
  %v553 = vmul.f32 %v527, %v538
  %v554 = vmul.f32 %v529, %v538
  %v555 = vadd.f32 %v539, 0.0
  %v556 = vadd.f32 %v540, 0.0
  %v557 = vadd.f32 %v541, 0.0
  %v558 = vadd.f32 %v542, 0.0
  %v559 = vadd.f32 %v543, 0.0
  %v560 = vadd.f32 %v544, 0.0
  %v561 = vadd.f32 %v545, 0.0
  %v562 = vadd.f32 %v546, 0.0
  %v563 = vadd.f32 %v547, 0.0
  %v564 = vadd.f32 %v548, 0.0
  %v565 = vadd.f32 %v549, 0.0
  %v566 = vadd.f32 %v550, 0.0
  %v567 = vadd.f32 %v551, 0.0
  %v568 = vadd.f32 %v552, 0.0
  %v569 = vadd.f32 %v553, 0.0
  %v570 = vadd.f32 %v554, 0.0
  %v571 = vld [vmem:[%s0] sm:$0xfe]
  %v572 = vld [vmem:[%s0 + $0x8] sm:$0xfe]
  %v573 = vld [vmem:[%s0 + $0x10] sm:$0xff]
  %v574 = vld [vmem:[%s0 + $0x18] sm:$0xff]
  %v575 = vld [vmem:[%s0 + $0x20] sm:$0xff]
  %v576 = vld [vmem:[%s0 + $0x28] sm:$0xff]
  %v577 = vld [vmem:[%s0 + $0x30] sm:$0xff]
  %v578 = vld [vmem:[%s0 + $0x38] sm:$0xff]
  %v579 = vld [vmem:[%s0 + $0x40] sm:$0x1]
  %v580 = vld [vmem:[%s0 + $0x48] sm:$0x1]
  %v581 = vpack.c.bf16 %v573, %v571
  %v582 = vpack.c.bf16 %v574, %v572
  %v583 = vpack.c.bf16 %v577, %v575
  %v584 = vpack.c.bf16 %v578, %v576
  %v585 = vpack.c.bf16 %v579, %v579
  %v586 = vpack.c.bf16 %v580, %v580
  %s587 = scalar_lea.vmem %s1, 512
  %v588 = vld [vmem:[%s587] sm:$0xff]
  %v589 = vld [vmem:[%s587 + $0x8] sm:$0xff]
  %v590 = vld [vmem:[%s587 + $0x10] sm:$0xff]
  %v591 = vld [vmem:[%s587 + $0x18] sm:$0xff]
  %v592 = vld [vmem:[%s587 + $0x20] sm:$0xff]
  %v593 = vld [vmem:[%s587 + $0x28] sm:$0xff]
  %v594 = vld [vmem:[%s587 + $0x30] sm:$0xff]
  %v595 = vld [vmem:[%s587 + $0x38] sm:$0xff]
  %v596 = vld [vmem:[%s587 + $0x40] sm:$0xff]
  %v597 = vld [vmem:[%s587 + $0x48] sm:$0xff]
  %v598 = vld [vmem:[%s587 + $0x50] sm:$0xff]
  %v599 = vld [vmem:[%s587 + $0x58] sm:$0xff]
  %v600 = vld [vmem:[%s587 + $0x60] sm:$0xff]
  %v601 = vld [vmem:[%s587 + $0x68] sm:$0xff]
  %v602 = vld [vmem:[%s587 + $0x70] sm:$0xff]
  %v603 = vld [vmem:[%s587 + $0x78] sm:$0xff]
  %v604 = vld [vmem:[%s587 + $0x80] sm:$0xff]
  %v605 = vld [vmem:[%s587 + $0x88] sm:$0xff]
  %v606 = vld [vmem:[%s587 + $0x90] sm:$0xff]
  %v607 = vld [vmem:[%s587 + $0x98] sm:$0xff]
  %v608 = vld [vmem:[%s587 + $0xa0] sm:$0xff]
  %v609 = vld [vmem:[%s587 + $0xa8] sm:$0xff]
  %v610 = vld [vmem:[%s587 + $0xb0] sm:$0xff]
  %v611 = vld [vmem:[%s587 + $0xb8] sm:$0xff]
  %v612 = vld [vmem:[%s587 + $0xc0] sm:$0xff]
  %v613 = vld [vmem:[%s587 + $0xc8] sm:$0xff]
  %v614 = vld [vmem:[%s587 + $0xd0] sm:$0xff]
  %v615 = vld [vmem:[%s587 + $0xd8] sm:$0xff]
  %v616 = vld [vmem:[%s587 + $0xe0] sm:$0xff]
  %v617 = vld [vmem:[%s587 + $0xe8] sm:$0xff]
  %v618 = vld [vmem:[%s587 + $0xf0] sm:$0xff]
  %v619 = vld [vmem:[%s587 + $0xf8] sm:$0xff]
  %v620 = vld [vmem:[%s587 + $0x100] sm:$0xff]
  %v621 = vld [vmem:[%s587 + $0x108] sm:$0xff]
  %v622 = vld [vmem:[%s587 + $0x110] sm:$0xff]
  %v623 = vld [vmem:[%s587 + $0x118] sm:$0xff]
  %v624 = vld [vmem:[%s587 + $0x120] sm:$0xff]
  %v625 = vld [vmem:[%s587 + $0x128] sm:$0xff]
  %v626 = vld [vmem:[%s587 + $0x130] sm:$0xff]
  %v627 = vld [vmem:[%s587 + $0x138] sm:$0xff]
  %v628 = vld [vmem:[%s587 + $0x140] sm:$0xff]
  %v629 = vld [vmem:[%s587 + $0x148] sm:$0xff]
  %v630 = vld [vmem:[%s587 + $0x150] sm:$0xff]
  %v631 = vld [vmem:[%s587 + $0x158] sm:$0xff]
  %v632 = vld [vmem:[%s587 + $0x160] sm:$0xff]
  %v633 = vld [vmem:[%s587 + $0x168] sm:$0xff]
  %v634 = vld [vmem:[%s587 + $0x170] sm:$0xff]
  %v635 = vld [vmem:[%s587 + $0x178] sm:$0xff]
  %v636 = vld [vmem:[%s587 + $0x180] sm:$0xff]
  %v637 = vld [vmem:[%s587 + $0x188] sm:$0xff]
  %v638 = vld [vmem:[%s587 + $0x190] sm:$0xff]
  %v639 = vld [vmem:[%s587 + $0x198] sm:$0xff]
  %v640 = vld [vmem:[%s587 + $0x1a0] sm:$0xff]
  %v641 = vld [vmem:[%s587 + $0x1a8] sm:$0xff]
  %v642 = vld [vmem:[%s587 + $0x1b0] sm:$0xff]
  %v643 = vld [vmem:[%s587 + $0x1b8] sm:$0xff]
  %v644 = vld [vmem:[%s587 + $0x1c0] sm:$0xff]
  %v645 = vld [vmem:[%s587 + $0x1c8] sm:$0xff]
  %v646 = vld [vmem:[%s587 + $0x1d0] sm:$0xff]
  %v647 = vld [vmem:[%s587 + $0x1d8] sm:$0xff]
  %v648 = vld [vmem:[%s587 + $0x1e0] sm:$0xff]
  %v649 = vld [vmem:[%s587 + $0x1e8] sm:$0xff]
  %v650 = vld [vmem:[%s587 + $0x1f0] sm:$0xff]
  %v651 = vld [vmem:[%s587 + $0x1f8] sm:$0xff]
  %vm652 = vsmask.f32 7424
  %v654 = vshrl.u32 %v581, 16
  %v656 = vshll.u32 %v581, 16
  %v658 = vrot.slane %v656, 1
  %v659 = vor.u32 %v654, %v658
  %v661 = vshll.u32 %v583, 16
  %v663 = vrot.slane %v661, 1
  %v664 = vsel %vm652, %v659, %v663
  %v666 = vshrl.u32 %v582, 16
  %v668 = vshll.u32 %v582, 16
  %v670 = vrot.slane %v668, 1
  %v671 = vor.u32 %v666, %v670
  %v673 = vshll.u32 %v584, 16
  %v675 = vrot.slane %v673, 1
  %v676 = vsel %vm652, %v671, %v675
  %v677 = vshrl.u32 %v583, 16
  %v679 = vor.u32 %v677, %v663
  %v681 = vshll.u32 %v585, 16
  %v683 = vrot.slane %v681, 1
  %v684 = vsel %vm652, %v679, %v683
  %v685 = vshrl.u32 %v584, 16
  %v687 = vor.u32 %v685, %v675
  %v689 = vshll.u32 %v586, 16
  %v691 = vrot.slane %v689, 1
  %v692 = vsel %vm652, %v687, %v691
  %v761 = vunpack.c.l.b16 %v588
  %v762 = vunpack.c.h.b16 %v588
  %v763 = vunpack.c.l.b16 %v589
  %v764 = vunpack.c.h.b16 %v589
  %v765 = vunpack.c.l.b16 %v590
  %v766 = vunpack.c.h.b16 %v590
  %v767 = vunpack.c.l.b16 %v591
  %v768 = vunpack.c.h.b16 %v591
  %v769 = vunpack.c.l.b16 %v592
  %v770 = vunpack.c.h.b16 %v592
  %v771 = vunpack.c.l.b16 %v593
  %v772 = vunpack.c.h.b16 %v593
  %v773 = vunpack.c.l.b16 %v594
  %v774 = vunpack.c.h.b16 %v594
  %v775 = vunpack.c.l.b16 %v595
  %v776 = vunpack.c.h.b16 %v595
  %v777 = vunpack.c.l.b16 %v596
  %v778 = vunpack.c.h.b16 %v596
  %v779 = vunpack.c.l.b16 %v597
  %v780 = vunpack.c.h.b16 %v597
  %v781 = vunpack.c.l.b16 %v598
  %v782 = vunpack.c.h.b16 %v598
  %v783 = vunpack.c.l.b16 %v599
  %v784 = vunpack.c.h.b16 %v599
  %v785 = vunpack.c.l.b16 %v600
  %v786 = vunpack.c.h.b16 %v600
  %v787 = vunpack.c.l.b16 %v601
  %v788 = vunpack.c.h.b16 %v601
  %v789 = vunpack.c.l.b16 %v602
  %v790 = vunpack.c.h.b16 %v602
  %v791 = vunpack.c.l.b16 %v603
  %v792 = vunpack.c.h.b16 %v603
  %v793 = vunpack.c.l.b16 %v604
  %v794 = vunpack.c.h.b16 %v604
  %v795 = vunpack.c.l.b16 %v605
  %v796 = vunpack.c.h.b16 %v605
  %v797 = vunpack.c.l.b16 %v606
  %v798 = vunpack.c.h.b16 %v606
  %v799 = vunpack.c.l.b16 %v607
  %v800 = vunpack.c.h.b16 %v607
  %v801 = vunpack.c.l.b16 %v608
  %v802 = vunpack.c.h.b16 %v608
  %v803 = vunpack.c.l.b16 %v609
  %v804 = vunpack.c.h.b16 %v609
  %v805 = vunpack.c.l.b16 %v610
  %v806 = vunpack.c.h.b16 %v610
  %v807 = vunpack.c.l.b16 %v611
  %v808 = vunpack.c.h.b16 %v611
  %v809 = vunpack.c.l.b16 %v612
  %v810 = vunpack.c.h.b16 %v612
  %v811 = vunpack.c.l.b16 %v613
  %v812 = vunpack.c.h.b16 %v613
  %v813 = vunpack.c.l.b16 %v614
  %v814 = vunpack.c.h.b16 %v614
  %v815 = vunpack.c.l.b16 %v615
  %v816 = vunpack.c.h.b16 %v615
  %v817 = vunpack.c.l.b16 %v616
  %v818 = vunpack.c.h.b16 %v616
  %v819 = vunpack.c.l.b16 %v617
  %v820 = vunpack.c.h.b16 %v617
  %v821 = vunpack.c.l.b16 %v618
  %v822 = vunpack.c.h.b16 %v618
  %v823 = vunpack.c.l.b16 %v619
  %v824 = vunpack.c.h.b16 %v619
  %v825 = vunpack.c.l.b16 %v620
  %v826 = vunpack.c.h.b16 %v620
  %v827 = vunpack.c.l.b16 %v621
  %v828 = vunpack.c.h.b16 %v621
  %v829 = vunpack.c.l.b16 %v622
  %v830 = vunpack.c.h.b16 %v622
  %v831 = vunpack.c.l.b16 %v623
  %v832 = vunpack.c.h.b16 %v623
  %v833 = vunpack.c.l.b16 %v624
  %v834 = vunpack.c.h.b16 %v624
  %v835 = vunpack.c.l.b16 %v625
  %v836 = vunpack.c.h.b16 %v625
  %v837 = vunpack.c.l.b16 %v626
  %v838 = vunpack.c.h.b16 %v626
  %v839 = vunpack.c.l.b16 %v627
  %v840 = vunpack.c.h.b16 %v627
  %v841 = vunpack.c.l.b16 %v628
  %v842 = vunpack.c.h.b16 %v628
  %v843 = vunpack.c.l.b16 %v629
  %v844 = vunpack.c.h.b16 %v629
  %v845 = vunpack.c.l.b16 %v630
  %v846 = vunpack.c.h.b16 %v630
  %v847 = vunpack.c.l.b16 %v631
  %v848 = vunpack.c.h.b16 %v631
  %v849 = vunpack.c.l.b16 %v632
  %v850 = vunpack.c.h.b16 %v632
  %v851 = vunpack.c.l.b16 %v633
  %v852 = vunpack.c.h.b16 %v633
  %v853 = vunpack.c.l.b16 %v634
  %v854 = vunpack.c.h.b16 %v634
  %v855 = vunpack.c.l.b16 %v635
  %v856 = vunpack.c.h.b16 %v635
  %v857 = vunpack.c.l.b16 %v636
  %v858 = vunpack.c.h.b16 %v636
  %v859 = vunpack.c.l.b16 %v637
  %v860 = vunpack.c.h.b16 %v637
  %v861 = vunpack.c.l.b16 %v638
  %v862 = vunpack.c.h.b16 %v638
  %v863 = vunpack.c.l.b16 %v639
  %v864 = vunpack.c.h.b16 %v639
  %v865 = vunpack.c.l.b16 %v640
  %v866 = vunpack.c.h.b16 %v640
  %v867 = vunpack.c.l.b16 %v641
  %v868 = vunpack.c.h.b16 %v641
  %v869 = vunpack.c.l.b16 %v642
  %v870 = vunpack.c.h.b16 %v642
  %v871 = vunpack.c.l.b16 %v643
  %v872 = vunpack.c.h.b16 %v643
  %v873 = vunpack.c.l.b16 %v644
  %v874 = vunpack.c.h.b16 %v644
  %v875 = vunpack.c.l.b16 %v645
  %v876 = vunpack.c.h.b16 %v645
  %v877 = vunpack.c.l.b16 %v646
  %v878 = vunpack.c.h.b16 %v646
  %v879 = vunpack.c.l.b16 %v647
  %v880 = vunpack.c.h.b16 %v647
  %v881 = vunpack.c.l.b16 %v648
  %v882 = vunpack.c.h.b16 %v648
  %v883 = vunpack.c.l.b16 %v649
  %v884 = vunpack.c.h.b16 %v649
  %v885 = vunpack.c.l.b16 %v650
  %v886 = vunpack.c.h.b16 %v650
  %v887 = vunpack.c.l.b16 %v651
  %v888 = vunpack.c.h.b16 %v651
  %v889 = vpack.c.b16 %v765, %v761
  %v890 = vpack.c.b16 %v766, %v762
  %v891 = vpack.c.b16 %v767, %v763
  %v892 = vpack.c.b16 %v768, %v764
  %v893 = vpack.c.b16 %v773, %v769
  %v894 = vpack.c.b16 %v774, %v770
  %v895 = vpack.c.b16 %v775, %v771
  %v896 = vpack.c.b16 %v776, %v772
  %v897 = vpack.c.b16 %v781, %v777
  %v898 = vpack.c.b16 %v782, %v778
  %v899 = vpack.c.b16 %v783, %v779
  %v900 = vpack.c.b16 %v784, %v780
  %v901 = vpack.c.b16 %v789, %v785
  %v902 = vpack.c.b16 %v790, %v786
  %v903 = vpack.c.b16 %v791, %v787
  %v904 = vpack.c.b16 %v792, %v788
  %v905 = vpack.c.b16 %v797, %v793
  %v906 = vpack.c.b16 %v798, %v794
  %v907 = vpack.c.b16 %v799, %v795
  %v908 = vpack.c.b16 %v800, %v796
  %v909 = vpack.c.b16 %v805, %v801
  %v910 = vpack.c.b16 %v806, %v802
  %v911 = vpack.c.b16 %v807, %v803
  %v912 = vpack.c.b16 %v808, %v804
  %v913 = vpack.c.b16 %v813, %v809
  %v914 = vpack.c.b16 %v814, %v810
  %v915 = vpack.c.b16 %v815, %v811
  %v916 = vpack.c.b16 %v816, %v812
  %v917 = vpack.c.b16 %v821, %v817
  %v918 = vpack.c.b16 %v822, %v818
  %v919 = vpack.c.b16 %v823, %v819
  %v920 = vpack.c.b16 %v824, %v820
  %v921 = vpack.c.b16 %v829, %v825
  %v922 = vpack.c.b16 %v830, %v826
  %v923 = vpack.c.b16 %v831, %v827
  %v924 = vpack.c.b16 %v832, %v828
  %v925 = vpack.c.b16 %v837, %v833
  %v926 = vpack.c.b16 %v838, %v834
  %v927 = vpack.c.b16 %v839, %v835
  %v928 = vpack.c.b16 %v840, %v836
  %v929 = vpack.c.b16 %v845, %v841
  %v930 = vpack.c.b16 %v846, %v842
  %v931 = vpack.c.b16 %v847, %v843
  %v932 = vpack.c.b16 %v848, %v844
  %v933 = vpack.c.b16 %v853, %v849
  %v934 = vpack.c.b16 %v854, %v850
  %v935 = vpack.c.b16 %v855, %v851
  %v936 = vpack.c.b16 %v856, %v852
  %v937 = vpack.c.b16 %v861, %v857
  %v938 = vpack.c.b16 %v862, %v858
  %v939 = vpack.c.b16 %v863, %v859
  %v940 = vpack.c.b16 %v864, %v860
  %v941 = vpack.c.b16 %v869, %v865
  %v942 = vpack.c.b16 %v870, %v866
  %v943 = vpack.c.b16 %v871, %v867
  %v944 = vpack.c.b16 %v872, %v868
  %v945 = vpack.c.b16 %v877, %v873
  %v946 = vpack.c.b16 %v878, %v874
  %v947 = vpack.c.b16 %v879, %v875
  %v948 = vpack.c.b16 %v880, %v876
  %v949 = vpack.c.b16 %v885, %v881
  %v950 = vpack.c.b16 %v886, %v882
  %v951 = vpack.c.b16 %v887, %v883
  %v952 = vpack.c.b16 %v888, %v884
  %1017 = vmatprep.subr.bf16.mxu0 %v890
  %1018 = vmatpush1.bf16.msra.mxu0 %v889
  %1019 = vmatprep.subr.bf16.mxu0 %v894
  %1020 = vmatpush1.bf16.msra.mxu0 %v893
  %1021 = vmatprep.subr.bf16.mxu0 %v898
  %1022 = vmatpush1.bf16.msra.mxu0 %v897
  %1023 = vmatprep.subr.bf16.mxu0 %v902
  %1024 = vmatpush1.bf16.msra.mxu0 %v901
  %1025 = vmatprep.subr.bf16.mxu0 %v906
  %1026 = vmatpush1.bf16.msra.mxu0 %v905
  %1027 = vmatprep.subr.bf16.mxu0 %v910
  %1028 = vmatpush1.bf16.msra.mxu0 %v909
  %1029 = vmatprep.subr.bf16.mxu0 %v914
  %1030 = vmatpush1.bf16.msra.mxu0 %v913
  %1031 = vmatprep.subr.bf16.mxu0 %v918
  %1032 = vmatpush1.bf16.msra.mxu0 %v917
  %1033 = vmatprep.subr.bf16.mxu0 %v922
  %1034 = vmatpush1.bf16.msra.mxu0 %v921
  %1035 = vmatprep.subr.bf16.mxu0 %v926
  %1036 = vmatpush1.bf16.msra.mxu0 %v925
  %1037 = vmatprep.subr.bf16.mxu0 %v930
  %1038 = vmatpush1.bf16.msra.mxu0 %v929
  %1039 = vmatprep.subr.bf16.mxu0 %v934
  %1040 = vmatpush1.bf16.msra.mxu0 %v933
  %1041 = vmatprep.subr.bf16.mxu0 %v938
  %1042 = vmatpush1.bf16.msra.mxu0 %v937
  %1043 = vmatprep.subr.bf16.mxu0 %v942
  %1044 = vmatpush1.bf16.msra.mxu0 %v941
  %1045 = vmatprep.subr.bf16.mxu0 %v946
  %1046 = vmatpush1.bf16.msra.mxu0 %v945
  %1047 = vmatprep.subr.bf16.mxu0 %v950
  %1048 = vmatpush1.bf16.msra.mxu0 %v949
  %1049 = vmatprep.mubr.bf16.mxu0 %v676
  %1050 = vmatmul.mubr.bf16.gmra.mrb[0].mxu0 %v664
  %v1051 = vpop.f32.mrb[0].mxu0
  %v1052 = vadd.f32 0.0, %v1051
  %v1053 = vpop.f32.mrb[0].mxu0
  %v1054 = vadd.f32 0.0, %v1053
  %v1055 = vpop.f32.mrb[0].mxu0
  %v1056 = vadd.f32 0.0, %v1055
  %v1057 = vpop.f32.mrb[0].mxu0
  %v1058 = vadd.f32 0.0, %v1057
  %1059 = vmatprep.mubr.bf16.mxu0 %v692
  %1060 = vmatmul.mubr.bf16.gmra.mrb[0].mxu0 %v684
  %v1061 = vpop.f32.mrb[0].mxu0
  %v1062 = vadd.f32 0.0, %v1061
  %v1063 = vpop.f32.mrb[0].mxu0
  %v1064 = vadd.f32 0.0, %v1063
  %v1065 = vpop.f32.mrb[0].mxu0
  %v1066 = vadd.f32 0.0, %v1065
  %v1067 = vpop.f32.mrb[0].mxu0
  %v1068 = vadd.f32 0.0, %v1067
  %1069 = vdwg.mxu0
  %1070 = vmatprep.subr.bf16.mxu0 %v892
  %1071 = vmatpush1.bf16.msra.mxu0 %v891
  %1072 = vmatprep.subr.bf16.mxu0 %v896
  %1073 = vmatpush1.bf16.msra.mxu0 %v895
  %1074 = vmatprep.subr.bf16.mxu0 %v900
  %1075 = vmatpush1.bf16.msra.mxu0 %v899
  %1076 = vmatprep.subr.bf16.mxu0 %v904
  %1077 = vmatpush1.bf16.msra.mxu0 %v903
  %1078 = vmatprep.subr.bf16.mxu0 %v908
  %1079 = vmatpush1.bf16.msra.mxu0 %v907
  %1080 = vmatprep.subr.bf16.mxu0 %v912
  %1081 = vmatpush1.bf16.msra.mxu0 %v911
  %1082 = vmatprep.subr.bf16.mxu0 %v916
  %1083 = vmatpush1.bf16.msra.mxu0 %v915
  %1084 = vmatprep.subr.bf16.mxu0 %v920
  %1085 = vmatpush1.bf16.msra.mxu0 %v919
  %1086 = vmatprep.subr.bf16.mxu0 %v924
  %1087 = vmatpush1.bf16.msra.mxu0 %v923
  %1088 = vmatprep.subr.bf16.mxu0 %v928
  %1089 = vmatpush1.bf16.msra.mxu0 %v927
  %1090 = vmatprep.subr.bf16.mxu0 %v932
  %1091 = vmatpush1.bf16.msra.mxu0 %v931
  %1092 = vmatprep.subr.bf16.mxu0 %v936
  %1093 = vmatpush1.bf16.msra.mxu0 %v935
  %1094 = vmatprep.subr.bf16.mxu0 %v940
  %1095 = vmatpush1.bf16.msra.mxu0 %v939
  %1096 = vmatprep.subr.bf16.mxu0 %v944
  %1097 = vmatpush1.bf16.msra.mxu0 %v943
  %1098 = vmatprep.subr.bf16.mxu0 %v948
  %1099 = vmatpush1.bf16.msra.mxu0 %v947
  %1100 = vmatprep.subr.bf16.mxu0 %v952
  %1101 = vmatpush1.bf16.msra.mxu0 %v951
  %1102 = vmatprep.mubr.bf16.mxu0 %v676
  %1103 = vmatmul.mubr.bf16.gmra.mrb[0].mxu0 %v664
  %v1104 = vpop.f32.mrb[0].mxu0
  %v1105 = vadd.f32 0.0, %v1104
  %v1106 = vpop.f32.mrb[0].mxu0
  %v1107 = vadd.f32 0.0, %v1106
  %v1108 = vpop.f32.mrb[0].mxu0
  %v1109 = vadd.f32 0.0, %v1108
  %v1110 = vpop.f32.mrb[0].mxu0
  %v1111 = vadd.f32 0.0, %v1110
  %1112 = vmatprep.mubr.bf16.mxu0 %v692
  %1113 = vmatmul.mubr.bf16.gmra.mrb[0].mxu0 %v684
  %v1114 = vpop.f32.mrb[0].mxu0
  %v1115 = vadd.f32 0.0, %v1114
  %v1116 = vpop.f32.mrb[0].mxu0
  %v1117 = vadd.f32 0.0, %v1116
  %v1118 = vpop.f32.mrb[0].mxu0
  %v1119 = vadd.f32 0.0, %v1118
  %v1120 = vpop.f32.mrb[0].mxu0
  %v1121 = vadd.f32 0.0, %v1120
  %1122 = vdwg.mxu0
  %v1123 = vadd.f32 %v555, %v1052
  %v1124 = vadd.f32 %v556, %v1054
  %v1125 = vadd.f32 %v557, %v1105
  %v1126 = vadd.f32 %v558, %v1107
  %v1127 = vadd.f32 %v559, %v1056
  %v1128 = vadd.f32 %v560, %v1058
  %v1129 = vadd.f32 %v561, %v1109
  %v1130 = vadd.f32 %v562, %v1111
  %v1131 = vadd.f32 %v563, %v1062
  %v1132 = vadd.f32 %v564, %v1064
  %v1133 = vadd.f32 %v565, %v1115
  %v1134 = vadd.f32 %v566, %v1117
  %v1135 = vadd.f32 %v567, %v1066
  %v1136 = vadd.f32 %v568, %v1068
  %v1137 = vadd.f32 %v569, %v1119
  %v1138 = vadd.f32 %v570, %v1121
  %v1139 = vld [vmem:[%s0] sm:$0xfc]
  %v1140 = vld [vmem:[%s0 + $0x8] sm:$0xfc]
  %v1141 = vld [vmem:[%s0 + $0x40] sm:$0x3]
  %v1142 = vld [vmem:[%s0 + $0x48] sm:$0x3]
  %v1143 = vpack.c.bf16 %v573, %v1139
  %v1144 = vpack.c.bf16 %v574, %v1140
  %v1145 = vpack.c.bf16 %v1141, %v1141
  %v1146 = vpack.c.bf16 %v1142, %v1142
  %s1147 = scalar_lea.vmem %s1, 1024
  %v1148 = vld [vmem:[%s1147] sm:$0xff]
  %v1149 = vld [vmem:[%s1147 + $0x8] sm:$0xff]
  %v1150 = vld [vmem:[%s1147 + $0x10] sm:$0xff]
  %v1151 = vld [vmem:[%s1147 + $0x18] sm:$0xff]
  %v1152 = vld [vmem:[%s1147 + $0x20] sm:$0xff]
  %v1153 = vld [vmem:[%s1147 + $0x28] sm:$0xff]
  %v1154 = vld [vmem:[%s1147 + $0x30] sm:$0xff]
  %v1155 = vld [vmem:[%s1147 + $0x38] sm:$0xff]
  %v1156 = vld [vmem:[%s1147 + $0x40] sm:$0xff]
  %v1157 = vld [vmem:[%s1147 + $0x48] sm:$0xff]
  %v1158 = vld [vmem:[%s1147 + $0x50] sm:$0xff]
  %v1159 = vld [vmem:[%s1147 + $0x58] sm:$0xff]
  %v1160 = vld [vmem:[%s1147 + $0x60] sm:$0xff]
  %v1161 = vld [vmem:[%s1147 + $0x68] sm:$0xff]
  %v1162 = vld [vmem:[%s1147 + $0x70] sm:$0xff]
  %v1163 = vld [vmem:[%s1147 + $0x78] sm:$0xff]
  %v1164 = vld [vmem:[%s1147 + $0x80] sm:$0xff]
  %v1165 = vld [vmem:[%s1147 + $0x88] sm:$0xff]
  %v1166 = vld [vmem:[%s1147 + $0x90] sm:$0xff]
  %v1167 = vld [vmem:[%s1147 + $0x98] sm:$0xff]
  %v1168 = vld [vmem:[%s1147 + $0xa0] sm:$0xff]
  %v1169 = vld [vmem:[%s1147 + $0xa8] sm:$0xff]
  %v1170 = vld [vmem:[%s1147 + $0xb0] sm:$0xff]
  %v1171 = vld [vmem:[%s1147 + $0xb8] sm:$0xff]
  %v1172 = vld [vmem:[%s1147 + $0xc0] sm:$0xff]
  %v1173 = vld [vmem:[%s1147 + $0xc8] sm:$0xff]
  %v1174 = vld [vmem:[%s1147 + $0xd0] sm:$0xff]
  %v1175 = vld [vmem:[%s1147 + $0xd8] sm:$0xff]
  %v1176 = vld [vmem:[%s1147 + $0xe0] sm:$0xff]
  %v1177 = vld [vmem:[%s1147 + $0xe8] sm:$0xff]
  %v1178 = vld [vmem:[%s1147 + $0xf0] sm:$0xff]
  %v1179 = vld [vmem:[%s1147 + $0xf8] sm:$0xff]
  %v1180 = vld [vmem:[%s1147 + $0x100] sm:$0xff]
  %v1181 = vld [vmem:[%s1147 + $0x108] sm:$0xff]
  %v1182 = vld [vmem:[%s1147 + $0x110] sm:$0xff]
  %v1183 = vld [vmem:[%s1147 + $0x118] sm:$0xff]
  %v1184 = vld [vmem:[%s1147 + $0x120] sm:$0xff]
  %v1185 = vld [vmem:[%s1147 + $0x128] sm:$0xff]
  %v1186 = vld [vmem:[%s1147 + $0x130] sm:$0xff]
  %v1187 = vld [vmem:[%s1147 + $0x138] sm:$0xff]
  %v1188 = vld [vmem:[%s1147 + $0x140] sm:$0xff]
  %v1189 = vld [vmem:[%s1147 + $0x148] sm:$0xff]
  %v1190 = vld [vmem:[%s1147 + $0x150] sm:$0xff]
  %v1191 = vld [vmem:[%s1147 + $0x158] sm:$0xff]
  %v1192 = vld [vmem:[%s1147 + $0x160] sm:$0xff]
  %v1193 = vld [vmem:[%s1147 + $0x168] sm:$0xff]
  %v1194 = vld [vmem:[%s1147 + $0x170] sm:$0xff]
  %v1195 = vld [vmem:[%s1147 + $0x178] sm:$0xff]
  %v1196 = vld [vmem:[%s1147 + $0x180] sm:$0xff]
  %v1197 = vld [vmem:[%s1147 + $0x188] sm:$0xff]
  %v1198 = vld [vmem:[%s1147 + $0x190] sm:$0xff]
  %v1199 = vld [vmem:[%s1147 + $0x198] sm:$0xff]
  %v1200 = vld [vmem:[%s1147 + $0x1a0] sm:$0xff]
  %v1201 = vld [vmem:[%s1147 + $0x1a8] sm:$0xff]
  %v1202 = vld [vmem:[%s1147 + $0x1b0] sm:$0xff]
  %v1203 = vld [vmem:[%s1147 + $0x1b8] sm:$0xff]
  %v1204 = vld [vmem:[%s1147 + $0x1c0] sm:$0xff]
  %v1205 = vld [vmem:[%s1147 + $0x1c8] sm:$0xff]
  %v1206 = vld [vmem:[%s1147 + $0x1d0] sm:$0xff]
  %v1207 = vld [vmem:[%s1147 + $0x1d8] sm:$0xff]
  %v1208 = vld [vmem:[%s1147 + $0x1e0] sm:$0xff]
  %v1209 = vld [vmem:[%s1147 + $0x1e8] sm:$0xff]
  %v1210 = vld [vmem:[%s1147 + $0x1f0] sm:$0xff]
  %v1211 = vld [vmem:[%s1147 + $0x1f8] sm:$0xff]
  %vm1218 = vcmask 1046528
  %v1219 = vrot.slane %v1143, 1
  %v1220 = vrot.slane %v583, 1
  %v1221 = vsel %vm1218, %v1219, %v1220
  %v1222 = vrot.slane %v1144, 1
  %v1223 = vrot.slane %v584, 1
  %v1224 = vsel %vm1218, %v1222, %v1223
  %v1225 = vrot.slane %v1145, 1
  %v1226 = vsel %vm1218, %v1220, %v1225
  %v1227 = vrot.slane %v1146, 1
  %v1228 = vsel %vm1218, %v1223, %v1227
  %v1297 = vunpack.c.l.b16 %v1148
  %v1298 = vunpack.c.h.b16 %v1148
  %v1299 = vunpack.c.l.b16 %v1149
  %v1300 = vunpack.c.h.b16 %v1149
  %v1301 = vunpack.c.l.b16 %v1150
  %v1302 = vunpack.c.h.b16 %v1150
  %v1303 = vunpack.c.l.b16 %v1151
  %v1304 = vunpack.c.h.b16 %v1151
  %v1305 = vunpack.c.l.b16 %v1152
  %v1306 = vunpack.c.h.b16 %v1152
  %v1307 = vunpack.c.l.b16 %v1153
  %v1308 = vunpack.c.h.b16 %v1153
  %v1309 = vunpack.c.l.b16 %v1154
  %v1310 = vunpack.c.h.b16 %v1154
  %v1311 = vunpack.c.l.b16 %v1155
  %v1312 = vunpack.c.h.b16 %v1155
  %v1313 = vunpack.c.l.b16 %v1156
  %v1314 = vunpack.c.h.b16 %v1156
  %v1315 = vunpack.c.l.b16 %v1157
  %v1316 = vunpack.c.h.b16 %v1157
  %v1317 = vunpack.c.l.b16 %v1158
  %v1318 = vunpack.c.h.b16 %v1158
  %v1319 = vunpack.c.l.b16 %v1159
  %v1320 = vunpack.c.h.b16 %v1159
  %v1321 = vunpack.c.l.b16 %v1160
  %v1322 = vunpack.c.h.b16 %v1160
  %v1323 = vunpack.c.l.b16 %v1161
  %v1324 = vunpack.c.h.b16 %v1161
  %v1325 = vunpack.c.l.b16 %v1162
  %v1326 = vunpack.c.h.b16 %v1162
  %v1327 = vunpack.c.l.b16 %v1163
  %v1328 = vunpack.c.h.b16 %v1163
  %v1329 = vunpack.c.l.b16 %v1164
  %v1330 = vunpack.c.h.b16 %v1164
  %v1331 = vunpack.c.l.b16 %v1165
  %v1332 = vunpack.c.h.b16 %v1165
  %v1333 = vunpack.c.l.b16 %v1166
  %v1334 = vunpack.c.h.b16 %v1166
  %v1335 = vunpack.c.l.b16 %v1167
  %v1336 = vunpack.c.h.b16 %v1167
  %v1337 = vunpack.c.l.b16 %v1168
  %v1338 = vunpack.c.h.b16 %v1168
  %v1339 = vunpack.c.l.b16 %v1169
  %v1340 = vunpack.c.h.b16 %v1169
  %v1341 = vunpack.c.l.b16 %v1170
  %v1342 = vunpack.c.h.b16 %v1170
  %v1343 = vunpack.c.l.b16 %v1171
  %v1344 = vunpack.c.h.b16 %v1171
  %v1345 = vunpack.c.l.b16 %v1172
  %v1346 = vunpack.c.h.b16 %v1172
  %v1347 = vunpack.c.l.b16 %v1173
  %v1348 = vunpack.c.h.b16 %v1173
  %v1349 = vunpack.c.l.b16 %v1174
  %v1350 = vunpack.c.h.b16 %v1174
  %v1351 = vunpack.c.l.b16 %v1175
  %v1352 = vunpack.c.h.b16 %v1175
  %v1353 = vunpack.c.l.b16 %v1176
  %v1354 = vunpack.c.h.b16 %v1176
  %v1355 = vunpack.c.l.b16 %v1177
  %v1356 = vunpack.c.h.b16 %v1177
  %v1357 = vunpack.c.l.b16 %v1178
  %v1358 = vunpack.c.h.b16 %v1178
  %v1359 = vunpack.c.l.b16 %v1179
  %v1360 = vunpack.c.h.b16 %v1179
  %v1361 = vunpack.c.l.b16 %v1180
  %v1362 = vunpack.c.h.b16 %v1180
  %v1363 = vunpack.c.l.b16 %v1181
  %v1364 = vunpack.c.h.b16 %v1181
  %v1365 = vunpack.c.l.b16 %v1182
  %v1366 = vunpack.c.h.b16 %v1182
  %v1367 = vunpack.c.l.b16 %v1183
  %v1368 = vunpack.c.h.b16 %v1183
  %v1369 = vunpack.c.l.b16 %v1184
  %v1370 = vunpack.c.h.b16 %v1184
  %v1371 = vunpack.c.l.b16 %v1185
  %v1372 = vunpack.c.h.b16 %v1185
  %v1373 = vunpack.c.l.b16 %v1186
  %v1374 = vunpack.c.h.b16 %v1186
  %v1375 = vunpack.c.l.b16 %v1187
  %v1376 = vunpack.c.h.b16 %v1187
  %v1377 = vunpack.c.l.b16 %v1188
  %v1378 = vunpack.c.h.b16 %v1188
  %v1379 = vunpack.c.l.b16 %v1189
  %v1380 = vunpack.c.h.b16 %v1189
  %v1381 = vunpack.c.l.b16 %v1190
  %v1382 = vunpack.c.h.b16 %v1190
  %v1383 = vunpack.c.l.b16 %v1191
  %v1384 = vunpack.c.h.b16 %v1191
  %v1385 = vunpack.c.l.b16 %v1192
  %v1386 = vunpack.c.h.b16 %v1192
  %v1387 = vunpack.c.l.b16 %v1193
  %v1388 = vunpack.c.h.b16 %v1193
  %v1389 = vunpack.c.l.b16 %v1194
  %v1390 = vunpack.c.h.b16 %v1194
  %v1391 = vunpack.c.l.b16 %v1195
  %v1392 = vunpack.c.h.b16 %v1195
  %v1393 = vunpack.c.l.b16 %v1196
  %v1394 = vunpack.c.h.b16 %v1196
  %v1395 = vunpack.c.l.b16 %v1197
  %v1396 = vunpack.c.h.b16 %v1197
  %v1397 = vunpack.c.l.b16 %v1198
  %v1398 = vunpack.c.h.b16 %v1198
  %v1399 = vunpack.c.l.b16 %v1199
  %v1400 = vunpack.c.h.b16 %v1199
  %v1401 = vunpack.c.l.b16 %v1200
  %v1402 = vunpack.c.h.b16 %v1200
  %v1403 = vunpack.c.l.b16 %v1201
  %v1404 = vunpack.c.h.b16 %v1201
  %v1405 = vunpack.c.l.b16 %v1202
  %v1406 = vunpack.c.h.b16 %v1202
  %v1407 = vunpack.c.l.b16 %v1203
  %v1408 = vunpack.c.h.b16 %v1203
  %v1409 = vunpack.c.l.b16 %v1204
  %v1410 = vunpack.c.h.b16 %v1204
  %v1411 = vunpack.c.l.b16 %v1205
  %v1412 = vunpack.c.h.b16 %v1205
  %v1413 = vunpack.c.l.b16 %v1206
  %v1414 = vunpack.c.h.b16 %v1206
  %v1415 = vunpack.c.l.b16 %v1207
  %v1416 = vunpack.c.h.b16 %v1207
  %v1417 = vunpack.c.l.b16 %v1208
  %v1418 = vunpack.c.h.b16 %v1208
  %v1419 = vunpack.c.l.b16 %v1209
  %v1420 = vunpack.c.h.b16 %v1209
  %v1421 = vunpack.c.l.b16 %v1210
  %v1422 = vunpack.c.h.b16 %v1210
  %v1423 = vunpack.c.l.b16 %v1211
  %v1424 = vunpack.c.h.b16 %v1211
  %v1425 = vpack.c.b16 %v1301, %v1297
  %v1426 = vpack.c.b16 %v1302, %v1298
  %v1427 = vpack.c.b16 %v1303, %v1299
  %v1428 = vpack.c.b16 %v1304, %v1300
  %v1429 = vpack.c.b16 %v1309, %v1305
  %v1430 = vpack.c.b16 %v1310, %v1306
  %v1431 = vpack.c.b16 %v1311, %v1307
  %v1432 = vpack.c.b16 %v1312, %v1308
  %v1433 = vpack.c.b16 %v1317, %v1313
  %v1434 = vpack.c.b16 %v1318, %v1314
  %v1435 = vpack.c.b16 %v1319, %v1315
  %v1436 = vpack.c.b16 %v1320, %v1316
  %v1437 = vpack.c.b16 %v1325, %v1321
  %v1438 = vpack.c.b16 %v1326, %v1322
  %v1439 = vpack.c.b16 %v1327, %v1323
  %v1440 = vpack.c.b16 %v1328, %v1324
  %v1441 = vpack.c.b16 %v1333, %v1329
  %v1442 = vpack.c.b16 %v1334, %v1330
  %v1443 = vpack.c.b16 %v1335, %v1331
  %v1444 = vpack.c.b16 %v1336, %v1332
  %v1445 = vpack.c.b16 %v1341, %v1337
  %v1446 = vpack.c.b16 %v1342, %v1338
  %v1447 = vpack.c.b16 %v1343, %v1339
  %v1448 = vpack.c.b16 %v1344, %v1340
  %v1449 = vpack.c.b16 %v1349, %v1345
  %v1450 = vpack.c.b16 %v1350, %v1346
  %v1451 = vpack.c.b16 %v1351, %v1347
  %v1452 = vpack.c.b16 %v1352, %v1348
  %v1453 = vpack.c.b16 %v1357, %v1353
  %v1454 = vpack.c.b16 %v1358, %v1354
  %v1455 = vpack.c.b16 %v1359, %v1355
  %v1456 = vpack.c.b16 %v1360, %v1356
  %v1457 = vpack.c.b16 %v1365, %v1361
  %v1458 = vpack.c.b16 %v1366, %v1362
  %v1459 = vpack.c.b16 %v1367, %v1363
  %v1460 = vpack.c.b16 %v1368, %v1364
  %v1461 = vpack.c.b16 %v1373, %v1369
  %v1462 = vpack.c.b16 %v1374, %v1370
  %v1463 = vpack.c.b16 %v1375, %v1371
  %v1464 = vpack.c.b16 %v1376, %v1372
  %v1465 = vpack.c.b16 %v1381, %v1377
  %v1466 = vpack.c.b16 %v1382, %v1378
  %v1467 = vpack.c.b16 %v1383, %v1379
  %v1468 = vpack.c.b16 %v1384, %v1380
  %v1469 = vpack.c.b16 %v1389, %v1385
  %v1470 = vpack.c.b16 %v1390, %v1386
  %v1471 = vpack.c.b16 %v1391, %v1387
  %v1472 = vpack.c.b16 %v1392, %v1388
  %v1473 = vpack.c.b16 %v1397, %v1393
  %v1474 = vpack.c.b16 %v1398, %v1394
  %v1475 = vpack.c.b16 %v1399, %v1395
  %v1476 = vpack.c.b16 %v1400, %v1396
  %v1477 = vpack.c.b16 %v1405, %v1401
  %v1478 = vpack.c.b16 %v1406, %v1402
  %v1479 = vpack.c.b16 %v1407, %v1403
  %v1480 = vpack.c.b16 %v1408, %v1404
  %v1481 = vpack.c.b16 %v1413, %v1409
  %v1482 = vpack.c.b16 %v1414, %v1410
  %v1483 = vpack.c.b16 %v1415, %v1411
  %v1484 = vpack.c.b16 %v1416, %v1412
  %v1485 = vpack.c.b16 %v1421, %v1417
  %v1486 = vpack.c.b16 %v1422, %v1418
  %v1487 = vpack.c.b16 %v1423, %v1419
  %v1488 = vpack.c.b16 %v1424, %v1420
  %1553 = vmatprep.subr.bf16.mxu0 %v1426
  %1554 = vmatpush1.bf16.msra.mxu0 %v1425
  %1555 = vmatprep.subr.bf16.mxu0 %v1430
  %1556 = vmatpush1.bf16.msra.mxu0 %v1429
  %1557 = vmatprep.subr.bf16.mxu0 %v1434
  %1558 = vmatpush1.bf16.msra.mxu0 %v1433
  %1559 = vmatprep.subr.bf16.mxu0 %v1438
  %1560 = vmatpush1.bf16.msra.mxu0 %v1437
  %1561 = vmatprep.subr.bf16.mxu0 %v1442
  %1562 = vmatpush1.bf16.msra.mxu0 %v1441
  %1563 = vmatprep.subr.bf16.mxu0 %v1446
  %1564 = vmatpush1.bf16.msra.mxu0 %v1445
  %1565 = vmatprep.subr.bf16.mxu0 %v1450
  %1566 = vmatpush1.bf16.msra.mxu0 %v1449
  %1567 = vmatprep.subr.bf16.mxu0 %v1454
  %1568 = vmatpush1.bf16.msra.mxu0 %v1453
  %1569 = vmatprep.subr.bf16.mxu0 %v1458
  %1570 = vmatpush1.bf16.msra.mxu0 %v1457
  %1571 = vmatprep.subr.bf16.mxu0 %v1462
  %1572 = vmatpush1.bf16.msra.mxu0 %v1461
  %1573 = vmatprep.subr.bf16.mxu0 %v1466
  %1574 = vmatpush1.bf16.msra.mxu0 %v1465
  %1575 = vmatprep.subr.bf16.mxu0 %v1470
  %1576 = vmatpush1.bf16.msra.mxu0 %v1469
  %1577 = vmatprep.subr.bf16.mxu0 %v1474
  %1578 = vmatpush1.bf16.msra.mxu0 %v1473
  %1579 = vmatprep.subr.bf16.mxu0 %v1478
  %1580 = vmatpush1.bf16.msra.mxu0 %v1477
  %1581 = vmatprep.subr.bf16.mxu0 %v1482
  %1582 = vmatpush1.bf16.msra.mxu0 %v1481
  %1583 = vmatprep.subr.bf16.mxu0 %v1486
  %1584 = vmatpush1.bf16.msra.mxu0 %v1485
  %1585 = vmatprep.mubr.bf16.mxu0 %v1224
  %1586 = vmatmul.mubr.bf16.gmra.mrb[0].mxu0 %v1221
  %v1587 = vpop.f32.mrb[0].mxu0
  %v1588 = vadd.f32 0.0, %v1587
  %v1589 = vpop.f32.mrb[0].mxu0
  %v1590 = vadd.f32 0.0, %v1589
  %v1591 = vpop.f32.mrb[0].mxu0
  %v1592 = vadd.f32 0.0, %v1591
  %v1593 = vpop.f32.mrb[0].mxu0
  %v1594 = vadd.f32 0.0, %v1593
  %1595 = vmatprep.mubr.bf16.mxu0 %v1228
  %1596 = vmatmul.mubr.bf16.gmra.mrb[0].mxu0 %v1226
  %v1597 = vpop.f32.mrb[0].mxu0
  %v1598 = vadd.f32 0.0, %v1597
  %v1599 = vpop.f32.mrb[0].mxu0
  %v1600 = vadd.f32 0.0, %v1599
  %v1601 = vpop.f32.mrb[0].mxu0
  %v1602 = vadd.f32 0.0, %v1601
  %v1603 = vpop.f32.mrb[0].mxu0
  %v1604 = vadd.f32 0.0, %v1603
  %1605 = vdwg.mxu0
  %1606 = vmatprep.subr.bf16.mxu0 %v1428
  %1607 = vmatpush1.bf16.msra.mxu0 %v1427
  %1608 = vmatprep.subr.bf16.mxu0 %v1432
  %1609 = vmatpush1.bf16.msra.mxu0 %v1431
  %1610 = vmatprep.subr.bf16.mxu0 %v1436
  %1611 = vmatpush1.bf16.msra.mxu0 %v1435
  %1612 = vmatprep.subr.bf16.mxu0 %v1440
  %1613 = vmatpush1.bf16.msra.mxu0 %v1439
  %1614 = vmatprep.subr.bf16.mxu0 %v1444
  %1615 = vmatpush1.bf16.msra.mxu0 %v1443
  %1616 = vmatprep.subr.bf16.mxu0 %v1448
  %1617 = vmatpush1.bf16.msra.mxu0 %v1447
  %1618 = vmatprep.subr.bf16.mxu0 %v1452
  %1619 = vmatpush1.bf16.msra.mxu0 %v1451
  %1620 = vmatprep.subr.bf16.mxu0 %v1456
  %1621 = vmatpush1.bf16.msra.mxu0 %v1455
  %1622 = vmatprep.subr.bf16.mxu0 %v1460
  %1623 = vmatpush1.bf16.msra.mxu0 %v1459
  %1624 = vmatprep.subr.bf16.mxu0 %v1464
  %1625 = vmatpush1.bf16.msra.mxu0 %v1463
  %1626 = vmatprep.subr.bf16.mxu0 %v1468
  %1627 = vmatpush1.bf16.msra.mxu0 %v1467
  %1628 = vmatprep.subr.bf16.mxu0 %v1472
  %1629 = vmatpush1.bf16.msra.mxu0 %v1471
  %1630 = vmatprep.subr.bf16.mxu0 %v1476
  %1631 = vmatpush1.bf16.msra.mxu0 %v1475
  %1632 = vmatprep.subr.bf16.mxu0 %v1480
  %1633 = vmatpush1.bf16.msra.mxu0 %v1479
  %1634 = vmatprep.subr.bf16.mxu0 %v1484
  %1635 = vmatpush1.bf16.msra.mxu0 %v1483
  %1636 = vmatprep.subr.bf16.mxu0 %v1488
  %1637 = vmatpush1.bf16.msra.mxu0 %v1487
  %1638 = vmatprep.mubr.bf16.mxu0 %v1224
  %1639 = vmatmul.mubr.bf16.gmra.mrb[0].mxu0 %v1221
  %v1640 = vpop.f32.mrb[0].mxu0
  %v1641 = vadd.f32 0.0, %v1640
  %v1642 = vpop.f32.mrb[0].mxu0
  %v1643 = vadd.f32 0.0, %v1642
  %v1644 = vpop.f32.mrb[0].mxu0
  %v1645 = vadd.f32 0.0, %v1644
  %v1646 = vpop.f32.mrb[0].mxu0
  %v1647 = vadd.f32 0.0, %v1646
  %1648 = vmatprep.mubr.bf16.mxu0 %v1228
  %1649 = vmatmul.mubr.bf16.gmra.mrb[0].mxu0 %v1226
  %v1650 = vpop.f32.mrb[0].mxu0
  %v1651 = vadd.f32 0.0, %v1650
  %v1652 = vpop.f32.mrb[0].mxu0
  %v1653 = vadd.f32 0.0, %v1652
  %v1654 = vpop.f32.mrb[0].mxu0
  %v1655 = vadd.f32 0.0, %v1654
  %v1656 = vpop.f32.mrb[0].mxu0
  %v1657 = vadd.f32 0.0, %v1656
  %1658 = vdwg.mxu0
  %vm1659 = vcmp.ne.s32.totalorder %v25, 15
  %vm1660 = vcmp.ne.s32.totalorder %v26, 15
  %vm1661 = vcmp.ne.s32.totalorder %v27, 15
  %vm1662 = vcmp.ne.s32.totalorder %v28, 15
  %v1663 = vsel %vm1659, 1.0, 0.0
  %v1664 = vsel %vm1660, 1.0, 0.0
  %v1665 = vsel %vm1661, 1.0, 0.0
  %v1666 = vsel %vm1662, 1.0, 0.0
  %v1667 = vmul.f32 %v1588, %v1663
  %v1668 = vmul.f32 %v1590, %v1663
  %v1669 = vmul.f32 %v1641, %v1663
  %v1670 = vmul.f32 %v1643, %v1663
  %v1671 = vmul.f32 %v1592, %v1664
  %v1672 = vmul.f32 %v1594, %v1664
  %v1673 = vmul.f32 %v1645, %v1664
  %v1674 = vmul.f32 %v1647, %v1664
  %v1675 = vmul.f32 %v1598, %v1665
  %v1676 = vmul.f32 %v1600, %v1665
  %v1677 = vmul.f32 %v1651, %v1665
  %v1678 = vmul.f32 %v1653, %v1665
  %v1679 = vmul.f32 %v1602, %v1666
  %v1680 = vmul.f32 %v1604, %v1666
  %v1681 = vmul.f32 %v1655, %v1666
  %v1682 = vmul.f32 %v1657, %v1666
  %v1683 = vadd.f32 %v1123, %v1667
  %v1684 = vadd.f32 %v1124, %v1668
  %v1685 = vadd.f32 %v1125, %v1669
  %v1686 = vadd.f32 %v1126, %v1670
  %v1687 = vadd.f32 %v1127, %v1671
  %v1688 = vadd.f32 %v1128, %v1672
  %v1689 = vadd.f32 %v1129, %v1673
  %v1690 = vadd.f32 %v1130, %v1674
  %v1691 = vadd.f32 %v1131, %v1675
  %v1692 = vadd.f32 %v1132, %v1676
  %v1693 = vadd.f32 %v1133, %v1677
  %v1694 = vadd.f32 %v1134, %v1678
  %v1695 = vadd.f32 %v1135, %v1679
  %v1696 = vadd.f32 %v1136, %v1680
  %v1697 = vadd.f32 %v1137, %v1681
  %v1698 = vadd.f32 %v1138, %v1682
  %v1699 = vld [vmem:[%s2] sm:$0xf]
  %v1701 = vlaneseq
  %v1702 = vshrl.u32 %v1701, 7
  %v1703 = vsub.s32 0, %v1702
  %v1704 = vrot.slane %v1699, %v1703
  %v1705 = vlaneseq
  %v1706 = vshrl.u32 %v1705, 7
  %v1707 = vsub.s32 1, %v1706
  %v1708 = vrot.slane %v1699, %v1707
  %v1709 = vlaneseq
  %v1710 = vshrl.u32 %v1709, 7
  %v1711 = vsub.s32 2, %v1710
  %v1712 = vrot.slane %v1699, %v1711
  %v1713 = vlaneseq
  %v1714 = vshrl.u32 %v1713, 7
  %v1715 = vsub.s32 3, %v1714
  %v1716 = vrot.slane %v1699, %v1715
  %v1721 = vadd.f32 %v1683, %v1704
  %v1722 = vadd.f32 %v1684, %v1708
  %v1723 = vadd.f32 %v1685, %v1712
  %v1724 = vadd.f32 %v1686, %v1716
  %v1725 = vadd.f32 %v1687, %v1704
  %v1726 = vadd.f32 %v1688, %v1708
  %v1727 = vadd.f32 %v1689, %v1712
  %v1728 = vadd.f32 %v1690, %v1716
  %v1729 = vadd.f32 %v1691, %v1704
  %v1730 = vadd.f32 %v1692, %v1708
  %v1731 = vadd.f32 %v1693, %v1712
  %v1732 = vadd.f32 %v1694, %v1716
  %v1733 = vadd.f32 %v1695, %v1704
  %v1734 = vadd.f32 %v1696, %v1708
  %v1735 = vadd.f32 %v1697, %v1712
  %v1736 = vadd.f32 %v1698, %v1716
  %v1737 = vmax.f32 %v1721, 0.0
  %v1738 = vmax.f32 %v1722, 0.0
  %v1739 = vmax.f32 %v1723, 0.0
  %v1740 = vmax.f32 %v1724, 0.0
  %v1741 = vmax.f32 %v1725, 0.0
  %v1742 = vmax.f32 %v1726, 0.0
  %v1743 = vmax.f32 %v1727, 0.0
  %v1744 = vmax.f32 %v1728, 0.0
  %v1745 = vmax.f32 %v1729, 0.0
  %v1746 = vmax.f32 %v1730, 0.0
  %v1747 = vmax.f32 %v1731, 0.0
  %v1748 = vmax.f32 %v1732, 0.0
  %v1749 = vmax.f32 %v1733, 0.0
  %v1750 = vmax.f32 %v1734, 0.0
  %v1751 = vmax.f32 %v1735, 0.0
  %v1752 = vmax.f32 %v1736, 0.0
  %v1753 = vlaneseq
  %v1754 = vand.u32 %v1753, 127
  %v1755 = vmul.u32 %v21, 2
  %v1756 = vmul.u32 %v22, 2
  %vm1757 = vcmp.eq.s32.totalorder %v1754, %v1755
  %vm1758 = vcmp.eq.s32.totalorder %v1754, %v1756
  %v1759 = vsel %vm1757, 1.0, 0.0
  %v1760 = vsel %vm1758, 1.0, 0.0
  %v1761 = vadd.s32 %v1755, 1
  %v1762 = vadd.s32 %v1756, 1
  %vm1763 = vcmp.eq.s32.totalorder %v1754, %v1761
  %vm1764 = vcmp.eq.s32.totalorder %v1754, %v1762
  %v1765 = vsel %vm1763, 1.0, 0.0
  %v1766 = vsel %vm1764, 1.0, 0.0
  %vm1767 = vcmask 261120
  %v1769 = vsel %vm1767, %v1759, 0
  %v1772 = vsel %vm1767, %v1760, 0
  %1774 = vmatprep.subr.mxu0 %v1738
  %1775 = vmatpush1.msra.mxu0 %v1737
  %1776 = vmatprep.subr.mxu0 %v1742
  %1777 = vmatpush1.msra.mxu0 %v1741
  %1778 = vmatprep.subr.mxu0 %v1746
  %1779 = vmatpush1.msra.mxu0 %v1745
  %1780 = vmatprep.subr.mxu0 %v1750
  %1781 = vmatpush1.msra.mxu0 %v1749
  %1782 = vmatprep.subr.mxu0 0.0
  %1783 = vmatpush1.msra.mxu0 0.0
  %1784 = vmatprep.subr.mxu0 0.0
  %1785 = vmatpush1.msra.mxu0 0.0
  %1786 = vmatprep.subr.mxu0 0.0
  %1787 = vmatpush1.msra.mxu0 0.0
  %1788 = vmatprep.subr.mxu0 0.0
  %1789 = vmatpush1.msra.mxu0 0.0
  %1790 = vmatprep.subr.mxu0 0.0
  %1791 = vmatpush1.msra.mxu0 0.0
  %1792 = vmatprep.subr.mxu0 0.0
  %1793 = vmatpush1.msra.mxu0 0.0
  %1794 = vmatprep.subr.mxu0 0.0
  %1795 = vmatpush1.msra.mxu0 0.0
  %1796 = vmatprep.subr.mxu0 0.0
  %1797 = vmatpush1.msra.mxu0 0.0
  %1798 = vmatprep.subr.mxu0 0.0
  %1799 = vmatpush1.msra.mxu0 0.0
  %1800 = vmatprep.subr.mxu0 0.0
  %1801 = vmatpush1.msra.mxu0 0.0
  %1802 = vmatprep.subr.mxu0 0.0
  %1803 = vmatpush1.msra.mxu0 0.0
  %1804 = vmatprep.subr.mxu0 0.0
  %1805 = vmatpush1.msra.mxu0 0.0
  %1806 = vmatprep.subr.mxu0 0.0
  %1807 = vmatpush1.msra.mxu0 0.0
  %1808 = vmatprep.subr.mxu0 0.0
  %1809 = vmatpush1.msra.mxu0 0.0
  %1810 = vmatprep.subr.mxu0 0.0
  %1811 = vmatpush1.msra.mxu0 0.0
  %1812 = vmatprep.subr.mxu0 0.0
  %1813 = vmatpush1.msra.mxu0 0.0
  %1814 = vmatprep.subr.mxu0 0.0
  %1815 = vmatpush1.msra.mxu0 0.0
  %1816 = vmatprep.subr.mxu0 0.0
  %1817 = vmatpush1.msra.mxu0 0.0
  %1818 = vmatprep.subr.mxu0 0.0
  %1819 = vmatpush1.msra.mxu0 0.0
  %1820 = vmatprep.subr.mxu0 0.0
  %1821 = vmatpush1.msra.mxu0 0.0
  %1822 = vmatprep.subr.mxu0 0.0
  %1823 = vmatpush1.msra.mxu0 0.0
  %1824 = vmatprep.subr.mxu0 0.0
  %1825 = vmatpush1.msra.mxu0 0.0
  %1826 = vmatprep.subr.mxu0 0.0
  %1827 = vmatpush1.msra.mxu0 0.0
  %1828 = vmatprep.subr.mxu0 0.0
  %1829 = vmatpush1.msra.mxu0 0.0
  %1830 = vmatprep.subr.mxu0 0.0
  %1831 = vmatpush1.msra.mxu0 0.0
  %1832 = vmatprep.subr.mxu0 0.0
  %1833 = vmatpush1.msra.mxu0 0.0
  %1834 = vmatprep.subr.mxu0 0.0
  %1835 = vmatpush1.msra.mxu0 0.0
  %1836 = vmatprep.subr.mxu0 0.0
  %1837 = vmatpush1.msra.mxu0 0.0
  %1838 = vmatprep.mubr.f32.mxu0 0.0
  %1839 = vmatmul.mubr.f32.gmra.mrb[0].mxu0 %v1769
  %v1840 = vpop.f32.mrb[0].mxu0
  %v1841 = vadd.f32 0.0, %v1840
  %v1842 = vpop.f32.mrb[0].mxu0
  %v1843 = vadd.f32 0.0, %v1842
  %1844 = vmatprep.mubr.f32.mxu0 0.0
  %1845 = vmatmul.mubr.f32.gmra.mrb[0].mxu0 %v1772
  %v1846 = vpop.f32.mrb[0].mxu0
  %v1847 = vadd.f32 0.0, %v1846
  %v1848 = vpop.f32.mrb[0].mxu0
  %v1849 = vadd.f32 0.0, %v1848
  %1850 = vdwg.mxu0
  %1851 = vmatprep.subr.mxu0 %v1740
  %1852 = vmatpush1.msra.mxu0 %v1739
  %1853 = vmatprep.subr.mxu0 %v1744
  %1854 = vmatpush1.msra.mxu0 %v1743
  %1855 = vmatprep.subr.mxu0 %v1748
  %1856 = vmatpush1.msra.mxu0 %v1747
  %1857 = vmatprep.subr.mxu0 %v1752
  %1858 = vmatpush1.msra.mxu0 %v1751
  %1859 = vmatprep.subr.mxu0 0.0
  %1860 = vmatpush1.msra.mxu0 0.0
  %1861 = vmatprep.subr.mxu0 0.0
  %1862 = vmatpush1.msra.mxu0 0.0
  %1863 = vmatprep.subr.mxu0 0.0
  %1864 = vmatpush1.msra.mxu0 0.0
  %1865 = vmatprep.subr.mxu0 0.0
  %1866 = vmatpush1.msra.mxu0 0.0
  %1867 = vmatprep.subr.mxu0 0.0
  %1868 = vmatpush1.msra.mxu0 0.0
  %1869 = vmatprep.subr.mxu0 0.0
  %1870 = vmatpush1.msra.mxu0 0.0
  %1871 = vmatprep.subr.mxu0 0.0
  %1872 = vmatpush1.msra.mxu0 0.0
  %1873 = vmatprep.subr.mxu0 0.0
  %1874 = vmatpush1.msra.mxu0 0.0
  %1875 = vmatprep.subr.mxu0 0.0
  %1876 = vmatpush1.msra.mxu0 0.0
  %1877 = vmatprep.subr.mxu0 0.0
  %1878 = vmatpush1.msra.mxu0 0.0
  %1879 = vmatprep.subr.mxu0 0.0
  %1880 = vmatpush1.msra.mxu0 0.0
  %1881 = vmatprep.subr.mxu0 0.0
  %1882 = vmatpush1.msra.mxu0 0.0
  %1883 = vmatprep.subr.mxu0 0.0
  %1884 = vmatpush1.msra.mxu0 0.0
  %1885 = vmatprep.subr.mxu0 0.0
  %1886 = vmatpush1.msra.mxu0 0.0
  %1887 = vmatprep.subr.mxu0 0.0
  %1888 = vmatpush1.msra.mxu0 0.0
  %1889 = vmatprep.subr.mxu0 0.0
  %1890 = vmatpush1.msra.mxu0 0.0
  %1891 = vmatprep.subr.mxu0 0.0
  %1892 = vmatpush1.msra.mxu0 0.0
  %1893 = vmatprep.subr.mxu0 0.0
  %1894 = vmatpush1.msra.mxu0 0.0
  %1895 = vmatprep.subr.mxu0 0.0
  %1896 = vmatpush1.msra.mxu0 0.0
  %1897 = vmatprep.subr.mxu0 0.0
  %1898 = vmatpush1.msra.mxu0 0.0
  %1899 = vmatprep.subr.mxu0 0.0
  %1900 = vmatpush1.msra.mxu0 0.0
  %1901 = vmatprep.subr.mxu0 0.0
  %1902 = vmatpush1.msra.mxu0 0.0
  %1903 = vmatprep.subr.mxu0 0.0
  %1904 = vmatpush1.msra.mxu0 0.0
  %1905 = vmatprep.subr.mxu0 0.0
  %1906 = vmatpush1.msra.mxu0 0.0
  %1907 = vmatprep.subr.mxu0 0.0
  %1908 = vmatpush1.msra.mxu0 0.0
  %1909 = vmatprep.subr.mxu0 0.0
  %1910 = vmatpush1.msra.mxu0 0.0
  %1911 = vmatprep.subr.mxu0 0.0
  %1912 = vmatpush1.msra.mxu0 0.0
  %1913 = vmatprep.subr.mxu0 0.0
  %1914 = vmatpush1.msra.mxu0 0.0
  %1915 = vmatprep.mubr.f32.mxu0 0.0
  %1916 = vmatmul.mubr.f32.gmra.mrb[0].mxu0 %v1769
  %v1917 = vpop.f32.mrb[0].mxu0
  %v1918 = vadd.f32 0.0, %v1917
  %v1919 = vpop.f32.mrb[0].mxu0
  %v1920 = vadd.f32 0.0, %v1919
  %1921 = vmatprep.mubr.f32.mxu0 0.0
  %1922 = vmatmul.mubr.f32.gmra.mrb[0].mxu0 %v1772
  %v1923 = vpop.f32.mrb[0].mxu0
  %v1924 = vadd.f32 0.0, %v1923
  %v1925 = vpop.f32.mrb[0].mxu0
  %v1926 = vadd.f32 0.0, %v1925
  %1927 = vdwg.mxu0
  %v1929 = vsel %vm1767, %v1765, 0
  %v1932 = vsel %vm1767, %v1766, 0
  %1934 = vmatprep.subr.mxu0 %v1738
  %1935 = vmatpush1.msra.mxu0 %v1737
  %1936 = vmatprep.subr.mxu0 %v1742
  %1937 = vmatpush1.msra.mxu0 %v1741
  %1938 = vmatprep.subr.mxu0 %v1746
  %1939 = vmatpush1.msra.mxu0 %v1745
  %1940 = vmatprep.subr.mxu0 %v1750
  %1941 = vmatpush1.msra.mxu0 %v1749
  %1942 = vmatprep.subr.mxu0 0.0
  %1943 = vmatpush1.msra.mxu0 0.0
  %1944 = vmatprep.subr.mxu0 0.0
  %1945 = vmatpush1.msra.mxu0 0.0
  %1946 = vmatprep.subr.mxu0 0.0
  %1947 = vmatpush1.msra.mxu0 0.0
  %1948 = vmatprep.subr.mxu0 0.0
  %1949 = vmatpush1.msra.mxu0 0.0
  %1950 = vmatprep.subr.mxu0 0.0
  %1951 = vmatpush1.msra.mxu0 0.0
  %1952 = vmatprep.subr.mxu0 0.0
  %1953 = vmatpush1.msra.mxu0 0.0
  %1954 = vmatprep.subr.mxu0 0.0
  %1955 = vmatpush1.msra.mxu0 0.0
  %1956 = vmatprep.subr.mxu0 0.0
  %1957 = vmatpush1.msra.mxu0 0.0
  %1958 = vmatprep.subr.mxu0 0.0
  %1959 = vmatpush1.msra.mxu0 0.0
  %1960 = vmatprep.subr.mxu0 0.0
  %1961 = vmatpush1.msra.mxu0 0.0
  %1962 = vmatprep.subr.mxu0 0.0
  %1963 = vmatpush1.msra.mxu0 0.0
  %1964 = vmatprep.subr.mxu0 0.0
  %1965 = vmatpush1.msra.mxu0 0.0
  %1966 = vmatprep.subr.mxu0 0.0
  %1967 = vmatpush1.msra.mxu0 0.0
  %1968 = vmatprep.subr.mxu0 0.0
  %1969 = vmatpush1.msra.mxu0 0.0
  %1970 = vmatprep.subr.mxu0 0.0
  %1971 = vmatpush1.msra.mxu0 0.0
  %1972 = vmatprep.subr.mxu0 0.0
  %1973 = vmatpush1.msra.mxu0 0.0
  %1974 = vmatprep.subr.mxu0 0.0
  %1975 = vmatpush1.msra.mxu0 0.0
  %1976 = vmatprep.subr.mxu0 0.0
  %1977 = vmatpush1.msra.mxu0 0.0
  %1978 = vmatprep.subr.mxu0 0.0
  %1979 = vmatpush1.msra.mxu0 0.0
  %1980 = vmatprep.subr.mxu0 0.0
  %1981 = vmatpush1.msra.mxu0 0.0
  %1982 = vmatprep.subr.mxu0 0.0
  %1983 = vmatpush1.msra.mxu0 0.0
  %1984 = vmatprep.subr.mxu0 0.0
  %1985 = vmatpush1.msra.mxu0 0.0
  %1986 = vmatprep.subr.mxu0 0.0
  %1987 = vmatpush1.msra.mxu0 0.0
  %1988 = vmatprep.subr.mxu0 0.0
  %1989 = vmatpush1.msra.mxu0 0.0
  %1990 = vmatprep.subr.mxu0 0.0
  %1991 = vmatpush1.msra.mxu0 0.0
  %1992 = vmatprep.subr.mxu0 0.0
  %1993 = vmatpush1.msra.mxu0 0.0
  %1994 = vmatprep.subr.mxu0 0.0
  %1995 = vmatpush1.msra.mxu0 0.0
  %1996 = vmatprep.subr.mxu0 0.0
  %1997 = vmatpush1.msra.mxu0 0.0
  %1998 = vmatprep.mubr.f32.mxu0 0.0
  %1999 = vmatmul.mubr.f32.gmra.mrb[0].mxu0 %v1929
  %v2000 = vpop.f32.mrb[0].mxu0
  %v2001 = vadd.f32 0.0, %v2000
  %v2002 = vpop.f32.mrb[0].mxu0
  %v2003 = vadd.f32 0.0, %v2002
  %2004 = vmatprep.mubr.f32.mxu0 0.0
  %2005 = vmatmul.mubr.f32.gmra.mrb[0].mxu0 %v1932
  %v2006 = vpop.f32.mrb[0].mxu0
  %v2007 = vadd.f32 0.0, %v2006
  %v2008 = vpop.f32.mrb[0].mxu0
  %v2009 = vadd.f32 0.0, %v2008
  %2010 = vdwg.mxu0
  %2011 = vmatprep.subr.mxu0 %v1740
  %2012 = vmatpush1.msra.mxu0 %v1739
  %2013 = vmatprep.subr.mxu0 %v1744
  %2014 = vmatpush1.msra.mxu0 %v1743
  %2015 = vmatprep.subr.mxu0 %v1748
  %2016 = vmatpush1.msra.mxu0 %v1747
  %2017 = vmatprep.subr.mxu0 %v1752
  %2018 = vmatpush1.msra.mxu0 %v1751
  %2019 = vmatprep.subr.mxu0 0.0
  %2020 = vmatpush1.msra.mxu0 0.0
  %2021 = vmatprep.subr.mxu0 0.0
  %2022 = vmatpush1.msra.mxu0 0.0
  %2023 = vmatprep.subr.mxu0 0.0
  %2024 = vmatpush1.msra.mxu0 0.0
  %2025 = vmatprep.subr.mxu0 0.0
  %2026 = vmatpush1.msra.mxu0 0.0
  %2027 = vmatprep.subr.mxu0 0.0
  %2028 = vmatpush1.msra.mxu0 0.0
  %2029 = vmatprep.subr.mxu0 0.0
  %2030 = vmatpush1.msra.mxu0 0.0
  %2031 = vmatprep.subr.mxu0 0.0
  %2032 = vmatpush1.msra.mxu0 0.0
  %2033 = vmatprep.subr.mxu0 0.0
  %2034 = vmatpush1.msra.mxu0 0.0
  %2035 = vmatprep.subr.mxu0 0.0
  %2036 = vmatpush1.msra.mxu0 0.0
  %2037 = vmatprep.subr.mxu0 0.0
  %2038 = vmatpush1.msra.mxu0 0.0
  %2039 = vmatprep.subr.mxu0 0.0
  %2040 = vmatpush1.msra.mxu0 0.0
  %2041 = vmatprep.subr.mxu0 0.0
  %2042 = vmatpush1.msra.mxu0 0.0
  %2043 = vmatprep.subr.mxu0 0.0
  %2044 = vmatpush1.msra.mxu0 0.0
  %2045 = vmatprep.subr.mxu0 0.0
  %2046 = vmatpush1.msra.mxu0 0.0
  %2047 = vmatprep.subr.mxu0 0.0
  %2048 = vmatpush1.msra.mxu0 0.0
  %2049 = vmatprep.subr.mxu0 0.0
  %2050 = vmatpush1.msra.mxu0 0.0
  %2051 = vmatprep.subr.mxu0 0.0
  %2052 = vmatpush1.msra.mxu0 0.0
  %2053 = vmatprep.subr.mxu0 0.0
  %2054 = vmatpush1.msra.mxu0 0.0
  %2055 = vmatprep.subr.mxu0 0.0
  %2056 = vmatpush1.msra.mxu0 0.0
  %2057 = vmatprep.subr.mxu0 0.0
  %2058 = vmatpush1.msra.mxu0 0.0
  %2059 = vmatprep.subr.mxu0 0.0
  %2060 = vmatpush1.msra.mxu0 0.0
  %2061 = vmatprep.subr.mxu0 0.0
  %2062 = vmatpush1.msra.mxu0 0.0
  %2063 = vmatprep.subr.mxu0 0.0
  %2064 = vmatpush1.msra.mxu0 0.0
  %2065 = vmatprep.subr.mxu0 0.0
  %2066 = vmatpush1.msra.mxu0 0.0
  %2067 = vmatprep.subr.mxu0 0.0
  %2068 = vmatpush1.msra.mxu0 0.0
  %2069 = vmatprep.subr.mxu0 0.0
  %2070 = vmatpush1.msra.mxu0 0.0
  %2071 = vmatprep.subr.mxu0 0.0
  %2072 = vmatpush1.msra.mxu0 0.0
  %2073 = vmatprep.subr.mxu0 0.0
  %2074 = vmatpush1.msra.mxu0 0.0
  %2075 = vmatprep.mubr.f32.mxu0 0.0
  %2076 = vmatmul.mubr.f32.gmra.mrb[0].mxu0 %v1929
  %v2077 = vpop.f32.mrb[0].mxu0
  %v2078 = vadd.f32 0.0, %v2077
  %v2079 = vpop.f32.mrb[0].mxu0
  %v2080 = vadd.f32 0.0, %v2079
  %2081 = vmatprep.mubr.f32.mxu0 0.0
  %2082 = vmatmul.mubr.f32.gmra.mrb[0].mxu0 %v1932
  %v2083 = vpop.f32.mrb[0].mxu0
  %v2084 = vadd.f32 0.0, %v2083
  %v2085 = vpop.f32.mrb[0].mxu0
  %v2086 = vadd.f32 0.0, %v2085
  %2087 = vdwg.mxu0
  %v2088 = vmax.f32 %v1841, %v2001
  %v2089 = vmax.f32 %v1843, %v2003
  %v2090 = vmax.f32 %v1918, %v2078
  %v2091 = vmax.f32 %v1920, %v2080
  %v2092 = vmax.f32 %v1847, %v2007
  %v2093 = vmax.f32 %v1849, %v2009
  %v2094 = vmax.f32 %v1924, %v2084
  %v2095 = vmax.f32 %v1926, %v2086
  %v2096 = vadd.s32 %v21, 32
  %v2097 = vadd.s32 %v21, 40
  %v2098 = vadd.s32 %v21, 48
  %v2099 = vadd.s32 %v21, 56
  %v2100 = vadd.s32 %v21, 64
  %v2101 = vadd.s32 %v21, 72
  %v2102 = vadd.s32 %v21, 80
  %v2103 = vadd.s32 %v21, 88
  %v2104 = vadd.s32 %v21, 96
  %v2105 = vadd.s32 %v21, 104
  %v2106 = vadd.s32 %v21, 112
  %v2107 = vadd.s32 %v21, 120
  %v2108 = vadd.s32 %v21, 128
  %v2109 = vadd.s32 %v21, 136
  %v2110 = vadd.s32 %v21, 144
  %v2111 = vadd.s32 %v21, 152
  %v2112 = vadd.s32 %v21, 160
  %v2113 = vadd.s32 %v21, 168
  %v2114 = vadd.s32 %v21, 176
  %v2115 = vadd.s32 %v21, 184
  %v2116 = vadd.s32 %v21, 192
  %v2117 = vadd.s32 %v21, 200
  %v2118 = vadd.s32 %v21, 208
  %v2119 = vadd.s32 %v21, 216
  %v2120 = vadd.s32 %v21, 224
  %v2121 = vadd.s32 %v21, 232
  %v2122 = vadd.s32 %v21, 240
  %v2123 = vadd.s32 %v21, 248
  %v2124 = vadd.s32 %v21, 256
  %v2125 = vadd.s32 %v21, 264
  %v2126 = vadd.s32 %v21, 272
  %v2127 = vadd.s32 %v21, 280
  %v2128 = vadd.s32 %v21, 288
  %v2129 = vadd.s32 %v21, 296
  %v2130 = vadd.s32 %v21, 304
  %v2131 = vadd.s32 %v21, 312
  %v2132 = vadd.s32 %v21, 320
  %v2133 = vadd.s32 %v21, 328
  %v2134 = vadd.s32 %v21, 336
  %v2135 = vadd.s32 %v21, 344
  %v2136 = vadd.s32 %v21, 352
  %v2137 = vadd.s32 %v21, 360
  %v2138 = vadd.s32 %v21, 368
  %v2139 = vadd.s32 %v21, 376
  %v2140 = vadd.s32 %v21, 384
  %v2141 = vadd.s32 %v21, 392
  %v2142 = vadd.s32 %v21, 400
  %v2143 = vadd.s32 %v21, 408
  %v2144 = vadd.s32 %v21, 416
  %v2145 = vadd.s32 %v21, 424
  %v2146 = vadd.s32 %v21, 432
  %v2147 = vadd.s32 %v21, 440
  %v2148 = vadd.s32 %v21, 448
  %v2149 = vadd.s32 %v21, 456
  %v2150 = vadd.s32 %v21, 464
  %v2151 = vadd.s32 %v21, 472
  %v2152 = vadd.s32 %v21, 480
  %v2153 = vadd.s32 %v21, 488
  %v2154 = vadd.s32 %v21, 496
  %v2155 = vadd.s32 %v21, 504
  %v2156 = vadd.s32 %v1754, 128
  %v2157 = vmul.u32 %v1754, 2
  %v2158 = vmul.u32 %v2156, 2
  %v2159 = vand.u32 %v1754, 31
  %v2160 = vand.u32 %v2156, 31
  %v2161 = vsub.s32 %v2157, %v2159
  %v2162 = vsub.s32 %v2158, %v2160
  %vm2163 = vcmp.eq.s32.totalorder %v21, %v2161
  %vm2164 = vcmp.eq.s32.totalorder %v21, %v2162
  %vm2165 = vcmp.eq.s32.totalorder %v22, %v2161
  %vm2166 = vcmp.eq.s32.totalorder %v22, %v2162
  %vm2167 = vcmp.eq.s32.totalorder %v23, %v2161
  %vm2168 = vcmp.eq.s32.totalorder %v23, %v2162
  %vm2169 = vcmp.eq.s32.totalorder %v24, %v2161
  %vm2170 = vcmp.eq.s32.totalorder %v24, %v2162
  %vm2171 = vcmp.eq.s32.totalorder %v2096, %v2161
  %vm2172 = vcmp.eq.s32.totalorder %v2096, %v2162
  %vm2173 = vcmp.eq.s32.totalorder %v2097, %v2161
  %vm2174 = vcmp.eq.s32.totalorder %v2097, %v2162
  %vm2175 = vcmp.eq.s32.totalorder %v2098, %v2161
  %vm2176 = vcmp.eq.s32.totalorder %v2098, %v2162
  %vm2177 = vcmp.eq.s32.totalorder %v2099, %v2161
  %vm2178 = vcmp.eq.s32.totalorder %v2099, %v2162
  %vm2179 = vcmp.eq.s32.totalorder %v2100, %v2161
  %vm2180 = vcmp.eq.s32.totalorder %v2100, %v2162
  %vm2181 = vcmp.eq.s32.totalorder %v2101, %v2161
  %vm2182 = vcmp.eq.s32.totalorder %v2101, %v2162
  %vm2183 = vcmp.eq.s32.totalorder %v2102, %v2161
  %vm2184 = vcmp.eq.s32.totalorder %v2102, %v2162
  %vm2185 = vcmp.eq.s32.totalorder %v2103, %v2161
  %vm2186 = vcmp.eq.s32.totalorder %v2103, %v2162
  %vm2187 = vcmp.eq.s32.totalorder %v2104, %v2161
  %vm2188 = vcmp.eq.s32.totalorder %v2104, %v2162
  %vm2189 = vcmp.eq.s32.totalorder %v2105, %v2161
  %vm2190 = vcmp.eq.s32.totalorder %v2105, %v2162
  %vm2191 = vcmp.eq.s32.totalorder %v2106, %v2161
  %vm2192 = vcmp.eq.s32.totalorder %v2106, %v2162
  %vm2193 = vcmp.eq.s32.totalorder %v2107, %v2161
  %vm2194 = vcmp.eq.s32.totalorder %v2107, %v2162
  %vm2195 = vcmp.eq.s32.totalorder %v2108, %v2161
  %vm2196 = vcmp.eq.s32.totalorder %v2108, %v2162
  %vm2197 = vcmp.eq.s32.totalorder %v2109, %v2161
  %vm2198 = vcmp.eq.s32.totalorder %v2109, %v2162
  %vm2199 = vcmp.eq.s32.totalorder %v2110, %v2161
  %vm2200 = vcmp.eq.s32.totalorder %v2110, %v2162
  %vm2201 = vcmp.eq.s32.totalorder %v2111, %v2161
  %vm2202 = vcmp.eq.s32.totalorder %v2111, %v2162
  %vm2203 = vcmp.eq.s32.totalorder %v2112, %v2161
  %vm2204 = vcmp.eq.s32.totalorder %v2112, %v2162
  %vm2205 = vcmp.eq.s32.totalorder %v2113, %v2161
  %vm2206 = vcmp.eq.s32.totalorder %v2113, %v2162
  %vm2207 = vcmp.eq.s32.totalorder %v2114, %v2161
  %vm2208 = vcmp.eq.s32.totalorder %v2114, %v2162
  %vm2209 = vcmp.eq.s32.totalorder %v2115, %v2161
  %vm2210 = vcmp.eq.s32.totalorder %v2115, %v2162
  %vm2211 = vcmp.eq.s32.totalorder %v2116, %v2161
  %vm2212 = vcmp.eq.s32.totalorder %v2116, %v2162
  %vm2213 = vcmp.eq.s32.totalorder %v2117, %v2161
  %vm2214 = vcmp.eq.s32.totalorder %v2117, %v2162
  %vm2215 = vcmp.eq.s32.totalorder %v2118, %v2161
  %vm2216 = vcmp.eq.s32.totalorder %v2118, %v2162
  %vm2217 = vcmp.eq.s32.totalorder %v2119, %v2161
  %vm2218 = vcmp.eq.s32.totalorder %v2119, %v2162
  %vm2219 = vcmp.eq.s32.totalorder %v2120, %v2161
  %vm2220 = vcmp.eq.s32.totalorder %v2120, %v2162
  %vm2221 = vcmp.eq.s32.totalorder %v2121, %v2161
  %vm2222 = vcmp.eq.s32.totalorder %v2121, %v2162
  %vm2223 = vcmp.eq.s32.totalorder %v2122, %v2161
  %vm2224 = vcmp.eq.s32.totalorder %v2122, %v2162
  %vm2225 = vcmp.eq.s32.totalorder %v2123, %v2161
  %vm2226 = vcmp.eq.s32.totalorder %v2123, %v2162
  %vm2227 = vcmp.eq.s32.totalorder %v2124, %v2161
  %vm2228 = vcmp.eq.s32.totalorder %v2124, %v2162
  %vm2229 = vcmp.eq.s32.totalorder %v2125, %v2161
  %vm2230 = vcmp.eq.s32.totalorder %v2125, %v2162
  %vm2231 = vcmp.eq.s32.totalorder %v2126, %v2161
  %vm2232 = vcmp.eq.s32.totalorder %v2126, %v2162
  %vm2233 = vcmp.eq.s32.totalorder %v2127, %v2161
  %vm2234 = vcmp.eq.s32.totalorder %v2127, %v2162
  %vm2235 = vcmp.eq.s32.totalorder %v2128, %v2161
  %vm2236 = vcmp.eq.s32.totalorder %v2128, %v2162
  %vm2237 = vcmp.eq.s32.totalorder %v2129, %v2161
  %vm2238 = vcmp.eq.s32.totalorder %v2129, %v2162
  %vm2239 = vcmp.eq.s32.totalorder %v2130, %v2161
  %vm2240 = vcmp.eq.s32.totalorder %v2130, %v2162
  %vm2241 = vcmp.eq.s32.totalorder %v2131, %v2161
  %vm2242 = vcmp.eq.s32.totalorder %v2131, %v2162
  %vm2243 = vcmp.eq.s32.totalorder %v2132, %v2161
  %vm2244 = vcmp.eq.s32.totalorder %v2132, %v2162
  %vm2245 = vcmp.eq.s32.totalorder %v2133, %v2161
  %vm2246 = vcmp.eq.s32.totalorder %v2133, %v2162
  %vm2247 = vcmp.eq.s32.totalorder %v2134, %v2161
  %vm2248 = vcmp.eq.s32.totalorder %v2134, %v2162
  %vm2249 = vcmp.eq.s32.totalorder %v2135, %v2161
  %vm2250 = vcmp.eq.s32.totalorder %v2135, %v2162
  %vm2251 = vcmp.eq.s32.totalorder %v2136, %v2161
  %vm2252 = vcmp.eq.s32.totalorder %v2136, %v2162
  %vm2253 = vcmp.eq.s32.totalorder %v2137, %v2161
  %vm2254 = vcmp.eq.s32.totalorder %v2137, %v2162
  %vm2255 = vcmp.eq.s32.totalorder %v2138, %v2161
  %vm2256 = vcmp.eq.s32.totalorder %v2138, %v2162
  %vm2257 = vcmp.eq.s32.totalorder %v2139, %v2161
  %vm2258 = vcmp.eq.s32.totalorder %v2139, %v2162
  %vm2259 = vcmp.eq.s32.totalorder %v2140, %v2161
  %vm2260 = vcmp.eq.s32.totalorder %v2140, %v2162
  %vm2261 = vcmp.eq.s32.totalorder %v2141, %v2161
  %vm2262 = vcmp.eq.s32.totalorder %v2141, %v2162
  %vm2263 = vcmp.eq.s32.totalorder %v2142, %v2161
  %vm2264 = vcmp.eq.s32.totalorder %v2142, %v2162
  %vm2265 = vcmp.eq.s32.totalorder %v2143, %v2161
  %vm2266 = vcmp.eq.s32.totalorder %v2143, %v2162
  %vm2267 = vcmp.eq.s32.totalorder %v2144, %v2161
  %vm2268 = vcmp.eq.s32.totalorder %v2144, %v2162
  %vm2269 = vcmp.eq.s32.totalorder %v2145, %v2161
  %vm2270 = vcmp.eq.s32.totalorder %v2145, %v2162
  %vm2271 = vcmp.eq.s32.totalorder %v2146, %v2161
  %vm2272 = vcmp.eq.s32.totalorder %v2146, %v2162
  %vm2273 = vcmp.eq.s32.totalorder %v2147, %v2161
  %vm2274 = vcmp.eq.s32.totalorder %v2147, %v2162
  %vm2275 = vcmp.eq.s32.totalorder %v2148, %v2161
  %vm2276 = vcmp.eq.s32.totalorder %v2148, %v2162
  %vm2277 = vcmp.eq.s32.totalorder %v2149, %v2161
  %vm2278 = vcmp.eq.s32.totalorder %v2149, %v2162
  %vm2279 = vcmp.eq.s32.totalorder %v2150, %v2161
  %vm2280 = vcmp.eq.s32.totalorder %v2150, %v2162
  %vm2281 = vcmp.eq.s32.totalorder %v2151, %v2161
  %vm2282 = vcmp.eq.s32.totalorder %v2151, %v2162
  %vm2283 = vcmp.eq.s32.totalorder %v2152, %v2161
  %vm2284 = vcmp.eq.s32.totalorder %v2152, %v2162
  %vm2285 = vcmp.eq.s32.totalorder %v2153, %v2161
  %vm2286 = vcmp.eq.s32.totalorder %v2153, %v2162
  %vm2287 = vcmp.eq.s32.totalorder %v2154, %v2161
  %vm2288 = vcmp.eq.s32.totalorder %v2154, %v2162
  %vm2289 = vcmp.eq.s32.totalorder %v2155, %v2161
  %vm2290 = vcmp.eq.s32.totalorder %v2155, %v2162
  %v2291 = vsel %vm2163, 1.0, 0.0
  %v2292 = vsel %vm2164, 1.0, 0.0
  %v2293 = vsel %vm2165, 1.0, 0.0
  %v2294 = vsel %vm2166, 1.0, 0.0
  %v2295 = vsel %vm2167, 1.0, 0.0
  %v2296 = vsel %vm2168, 1.0, 0.0
  %v2297 = vsel %vm2169, 1.0, 0.0
  %v2298 = vsel %vm2170, 1.0, 0.0
  %v2299 = vsel %vm2171, 1.0, 0.0
  %v2300 = vsel %vm2172, 1.0, 0.0
  %v2301 = vsel %vm2173, 1.0, 0.0
  %v2302 = vsel %vm2174, 1.0, 0.0
  %v2303 = vsel %vm2175, 1.0, 0.0
  %v2304 = vsel %vm2176, 1.0, 0.0
  %v2305 = vsel %vm2177, 1.0, 0.0
  %v2306 = vsel %vm2178, 1.0, 0.0
  %v2307 = vsel %vm2179, 1.0, 0.0
  %v2308 = vsel %vm2180, 1.0, 0.0
  %v2309 = vsel %vm2181, 1.0, 0.0
  %v2310 = vsel %vm2182, 1.0, 0.0
  %v2311 = vsel %vm2183, 1.0, 0.0
  %v2312 = vsel %vm2184, 1.0, 0.0
  %v2313 = vsel %vm2185, 1.0, 0.0
  %v2314 = vsel %vm2186, 1.0, 0.0
  %v2315 = vsel %vm2187, 1.0, 0.0
  %v2316 = vsel %vm2188, 1.0, 0.0
  %v2317 = vsel %vm2189, 1.0, 0.0
  %v2318 = vsel %vm2190, 1.0, 0.0
  %v2319 = vsel %vm2191, 1.0, 0.0
  %v2320 = vsel %vm2192, 1.0, 0.0
  %v2321 = vsel %vm2193, 1.0, 0.0
  %v2322 = vsel %vm2194, 1.0, 0.0
  %v2323 = vsel %vm2195, 1.0, 0.0
  %v2324 = vsel %vm2196, 1.0, 0.0
  %v2325 = vsel %vm2197, 1.0, 0.0
  %v2326 = vsel %vm2198, 1.0, 0.0
  %v2327 = vsel %vm2199, 1.0, 0.0
  %v2328 = vsel %vm2200, 1.0, 0.0
  %v2329 = vsel %vm2201, 1.0, 0.0
  %v2330 = vsel %vm2202, 1.0, 0.0
  %v2331 = vsel %vm2203, 1.0, 0.0
  %v2332 = vsel %vm2204, 1.0, 0.0
  %v2333 = vsel %vm2205, 1.0, 0.0
  %v2334 = vsel %vm2206, 1.0, 0.0
  %v2335 = vsel %vm2207, 1.0, 0.0
  %v2336 = vsel %vm2208, 1.0, 0.0
  %v2337 = vsel %vm2209, 1.0, 0.0
  %v2338 = vsel %vm2210, 1.0, 0.0
  %v2339 = vsel %vm2211, 1.0, 0.0
  %v2340 = vsel %vm2212, 1.0, 0.0
  %v2341 = vsel %vm2213, 1.0, 0.0
  %v2342 = vsel %vm2214, 1.0, 0.0
  %v2343 = vsel %vm2215, 1.0, 0.0
  %v2344 = vsel %vm2216, 1.0, 0.0
  %v2345 = vsel %vm2217, 1.0, 0.0
  %v2346 = vsel %vm2218, 1.0, 0.0
  %v2347 = vsel %vm2219, 1.0, 0.0
  %v2348 = vsel %vm2220, 1.0, 0.0
  %v2349 = vsel %vm2221, 1.0, 0.0
  %v2350 = vsel %vm2222, 1.0, 0.0
  %v2351 = vsel %vm2223, 1.0, 0.0
  %v2352 = vsel %vm2224, 1.0, 0.0
  %v2353 = vsel %vm2225, 1.0, 0.0
  %v2354 = vsel %vm2226, 1.0, 0.0
  %v2355 = vsel %vm2227, 1.0, 0.0
  %v2356 = vsel %vm2228, 1.0, 0.0
  %v2357 = vsel %vm2229, 1.0, 0.0
  %v2358 = vsel %vm2230, 1.0, 0.0
  %v2359 = vsel %vm2231, 1.0, 0.0
  %v2360 = vsel %vm2232, 1.0, 0.0
  %v2361 = vsel %vm2233, 1.0, 0.0
  %v2362 = vsel %vm2234, 1.0, 0.0
  %v2363 = vsel %vm2235, 1.0, 0.0
  %v2364 = vsel %vm2236, 1.0, 0.0
  %v2365 = vsel %vm2237, 1.0, 0.0
  %v2366 = vsel %vm2238, 1.0, 0.0
  %v2367 = vsel %vm2239, 1.0, 0.0
  %v2368 = vsel %vm2240, 1.0, 0.0
  %v2369 = vsel %vm2241, 1.0, 0.0
  %v2370 = vsel %vm2242, 1.0, 0.0
  %v2371 = vsel %vm2243, 1.0, 0.0
  %v2372 = vsel %vm2244, 1.0, 0.0
  %v2373 = vsel %vm2245, 1.0, 0.0
  %v2374 = vsel %vm2246, 1.0, 0.0
  %v2375 = vsel %vm2247, 1.0, 0.0
  %v2376 = vsel %vm2248, 1.0, 0.0
  %v2377 = vsel %vm2249, 1.0, 0.0
  %v2378 = vsel %vm2250, 1.0, 0.0
  %v2379 = vsel %vm2251, 1.0, 0.0
  %v2380 = vsel %vm2252, 1.0, 0.0
  %v2381 = vsel %vm2253, 1.0, 0.0
  %v2382 = vsel %vm2254, 1.0, 0.0
  %v2383 = vsel %vm2255, 1.0, 0.0
  %v2384 = vsel %vm2256, 1.0, 0.0
  %v2385 = vsel %vm2257, 1.0, 0.0
  %v2386 = vsel %vm2258, 1.0, 0.0
  %v2387 = vsel %vm2259, 1.0, 0.0
  %v2388 = vsel %vm2260, 1.0, 0.0
  %v2389 = vsel %vm2261, 1.0, 0.0
  %v2390 = vsel %vm2262, 1.0, 0.0
  %v2391 = vsel %vm2263, 1.0, 0.0
  %v2392 = vsel %vm2264, 1.0, 0.0
  %v2393 = vsel %vm2265, 1.0, 0.0
  %v2394 = vsel %vm2266, 1.0, 0.0
  %v2395 = vsel %vm2267, 1.0, 0.0
  %v2396 = vsel %vm2268, 1.0, 0.0
  %v2397 = vsel %vm2269, 1.0, 0.0
  %v2398 = vsel %vm2270, 1.0, 0.0
  %v2399 = vsel %vm2271, 1.0, 0.0
  %v2400 = vsel %vm2272, 1.0, 0.0
  %v2401 = vsel %vm2273, 1.0, 0.0
  %v2402 = vsel %vm2274, 1.0, 0.0
  %v2403 = vsel %vm2275, 1.0, 0.0
  %v2404 = vsel %vm2276, 1.0, 0.0
  %v2405 = vsel %vm2277, 1.0, 0.0
  %v2406 = vsel %vm2278, 1.0, 0.0
  %v2407 = vsel %vm2279, 1.0, 0.0
  %v2408 = vsel %vm2280, 1.0, 0.0
  %v2409 = vsel %vm2281, 1.0, 0.0
  %v2410 = vsel %vm2282, 1.0, 0.0
  %v2411 = vsel %vm2283, 1.0, 0.0
  %v2412 = vsel %vm2284, 1.0, 0.0
  %v2413 = vsel %vm2285, 1.0, 0.0
  %v2414 = vsel %vm2286, 1.0, 0.0
  %v2415 = vsel %vm2287, 1.0, 0.0
  %v2416 = vsel %vm2288, 1.0, 0.0
  %v2417 = vsel %vm2289, 1.0, 0.0
  %v2418 = vsel %vm2290, 1.0, 0.0
  %v2419 = vadd.s32 %v2161, 32
  %v2420 = vadd.s32 %v2162, 32
  %vm2421 = vcmp.eq.s32.totalorder %v21, %v2419
  %vm2422 = vcmp.eq.s32.totalorder %v21, %v2420
  %vm2423 = vcmp.eq.s32.totalorder %v22, %v2419
  %vm2424 = vcmp.eq.s32.totalorder %v22, %v2420
  %vm2425 = vcmp.eq.s32.totalorder %v23, %v2419
  %vm2426 = vcmp.eq.s32.totalorder %v23, %v2420
  %vm2427 = vcmp.eq.s32.totalorder %v24, %v2419
  %vm2428 = vcmp.eq.s32.totalorder %v24, %v2420
  %vm2429 = vcmp.eq.s32.totalorder %v2096, %v2419
  %vm2430 = vcmp.eq.s32.totalorder %v2096, %v2420
  %vm2431 = vcmp.eq.s32.totalorder %v2097, %v2419
  %vm2432 = vcmp.eq.s32.totalorder %v2097, %v2420
  %vm2433 = vcmp.eq.s32.totalorder %v2098, %v2419
  %vm2434 = vcmp.eq.s32.totalorder %v2098, %v2420
  %vm2435 = vcmp.eq.s32.totalorder %v2099, %v2419
  %vm2436 = vcmp.eq.s32.totalorder %v2099, %v2420
  %vm2437 = vcmp.eq.s32.totalorder %v2100, %v2419
  %vm2438 = vcmp.eq.s32.totalorder %v2100, %v2420
  %vm2439 = vcmp.eq.s32.totalorder %v2101, %v2419
  %vm2440 = vcmp.eq.s32.totalorder %v2101, %v2420
  %vm2441 = vcmp.eq.s32.totalorder %v2102, %v2419
  %vm2442 = vcmp.eq.s32.totalorder %v2102, %v2420
  %vm2443 = vcmp.eq.s32.totalorder %v2103, %v2419
  %vm2444 = vcmp.eq.s32.totalorder %v2103, %v2420
  %vm2445 = vcmp.eq.s32.totalorder %v2104, %v2419
  %vm2446 = vcmp.eq.s32.totalorder %v2104, %v2420
  %vm2447 = vcmp.eq.s32.totalorder %v2105, %v2419
  %vm2448 = vcmp.eq.s32.totalorder %v2105, %v2420
  %vm2449 = vcmp.eq.s32.totalorder %v2106, %v2419
  %vm2450 = vcmp.eq.s32.totalorder %v2106, %v2420
  %vm2451 = vcmp.eq.s32.totalorder %v2107, %v2419
  %vm2452 = vcmp.eq.s32.totalorder %v2107, %v2420
  %vm2453 = vcmp.eq.s32.totalorder %v2108, %v2419
  %vm2454 = vcmp.eq.s32.totalorder %v2108, %v2420
  %vm2455 = vcmp.eq.s32.totalorder %v2109, %v2419
  %vm2456 = vcmp.eq.s32.totalorder %v2109, %v2420
  %vm2457 = vcmp.eq.s32.totalorder %v2110, %v2419
  %vm2458 = vcmp.eq.s32.totalorder %v2110, %v2420
  %vm2459 = vcmp.eq.s32.totalorder %v2111, %v2419
  %vm2460 = vcmp.eq.s32.totalorder %v2111, %v2420
  %vm2461 = vcmp.eq.s32.totalorder %v2112, %v2419
  %vm2462 = vcmp.eq.s32.totalorder %v2112, %v2420
  %vm2463 = vcmp.eq.s32.totalorder %v2113, %v2419
  %vm2464 = vcmp.eq.s32.totalorder %v2113, %v2420
  %vm2465 = vcmp.eq.s32.totalorder %v2114, %v2419
  %vm2466 = vcmp.eq.s32.totalorder %v2114, %v2420
  %vm2467 = vcmp.eq.s32.totalorder %v2115, %v2419
  %vm2468 = vcmp.eq.s32.totalorder %v2115, %v2420
  %vm2469 = vcmp.eq.s32.totalorder %v2116, %v2419
  %vm2470 = vcmp.eq.s32.totalorder %v2116, %v2420
  %vm2471 = vcmp.eq.s32.totalorder %v2117, %v2419
  %vm2472 = vcmp.eq.s32.totalorder %v2117, %v2420
  %vm2473 = vcmp.eq.s32.totalorder %v2118, %v2419
  %vm2474 = vcmp.eq.s32.totalorder %v2118, %v2420
  %vm2475 = vcmp.eq.s32.totalorder %v2119, %v2419
  %vm2476 = vcmp.eq.s32.totalorder %v2119, %v2420
  %vm2477 = vcmp.eq.s32.totalorder %v2120, %v2419
  %vm2478 = vcmp.eq.s32.totalorder %v2120, %v2420
  %vm2479 = vcmp.eq.s32.totalorder %v2121, %v2419
  %vm2480 = vcmp.eq.s32.totalorder %v2121, %v2420
  %vm2481 = vcmp.eq.s32.totalorder %v2122, %v2419
  %vm2482 = vcmp.eq.s32.totalorder %v2122, %v2420
  %vm2483 = vcmp.eq.s32.totalorder %v2123, %v2419
  %vm2484 = vcmp.eq.s32.totalorder %v2123, %v2420
  %vm2485 = vcmp.eq.s32.totalorder %v2124, %v2419
  %vm2486 = vcmp.eq.s32.totalorder %v2124, %v2420
  %vm2487 = vcmp.eq.s32.totalorder %v2125, %v2419
  %vm2488 = vcmp.eq.s32.totalorder %v2125, %v2420
  %vm2489 = vcmp.eq.s32.totalorder %v2126, %v2419
  %vm2490 = vcmp.eq.s32.totalorder %v2126, %v2420
  %vm2491 = vcmp.eq.s32.totalorder %v2127, %v2419
  %vm2492 = vcmp.eq.s32.totalorder %v2127, %v2420
  %vm2493 = vcmp.eq.s32.totalorder %v2128, %v2419
  %vm2494 = vcmp.eq.s32.totalorder %v2128, %v2420
  %vm2495 = vcmp.eq.s32.totalorder %v2129, %v2419
  %vm2496 = vcmp.eq.s32.totalorder %v2129, %v2420
  %vm2497 = vcmp.eq.s32.totalorder %v2130, %v2419
  %vm2498 = vcmp.eq.s32.totalorder %v2130, %v2420
  %vm2499 = vcmp.eq.s32.totalorder %v2131, %v2419
  %vm2500 = vcmp.eq.s32.totalorder %v2131, %v2420
  %vm2501 = vcmp.eq.s32.totalorder %v2132, %v2419
  %vm2502 = vcmp.eq.s32.totalorder %v2132, %v2420
  %vm2503 = vcmp.eq.s32.totalorder %v2133, %v2419
  %vm2504 = vcmp.eq.s32.totalorder %v2133, %v2420
  %vm2505 = vcmp.eq.s32.totalorder %v2134, %v2419
  %vm2506 = vcmp.eq.s32.totalorder %v2134, %v2420
  %vm2507 = vcmp.eq.s32.totalorder %v2135, %v2419
  %vm2508 = vcmp.eq.s32.totalorder %v2135, %v2420
  %vm2509 = vcmp.eq.s32.totalorder %v2136, %v2419
  %vm2510 = vcmp.eq.s32.totalorder %v2136, %v2420
  %vm2511 = vcmp.eq.s32.totalorder %v2137, %v2419
  %vm2512 = vcmp.eq.s32.totalorder %v2137, %v2420
  %vm2513 = vcmp.eq.s32.totalorder %v2138, %v2419
  %vm2514 = vcmp.eq.s32.totalorder %v2138, %v2420
  %vm2515 = vcmp.eq.s32.totalorder %v2139, %v2419
  %vm2516 = vcmp.eq.s32.totalorder %v2139, %v2420
  %vm2517 = vcmp.eq.s32.totalorder %v2140, %v2419
  %vm2518 = vcmp.eq.s32.totalorder %v2140, %v2420
  %vm2519 = vcmp.eq.s32.totalorder %v2141, %v2419
  %vm2520 = vcmp.eq.s32.totalorder %v2141, %v2420
  %vm2521 = vcmp.eq.s32.totalorder %v2142, %v2419
  %vm2522 = vcmp.eq.s32.totalorder %v2142, %v2420
  %vm2523 = vcmp.eq.s32.totalorder %v2143, %v2419
  %vm2524 = vcmp.eq.s32.totalorder %v2143, %v2420
  %vm2525 = vcmp.eq.s32.totalorder %v2144, %v2419
  %vm2526 = vcmp.eq.s32.totalorder %v2144, %v2420
  %vm2527 = vcmp.eq.s32.totalorder %v2145, %v2419
  %vm2528 = vcmp.eq.s32.totalorder %v2145, %v2420
  %vm2529 = vcmp.eq.s32.totalorder %v2146, %v2419
  %vm2530 = vcmp.eq.s32.totalorder %v2146, %v2420
  %vm2531 = vcmp.eq.s32.totalorder %v2147, %v2419
  %vm2532 = vcmp.eq.s32.totalorder %v2147, %v2420
  %vm2533 = vcmp.eq.s32.totalorder %v2148, %v2419
  %vm2534 = vcmp.eq.s32.totalorder %v2148, %v2420
  %vm2535 = vcmp.eq.s32.totalorder %v2149, %v2419
  %vm2536 = vcmp.eq.s32.totalorder %v2149, %v2420
  %vm2537 = vcmp.eq.s32.totalorder %v2150, %v2419
  %vm2538 = vcmp.eq.s32.totalorder %v2150, %v2420
  %vm2539 = vcmp.eq.s32.totalorder %v2151, %v2419
  %vm2540 = vcmp.eq.s32.totalorder %v2151, %v2420
  %vm2541 = vcmp.eq.s32.totalorder %v2152, %v2419
  %vm2542 = vcmp.eq.s32.totalorder %v2152, %v2420
  %vm2543 = vcmp.eq.s32.totalorder %v2153, %v2419
  %vm2544 = vcmp.eq.s32.totalorder %v2153, %v2420
  %vm2545 = vcmp.eq.s32.totalorder %v2154, %v2419
  %vm2546 = vcmp.eq.s32.totalorder %v2154, %v2420
  %vm2547 = vcmp.eq.s32.totalorder %v2155, %v2419
  %vm2548 = vcmp.eq.s32.totalorder %v2155, %v2420
  %v2549 = vsel %vm2421, 1.0, 0.0
  %v2550 = vsel %vm2422, 1.0, 0.0
  %v2551 = vsel %vm2423, 1.0, 0.0
  %v2552 = vsel %vm2424, 1.0, 0.0
  %v2553 = vsel %vm2425, 1.0, 0.0
  %v2554 = vsel %vm2426, 1.0, 0.0
  %v2555 = vsel %vm2427, 1.0, 0.0
  %v2556 = vsel %vm2428, 1.0, 0.0
  %v2557 = vsel %vm2429, 1.0, 0.0
  %v2558 = vsel %vm2430, 1.0, 0.0
  %v2559 = vsel %vm2431, 1.0, 0.0
  %v2560 = vsel %vm2432, 1.0, 0.0
  %v2561 = vsel %vm2433, 1.0, 0.0
  %v2562 = vsel %vm2434, 1.0, 0.0
  %v2563 = vsel %vm2435, 1.0, 0.0
  %v2564 = vsel %vm2436, 1.0, 0.0
  %v2565 = vsel %vm2437, 1.0, 0.0
  %v2566 = vsel %vm2438, 1.0, 0.0
  %v2567 = vsel %vm2439, 1.0, 0.0
  %v2568 = vsel %vm2440, 1.0, 0.0
  %v2569 = vsel %vm2441, 1.0, 0.0
  %v2570 = vsel %vm2442, 1.0, 0.0
  %v2571 = vsel %vm2443, 1.0, 0.0
  %v2572 = vsel %vm2444, 1.0, 0.0
  %v2573 = vsel %vm2445, 1.0, 0.0
  %v2574 = vsel %vm2446, 1.0, 0.0
  %v2575 = vsel %vm2447, 1.0, 0.0
  %v2576 = vsel %vm2448, 1.0, 0.0
  %v2577 = vsel %vm2449, 1.0, 0.0
  %v2578 = vsel %vm2450, 1.0, 0.0
  %v2579 = vsel %vm2451, 1.0, 0.0
  %v2580 = vsel %vm2452, 1.0, 0.0
  %v2581 = vsel %vm2453, 1.0, 0.0
  %v2582 = vsel %vm2454, 1.0, 0.0
  %v2583 = vsel %vm2455, 1.0, 0.0
  %v2584 = vsel %vm2456, 1.0, 0.0
  %v2585 = vsel %vm2457, 1.0, 0.0
  %v2586 = vsel %vm2458, 1.0, 0.0
  %v2587 = vsel %vm2459, 1.0, 0.0
  %v2588 = vsel %vm2460, 1.0, 0.0
  %v2589 = vsel %vm2461, 1.0, 0.0
  %v2590 = vsel %vm2462, 1.0, 0.0
  %v2591 = vsel %vm2463, 1.0, 0.0
  %v2592 = vsel %vm2464, 1.0, 0.0
  %v2593 = vsel %vm2465, 1.0, 0.0
  %v2594 = vsel %vm2466, 1.0, 0.0
  %v2595 = vsel %vm2467, 1.0, 0.0
  %v2596 = vsel %vm2468, 1.0, 0.0
  %v2597 = vsel %vm2469, 1.0, 0.0
  %v2598 = vsel %vm2470, 1.0, 0.0
  %v2599 = vsel %vm2471, 1.0, 0.0
  %v2600 = vsel %vm2472, 1.0, 0.0
  %v2601 = vsel %vm2473, 1.0, 0.0
  %v2602 = vsel %vm2474, 1.0, 0.0
  %v2603 = vsel %vm2475, 1.0, 0.0
  %v2604 = vsel %vm2476, 1.0, 0.0
  %v2605 = vsel %vm2477, 1.0, 0.0
  %v2606 = vsel %vm2478, 1.0, 0.0
  %v2607 = vsel %vm2479, 1.0, 0.0
  %v2608 = vsel %vm2480, 1.0, 0.0
  %v2609 = vsel %vm2481, 1.0, 0.0
  %v2610 = vsel %vm2482, 1.0, 0.0
  %v2611 = vsel %vm2483, 1.0, 0.0
  %v2612 = vsel %vm2484, 1.0, 0.0
  %v2613 = vsel %vm2485, 1.0, 0.0
  %v2614 = vsel %vm2486, 1.0, 0.0
  %v2615 = vsel %vm2487, 1.0, 0.0
  %v2616 = vsel %vm2488, 1.0, 0.0
  %v2617 = vsel %vm2489, 1.0, 0.0
  %v2618 = vsel %vm2490, 1.0, 0.0
  %v2619 = vsel %vm2491, 1.0, 0.0
  %v2620 = vsel %vm2492, 1.0, 0.0
  %v2621 = vsel %vm2493, 1.0, 0.0
  %v2622 = vsel %vm2494, 1.0, 0.0
  %v2623 = vsel %vm2495, 1.0, 0.0
  %v2624 = vsel %vm2496, 1.0, 0.0
  %v2625 = vsel %vm2497, 1.0, 0.0
  %v2626 = vsel %vm2498, 1.0, 0.0
  %v2627 = vsel %vm2499, 1.0, 0.0
  %v2628 = vsel %vm2500, 1.0, 0.0
  %v2629 = vsel %vm2501, 1.0, 0.0
  %v2630 = vsel %vm2502, 1.0, 0.0
  %v2631 = vsel %vm2503, 1.0, 0.0
  %v2632 = vsel %vm2504, 1.0, 0.0
  %v2633 = vsel %vm2505, 1.0, 0.0
  %v2634 = vsel %vm2506, 1.0, 0.0
  %v2635 = vsel %vm2507, 1.0, 0.0
  %v2636 = vsel %vm2508, 1.0, 0.0
  %v2637 = vsel %vm2509, 1.0, 0.0
  %v2638 = vsel %vm2510, 1.0, 0.0
  %v2639 = vsel %vm2511, 1.0, 0.0
  %v2640 = vsel %vm2512, 1.0, 0.0
  %v2641 = vsel %vm2513, 1.0, 0.0
  %v2642 = vsel %vm2514, 1.0, 0.0
  %v2643 = vsel %vm2515, 1.0, 0.0
  %v2644 = vsel %vm2516, 1.0, 0.0
  %v2645 = vsel %vm2517, 1.0, 0.0
  %v2646 = vsel %vm2518, 1.0, 0.0
  %v2647 = vsel %vm2519, 1.0, 0.0
  %v2648 = vsel %vm2520, 1.0, 0.0
  %v2649 = vsel %vm2521, 1.0, 0.0
  %v2650 = vsel %vm2522, 1.0, 0.0
  %v2651 = vsel %vm2523, 1.0, 0.0
  %v2652 = vsel %vm2524, 1.0, 0.0
  %v2653 = vsel %vm2525, 1.0, 0.0
  %v2654 = vsel %vm2526, 1.0, 0.0
  %v2655 = vsel %vm2527, 1.0, 0.0
  %v2656 = vsel %vm2528, 1.0, 0.0
  %v2657 = vsel %vm2529, 1.0, 0.0
  %v2658 = vsel %vm2530, 1.0, 0.0
  %v2659 = vsel %vm2531, 1.0, 0.0
  %v2660 = vsel %vm2532, 1.0, 0.0
  %v2661 = vsel %vm2533, 1.0, 0.0
  %v2662 = vsel %vm2534, 1.0, 0.0
  %v2663 = vsel %vm2535, 1.0, 0.0
  %v2664 = vsel %vm2536, 1.0, 0.0
  %v2665 = vsel %vm2537, 1.0, 0.0
  %v2666 = vsel %vm2538, 1.0, 0.0
  %v2667 = vsel %vm2539, 1.0, 0.0
  %v2668 = vsel %vm2540, 1.0, 0.0
  %v2669 = vsel %vm2541, 1.0, 0.0
  %v2670 = vsel %vm2542, 1.0, 0.0
  %v2671 = vsel %vm2543, 1.0, 0.0
  %v2672 = vsel %vm2544, 1.0, 0.0
  %v2673 = vsel %vm2545, 1.0, 0.0
  %v2674 = vsel %vm2546, 1.0, 0.0
  %v2675 = vsel %vm2547, 1.0, 0.0
  %v2676 = vsel %vm2548, 1.0, 0.0
  %2677 = vmatprep.subr.mxu0 %v2292
  %2678 = vmatpush1.msra.mxu0 %v2291
  %2679 = vmatprep.subr.mxu0 %v2294
  %2680 = vmatpush1.msra.mxu0 %v2293
  %2681 = vmatprep.subr.mxu0 %v2296
  %2682 = vmatpush1.msra.mxu0 %v2295
  %2683 = vmatprep.subr.mxu0 %v2298
  %2684 = vmatpush1.msra.mxu0 %v2297
  %2685 = vmatprep.subr.mxu0 %v2300
  %2686 = vmatpush1.msra.mxu0 %v2299
  %2687 = vmatprep.subr.mxu0 %v2302
  %2688 = vmatpush1.msra.mxu0 %v2301
  %2689 = vmatprep.subr.mxu0 %v2304
  %2690 = vmatpush1.msra.mxu0 %v2303
  %2691 = vmatprep.subr.mxu0 %v2306
  %2692 = vmatpush1.msra.mxu0 %v2305
  %2693 = vmatprep.subr.mxu0 %v2308
  %2694 = vmatpush1.msra.mxu0 %v2307
  %2695 = vmatprep.subr.mxu0 %v2310
  %2696 = vmatpush1.msra.mxu0 %v2309
  %2697 = vmatprep.subr.mxu0 %v2312
  %2698 = vmatpush1.msra.mxu0 %v2311
  %2699 = vmatprep.subr.mxu0 %v2314
  %2700 = vmatpush1.msra.mxu0 %v2313
  %2701 = vmatprep.subr.mxu0 %v2316
  %2702 = vmatpush1.msra.mxu0 %v2315
  %2703 = vmatprep.subr.mxu0 %v2318
  %2704 = vmatpush1.msra.mxu0 %v2317
  %2705 = vmatprep.subr.mxu0 %v2320
  %2706 = vmatpush1.msra.mxu0 %v2319
  %2707 = vmatprep.subr.mxu0 %v2322
  %2708 = vmatpush1.msra.mxu0 %v2321
  %2709 = vmatprep.subr.mxu0 %v2324
  %2710 = vmatpush1.msra.mxu0 %v2323
  %2711 = vmatprep.subr.mxu0 %v2326
  %2712 = vmatpush1.msra.mxu0 %v2325
  %2713 = vmatprep.subr.mxu0 %v2328
  %2714 = vmatpush1.msra.mxu0 %v2327
  %2715 = vmatprep.subr.mxu0 %v2330
  %2716 = vmatpush1.msra.mxu0 %v2329
  %2717 = vmatprep.subr.mxu0 %v2332
  %2718 = vmatpush1.msra.mxu0 %v2331
  %2719 = vmatprep.subr.mxu0 %v2334
  %2720 = vmatpush1.msra.mxu0 %v2333
  %2721 = vmatprep.subr.mxu0 %v2336
  %2722 = vmatpush1.msra.mxu0 %v2335
  %2723 = vmatprep.subr.mxu0 %v2338
  %2724 = vmatpush1.msra.mxu0 %v2337
  %2725 = vmatprep.subr.mxu0 %v2340
  %2726 = vmatpush1.msra.mxu0 %v2339
  %2727 = vmatprep.subr.mxu0 %v2342
  %2728 = vmatpush1.msra.mxu0 %v2341
  %2729 = vmatprep.subr.mxu0 %v2344
  %2730 = vmatpush1.msra.mxu0 %v2343
  %2731 = vmatprep.subr.mxu0 %v2346
  %2732 = vmatpush1.msra.mxu0 %v2345
  %2733 = vmatprep.subr.mxu0 %v2348
  %2734 = vmatpush1.msra.mxu0 %v2347
  %2735 = vmatprep.subr.mxu0 %v2350
  %2736 = vmatpush1.msra.mxu0 %v2349
  %2737 = vmatprep.subr.mxu0 %v2352
  %2738 = vmatpush1.msra.mxu0 %v2351
  %2739 = vmatprep.subr.mxu0 %v2354
  %2740 = vmatpush1.msra.mxu0 %v2353
  %2741 = vmatprep.mubr.f32.mxu0 %v2089
  %2742 = vmatmul.mubr.f32.gmra.mrb[0].mxu0 %v2088
  %v2743 = vpop.f32.mrb[0].mxu0
  %v2744 = vadd.f32 0.0, %v2743
  %v2745 = vpop.f32.mrb[0].mxu0
  %v2746 = vadd.f32 0.0, %v2745
  %2747 = vmatprep.mubr.f32.mxu0 %v2093
  %2748 = vmatmul.mubr.f32.gmra.mrb[0].mxu0 %v2092
  %v2749 = vpop.f32.mrb[0].mxu0
  %v2750 = vadd.f32 0.0, %v2749
  %v2751 = vpop.f32.mrb[0].mxu0
  %v2752 = vadd.f32 0.0, %v2751
  %2753 = vdwg.mxu0
  %2754 = vmatprep.subr.mxu0 %v2356
  %2755 = vmatpush1.msra.mxu0 %v2355
  %2756 = vmatprep.subr.mxu0 %v2358
  %2757 = vmatpush1.msra.mxu0 %v2357
  %2758 = vmatprep.subr.mxu0 %v2360
  %2759 = vmatpush1.msra.mxu0 %v2359
  %2760 = vmatprep.subr.mxu0 %v2362
  %2761 = vmatpush1.msra.mxu0 %v2361
  %2762 = vmatprep.subr.mxu0 %v2364
  %2763 = vmatpush1.msra.mxu0 %v2363
  %2764 = vmatprep.subr.mxu0 %v2366
  %2765 = vmatpush1.msra.mxu0 %v2365
  %2766 = vmatprep.subr.mxu0 %v2368
  %2767 = vmatpush1.msra.mxu0 %v2367
  %2768 = vmatprep.subr.mxu0 %v2370
  %2769 = vmatpush1.msra.mxu0 %v2369
  %2770 = vmatprep.subr.mxu0 %v2372
  %2771 = vmatpush1.msra.mxu0 %v2371
  %2772 = vmatprep.subr.mxu0 %v2374
  %2773 = vmatpush1.msra.mxu0 %v2373
  %2774 = vmatprep.subr.mxu0 %v2376
  %2775 = vmatpush1.msra.mxu0 %v2375
  %2776 = vmatprep.subr.mxu0 %v2378
  %2777 = vmatpush1.msra.mxu0 %v2377
  %2778 = vmatprep.subr.mxu0 %v2380
  %2779 = vmatpush1.msra.mxu0 %v2379
  %2780 = vmatprep.subr.mxu0 %v2382
  %2781 = vmatpush1.msra.mxu0 %v2381
  %2782 = vmatprep.subr.mxu0 %v2384
  %2783 = vmatpush1.msra.mxu0 %v2383
  %2784 = vmatprep.subr.mxu0 %v2386
  %2785 = vmatpush1.msra.mxu0 %v2385
  %2786 = vmatprep.subr.mxu0 %v2388
  %2787 = vmatpush1.msra.mxu0 %v2387
  %2788 = vmatprep.subr.mxu0 %v2390
  %2789 = vmatpush1.msra.mxu0 %v2389
  %2790 = vmatprep.subr.mxu0 %v2392
  %2791 = vmatpush1.msra.mxu0 %v2391
  %2792 = vmatprep.subr.mxu0 %v2394
  %2793 = vmatpush1.msra.mxu0 %v2393
  %2794 = vmatprep.subr.mxu0 %v2396
  %2795 = vmatpush1.msra.mxu0 %v2395
  %2796 = vmatprep.subr.mxu0 %v2398
  %2797 = vmatpush1.msra.mxu0 %v2397
  %2798 = vmatprep.subr.mxu0 %v2400
  %2799 = vmatpush1.msra.mxu0 %v2399
  %2800 = vmatprep.subr.mxu0 %v2402
  %2801 = vmatpush1.msra.mxu0 %v2401
  %2802 = vmatprep.subr.mxu0 %v2404
  %2803 = vmatpush1.msra.mxu0 %v2403
  %2804 = vmatprep.subr.mxu0 %v2406
  %2805 = vmatpush1.msra.mxu0 %v2405
  %2806 = vmatprep.subr.mxu0 %v2408
  %2807 = vmatpush1.msra.mxu0 %v2407
  %2808 = vmatprep.subr.mxu0 %v2410
  %2809 = vmatpush1.msra.mxu0 %v2409
  %2810 = vmatprep.subr.mxu0 %v2412
  %2811 = vmatpush1.msra.mxu0 %v2411
  %2812 = vmatprep.subr.mxu0 %v2414
  %2813 = vmatpush1.msra.mxu0 %v2413
  %2814 = vmatprep.subr.mxu0 %v2416
  %2815 = vmatpush1.msra.mxu0 %v2415
  %2816 = vmatprep.subr.mxu0 %v2418
  %2817 = vmatpush1.msra.mxu0 %v2417
  %2818 = vmatprep.mubr.f32.mxu0 %v2091
  %2819 = vmatmul.mubr.f32.gmra.mrb[0].mxu0 %v2090
  %v2820 = vpop.f32.mrb[0].mxu0
  %v2821 = vadd.f32 %v2744, %v2820
  %v2822 = vpop.f32.mrb[0].mxu0
  %v2823 = vadd.f32 %v2746, %v2822
  %2824 = vmatprep.mubr.f32.mxu0 %v2095
  %2825 = vmatmul.mubr.f32.gmra.mrb[0].mxu0 %v2094
  %v2826 = vpop.f32.mrb[0].mxu0
  %v2827 = vadd.f32 %v2750, %v2826
  %v2828 = vpop.f32.mrb[0].mxu0
  %v2829 = vadd.f32 %v2752, %v2828
  %2830 = vdwg.mxu0
  %2831 = vmatprep.subr.mxu0 %v2550
  %2832 = vmatpush1.msra.mxu0 %v2549
  %2833 = vmatprep.subr.mxu0 %v2552
  %2834 = vmatpush1.msra.mxu0 %v2551
  %2835 = vmatprep.subr.mxu0 %v2554
  %2836 = vmatpush1.msra.mxu0 %v2553
  %2837 = vmatprep.subr.mxu0 %v2556
  %2838 = vmatpush1.msra.mxu0 %v2555
  %2839 = vmatprep.subr.mxu0 %v2558
  %2840 = vmatpush1.msra.mxu0 %v2557
  %2841 = vmatprep.subr.mxu0 %v2560
  %2842 = vmatpush1.msra.mxu0 %v2559
  %2843 = vmatprep.subr.mxu0 %v2562
  %2844 = vmatpush1.msra.mxu0 %v2561
  %2845 = vmatprep.subr.mxu0 %v2564
  %2846 = vmatpush1.msra.mxu0 %v2563
  %2847 = vmatprep.subr.mxu0 %v2566
  %2848 = vmatpush1.msra.mxu0 %v2565
  %2849 = vmatprep.subr.mxu0 %v2568
  %2850 = vmatpush1.msra.mxu0 %v2567
  %2851 = vmatprep.subr.mxu0 %v2570
  %2852 = vmatpush1.msra.mxu0 %v2569
  %2853 = vmatprep.subr.mxu0 %v2572
  %2854 = vmatpush1.msra.mxu0 %v2571
  %2855 = vmatprep.subr.mxu0 %v2574
  %2856 = vmatpush1.msra.mxu0 %v2573
  %2857 = vmatprep.subr.mxu0 %v2576
  %2858 = vmatpush1.msra.mxu0 %v2575
  %2859 = vmatprep.subr.mxu0 %v2578
  %2860 = vmatpush1.msra.mxu0 %v2577
  %2861 = vmatprep.subr.mxu0 %v2580
  %2862 = vmatpush1.msra.mxu0 %v2579
  %2863 = vmatprep.subr.mxu0 %v2582
  %2864 = vmatpush1.msra.mxu0 %v2581
  %2865 = vmatprep.subr.mxu0 %v2584
  %2866 = vmatpush1.msra.mxu0 %v2583
  %2867 = vmatprep.subr.mxu0 %v2586
  %2868 = vmatpush1.msra.mxu0 %v2585
  %2869 = vmatprep.subr.mxu0 %v2588
  %2870 = vmatpush1.msra.mxu0 %v2587
  %2871 = vmatprep.subr.mxu0 %v2590
  %2872 = vmatpush1.msra.mxu0 %v2589
  %2873 = vmatprep.subr.mxu0 %v2592
  %2874 = vmatpush1.msra.mxu0 %v2591
  %2875 = vmatprep.subr.mxu0 %v2594
  %2876 = vmatpush1.msra.mxu0 %v2593
  %2877 = vmatprep.subr.mxu0 %v2596
  %2878 = vmatpush1.msra.mxu0 %v2595
  %2879 = vmatprep.subr.mxu0 %v2598
  %2880 = vmatpush1.msra.mxu0 %v2597
  %2881 = vmatprep.subr.mxu0 %v2600
  %2882 = vmatpush1.msra.mxu0 %v2599
  %2883 = vmatprep.subr.mxu0 %v2602
  %2884 = vmatpush1.msra.mxu0 %v2601
  %2885 = vmatprep.subr.mxu0 %v2604
  %2886 = vmatpush1.msra.mxu0 %v2603
  %2887 = vmatprep.subr.mxu0 %v2606
  %2888 = vmatpush1.msra.mxu0 %v2605
  %2889 = vmatprep.subr.mxu0 %v2608
  %2890 = vmatpush1.msra.mxu0 %v2607
  %2891 = vmatprep.subr.mxu0 %v2610
  %2892 = vmatpush1.msra.mxu0 %v2609
  %2893 = vmatprep.subr.mxu0 %v2612
  %2894 = vmatpush1.msra.mxu0 %v2611
  %2895 = vmatprep.mubr.f32.mxu0 %v2089
  %2896 = vmatmul.mubr.f32.gmra.mrb[0].mxu0 %v2088
  %v2897 = vpop.f32.mrb[0].mxu0
  %v2898 = vadd.f32 0.0, %v2897
  %v2899 = vpop.f32.mrb[0].mxu0
  %v2900 = vadd.f32 0.0, %v2899
  %2901 = vmatprep.mubr.f32.mxu0 %v2093
  %2902 = vmatmul.mubr.f32.gmra.mrb[0].mxu0 %v2092
  %v2903 = vpop.f32.mrb[0].mxu0
  %v2904 = vadd.f32 0.0, %v2903
  %v2905 = vpop.f32.mrb[0].mxu0
  %v2906 = vadd.f32 0.0, %v2905
  %2907 = vdwg.mxu0
  %2908 = vmatprep.subr.mxu0 %v2614
  %2909 = vmatpush1.msra.mxu0 %v2613
  %2910 = vmatprep.subr.mxu0 %v2616
  %2911 = vmatpush1.msra.mxu0 %v2615
  %2912 = vmatprep.subr.mxu0 %v2618
  %2913 = vmatpush1.msra.mxu0 %v2617
  %2914 = vmatprep.subr.mxu0 %v2620
  %2915 = vmatpush1.msra.mxu0 %v2619
  %2916 = vmatprep.subr.mxu0 %v2622
  %2917 = vmatpush1.msra.mxu0 %v2621
  %2918 = vmatprep.subr.mxu0 %v2624
  %2919 = vmatpush1.msra.mxu0 %v2623
  %2920 = vmatprep.subr.mxu0 %v2626
  %2921 = vmatpush1.msra.mxu0 %v2625
  %2922 = vmatprep.subr.mxu0 %v2628
  %2923 = vmatpush1.msra.mxu0 %v2627
  %2924 = vmatprep.subr.mxu0 %v2630
  %2925 = vmatpush1.msra.mxu0 %v2629
  %2926 = vmatprep.subr.mxu0 %v2632
  %2927 = vmatpush1.msra.mxu0 %v2631
  %2928 = vmatprep.subr.mxu0 %v2634
  %2929 = vmatpush1.msra.mxu0 %v2633
  %2930 = vmatprep.subr.mxu0 %v2636
  %2931 = vmatpush1.msra.mxu0 %v2635
  %2932 = vmatprep.subr.mxu0 %v2638
  %2933 = vmatpush1.msra.mxu0 %v2637
  %2934 = vmatprep.subr.mxu0 %v2640
  %2935 = vmatpush1.msra.mxu0 %v2639
  %2936 = vmatprep.subr.mxu0 %v2642
  %2937 = vmatpush1.msra.mxu0 %v2641
  %2938 = vmatprep.subr.mxu0 %v2644
  %2939 = vmatpush1.msra.mxu0 %v2643
  %2940 = vmatprep.subr.mxu0 %v2646
  %2941 = vmatpush1.msra.mxu0 %v2645
  %2942 = vmatprep.subr.mxu0 %v2648
  %2943 = vmatpush1.msra.mxu0 %v2647
  %2944 = vmatprep.subr.mxu0 %v2650
  %2945 = vmatpush1.msra.mxu0 %v2649
  %2946 = vmatprep.subr.mxu0 %v2652
  %2947 = vmatpush1.msra.mxu0 %v2651
  %2948 = vmatprep.subr.mxu0 %v2654
  %2949 = vmatpush1.msra.mxu0 %v2653
  %2950 = vmatprep.subr.mxu0 %v2656
  %2951 = vmatpush1.msra.mxu0 %v2655
  %2952 = vmatprep.subr.mxu0 %v2658
  %2953 = vmatpush1.msra.mxu0 %v2657
  %2954 = vmatprep.subr.mxu0 %v2660
  %2955 = vmatpush1.msra.mxu0 %v2659
  %2956 = vmatprep.subr.mxu0 %v2662
  %2957 = vmatpush1.msra.mxu0 %v2661
  %2958 = vmatprep.subr.mxu0 %v2664
  %2959 = vmatpush1.msra.mxu0 %v2663
  %2960 = vmatprep.subr.mxu0 %v2666
  %2961 = vmatpush1.msra.mxu0 %v2665
  %2962 = vmatprep.subr.mxu0 %v2668
  %2963 = vmatpush1.msra.mxu0 %v2667
  %2964 = vmatprep.subr.mxu0 %v2670
  %2965 = vmatpush1.msra.mxu0 %v2669
  %2966 = vmatprep.subr.mxu0 %v2672
  %2967 = vmatpush1.msra.mxu0 %v2671
  %2968 = vmatprep.subr.mxu0 %v2674
  %2969 = vmatpush1.msra.mxu0 %v2673
  %2970 = vmatprep.subr.mxu0 %v2676
  %2971 = vmatpush1.msra.mxu0 %v2675
  %2972 = vmatprep.mubr.f32.mxu0 %v2091
  %2973 = vmatmul.mubr.f32.gmra.mrb[0].mxu0 %v2090
  %v2974 = vpop.f32.mrb[0].mxu0
  %v2975 = vadd.f32 %v2898, %v2974
  %v2976 = vpop.f32.mrb[0].mxu0
  %v2977 = vadd.f32 %v2900, %v2976
  %2978 = vmatprep.mubr.f32.mxu0 %v2095
  %2979 = vmatmul.mubr.f32.gmra.mrb[0].mxu0 %v2094
  %v2980 = vpop.f32.mrb[0].mxu0
  %v2981 = vadd.f32 %v2904, %v2980
  %v2982 = vpop.f32.mrb[0].mxu0
  %v2983 = vadd.f32 %v2906, %v2982
  %2984 = vdwg.mxu0
  %v2985 = vmax.f32 %v2821, %v2975
  %v2986 = vmax.f32 %v2823, %v2977
  %v2987 = vmax.f32 %v2827, %v2981
  %v2988 = vmax.f32 %v2829, %v2983
  %v2989 = vand.u32 %v21, 31
  %v2990 = vand.u32 %v22, 31
  %v2991 = vand.u32 %v23, 31
  %v2992 = vand.u32 %v24, 31
  %v2993 = vand.u32 %v2096, 31
  %v2994 = vand.u32 %v2097, 31
  %v2995 = vand.u32 %v2098, 31
  %v2996 = vand.u32 %v2099, 31
  %v2997 = vand.u32 %v2100, 31
  %v2998 = vand.u32 %v2101, 31
  %v2999 = vand.u32 %v2102, 31
  %v3000 = vand.u32 %v2103, 31
  %v3001 = vand.u32 %v2104, 31
  %v3002 = vand.u32 %v2105, 31
  %v3003 = vand.u32 %v2106, 31
  %v3004 = vand.u32 %v2107, 31
  %v3005 = vand.u32 %v2108, 31
  %v3006 = vand.u32 %v2109, 31
  %v3007 = vand.u32 %v2110, 31
  %v3008 = vand.u32 %v2111, 31
  %v3009 = vand.u32 %v2112, 31
  %v3010 = vand.u32 %v2113, 31
  %v3011 = vand.u32 %v2114, 31
  %v3012 = vand.u32 %v2115, 31
  %v3013 = vand.u32 %v2116, 31
  %v3014 = vand.u32 %v2117, 31
  %v3015 = vand.u32 %v2118, 31
  %v3016 = vand.u32 %v2119, 31
  %v3017 = vand.u32 %v2120, 31
  %v3018 = vand.u32 %v2121, 31
  %v3019 = vand.u32 %v2122, 31
  %v3020 = vand.u32 %v2123, 31
  %vm3021 = vcmp.eq.s32.totalorder %v2989, %v1754
  %vm3022 = vcmp.eq.s32.totalorder %v2990, %v1754
  %vm3023 = vcmp.eq.s32.totalorder %v2991, %v1754
  %vm3024 = vcmp.eq.s32.totalorder %v2992, %v1754
  %vm3025 = vcmp.eq.s32.totalorder %v2993, %v1754
  %vm3026 = vcmp.eq.s32.totalorder %v2994, %v1754
  %vm3027 = vcmp.eq.s32.totalorder %v2995, %v1754
  %vm3028 = vcmp.eq.s32.totalorder %v2996, %v1754
  %vm3029 = vcmp.eq.s32.totalorder %v2997, %v1754
  %vm3030 = vcmp.eq.s32.totalorder %v2998, %v1754
  %vm3031 = vcmp.eq.s32.totalorder %v2999, %v1754
  %vm3032 = vcmp.eq.s32.totalorder %v3000, %v1754
  %vm3033 = vcmp.eq.s32.totalorder %v3001, %v1754
  %vm3034 = vcmp.eq.s32.totalorder %v3002, %v1754
  %vm3035 = vcmp.eq.s32.totalorder %v3003, %v1754
  %vm3036 = vcmp.eq.s32.totalorder %v3004, %v1754
  %vm3037 = vcmp.eq.s32.totalorder %v3005, %v1754
  %vm3038 = vcmp.eq.s32.totalorder %v3006, %v1754
  %vm3039 = vcmp.eq.s32.totalorder %v3007, %v1754
  %vm3040 = vcmp.eq.s32.totalorder %v3008, %v1754
  %vm3041 = vcmp.eq.s32.totalorder %v3009, %v1754
  %vm3042 = vcmp.eq.s32.totalorder %v3010, %v1754
  %vm3043 = vcmp.eq.s32.totalorder %v3011, %v1754
  %vm3044 = vcmp.eq.s32.totalorder %v3012, %v1754
  %vm3045 = vcmp.eq.s32.totalorder %v3013, %v1754
  %vm3046 = vcmp.eq.s32.totalorder %v3014, %v1754
  %vm3047 = vcmp.eq.s32.totalorder %v3015, %v1754
  %vm3048 = vcmp.eq.s32.totalorder %v3016, %v1754
  %vm3049 = vcmp.eq.s32.totalorder %v3017, %v1754
  %vm3050 = vcmp.eq.s32.totalorder %v3018, %v1754
  %vm3051 = vcmp.eq.s32.totalorder %v3019, %v1754
  %vm3052 = vcmp.eq.s32.totalorder %v3020, %v1754
  %v3053 = vsel %vm3021, 1.0, 0.0
  %v3054 = vsel %vm3022, 1.0, 0.0
  %v3055 = vsel %vm3023, 1.0, 0.0
  %v3056 = vsel %vm3024, 1.0, 0.0
  %v3057 = vsel %vm3025, 1.0, 0.0
  %v3058 = vsel %vm3026, 1.0, 0.0
  %v3059 = vsel %vm3027, 1.0, 0.0
  %v3060 = vsel %vm3028, 1.0, 0.0
  %v3061 = vsel %vm3029, 1.0, 0.0
  %v3062 = vsel %vm3030, 1.0, 0.0
  %v3063 = vsel %vm3031, 1.0, 0.0
  %v3064 = vsel %vm3032, 1.0, 0.0
  %v3065 = vsel %vm3033, 1.0, 0.0
  %v3066 = vsel %vm3034, 1.0, 0.0
  %v3067 = vsel %vm3035, 1.0, 0.0
  %v3068 = vsel %vm3036, 1.0, 0.0
  %v3069 = vsel %vm3037, 1.0, 0.0
  %v3070 = vsel %vm3038, 1.0, 0.0
  %v3071 = vsel %vm3039, 1.0, 0.0
  %v3072 = vsel %vm3040, 1.0, 0.0
  %v3073 = vsel %vm3041, 1.0, 0.0
  %v3074 = vsel %vm3042, 1.0, 0.0
  %v3075 = vsel %vm3043, 1.0, 0.0
  %v3076 = vsel %vm3044, 1.0, 0.0
  %v3077 = vsel %vm3045, 1.0, 0.0
  %v3078 = vsel %vm3046, 1.0, 0.0
  %v3079 = vsel %vm3047, 1.0, 0.0
  %v3080 = vsel %vm3048, 1.0, 0.0
  %v3081 = vsel %vm3049, 1.0, 0.0
  %v3082 = vsel %vm3050, 1.0, 0.0
  %v3083 = vsel %vm3051, 1.0, 0.0
  %v3084 = vsel %vm3052, 1.0, 0.0
  %v3085 = vadd.f32 %v2985, %v2987
  %v3086 = vrot.slane %v3085, 4
  %v3087 = vadd.f32 %v3085, %v3086
  %v3088 = vrot.slane %v3087, 2
  %v3089 = vadd.f32 %v3087, %v3088
  %v3090 = vrot.slane %v3089, 1
  %v3091 = vadd.f32 %v3089, %v3090
  %v3092 = vadd.f32 %v2986, %v2988
  %v3093 = vrot.slane %v3092, 4
  %v3094 = vadd.f32 %v3092, %v3093
  %v3095 = vrot.slane %v3094, 2
  %v3096 = vadd.f32 %v3094, %v3095
  %v3097 = vrot.slane %v3096, 1
  %v3098 = vadd.f32 %v3096, %v3097
  %3099 = vmatprep.subr.mxu0 0.0
  %3100 = vmatpush1.msra.mxu0 %v3053
  %3101 = vmatprep.subr.mxu0 0.0
  %3102 = vmatpush1.msra.mxu0 %v3054
  %3103 = vmatprep.subr.mxu0 0.0
  %3104 = vmatpush1.msra.mxu0 %v3055
  %3105 = vmatprep.subr.mxu0 0.0
  %3106 = vmatpush1.msra.mxu0 %v3056
  %3107 = vmatprep.subr.mxu0 0.0
  %3108 = vmatpush1.msra.mxu0 %v3057
  %3109 = vmatprep.subr.mxu0 0.0
  %3110 = vmatpush1.msra.mxu0 %v3058
  %3111 = vmatprep.subr.mxu0 0.0
  %3112 = vmatpush1.msra.mxu0 %v3059
  %3113 = vmatprep.subr.mxu0 0.0
  %3114 = vmatpush1.msra.mxu0 %v3060
  %3115 = vmatprep.subr.mxu0 0.0
  %3116 = vmatpush1.msra.mxu0 %v3061
  %3117 = vmatprep.subr.mxu0 0.0
  %3118 = vmatpush1.msra.mxu0 %v3062
  %3119 = vmatprep.subr.mxu0 0.0
  %3120 = vmatpush1.msra.mxu0 %v3063
  %3121 = vmatprep.subr.mxu0 0.0
  %3122 = vmatpush1.msra.mxu0 %v3064
  %3123 = vmatprep.subr.mxu0 0.0
  %3124 = vmatpush1.msra.mxu0 %v3065
  %3125 = vmatprep.subr.mxu0 0.0
  %3126 = vmatpush1.msra.mxu0 %v3066
  %3127 = vmatprep.subr.mxu0 0.0
  %3128 = vmatpush1.msra.mxu0 %v3067
  %3129 = vmatprep.subr.mxu0 0.0
  %3130 = vmatpush1.msra.mxu0 %v3068
  %3131 = vmatprep.subr.mxu0 0.0
  %3132 = vmatpush1.msra.mxu0 %v3069
  %3133 = vmatprep.subr.mxu0 0.0
  %3134 = vmatpush1.msra.mxu0 %v3070
  %3135 = vmatprep.subr.mxu0 0.0
  %3136 = vmatpush1.msra.mxu0 %v3071
  %3137 = vmatprep.subr.mxu0 0.0
  %3138 = vmatpush1.msra.mxu0 %v3072
  %3139 = vmatprep.subr.mxu0 0.0
  %3140 = vmatpush1.msra.mxu0 %v3073
  %3141 = vmatprep.subr.mxu0 0.0
  %3142 = vmatpush1.msra.mxu0 %v3074
  %3143 = vmatprep.subr.mxu0 0.0
  %3144 = vmatpush1.msra.mxu0 %v3075
  %3145 = vmatprep.subr.mxu0 0.0
  %3146 = vmatpush1.msra.mxu0 %v3076
  %3147 = vmatprep.subr.mxu0 0.0
  %3148 = vmatpush1.msra.mxu0 %v3077
  %3149 = vmatprep.subr.mxu0 0.0
  %3150 = vmatpush1.msra.mxu0 %v3078
  %3151 = vmatprep.subr.mxu0 0.0
  %3152 = vmatpush1.msra.mxu0 %v3079
  %3153 = vmatprep.subr.mxu0 0.0
  %3154 = vmatpush1.msra.mxu0 %v3080
  %3155 = vmatprep.subr.mxu0 0.0
  %3156 = vmatpush1.msra.mxu0 %v3081
  %3157 = vmatprep.subr.mxu0 0.0
  %3158 = vmatpush1.msra.mxu0 %v3082
  %3159 = vmatprep.subr.mxu0 0.0
  %3160 = vmatpush1.msra.mxu0 %v3083
  %3161 = vmatprep.subr.mxu0 0.0
  %3162 = vmatpush1.msra.mxu0 %v3084
  %3163 = vmatprep.mubr.f32.mxu0 %v3098
  %3164 = vmatmul.mubr.f32.gmra.mrb[0].mxu0 %v3091
  %v3165 = vpop.f32.mrb[0].mxu0
  %v3166 = vadd.f32 0.0, %v3165
  %v3167 = vpop.f32.mrb[0].mxu0
  %3168 = vdwg.mxu0
  %v3169 = vmul.f32 %v2985, %v2985
  %v3170 = vmul.f32 %v2986, %v2986
  %v3171 = vmul.f32 %v2987, %v2987
  %v3172 = vmul.f32 %v2988, %v2988
  %v3173 = vadd.f32 %v3169, %v3171
  %v3174 = vrot.slane %v3173, 4
  %v3175 = vadd.f32 %v3173, %v3174
  %v3176 = vrot.slane %v3175, 2
  %v3177 = vadd.f32 %v3175, %v3176
  %v3178 = vrot.slane %v3177, 1
  %v3179 = vadd.f32 %v3177, %v3178
  %v3180 = vadd.f32 %v3170, %v3172
  %v3181 = vrot.slane %v3180, 4
  %v3182 = vadd.f32 %v3180, %v3181
  %v3183 = vrot.slane %v3182, 2
  %v3184 = vadd.f32 %v3182, %v3183
  %v3185 = vrot.slane %v3184, 1
  %v3186 = vadd.f32 %v3184, %v3185
  %3187 = vmatprep.subr.mxu0 0.0
  %3188 = vmatpush1.msra.mxu0 %v3053
  %3189 = vmatprep.subr.mxu0 0.0
  %3190 = vmatpush1.msra.mxu0 %v3054
  %3191 = vmatprep.subr.mxu0 0.0
  %3192 = vmatpush1.msra.mxu0 %v3055
  %3193 = vmatprep.subr.mxu0 0.0
  %3194 = vmatpush1.msra.mxu0 %v3056
  %3195 = vmatprep.subr.mxu0 0.0
  %3196 = vmatpush1.msra.mxu0 %v3057
  %3197 = vmatprep.subr.mxu0 0.0
  %3198 = vmatpush1.msra.mxu0 %v3058
  %3199 = vmatprep.subr.mxu0 0.0
  %3200 = vmatpush1.msra.mxu0 %v3059
  %3201 = vmatprep.subr.mxu0 0.0
  %3202 = vmatpush1.msra.mxu0 %v3060
  %3203 = vmatprep.subr.mxu0 0.0
  %3204 = vmatpush1.msra.mxu0 %v3061
  %3205 = vmatprep.subr.mxu0 0.0
  %3206 = vmatpush1.msra.mxu0 %v3062
  %3207 = vmatprep.subr.mxu0 0.0
  %3208 = vmatpush1.msra.mxu0 %v3063
  %3209 = vmatprep.subr.mxu0 0.0
  %3210 = vmatpush1.msra.mxu0 %v3064
  %3211 = vmatprep.subr.mxu0 0.0
  %3212 = vmatpush1.msra.mxu0 %v3065
  %3213 = vmatprep.subr.mxu0 0.0
  %3214 = vmatpush1.msra.mxu0 %v3066
  %3215 = vmatprep.subr.mxu0 0.0
  %3216 = vmatpush1.msra.mxu0 %v3067
  %3217 = vmatprep.subr.mxu0 0.0
  %3218 = vmatpush1.msra.mxu0 %v3068
  %3219 = vmatprep.subr.mxu0 0.0
  %3220 = vmatpush1.msra.mxu0 %v3069
  %3221 = vmatprep.subr.mxu0 0.0
  %3222 = vmatpush1.msra.mxu0 %v3070
  %3223 = vmatprep.subr.mxu0 0.0
  %3224 = vmatpush1.msra.mxu0 %v3071
  %3225 = vmatprep.subr.mxu0 0.0
  %3226 = vmatpush1.msra.mxu0 %v3072
  %3227 = vmatprep.subr.mxu0 0.0
  %3228 = vmatpush1.msra.mxu0 %v3073
  %3229 = vmatprep.subr.mxu0 0.0
  %3230 = vmatpush1.msra.mxu0 %v3074
  %3231 = vmatprep.subr.mxu0 0.0
  %3232 = vmatpush1.msra.mxu0 %v3075
  %3233 = vmatprep.subr.mxu0 0.0
  %3234 = vmatpush1.msra.mxu0 %v3076
  %3235 = vmatprep.subr.mxu0 0.0
  %3236 = vmatpush1.msra.mxu0 %v3077
  %3237 = vmatprep.subr.mxu0 0.0
  %3238 = vmatpush1.msra.mxu0 %v3078
  %3239 = vmatprep.subr.mxu0 0.0
  %3240 = vmatpush1.msra.mxu0 %v3079
  %3241 = vmatprep.subr.mxu0 0.0
  %3242 = vmatpush1.msra.mxu0 %v3080
  %3243 = vmatprep.subr.mxu0 0.0
  %3244 = vmatpush1.msra.mxu0 %v3081
  %3245 = vmatprep.subr.mxu0 0.0
  %3246 = vmatpush1.msra.mxu0 %v3082
  %3247 = vmatprep.subr.mxu0 0.0
  %3248 = vmatpush1.msra.mxu0 %v3083
  %3249 = vmatprep.subr.mxu0 0.0
  %3250 = vmatpush1.msra.mxu0 %v3084
  %3251 = vmatprep.mubr.f32.mxu0 %v3186
  %3252 = vmatmul.mubr.f32.gmra.mrb[0].mxu0 %v3179
  %v3253 = vpop.f32.mrb[0].mxu0
  %v3254 = vadd.f32 0.0, %v3253
  %v3255 = vpop.f32.mrb[0].mxu0
  %3256 = vdwg.mxu0
  %v3257 = vrcp.pop 128.0
  %v3258 = vmul.f32 %v3166, %v3257
  %v3259 = vmul.f32 %v3254, %v3257
  %v3260 = vmul.f32 %v3258, %v3258
  %v3261 = vsub.f32 %v3259, %v3260
  %v3262 = vadd.f32 %v3261, 1e-05
  %v3263 = vrsqrt.pop %v3262
  %v3264 = vld [vmem:[%s3] sm:$0x1]
  %v3265 = vmul.f32 %v3264, %v3263
  %v3266 = vld [vmem:[%s4] sm:$0x1]
  %v3267 = vmul.f32 %v3258, %v3265
  %v3268 = vsub.f32 %v3266, %v3267
  %vm3269 = vcmp.eq.s32.totalorder %v21, %v2159
  %vm3270 = vcmp.eq.s32.totalorder %v21, %v2160
  %vm3271 = vcmp.eq.s32.totalorder %v22, %v2159
  %vm3272 = vcmp.eq.s32.totalorder %v22, %v2160
  %vm3273 = vcmp.eq.s32.totalorder %v23, %v2159
  %vm3274 = vcmp.eq.s32.totalorder %v23, %v2160
  %vm3275 = vcmp.eq.s32.totalorder %v24, %v2159
  %vm3276 = vcmp.eq.s32.totalorder %v24, %v2160
  %v3277 = vsel %vm3269, 1.0, 0.0
  %v3278 = vsel %vm3270, 1.0, 0.0
  %v3279 = vsel %vm3271, 1.0, 0.0
  %v3280 = vsel %vm3272, 1.0, 0.0
  %v3281 = vsel %vm3273, 1.0, 0.0
  %v3282 = vsel %vm3274, 1.0, 0.0
  %v3283 = vsel %vm3275, 1.0, 0.0
  %v3284 = vsel %vm3276, 1.0, 0.0
  %v3286 = vsel %vm1767, %v3265, 0
  %3288 = vmatprep.subr.mxu0 %v3278
  %3289 = vmatpush1.msra.mxu0 %v3277
  %3290 = vmatprep.subr.mxu0 %v3280
  %3291 = vmatpush1.msra.mxu0 %v3279
  %3292 = vmatprep.subr.mxu0 %v3282
  %3293 = vmatpush1.msra.mxu0 %v3281
  %3294 = vmatprep.subr.mxu0 %v3284
  %3295 = vmatpush1.msra.mxu0 %v3283
  %3296 = vmatprep.subr.mxu0 0.0
  %3297 = vmatpush1.msra.mxu0 0.0
  %3298 = vmatprep.subr.mxu0 0.0
  %3299 = vmatpush1.msra.mxu0 0.0
  %3300 = vmatprep.subr.mxu0 0.0
  %3301 = vmatpush1.msra.mxu0 0.0
  %3302 = vmatprep.subr.mxu0 0.0
  %3303 = vmatpush1.msra.mxu0 0.0
  %3304 = vmatprep.subr.mxu0 0.0
  %3305 = vmatpush1.msra.mxu0 0.0
  %3306 = vmatprep.subr.mxu0 0.0
  %3307 = vmatpush1.msra.mxu0 0.0
  %3308 = vmatprep.subr.mxu0 0.0
  %3309 = vmatpush1.msra.mxu0 0.0
  %3310 = vmatprep.subr.mxu0 0.0
  %3311 = vmatpush1.msra.mxu0 0.0
  %3312 = vmatprep.subr.mxu0 0.0
  %3313 = vmatpush1.msra.mxu0 0.0
  %3314 = vmatprep.subr.mxu0 0.0
  %3315 = vmatpush1.msra.mxu0 0.0
  %3316 = vmatprep.subr.mxu0 0.0
  %3317 = vmatpush1.msra.mxu0 0.0
  %3318 = vmatprep.subr.mxu0 0.0
  %3319 = vmatpush1.msra.mxu0 0.0
  %3320 = vmatprep.subr.mxu0 0.0
  %3321 = vmatpush1.msra.mxu0 0.0
  %3322 = vmatprep.subr.mxu0 0.0
  %3323 = vmatpush1.msra.mxu0 0.0
  %3324 = vmatprep.subr.mxu0 0.0
  %3325 = vmatpush1.msra.mxu0 0.0
  %3326 = vmatprep.subr.mxu0 0.0
  %3327 = vmatpush1.msra.mxu0 0.0
  %3328 = vmatprep.subr.mxu0 0.0
  %3329 = vmatpush1.msra.mxu0 0.0
  %3330 = vmatprep.subr.mxu0 0.0
  %3331 = vmatpush1.msra.mxu0 0.0
  %3332 = vmatprep.subr.mxu0 0.0
  %3333 = vmatpush1.msra.mxu0 0.0
  %3334 = vmatprep.subr.mxu0 0.0
  %3335 = vmatpush1.msra.mxu0 0.0
  %3336 = vmatprep.subr.mxu0 0.0
  %3337 = vmatpush1.msra.mxu0 0.0
  %3338 = vmatprep.subr.mxu0 0.0
  %3339 = vmatpush1.msra.mxu0 0.0
  %3340 = vmatprep.subr.mxu0 0.0
  %3341 = vmatpush1.msra.mxu0 0.0
  %3342 = vmatprep.subr.mxu0 0.0
  %3343 = vmatpush1.msra.mxu0 0.0
  %3344 = vmatprep.subr.mxu0 0.0
  %3345 = vmatpush1.msra.mxu0 0.0
  %3346 = vmatprep.subr.mxu0 0.0
  %3347 = vmatpush1.msra.mxu0 0.0
  %3348 = vmatprep.subr.mxu0 0.0
  %3349 = vmatpush1.msra.mxu0 0.0
  %3350 = vmatprep.subr.mxu0 0.0
  %3351 = vmatpush1.msra.mxu0 0.0
  %3352 = vmatprep.mubr.f32.mxu0 0.0
  %3353 = vmatmul.mubr.f32.gmra.mrb[0].mxu0 %v3286
  %v3354 = vpop.f32.mrb[0].mxu0
  %v3355 = vadd.f32 0.0, %v3354
  %v3356 = vpop.f32.mrb[0].mxu0
  %v3357 = vadd.f32 0.0, %v3356
  %3358 = vdwg.mxu0
  %v3360 = vsel %vm1767, %v3268, 0
  %3362 = vmatprep.subr.mxu0 %v3278
  %3363 = vmatpush1.msra.mxu0 %v3277
  %3364 = vmatprep.subr.mxu0 %v3280
  %3365 = vmatpush1.msra.mxu0 %v3279
  %3366 = vmatprep.subr.mxu0 %v3282
  %3367 = vmatpush1.msra.mxu0 %v3281
  %3368 = vmatprep.subr.mxu0 %v3284
  %3369 = vmatpush1.msra.mxu0 %v3283
  %3370 = vmatprep.subr.mxu0 0.0
  %3371 = vmatpush1.msra.mxu0 0.0
  %3372 = vmatprep.subr.mxu0 0.0
  %3373 = vmatpush1.msra.mxu0 0.0
  %3374 = vmatprep.subr.mxu0 0.0
  %3375 = vmatpush1.msra.mxu0 0.0
  %3376 = vmatprep.subr.mxu0 0.0
  %3377 = vmatpush1.msra.mxu0 0.0
  %3378 = vmatprep.subr.mxu0 0.0
  %3379 = vmatpush1.msra.mxu0 0.0
  %3380 = vmatprep.subr.mxu0 0.0
  %3381 = vmatpush1.msra.mxu0 0.0
  %3382 = vmatprep.subr.mxu0 0.0
  %3383 = vmatpush1.msra.mxu0 0.0
  %3384 = vmatprep.subr.mxu0 0.0
  %3385 = vmatpush1.msra.mxu0 0.0
  %3386 = vmatprep.subr.mxu0 0.0
  %3387 = vmatpush1.msra.mxu0 0.0
  %3388 = vmatprep.subr.mxu0 0.0
  %3389 = vmatpush1.msra.mxu0 0.0
  %3390 = vmatprep.subr.mxu0 0.0
  %3391 = vmatpush1.msra.mxu0 0.0
  %3392 = vmatprep.subr.mxu0 0.0
  %3393 = vmatpush1.msra.mxu0 0.0
  %3394 = vmatprep.subr.mxu0 0.0
  %3395 = vmatpush1.msra.mxu0 0.0
  %3396 = vmatprep.subr.mxu0 0.0
  %3397 = vmatpush1.msra.mxu0 0.0
  %3398 = vmatprep.subr.mxu0 0.0
  %3399 = vmatpush1.msra.mxu0 0.0
  %3400 = vmatprep.subr.mxu0 0.0
  %3401 = vmatpush1.msra.mxu0 0.0
  %3402 = vmatprep.subr.mxu0 0.0
  %3403 = vmatpush1.msra.mxu0 0.0
  %3404 = vmatprep.subr.mxu0 0.0
  %3405 = vmatpush1.msra.mxu0 0.0
  %3406 = vmatprep.subr.mxu0 0.0
  %3407 = vmatpush1.msra.mxu0 0.0
  %3408 = vmatprep.subr.mxu0 0.0
  %3409 = vmatpush1.msra.mxu0 0.0
  %3410 = vmatprep.subr.mxu0 0.0
  %3411 = vmatpush1.msra.mxu0 0.0
  %3412 = vmatprep.subr.mxu0 0.0
  %3413 = vmatpush1.msra.mxu0 0.0
  %3414 = vmatprep.subr.mxu0 0.0
  %3415 = vmatpush1.msra.mxu0 0.0
  %3416 = vmatprep.subr.mxu0 0.0
  %3417 = vmatpush1.msra.mxu0 0.0
  %3418 = vmatprep.subr.mxu0 0.0
  %3419 = vmatpush1.msra.mxu0 0.0
  %3420 = vmatprep.subr.mxu0 0.0
  %3421 = vmatpush1.msra.mxu0 0.0
  %3422 = vmatprep.subr.mxu0 0.0
  %3423 = vmatpush1.msra.mxu0 0.0
  %3424 = vmatprep.subr.mxu0 0.0
  %3425 = vmatpush1.msra.mxu0 0.0
  %3426 = vmatprep.mubr.f32.mxu0 0.0
  %3427 = vmatmul.mubr.f32.gmra.mrb[0].mxu0 %v3360
  %v3428 = vpop.f32.mrb[0].mxu0
  %v3429 = vadd.f32 0.0, %v3428
  %v3430 = vpop.f32.mrb[0].mxu0
  %v3431 = vadd.f32 0.0, %v3430
  %3432 = vdwg.mxu0
  %v3433 = vlaneseq
  %v3434 = vshrl.u32 %v3433, 7
  %v3435 = vsub.s32 0, %v3434
  %v3436 = vrot.slane %v3355, %v3435
  %v3437 = vlaneseq
  %v3438 = vshrl.u32 %v3437, 7
  %v3439 = vsub.s32 0, %v3438
  %v3440 = vrot.slane %v3357, %v3439
  %v3441 = vmul.f32 %v2985, %v3436
  %v3442 = vmul.f32 %v2986, %v3440
  %v3443 = vmul.f32 %v2987, %v3436
  %v3444 = vmul.f32 %v2988, %v3440
  %v3445 = vlaneseq
  %v3446 = vshrl.u32 %v3445, 7
  %v3447 = vsub.s32 0, %v3446
  %v3448 = vrot.slane %v3429, %v3447
  %v3449 = vlaneseq
  %v3450 = vshrl.u32 %v3449, 7
  %v3451 = vsub.s32 0, %v3450
  %v3452 = vrot.slane %v3431, %v3451
  %v3453 = vadd.f32 %v3441, %v3448
  %v3454 = vadd.f32 %v3442, %v3452
  %v3455 = vadd.f32 %v3443, %v3448
  %v3456 = vadd.f32 %v3444, %v3452
  %v3457 = vlaneseq
  %vm3458 = vcmp.ge.s32.totalorder %v3457, 0
  %vm3459 = vcmp.lt.s32.totalorder %v3457, 256
  %vm3460 = vmand %vm3458, %vm3459
  %3461 = vst.msk [vmem:[%s5] ss:$8 sm:$0x3] %vm3460, 0.0
  %3462 = vst.msk [vmem:[%s5] ss:$8 sm:$0x0] %vm3460, 0.0
  %vm3467 = vcmask 1040384
  %v3468 = vrot.slane %v3453, 7
  %v3469 = vrot.slane %v3454, 7
  %v3470 = vrot.slane %v3455, 7
  %v3471 = vsel %vm3467, %v3468, %v3470
  %v3472 = vrot.slane %v3456, 7
  %v3473 = vsel %vm3467, %v3469, %v3472
  %3480 = vst [vmem:[%s5] sm:$0xfe] %v3468
  %3481 = vst [vmem:[%s5 + $0x8] sm:$0xfe] %v3469
  %3482 = vst [vmem:[%s5 + $0x10] sm:$0xff] %v3471
  %3483 = vst [vmem:[%s5 + $0x18] sm:$0xff] %v3473
  %3484 = vst [vmem:[%s5 + $0x20] sm:$0x1] %v3470
  %3485 = vst [vmem:[%s5 + $0x28] sm:$0x1] %v3472
  %s3486 = scalar_lea.vmem %s5, 33
  %3487 = vst.msk [vmem:[%s3486] ss:$8 sm:$0x3] %vm3460, 0.0
  %3488 = vst.msk [vmem:[%s3486] ss:$8 sm:$0x0] %vm3460, 0.0
  // Predicated region
  $region22: #{lenet_forward.5} parent=0 // pred_check
    _
  $region23: #{lenet_forward.5} parent=0 // pred_check_branch
    %3490 = sbr.rel (0) target = $region25
  $region24: #{lenet_forward.5} parent=0 // pred_region
    _
  $region25: #{lenet_forward.5} parent=0 // pred_fallthru
    _
  // Predicated region
  $region26: #{lenet_forward.5} parent=0 // pred_check
    _
  $region27: #{lenet_forward.5} parent=0 // pred_check_branch
    %3492 = sbr.rel (0) target = $region29
  $region28: #{lenet_forward.5} parent=0 // pred_region
    _
  $region29: #{lenet_forward.5} parent=0 // pred_fallthru
    _

</llo_original>
